<compile_context>
chip_gen: v7x
topology: tpu7x:2x2x1
jax: 0.10.0
libtpu: 0.0.40
codegen_flags: <defaults>
</compile_context>

<pallas_src>
import jax
import jax.numpy as jnp
from jax import lax
from jax.experimental import pallas as pl
from jax.experimental.pallas import tpu as pltpu

BN_EPS = 1e-5
LN_EPS = 1e-5
L2_EPS = 1e-12

# ---- static geometry implied by the module (Linear(15360, 6) <- (N,1,128,9)) ----
N = 2
H0, W0 = 128, 9
KH, SH = 6, 3
C1, C2, C3 = 64, 128, 256
K1 = 8                                  # layer-1 contraction, 6 taps zero-padded to 8


def _conv_h(h):                         # pad 1, kernel 6, stride 3
    return (h + 2 - KH) // SH + 1


H1, W1 = _conv_h(H0), W0 + 2            # 42, 11
H2, W2 = _conv_h(H1), W1 + 2            # 13, 13
H3, W3 = _conv_h(H2), W2 + 2            # 4, 15
F_FC = C3 * H3 * W3                     # 15360

WPAD = 16                               # shared width frame (sublane friendly)
XOFF = 3                                # input occupies cols [3, 3+W0)
V1_LO, V1_HI = 2, 12                    # layer-1 valid output cols (11)
V2_LO, V2_HI = 1, 13                    # layer-2 valid output cols (13)
V3_LO, V3_HI = 0, 14                    # layer-3 valid output cols (15)


def _r3(n):                             # round up to a multiple of 3 (tap blocking)
    return ((n + 2) // 3) * 3


HP2, HP3 = _r3(H1 + 2), _r3(H2 + 2)     # 45, 15


# ---------------------------------------------------------------------------
# Fused Pallas kernel
# ---------------------------------------------------------------------------
def _sum_keep(x, axes):
    for a in axes:
        x = jnp.sum(x, axis=a, keepdims=True)
    return x


def _bn_relu_mask(y, mask, count, g, bt):
    """Training-mode BatchNorm (stats over the masked/valid columns) + ReLU,
    returning the full-width map with invalid columns forced to zero."""
    ym = y * mask
    s1 = _sum_keep(ym, (0, 1, 2))
    s2 = _sum_keep(ym * ym, (0, 1, 2))
    mean = s1 / count
    var = jnp.maximum(s2 / count - mean * mean, 0.0)
    scale = lax.rsqrt(var + BN_EPS) * g
    shift = bt - mean * scale
    return jnp.maximum(y * scale + shift, 0.0) * mask


def _tap_concat(act_ref, h_out, c_in):
    """Build the (N*h_out*WPAD, KH*c_in) tap-major conv operand (bf16) from a
    zero-row-padded activation scratch, via 6 static slabs + lane concat."""
    hp = act_ref.shape[1]
    a = act_ref[...]                                           # bf16
    ab = a.reshape(N, hp // 3, 3, WPAD, c_in)
    slabs = []
    for k in range(KH):
        q, r = divmod(k, 3)
        slabs.append(ab[:, q:q + h_out, r, :, :])              # (N, h_out, WPAD, c_in)
    cat = jnp.concatenate(slabs, axis=-1)                      # (N, h_out, WPAD, KH*c_in)
    return cat.reshape(N * h_out * WPAD, KH * c_in)


def _net_sc_kernel(xim_ref, w1_ref, pk1_ref, w2_ref, pk2_ref, pk3_ref,
                   w3_hbm, wfc_hbm,
                   o_ref,
                   a2_ref, a3_ref, w3_vmem, wfc_vmem, dma_sem):
    f32, bf16 = jnp.float32, jnp.bfloat16

    # Kick off the late-weight DMAs so they overlap layers 1-2.
    w3_cp = pltpu.make_async_copy(w3_hbm, w3_vmem, dma_sem.at[0])
    wfc_cp = pltpu.make_async_copy(wfc_hbm, wfc_vmem, dma_sem.at[1])
    w3_cp.start()
    wfc_cp.start()

    # 0/1 column masks in the shared 16-wide frame (conv width padding).
    wcol = lax.broadcasted_iota(jnp.int32, (WPAD, 1), 0)
    mask1 = ((wcol >= V1_LO) & (wcol <= V1_HI)).astype(f32)
    mask2 = ((wcol >= V2_LO) & (wcol <= V2_HI)).astype(f32)
    mask3 = (wcol <= V3_HI).astype(f32)

    # ---- layer 1: Conv(1->64,(6,1),s3,p1) as one (1344, 8) x (8, 64) matmul ----
    a1 = xim_ref[...].reshape(N * H1 * WPAD, K1)
    y = jnp.dot(a1, w1_ref[...], preferred_element_type=f32)
    y = y.reshape(N, H1, WPAD, C1) + pk1_ref[0:1, :]
    yb = _bn_relu_mask(y, mask1, float(N * H1 * W1), pk1_ref[1:2, :], pk1_ref[2:3, :])
    a2_ref[:, 1:1 + H1] = yb.astype(bf16)                      # full-width dense store
    a2_ref[:, 0:1] = jnp.zeros((N, 1, WPAD, C1), bf16)         # top conv pad row
    # rows H1+1 .. HP2-1 are never read by any tap window -> left untouched

    # ---- layer 2: Conv(64->128) as one (416, 384) x (384, 128) bf16 matmul ----
    a2cat = _tap_concat(a2_ref, H2, C1)
    y = jnp.dot(a2cat, w2_ref[...], preferred_element_type=f32)
    y = y.reshape(N, H2, WPAD, C2) + pk2_ref[0:1, :]
    yb = _bn_relu_mask(y, mask2, float(N * H2 * W2), pk2_ref[1:2, :], pk2_ref[2:3, :])
    a3_ref[:, 1:1 + H2] = yb.astype(bf16)
    a3_ref[:, 0:1] = jnp.zeros((N, 1, WPAD, C2), bf16)         # top conv pad row
    a3_ref[:, HP3 - 1:HP3] = jnp.zeros((N, 1, WPAD, C2), bf16)  # bottom conv pad row

    # ---- layer 3: Conv(128->256) as one (128, 768) x (768, 256) bf16 matmul ---
    w3_cp.wait()                                               # weight prefetch done?
    a3cat = _tap_concat(a3_ref, H3, C2)
    y = jnp.dot(a3cat, w3_vmem[...], preferred_element_type=f32)
    y = y.reshape(N, H3, WPAD, C3) + pk3_ref[0:1, :]
    yn = _bn_relu_mask(y, mask3, float(N * H3 * W3), pk3_ref[1:2, :], pk3_ref[2:3, :])

    # -------- head: Linear(15360,6) + whole-tensor LayerNorm + row L2 ----------
    wfc_cp.wait()
    feats = yn.reshape(N, H3 * WPAD, C3)                       # (2, 64, 256), lane-dense
    parts = []
    for j in range(6):                                         # 6 VPU multiply-reduces
        prod = feats * wfc_vmem[j].astype(f32)                 # (2, 64, 256)
        parts.append(_sum_keep(prod, (1, 2)))                  # (2, 1, 1)
    logits = jnp.concatenate(parts, axis=2) + pk3_ref[3:4, 0:6]  # (2, 1, 6)

    # nn.LayerNorm(x.size()) with fresh (identity) affine: normalize over ALL elems
    tot = float(N * 6)
    lm = _sum_keep(logits, (0, 1, 2)) / tot
    ld = logits - lm
    lv = _sum_keep(ld * ld, (0, 1, 2)) / tot
    z = ld * lax.rsqrt(lv + LN_EPS)

    # F.normalize: per-row L2 (dim=1), eps=1e-12
    nrm = jnp.sqrt(_sum_keep(z * z, (2,)))
    o_ref[...] = z / jnp.maximum(nrm, L2_EPS)
    # TODO(synk): the .cpu()/.cuda() device hops in the original forward have no
    # Pallas equivalent and are semantic no-ops here.


# ---------------------------------------------------------------------------
# Host wrappers
# ---------------------------------------------------------------------------
def prepare_kernel_params(p):
    """One-time re-layout of torch-convention params into MXU/VMEM-ready layouts."""
    kp = {}
    # layer-1 conv weight -> (K1, C1) bf16 (taps 6..7 are zero padding)
    w1 = jnp.transpose(p["w1"][:, 0, :, 0], (1, 0))                       # (6, 64)
    kp["w1c"] = jnp.pad(w1, ((0, K1 - KH), (0, 0))).astype(jnp.bfloat16)  # (8, 64)
    # layer-2/3 conv weights -> tap-major K-concatenated (KH*C_in, C_out) bf16
    kp["w2c"] = (jnp.transpose(p["w2"][:, :, :, 0], (2, 1, 0))
                 .reshape(KH * C1, C2).astype(jnp.bfloat16))              # (384, 128)
    kp["w3c"] = (jnp.transpose(p["w3"][:, :, :, 0], (2, 1, 0))
                 .reshape(KH * C2, C3).astype(jnp.bfloat16))              # (768, 256)
    # per-layer [conv bias; bn gamma; bn beta] packs (f32); FC bias folded into pk3
    kp["pk1"] = jnp.stack([p["b1"], p["g1"], p["bt1"]])                   # (3, 64)
    kp["pk2"] = jnp.stack([p["b2"], p["g2"], p["bt2"]])                   # (3, 128)
    pk3 = jnp.stack([p["b3"], p["g3"], p["bt3"]])                         # (3, 256)
    bfc = jnp.zeros((1, C3), jnp.float32).at[0, :6].set(p["b_fc"])
    kp["pk3"] = jnp.concatenate([pk3, bfc], axis=0)                       # (4, 256)
    # FC weight: NCHW flatten order f = c*60 + h*15 + w -> (6, H3*WPAD, C3) bf16,
    # zero-padded at w = 15 (the unused extra column of the width frame).
    wfc = p["w_fc"].reshape(C3, H3, W3, 6)
    wfc = jnp.transpose(wfc, (3, 1, 2, 0))                                # (6, 4, 15, 256)
    wfc = jnp.pad(wfc, ((0, 0), (0, 0), (0, WPAD - W3), (0, 0)))
    kp["wfc"] = wfc.reshape(6, H3 * WPAD, C3).astype(jnp.bfloat16)        # (6, 64, 256)
    return kp


@jax.jit
def net_sc_forward(x, kp):
    # Tiny host-side prep for layer 1 only (~16 KiB): place the width-9 signal at
    # cols [3, 12) of the 16-wide frame and gather the 6 H-taps per output row.
    xs = jnp.pad(x[:, 0, :, :], ((0, 0), (1, 1), (XOFF, WPAD - XOFF - W0)))  # (N,130,16)
    rows = (jnp.arange(H1) * SH)[:, None] + jnp.arange(KH)[None, :]          # (42, 6)
    xim = jnp.transpose(xs[:, rows, :], (0, 1, 3, 2))                        # (N,42,16,6)
    xim = jnp.pad(xim, ((0, 0), (0, 0), (0, 0), (0, K1 - KH))).astype(jnp.bfloat16)

    out = pl.pallas_call(
        _net_sc_kernel,
        out_shape=jax.ShapeDtypeStruct((N, 1, 6), jnp.float32),
        in_specs=[
            pl.BlockSpec(memory_space=pltpu.MemorySpace.VMEM),   # xim
            pl.BlockSpec(memory_space=pltpu.MemorySpace.VMEM),   # w1c
            pl.BlockSpec(memory_space=pltpu.MemorySpace.VMEM),   # pk1
            pl.BlockSpec(memory_space=pltpu.MemorySpace.VMEM),   # w2c
            pl.BlockSpec(memory_space=pltpu.MemorySpace.VMEM),   # pk2
            pl.BlockSpec(memory_space=pltpu.MemorySpace.VMEM),   # pk3
            pl.BlockSpec(memory_space=pl.ANY),                   # w3c  (HBM, DMA'd in-kernel)
            pl.BlockSpec(memory_space=pl.ANY),                   # wfc  (HBM, DMA'd in-kernel)
        ],
        out_specs=pl.BlockSpec(memory_space=pltpu.MemorySpace.VMEM),
        scratch_shapes=[
            pltpu.VMEM((N, HP2, WPAD, C1), jnp.bfloat16),        # padded layer-2 input
            pltpu.VMEM((N, HP3, WPAD, C2), jnp.bfloat16),        # padded layer-3 input
            pltpu.VMEM((KH * C2, C3), jnp.bfloat16),             # layer-3 weight landing buf
            pltpu.VMEM((6, H3 * WPAD, C3), jnp.bfloat16),        # FC weight landing buf
            pltpu.SemaphoreType.DMA((2,)),
        ],
        compiler_params=pltpu.CompilerParams(vmem_limit_bytes=12 * 1024 * 1024),
    )(xim, kp["w1c"], kp["pk1"], kp["w2c"], kp["pk2"], kp["pk3"], kp["w3c"], kp["wfc"])
    return out.reshape(N, 6)


# ---------------------------------------------------------------------------
# Pure-JAX reference (lax.conv, torch-layout params) for correctness checking
# ---------------------------------------------------------------------------
def reference_forward(x, params):
    def layer(h, w, b, g, bt):
        y = lax.conv_general_dilated(h, w, window_strides=(SH, 1),
                                     padding=((1, 1), (1, 1)),
                                     dimension_numbers=("NCHW", "OIHW", "NCHW"))
        y = y + b.reshape(1, -1, 1, 1)
        mean = jnp.mean(y, axis=(0, 2, 3), keepdims=True)
        var = jnp.mean(jnp.square(y - mean), axis=(0, 2, 3), keepdims=True)
        y = (y - mean) / jnp.sqrt(var + BN_EPS)
        y = y * g.reshape(1, -1, 1, 1) + bt.reshape(1, -1, 1, 1)
        return jnp.maximum(y, 0.0)

    h = layer(x, params["w1"], params["b1"], params["g1"], params["bt1"])
    h = layer(h, params["w2"], params["b2"], params["g2"], params["bt2"])
    h = layer(h, params["w3"], params["b3"], params["g3"], params["bt3"])
    y = h.reshape(h.shape[0], -1) @ params["w_fc"] + params["b_fc"]
    mean = jnp.mean(y)
    var = jnp.mean(jnp.square(y - mean))
    y = (y - mean) / jnp.sqrt(var + LN_EPS)
    nrm = jnp.sqrt(jnp.sum(y * y, axis=1, keepdims=True))
    return y / jnp.maximum(nrm, L2_EPS)


# ---------------------------------------------------------------------------
# Deterministic synthetic parameters (torch OIHW / Linear layout)
# ---------------------------------------------------------------------------
def init_params(key):
    ks = jax.random.split(key, 10)

    def conv_w(k, c_out, c_in):
        fan_in = c_in * KH
        return jax.random.normal(k, (c_out, c_in, KH, 1), jnp.float32) / jnp.sqrt(fan_in)

    p = {}
    p["w1"] = conv_w(ks[0], C1, 1)
    p["w2"] = conv_w(ks[1], C2, C1)
    p["w3"] = conv_w(ks[2], C3, C2)
    p["b1"] = 0.01 * jax.random.normal(ks[3], (C1,), jnp.float32)
    p["b2"] = 0.01 * jax.random.normal(ks[4], (C2,), jnp.float32)
    p["b3"] = 0.01 * jax.random.normal(ks[5], (C3,), jnp.float32)
    p["g1"] = jnp.ones((C1,), jnp.float32)
    p["g2"] = jnp.ones((C2,), jnp.float32)
    p["g3"] = jnp.ones((C3,), jnp.float32)
    p["bt1"] = 0.05 * jax.random.normal(ks[6], (C1,), jnp.float32)
    p["bt2"] = 0.05 * jax.random.normal(ks[7], (C2,), jnp.float32)
    p["bt3"] = 0.05 * jax.random.normal(ks[8], (C3,), jnp.float32)
    p["w_fc"] = jax.random.normal(ks[9], (F_FC, 6), jnp.float32) / jnp.sqrt(float(F_FC))
    p["b_fc"] = jnp.zeros((6,), jnp.float32)
    return p


if __name__ == "__main__":
    key = jax.random.PRNGKey(0)
    kx, kparam = jax.random.split(key)
    # Input implied by Linear(15360, 6): (N, 1, 128, 9) -> 256*4*15 = 15360 after 3 convs.
    x = jax.random.normal(kx, (N, 1, H0, W0), jnp.float32)
    params = init_params(kparam)
    kparams = prepare_kernel_params(params)   # one-time, outside the forward path

    out = net_sc_forward(x, kparams)
    out = jax.block_until_ready(out)

    ref = reference_forward(x, params)
    assert out.shape == (N, 6), out.shape
    assert bool(jnp.all(jnp.isfinite(out)))
    assert jnp.allclose(out, ref, atol=2e-2, rtol=2e-2), (out, ref)
    print("KERNEL_OK")
</pallas_src>

<mosaic_0001>
module attributes {stable_mosaic.version = 11 : i64} {
  func.func @_net_sc_kernel(%arg0: memref<2x42x16x8xbf16, #tpu.memory_space<vmem>>, %arg1: memref<8x64xbf16, #tpu.memory_space<vmem>>, %arg2: memref<3x64xf32, #tpu.memory_space<vmem>>, %arg3: memref<384x128xbf16, #tpu.memory_space<vmem>>, %arg4: memref<3x128xf32, #tpu.memory_space<vmem>>, %arg5: memref<4x256xf32, #tpu.memory_space<vmem>>, %arg6: memref<768x256xbf16, #tpu.memory_space<any>>, %arg7: memref<6x64x256xbf16, #tpu.memory_space<any>>, %arg8: memref<2x1x6xf32, #tpu.memory_space<vmem>>, %arg9: memref<2x45x16x64xbf16, #tpu.memory_space<vmem>>, %arg10: memref<2x15x16x128xbf16, #tpu.memory_space<vmem>>, %arg11: memref<768x256xbf16, #tpu.memory_space<vmem>>, %arg12: memref<6x64x256xbf16, #tpu.memory_space<vmem>>, %arg13: memref<2x!tpu.dma_semaphore, #tpu.memory_space<semaphore_mem>>) attributes {dimension_semantics = [], scalar_prefetch = 0 : i64, scratch_operands = 5 : i64, tpu.core_type = #tpu.core_type<tc>} {
    %c0_i32 = arith.constant 0 : i32
    %0 = tpu.memref_slice %arg13[%c0_i32] : memref<2x!tpu.dma_semaphore, #tpu.memory_space<semaphore_mem>> -> memref<1x!tpu.dma_semaphore, #tpu.memory_space<semaphore_mem>>
    %1 = tpu.memref_squeeze %0 : memref<1x!tpu.dma_semaphore, #tpu.memory_space<semaphore_mem>> -> memref<!tpu.dma_semaphore, #tpu.memory_space<semaphore_mem>>
    tpu.enqueue_dma source(%arg6 : memref<768x256xbf16, #tpu.memory_space<any>>) target(%arg11 : memref<768x256xbf16, #tpu.memory_space<vmem>>) target_semaphore(%1 : memref<!tpu.dma_semaphore, #tpu.memory_space<semaphore_mem>>)
    %c1_i32 = arith.constant 1 : i32
    %2 = tpu.memref_slice %arg13[%c1_i32] : memref<2x!tpu.dma_semaphore, #tpu.memory_space<semaphore_mem>> -> memref<1x!tpu.dma_semaphore, #tpu.memory_space<semaphore_mem>>
    %3 = tpu.memref_squeeze %2 : memref<1x!tpu.dma_semaphore, #tpu.memory_space<semaphore_mem>> -> memref<!tpu.dma_semaphore, #tpu.memory_space<semaphore_mem>>
    tpu.enqueue_dma source(%arg7 : memref<6x64x256xbf16, #tpu.memory_space<any>>) target(%arg12 : memref<6x64x256xbf16, #tpu.memory_space<vmem>>) target_semaphore(%3 : memref<!tpu.dma_semaphore, #tpu.memory_space<semaphore_mem>>)
    %4 = tpu.iota {dimensions = array<i32: 0>} : vector<16x1xi32>
    %c2_i32 = arith.constant 2 : i32
    %5 = vector.broadcast %c2_i32 : i32 to vector<16x1xi32>
    %6 = arith.cmpi sge, %4, %5 : vector<16x1xi32>
    %c12_i32 = arith.constant 12 : i32
    %7 = vector.broadcast %c12_i32 : i32 to vector<16x1xi32>
    %8 = arith.cmpi sle, %4, %7 : vector<16x1xi32>
    %9 = arith.andi %6, %8 : vector<16x1xi1>
    %10 = arith.extui %9 : vector<16x1xi1> to vector<16x1xi32>
    %11 = arith.sitofp %10 : vector<16x1xi32> to vector<16x1xf32>
    %c1_i32_0 = arith.constant 1 : i32
    %12 = vector.broadcast %c1_i32_0 : i32 to vector<16x1xi32>
    %13 = arith.cmpi sge, %4, %12 : vector<16x1xi32>
    %c13_i32 = arith.constant 13 : i32
    %14 = vector.broadcast %c13_i32 : i32 to vector<16x1xi32>
    %15 = arith.cmpi sle, %4, %14 : vector<16x1xi32>
    %16 = arith.andi %13, %15 : vector<16x1xi1>
    %17 = arith.extui %16 : vector<16x1xi1> to vector<16x1xi32>
    %18 = arith.sitofp %17 : vector<16x1xi32> to vector<16x1xf32>
    %c14_i32 = arith.constant 14 : i32
    %19 = vector.broadcast %c14_i32 : i32 to vector<16x1xi32>
    %20 = arith.cmpi sle, %4, %19 : vector<16x1xi32>
    %21 = arith.extui %20 : vector<16x1xi1> to vector<16x1xi32>
    %22 = arith.sitofp %21 : vector<16x1xi32> to vector<16x1xf32>
    %c0 = arith.constant 0 : index
    %c0_1 = arith.constant 0 : index
    %c0_2 = arith.constant 0 : index
    %c0_3 = arith.constant 0 : index
    %23 = vector.load %arg0[%c0, %c0_1, %c0_2, %c0_3] : memref<2x42x16x8xbf16, #tpu.memory_space<vmem>>, vector<2x42x16x8xbf16>
    %24 = vector.shape_cast %23 : vector<2x42x16x8xbf16> to vector<1344x8xbf16>
    %c0_4 = arith.constant 0 : index
    %c0_5 = arith.constant 0 : index
    %25 = vector.load %arg1[%c0_4, %c0_5] : memref<8x64xbf16, #tpu.memory_space<vmem>>, vector<8x64xbf16>
    %cst = arith.constant dense<0.000000e+00> : vector<1344x64xf32>
    %26 = tpu.matmul %24, %25, %cst {dimension_numbers = #tpu.dot_dimension_numbers<[1], [0], [0], [1], [0, 0, 1, 1], [], []>} : vector<1344x8xbf16>, vector<8x64xbf16>, vector<1344x64xf32> -> vector<1344x64xf32>
    %27 = vector.shape_cast %26 : vector<1344x64xf32> to vector<2x42x16x64xf32>
    %c0_6 = arith.constant 0 : index
    %c0_7 = arith.constant 0 : index
    %28 = vector.load %arg2[%c0_6, %c0_7] : memref<3x64xf32, #tpu.memory_space<vmem>>, vector<1x64xf32>
    %29 = vector.shape_cast %28 : vector<1x64xf32> to vector<1x1x1x64xf32>
    %30 = vector.broadcast %29 : vector<1x1x1x64xf32> to vector<2x42x16x64xf32>
    %31 = arith.addf %27, %30 : vector<2x42x16x64xf32>
    %c1 = arith.constant 1 : index
    %c0_8 = arith.constant 0 : index
    %32 = vector.load %arg2[%c1, %c0_8] : memref<3x64xf32, #tpu.memory_space<vmem>>, vector<1x64xf32>
    %c2 = arith.constant 2 : index
    %c0_9 = arith.constant 0 : index
    %33 = vector.load %arg2[%c2, %c0_9] : memref<3x64xf32, #tpu.memory_space<vmem>>, vector<1x64xf32>
    %34 = vector.shape_cast %11 : vector<16x1xf32> to vector<1x1x16x1xf32>
    %35 = vector.broadcast %34 : vector<1x1x16x1xf32> to vector<2x42x16x64xf32>
    %36 = arith.mulf %31, %35 : vector<2x42x16x64xf32>
    %cst_10 = arith.constant dense<0.000000e+00> : vector<42x16x64xf32>
    %37 = vector.multi_reduction <add>, %36, %cst_10 [0] : vector<2x42x16x64xf32> to vector<42x16x64xf32>
    %38 = vector.shape_cast %37 : vector<42x16x64xf32> to vector<1x42x16x64xf32>
    %cst_11 = arith.constant dense<0.000000e+00> : vector<1x16x64xf32>
    %39 = vector.multi_reduction <add>, %38, %cst_11 [1] : vector<1x42x16x64xf32> to vector<1x16x64xf32>
    %40 = vector.shape_cast %39 : vector<1x16x64xf32> to vector<1x1x16x64xf32>
    %cst_12 = arith.constant dense<0.000000e+00> : vector<1x1x64xf32>
    %41 = vector.multi_reduction <add>, %40, %cst_12 [2] : vector<1x1x16x64xf32> to vector<1x1x64xf32>
    %42 = vector.shape_cast %41 : vector<1x1x64xf32> to vector<1x1x1x64xf32>
    %43 = arith.mulf %36, %36 : vector<2x42x16x64xf32>
    %cst_13 = arith.constant dense<0.000000e+00> : vector<42x16x64xf32>
    %44 = vector.multi_reduction <add>, %43, %cst_13 [0] : vector<2x42x16x64xf32> to vector<42x16x64xf32>
    %45 = vector.shape_cast %44 : vector<42x16x64xf32> to vector<1x42x16x64xf32>
    %cst_14 = arith.constant dense<0.000000e+00> : vector<1x16x64xf32>
    %46 = vector.multi_reduction <add>, %45, %cst_14 [1] : vector<1x42x16x64xf32> to vector<1x16x64xf32>
    %47 = vector.shape_cast %46 : vector<1x16x64xf32> to vector<1x1x16x64xf32>
    %cst_15 = arith.constant dense<0.000000e+00> : vector<1x1x64xf32>
    %48 = vector.multi_reduction <add>, %47, %cst_15 [2] : vector<1x1x16x64xf32> to vector<1x1x64xf32>
    %49 = vector.shape_cast %48 : vector<1x1x64xf32> to vector<1x1x1x64xf32>
    %cst_16 = arith.constant 9.240000e+02 : f32
    %50 = vector.broadcast %cst_16 : f32 to vector<1x1x1x64xf32>
    %51 = arith.divf %42, %50 : vector<1x1x1x64xf32>
    %cst_17 = arith.constant 9.240000e+02 : f32
    %52 = vector.broadcast %cst_17 : f32 to vector<1x1x1x64xf32>
    %53 = arith.divf %49, %52 : vector<1x1x1x64xf32>
    %54 = arith.mulf %51, %51 : vector<1x1x1x64xf32>
    %55 = arith.subf %53, %54 : vector<1x1x1x64xf32>
    %cst_18 = arith.constant 0.000000e+00 : f32
    %56 = vector.broadcast %cst_18 : f32 to vector<1x1x1x64xf32>
    %57 = arith.maximumf %55, %56 : vector<1x1x1x64xf32>
    %cst_19 = arith.constant 9.99999974E-6 : f32
    %58 = vector.broadcast %cst_19 : f32 to vector<1x1x1x64xf32>
    %59 = arith.addf %57, %58 : vector<1x1x1x64xf32>
    %60 = math.rsqrt %59 : vector<1x1x1x64xf32>
    %61 = vector.shape_cast %32 : vector<1x64xf32> to vector<1x1x1x64xf32>
    %62 = arith.mulf %60, %61 : vector<1x1x1x64xf32>
    %63 = arith.mulf %51, %62 : vector<1x1x1x64xf32>
    %64 = vector.shape_cast %33 : vector<1x64xf32> to vector<1x1x1x64xf32>
    %65 = arith.subf %64, %63 : vector<1x1x1x64xf32>
    %66 = vector.broadcast %62 : vector<1x1x1x64xf32> to vector<2x42x16x64xf32>
    %67 = arith.mulf %31, %66 : vector<2x42x16x64xf32>
    %68 = vector.broadcast %65 : vector<1x1x1x64xf32> to vector<2x42x16x64xf32>
    %69 = arith.addf %67, %68 : vector<2x42x16x64xf32>
    %cst_20 = arith.constant 0.000000e+00 : f32
    %70 = vector.broadcast %cst_20 : f32 to vector<2x42x16x64xf32>
    %71 = arith.maximumf %69, %70 : vector<2x42x16x64xf32>
    %72 = vector.shape_cast %11 : vector<16x1xf32> to vector<1x1x16x1xf32>
    %73 = vector.broadcast %72 : vector<1x1x16x1xf32> to vector<2x42x16x64xf32>
    %74 = arith.mulf %71, %73 : vector<2x42x16x64xf32>
    %75 = arith.truncf %74 : vector<2x42x16x64xf32> to vector<2x42x16x64xbf16>
    %c0_21 = arith.constant 0 : index
    %c1_22 = arith.constant 1 : index
    %c0_23 = arith.constant 0 : index
    %c0_24 = arith.constant 0 : index
    %76 = vector.load %arg9[%c0_21, %c1_22, %c0_23, %c0_24] : memref<2x45x16x64xbf16, #tpu.memory_space<vmem>>, vector<2x42x16x64xbf16>
    tpu.vector_store %arg9[%c0_21, %c1_22, %c0_23, %c0_24], %75 {strides = array<i32>} : memref<2x45x16x64xbf16, #tpu.memory_space<vmem>>, vector<2x42x16x64xbf16>,
    %cst_25 = arith.constant 0.000000e+00 : bf16
    %77 = vector.broadcast %cst_25 : bf16 to vector<2x1x16x64xbf16>
    %c0_26 = arith.constant 0 : index
    %c0_27 = arith.constant 0 : index
    %c0_28 = arith.constant 0 : index
    %c0_29 = arith.constant 0 : index
    %78 = vector.load %arg9[%c0_26, %c0_27, %c0_28, %c0_29] : memref<2x45x16x64xbf16, #tpu.memory_space<vmem>>, vector<2x1x16x64xbf16>
    tpu.vector_store %arg9[%c0_26, %c0_27, %c0_28, %c0_29], %77 {strides = array<i32>} : memref<2x45x16x64xbf16, #tpu.memory_space<vmem>>, vector<2x1x16x64xbf16>,
    %c0_30 = arith.constant 0 : index
    %c0_31 = arith.constant 0 : index
    %c0_32 = arith.constant 0 : index
    %c0_33 = arith.constant 0 : index
    %79 = vector.load %arg9[%c0_30, %c0_31, %c0_32, %c0_33] : memref<2x45x16x64xbf16, #tpu.memory_space<vmem>>, vector<2x45x16x64xbf16>
    %80 = vector.shape_cast %79 : vector<2x45x16x64xbf16> to vector<2x15x3x16x64xbf16>
    %81 = vector.extract_strided_slice %80 {offsets = [0, 0, 0, 0, 0], sizes = [2, 13, 1, 16, 64], strides = [1, 1, 1, 1, 1]} : vector<2x15x3x16x64xbf16> to vector<2x13x1x16x64xbf16>
    %82 = vector.shape_cast %81 : vector<2x13x1x16x64xbf16> to vector<2x13x16x64xbf16>
    %83 = vector.extract_strided_slice %80 {offsets = [0, 0, 1, 0, 0], sizes = [2, 13, 1, 16, 64], strides = [1, 1, 1, 1, 1]} : vector<2x15x3x16x64xbf16> to vector<2x13x1x16x64xbf16>
    %84 = vector.shape_cast %83 : vector<2x13x1x16x64xbf16> to vector<2x13x16x64xbf16>
    %85 = vector.extract_strided_slice %80 {offsets = [0, 0, 2, 0, 0], sizes = [2, 13, 1, 16, 64], strides = [1, 1, 1, 1, 1]} : vector<2x15x3x16x64xbf16> to vector<2x13x1x16x64xbf16>
    %86 = vector.shape_cast %85 : vector<2x13x1x16x64xbf16> to vector<2x13x16x64xbf16>
    %87 = vector.extract_strided_slice %80 {offsets = [0, 1, 0, 0, 0], sizes = [2, 13, 1, 16, 64], strides = [1, 1, 1, 1, 1]} : vector<2x15x3x16x64xbf16> to vector<2x13x1x16x64xbf16>
    %88 = vector.shape_cast %87 : vector<2x13x1x16x64xbf16> to vector<2x13x16x64xbf16>
    %89 = vector.extract_strided_slice %80 {offsets = [0, 1, 1, 0, 0], sizes = [2, 13, 1, 16, 64], strides = [1, 1, 1, 1, 1]} : vector<2x15x3x16x64xbf16> to vector<2x13x1x16x64xbf16>
    %90 = vector.shape_cast %89 : vector<2x13x1x16x64xbf16> to vector<2x13x16x64xbf16>
    %91 = vector.extract_strided_slice %80 {offsets = [0, 1, 2, 0, 0], sizes = [2, 13, 1, 16, 64], strides = [1, 1, 1, 1, 1]} : vector<2x15x3x16x64xbf16> to vector<2x13x1x16x64xbf16>
    %92 = vector.shape_cast %91 : vector<2x13x1x16x64xbf16> to vector<2x13x16x64xbf16>
    %93 = tpu.concatenate %82, %84, %86, %88, %90, %92 in 3 : vector<2x13x16x64xbf16>, vector<2x13x16x64xbf16>, vector<2x13x16x64xbf16>, vector<2x13x16x64xbf16>, vector<2x13x16x64xbf16>, vector<2x13x16x64xbf16> -> vector<2x13x16x384xbf16>
    %94 = vector.shape_cast %93 : vector<2x13x16x384xbf16> to vector<416x384xbf16>
    %c0_34 = arith.constant 0 : index
    %c0_35 = arith.constant 0 : index
    %95 = vector.load %arg3[%c0_34, %c0_35] : memref<384x128xbf16, #tpu.memory_space<vmem>>, vector<384x128xbf16>
    %cst_36 = arith.constant dense<0.000000e+00> : vector<416x128xf32>
    %96 = tpu.matmul %94, %95, %cst_36 {dimension_numbers = #tpu.dot_dimension_numbers<[1], [0], [0], [1], [0, 0, 1, 1], [], []>} : vector<416x384xbf16>, vector<384x128xbf16>, vector<416x128xf32> -> vector<416x128xf32>
    %97 = vector.shape_cast %96 : vector<416x128xf32> to vector<2x13x16x128xf32>
    %c0_37 = arith.constant 0 : index
    %c0_38 = arith.constant 0 : index
    %98 = vector.load %arg4[%c0_37, %c0_38] : memref<3x128xf32, #tpu.memory_space<vmem>>, vector<1x128xf32>
    %99 = vector.shape_cast %98 : vector<1x128xf32> to vector<1x1x1x128xf32>
    %100 = vector.broadcast %99 : vector<1x1x1x128xf32> to vector<2x13x16x128xf32>
    %101 = arith.addf %97, %100 : vector<2x13x16x128xf32>
    %c1_39 = arith.constant 1 : index
    %c0_40 = arith.constant 0 : index
    %102 = vector.load %arg4[%c1_39, %c0_40] : memref<3x128xf32, #tpu.memory_space<vmem>>, vector<1x128xf32>
    %c2_41 = arith.constant 2 : index
    %c0_42 = arith.constant 0 : index
    %103 = vector.load %arg4[%c2_41, %c0_42] : memref<3x128xf32, #tpu.memory_space<vmem>>, vector<1x128xf32>
    %104 = vector.shape_cast %18 : vector<16x1xf32> to vector<1x1x16x1xf32>
    %105 = vector.broadcast %104 : vector<1x1x16x1xf32> to vector<2x13x16x128xf32>
    %106 = arith.mulf %101, %105 : vector<2x13x16x128xf32>
    %cst_43 = arith.constant dense<0.000000e+00> : vector<13x16x128xf32>
    %107 = vector.multi_reduction <add>, %106, %cst_43 [0] : vector<2x13x16x128xf32> to vector<13x16x128xf32>
    %108 = vector.shape_cast %107 : vector<13x16x128xf32> to vector<1x13x16x128xf32>
    %cst_44 = arith.constant dense<0.000000e+00> : vector<1x16x128xf32>
    %109 = vector.multi_reduction <add>, %108, %cst_44 [1] : vector<1x13x16x128xf32> to vector<1x16x128xf32>
    %110 = vector.shape_cast %109 : vector<1x16x128xf32> to vector<1x1x16x128xf32>
    %cst_45 = arith.constant dense<0.000000e+00> : vector<1x1x128xf32>
    %111 = vector.multi_reduction <add>, %110, %cst_45 [2] : vector<1x1x16x128xf32> to vector<1x1x128xf32>
    %112 = vector.shape_cast %111 : vector<1x1x128xf32> to vector<1x1x1x128xf32>
    %113 = arith.mulf %106, %106 : vector<2x13x16x128xf32>
    %cst_46 = arith.constant dense<0.000000e+00> : vector<13x16x128xf32>
    %114 = vector.multi_reduction <add>, %113, %cst_46 [0] : vector<2x13x16x128xf32> to vector<13x16x128xf32>
    %115 = vector.shape_cast %114 : vector<13x16x128xf32> to vector<1x13x16x128xf32>
    %cst_47 = arith.constant dense<0.000000e+00> : vector<1x16x128xf32>
    %116 = vector.multi_reduction <add>, %115, %cst_47 [1] : vector<1x13x16x128xf32> to vector<1x16x128xf32>
    %117 = vector.shape_cast %116 : vector<1x16x128xf32> to vector<1x1x16x128xf32>
    %cst_48 = arith.constant dense<0.000000e+00> : vector<1x1x128xf32>
    %118 = vector.multi_reduction <add>, %117, %cst_48 [2] : vector<1x1x16x128xf32> to vector<1x1x128xf32>
    %119 = vector.shape_cast %118 : vector<1x1x128xf32> to vector<1x1x1x128xf32>
    %cst_49 = arith.constant 3.380000e+02 : f32
    %120 = vector.broadcast %cst_49 : f32 to vector<1x1x1x128xf32>
    %121 = arith.divf %112, %120 : vector<1x1x1x128xf32>
    %cst_50 = arith.constant 3.380000e+02 : f32
    %122 = vector.broadcast %cst_50 : f32 to vector<1x1x1x128xf32>
    %123 = arith.divf %119, %122 : vector<1x1x1x128xf32>
    %124 = arith.mulf %121, %121 : vector<1x1x1x128xf32>
    %125 = arith.subf %123, %124 : vector<1x1x1x128xf32>
    %cst_51 = arith.constant 0.000000e+00 : f32
    %126 = vector.broadcast %cst_51 : f32 to vector<1x1x1x128xf32>
    %127 = arith.maximumf %125, %126 : vector<1x1x1x128xf32>
    %cst_52 = arith.constant 9.99999974E-6 : f32
    %128 = vector.broadcast %cst_52 : f32 to vector<1x1x1x128xf32>
    %129 = arith.addf %127, %128 : vector<1x1x1x128xf32>
    %130 = math.rsqrt %129 : vector<1x1x1x128xf32>
    %131 = vector.shape_cast %102 : vector<1x128xf32> to vector<1x1x1x128xf32>
    %132 = arith.mulf %130, %131 : vector<1x1x1x128xf32>
    %133 = arith.mulf %121, %132 : vector<1x1x1x128xf32>
    %134 = vector.shape_cast %103 : vector<1x128xf32> to vector<1x1x1x128xf32>
    %135 = arith.subf %134, %133 : vector<1x1x1x128xf32>
    %136 = vector.broadcast %132 : vector<1x1x1x128xf32> to vector<2x13x16x128xf32>
    %137 = arith.mulf %101, %136 : vector<2x13x16x128xf32>
    %138 = vector.broadcast %135 : vector<1x1x1x128xf32> to vector<2x13x16x128xf32>
    %139 = arith.addf %137, %138 : vector<2x13x16x128xf32>
    %cst_53 = arith.constant 0.000000e+00 : f32
    %140 = vector.broadcast %cst_53 : f32 to vector<2x13x16x128xf32>
    %141 = arith.maximumf %139, %140 : vector<2x13x16x128xf32>
    %142 = vector.shape_cast %18 : vector<16x1xf32> to vector<1x1x16x1xf32>
    %143 = vector.broadcast %142 : vector<1x1x16x1xf32> to vector<2x13x16x128xf32>
    %144 = arith.mulf %141, %143 : vector<2x13x16x128xf32>
    %145 = arith.truncf %144 : vector<2x13x16x128xf32> to vector<2x13x16x128xbf16>
    %c0_54 = arith.constant 0 : index
    %c1_55 = arith.constant 1 : index
    %c0_56 = arith.constant 0 : index
    %c0_57 = arith.constant 0 : index
    %146 = vector.load %arg10[%c0_54, %c1_55, %c0_56, %c0_57] : memref<2x15x16x128xbf16, #tpu.memory_space<vmem>>, vector<2x13x16x128xbf16>
    tpu.vector_store %arg10[%c0_54, %c1_55, %c0_56, %c0_57], %145 {strides = array<i32>} : memref<2x15x16x128xbf16, #tpu.memory_space<vmem>>, vector<2x13x16x128xbf16>,
    %cst_58 = arith.constant 0.000000e+00 : bf16
    %147 = vector.broadcast %cst_58 : bf16 to vector<2x1x16x128xbf16>
    %c0_59 = arith.constant 0 : index
    %c0_60 = arith.constant 0 : index
    %c0_61 = arith.constant 0 : index
    %c0_62 = arith.constant 0 : index
    %148 = vector.load %arg10[%c0_59, %c0_60, %c0_61, %c0_62] : memref<2x15x16x128xbf16, #tpu.memory_space<vmem>>, vector<2x1x16x128xbf16>
    tpu.vector_store %arg10[%c0_59, %c0_60, %c0_61, %c0_62], %147 {strides = array<i32>} : memref<2x15x16x128xbf16, #tpu.memory_space<vmem>>, vector<2x1x16x128xbf16>,
    %cst_63 = arith.constant 0.000000e+00 : bf16
    %149 = vector.broadcast %cst_63 : bf16 to vector<2x1x16x128xbf16>
    %c0_64 = arith.constant 0 : index
    %c14 = arith.constant 14 : index
    %c0_65 = arith.constant 0 : index
    %c0_66 = arith.constant 0 : index
    %150 = vector.load %arg10[%c0_64, %c14, %c0_65, %c0_66] : memref<2x15x16x128xbf16, #tpu.memory_space<vmem>>, vector<2x1x16x128xbf16>
    tpu.vector_store %arg10[%c0_64, %c14, %c0_65, %c0_66], %149 {strides = array<i32>} : memref<2x15x16x128xbf16, #tpu.memory_space<vmem>>, vector<2x1x16x128xbf16>,
    %c0_i32_67 = arith.constant 0 : i32
    %151 = tpu.memref_slice %arg13[%c0_i32_67] : memref<2x!tpu.dma_semaphore, #tpu.memory_space<semaphore_mem>> -> memref<1x!tpu.dma_semaphore, #tpu.memory_space<semaphore_mem>>
    %152 = tpu.memref_squeeze %151 : memref<1x!tpu.dma_semaphore, #tpu.memory_space<semaphore_mem>> -> memref<!tpu.dma_semaphore, #tpu.memory_space<semaphore_mem>>
    tpu.wait_dma2 semaphore(%152 : memref<!tpu.dma_semaphore, #tpu.memory_space<semaphore_mem>>) src(%arg6 : memref<768x256xbf16, #tpu.memory_space<any>>) dst(%arg11 : memref<768x256xbf16, #tpu.memory_space<vmem>>)
    %c0_68 = arith.constant 0 : index
    %c0_69 = arith.constant 0 : index
    %c0_70 = arith.constant 0 : index
    %c0_71 = arith.constant 0 : index
    %153 = vector.load %arg10[%c0_68, %c0_69, %c0_70, %c0_71] : memref<2x15x16x128xbf16, #tpu.memory_space<vmem>>, vector<2x15x16x128xbf16>
    %154 = vector.shape_cast %153 : vector<2x15x16x128xbf16> to vector<2x5x3x16x128xbf16>
    %155 = vector.extract_strided_slice %154 {offsets = [0, 0, 0, 0, 0], sizes = [2, 4, 1, 16, 128], strides = [1, 1, 1, 1, 1]} : vector<2x5x3x16x128xbf16> to vector<2x4x1x16x128xbf16>
    %156 = vector.shape_cast %155 : vector<2x4x1x16x128xbf16> to vector<2x4x16x128xbf16>
    %157 = vector.extract_strided_slice %154 {offsets = [0, 0, 1, 0, 0], sizes = [2, 4, 1, 16, 128], strides = [1, 1, 1, 1, 1]} : vector<2x5x3x16x128xbf16> to vector<2x4x1x16x128xbf16>
    %158 = vector.shape_cast %157 : vector<2x4x1x16x128xbf16> to vector<2x4x16x128xbf16>
    %159 = vector.extract_strided_slice %154 {offsets = [0, 0, 2, 0, 0], sizes = [2, 4, 1, 16, 128], strides = [1, 1, 1, 1, 1]} : vector<2x5x3x16x128xbf16> to vector<2x4x1x16x128xbf16>
    %160 = vector.shape_cast %159 : vector<2x4x1x16x128xbf16> to vector<2x4x16x128xbf16>
    %161 = vector.extract_strided_slice %154 {offsets = [0, 1, 0, 0, 0], sizes = [2, 4, 1, 16, 128], strides = [1, 1, 1, 1, 1]} : vector<2x5x3x16x128xbf16> to vector<2x4x1x16x128xbf16>
    %162 = vector.shape_cast %161 : vector<2x4x1x16x128xbf16> to vector<2x4x16x128xbf16>
    %163 = vector.extract_strided_slice %154 {offsets = [0, 1, 1, 0, 0], sizes = [2, 4, 1, 16, 128], strides = [1, 1, 1, 1, 1]} : vector<2x5x3x16x128xbf16> to vector<2x4x1x16x128xbf16>
    %164 = vector.shape_cast %163 : vector<2x4x1x16x128xbf16> to vector<2x4x16x128xbf16>
    %165 = vector.extract_strided_slice %154 {offsets = [0, 1, 2, 0, 0], sizes = [2, 4, 1, 16, 128], strides = [1, 1, 1, 1, 1]} : vector<2x5x3x16x128xbf16> to vector<2x4x1x16x128xbf16>
    %166 = vector.shape_cast %165 : vector<2x4x1x16x128xbf16> to vector<2x4x16x128xbf16>
    %167 = tpu.concatenate %156, %158, %160, %162, %164, %166 in 3 : vector<2x4x16x128xbf16>, vector<2x4x16x128xbf16>, vector<2x4x16x128xbf16>, vector<2x4x16x128xbf16>, vector<2x4x16x128xbf16>, vector<2x4x16x128xbf16> -> vector<2x4x16x768xbf16>
    %168 = vector.shape_cast %167 : vector<2x4x16x768xbf16> to vector<128x768xbf16>
    %c0_72 = arith.constant 0 : index
    %c0_73 = arith.constant 0 : index
    %169 = vector.load %arg11[%c0_72, %c0_73] : memref<768x256xbf16, #tpu.memory_space<vmem>>, vector<768x256xbf16>
    %cst_74 = arith.constant dense<0.000000e+00> : vector<128x256xf32>
    %170 = tpu.matmul %168, %169, %cst_74 {dimension_numbers = #tpu.dot_dimension_numbers<[1], [0], [0], [1], [0, 0, 1, 1], [], []>} : vector<128x768xbf16>, vector<768x256xbf16>, vector<128x256xf32> -> vector<128x256xf32>
    %171 = vector.shape_cast %170 : vector<128x256xf32> to vector<2x4x16x256xf32>
    %c0_75 = arith.constant 0 : index
    %c0_76 = arith.constant 0 : index
    %172 = vector.load %arg5[%c0_75, %c0_76] : memref<4x256xf32, #tpu.memory_space<vmem>>, vector<1x256xf32>
    %173 = vector.shape_cast %172 : vector<1x256xf32> to vector<1x1x1x256xf32>
    %174 = vector.broadcast %173 : vector<1x1x1x256xf32> to vector<2x4x16x256xf32>
    %175 = arith.addf %171, %174 : vector<2x4x16x256xf32>
    %c1_77 = arith.constant 1 : index
    %c0_78 = arith.constant 0 : index
    %176 = vector.load %arg5[%c1_77, %c0_78] : memref<4x256xf32, #tpu.memory_space<vmem>>, vector<1x256xf32>
    %c2_79 = arith.constant 2 : index
    %c0_80 = arith.constant 0 : index
    %177 = vector.load %arg5[%c2_79, %c0_80] : memref<4x256xf32, #tpu.memory_space<vmem>>, vector<1x256xf32>
    %178 = vector.shape_cast %22 : vector<16x1xf32> to vector<1x1x16x1xf32>
    %179 = vector.broadcast %178 : vector<1x1x16x1xf32> to vector<2x4x16x256xf32>
    %180 = arith.mulf %175, %179 : vector<2x4x16x256xf32>
    %cst_81 = arith.constant dense<0.000000e+00> : vector<4x16x256xf32>
    %181 = vector.multi_reduction <add>, %180, %cst_81 [0] : vector<2x4x16x256xf32> to vector<4x16x256xf32>
    %182 = vector.shape_cast %181 : vector<4x16x256xf32> to vector<1x4x16x256xf32>
    %cst_82 = arith.constant dense<0.000000e+00> : vector<1x16x256xf32>
    %183 = vector.multi_reduction <add>, %182, %cst_82 [1] : vector<1x4x16x256xf32> to vector<1x16x256xf32>
    %184 = vector.shape_cast %183 : vector<1x16x256xf32> to vector<1x1x16x256xf32>
    %cst_83 = arith.constant dense<0.000000e+00> : vector<1x1x256xf32>
    %185 = vector.multi_reduction <add>, %184, %cst_83 [2] : vector<1x1x16x256xf32> to vector<1x1x256xf32>
    %186 = vector.shape_cast %185 : vector<1x1x256xf32> to vector<1x1x1x256xf32>
    %187 = arith.mulf %180, %180 : vector<2x4x16x256xf32>
    %cst_84 = arith.constant dense<0.000000e+00> : vector<4x16x256xf32>
    %188 = vector.multi_reduction <add>, %187, %cst_84 [0] : vector<2x4x16x256xf32> to vector<4x16x256xf32>
    %189 = vector.shape_cast %188 : vector<4x16x256xf32> to vector<1x4x16x256xf32>
    %cst_85 = arith.constant dense<0.000000e+00> : vector<1x16x256xf32>
    %190 = vector.multi_reduction <add>, %189, %cst_85 [1] : vector<1x4x16x256xf32> to vector<1x16x256xf32>
    %191 = vector.shape_cast %190 : vector<1x16x256xf32> to vector<1x1x16x256xf32>
    %cst_86 = arith.constant dense<0.000000e+00> : vector<1x1x256xf32>
    %192 = vector.multi_reduction <add>, %191, %cst_86 [2] : vector<1x1x16x256xf32> to vector<1x1x256xf32>
    %193 = vector.shape_cast %192 : vector<1x1x256xf32> to vector<1x1x1x256xf32>
    %cst_87 = arith.constant 1.200000e+02 : f32
    %194 = vector.broadcast %cst_87 : f32 to vector<1x1x1x256xf32>
    %195 = arith.divf %186, %194 : vector<1x1x1x256xf32>
    %cst_88 = arith.constant 1.200000e+02 : f32
    %196 = vector.broadcast %cst_88 : f32 to vector<1x1x1x256xf32>
    %197 = arith.divf %193, %196 : vector<1x1x1x256xf32>
    %198 = arith.mulf %195, %195 : vector<1x1x1x256xf32>
    %199 = arith.subf %197, %198 : vector<1x1x1x256xf32>
    %cst_89 = arith.constant 0.000000e+00 : f32
    %200 = vector.broadcast %cst_89 : f32 to vector<1x1x1x256xf32>
    %201 = arith.maximumf %199, %200 : vector<1x1x1x256xf32>
    %cst_90 = arith.constant 9.99999974E-6 : f32
    %202 = vector.broadcast %cst_90 : f32 to vector<1x1x1x256xf32>
    %203 = arith.addf %201, %202 : vector<1x1x1x256xf32>
    %204 = math.rsqrt %203 : vector<1x1x1x256xf32>
    %205 = vector.shape_cast %176 : vector<1x256xf32> to vector<1x1x1x256xf32>
    %206 = arith.mulf %204, %205 : vector<1x1x1x256xf32>
    %207 = arith.mulf %195, %206 : vector<1x1x1x256xf32>
    %208 = vector.shape_cast %177 : vector<1x256xf32> to vector<1x1x1x256xf32>
    %209 = arith.subf %208, %207 : vector<1x1x1x256xf32>
    %210 = vector.broadcast %206 : vector<1x1x1x256xf32> to vector<2x4x16x256xf32>
    %211 = arith.mulf %175, %210 : vector<2x4x16x256xf32>
    %212 = vector.broadcast %209 : vector<1x1x1x256xf32> to vector<2x4x16x256xf32>
    %213 = arith.addf %211, %212 : vector<2x4x16x256xf32>
    %cst_91 = arith.constant 0.000000e+00 : f32
    %214 = vector.broadcast %cst_91 : f32 to vector<2x4x16x256xf32>
    %215 = arith.maximumf %213, %214 : vector<2x4x16x256xf32>
    %216 = vector.shape_cast %22 : vector<16x1xf32> to vector<1x1x16x1xf32>
    %217 = vector.broadcast %216 : vector<1x1x16x1xf32> to vector<2x4x16x256xf32>
    %218 = arith.mulf %215, %217 : vector<2x4x16x256xf32>
    %c1_i32_92 = arith.constant 1 : i32
    %219 = tpu.memref_slice %arg13[%c1_i32_92] : memref<2x!tpu.dma_semaphore, #tpu.memory_space<semaphore_mem>> -> memref<1x!tpu.dma_semaphore, #tpu.memory_space<semaphore_mem>>
    %220 = tpu.memref_squeeze %219 : memref<1x!tpu.dma_semaphore, #tpu.memory_space<semaphore_mem>> -> memref<!tpu.dma_semaphore, #tpu.memory_space<semaphore_mem>>
    tpu.wait_dma2 semaphore(%220 : memref<!tpu.dma_semaphore, #tpu.memory_space<semaphore_mem>>) src(%arg7 : memref<6x64x256xbf16, #tpu.memory_space<any>>) dst(%arg12 : memref<6x64x256xbf16, #tpu.memory_space<vmem>>)
    %221 = vector.shape_cast %218 : vector<2x4x16x256xf32> to vector<2x64x256xf32>
    %c0_93 = arith.constant 0 : index
    %c0_94 = arith.constant 0 : index
    %c0_95 = arith.constant 0 : index
    %222 = vector.load %arg12[%c0_93, %c0_94, %c0_95] : memref<6x64x256xbf16, #tpu.memory_space<vmem>>, vector<1x64x256xbf16>
    %223 = vector.shape_cast %222 : vector<1x64x256xbf16> to vector<64x256xbf16>
    %224 = arith.extf %223 : vector<64x256xbf16> to vector<64x256xf32>
    %225 = vector.shape_cast %224 : vector<64x256xf32> to vector<1x64x256xf32>
    %226 = vector.broadcast %225 : vector<1x64x256xf32> to vector<2x64x256xf32>
    %227 = arith.mulf %221, %226 : vector<2x64x256xf32>
    %cst_96 = arith.constant dense<0.000000e+00> : vector<2x256xf32>
    %228 = vector.multi_reduction <add>, %227, %cst_96 [1] : vector<2x64x256xf32> to vector<2x256xf32>
    %229 = vector.shape_cast %228 : vector<2x256xf32> to vector<2x1x256xf32>
    %cst_97 = arith.constant dense<0.000000e+00> : vector<2x1xf32>
    %230 = vector.multi_reduction <add>, %229, %cst_97 [2] : vector<2x1x256xf32> to vector<2x1xf32>
    %231 = vector.shape_cast %230 : vector<2x1xf32> to vector<2x1x1xf32>
    %c1_98 = arith.constant 1 : index
    %c0_99 = arith.constant 0 : index
    %c0_100 = arith.constant 0 : index
    %232 = vector.load %arg12[%c1_98, %c0_99, %c0_100] : memref<6x64x256xbf16, #tpu.memory_space<vmem>>, vector<1x64x256xbf16>
    %233 = vector.shape_cast %232 : vector<1x64x256xbf16> to vector<64x256xbf16>
    %234 = arith.extf %233 : vector<64x256xbf16> to vector<64x256xf32>
    %235 = vector.shape_cast %234 : vector<64x256xf32> to vector<1x64x256xf32>
    %236 = vector.broadcast %235 : vector<1x64x256xf32> to vector<2x64x256xf32>
    %237 = arith.mulf %221, %236 : vector<2x64x256xf32>
    %cst_101 = arith.constant dense<0.000000e+00> : vector<2x256xf32>
    %238 = vector.multi_reduction <add>, %237, %cst_101 [1] : vector<2x64x256xf32> to vector<2x256xf32>
    %239 = vector.shape_cast %238 : vector<2x256xf32> to vector<2x1x256xf32>
    %cst_102 = arith.constant dense<0.000000e+00> : vector<2x1xf32>
    %240 = vector.multi_reduction <add>, %239, %cst_102 [2] : vector<2x1x256xf32> to vector<2x1xf32>
    %241 = vector.shape_cast %240 : vector<2x1xf32> to vector<2x1x1xf32>
    %c2_103 = arith.constant 2 : index
    %c0_104 = arith.constant 0 : index
    %c0_105 = arith.constant 0 : index
    %242 = vector.load %arg12[%c2_103, %c0_104, %c0_105] : memref<6x64x256xbf16, #tpu.memory_space<vmem>>, vector<1x64x256xbf16>
    %243 = vector.shape_cast %242 : vector<1x64x256xbf16> to vector<64x256xbf16>
    %244 = arith.extf %243 : vector<64x256xbf16> to vector<64x256xf32>
    %245 = vector.shape_cast %244 : vector<64x256xf32> to vector<1x64x256xf32>
    %246 = vector.broadcast %245 : vector<1x64x256xf32> to vector<2x64x256xf32>
    %247 = arith.mulf %221, %246 : vector<2x64x256xf32>
    %cst_106 = arith.constant dense<0.000000e+00> : vector<2x256xf32>
    %248 = vector.multi_reduction <add>, %247, %cst_106 [1] : vector<2x64x256xf32> to vector<2x256xf32>
    %249 = vector.shape_cast %248 : vector<2x256xf32> to vector<2x1x256xf32>
    %cst_107 = arith.constant dense<0.000000e+00> : vector<2x1xf32>
    %250 = vector.multi_reduction <add>, %249, %cst_107 [2] : vector<2x1x256xf32> to vector<2x1xf32>
    %251 = vector.shape_cast %250 : vector<2x1xf32> to vector<2x1x1xf32>
    %c3 = arith.constant 3 : index
    %c0_108 = arith.constant 0 : index
    %c0_109 = arith.constant 0 : index
    %252 = vector.load %arg12[%c3, %c0_108, %c0_109] : memref<6x64x256xbf16, #tpu.memory_space<vmem>>, vector<1x64x256xbf16>
    %253 = vector.shape_cast %252 : vector<1x64x256xbf16> to vector<64x256xbf16>
    %254 = arith.extf %253 : vector<64x256xbf16> to vector<64x256xf32>
    %255 = vector.shape_cast %254 : vector<64x256xf32> to vector<1x64x256xf32>
    %256 = vector.broadcast %255 : vector<1x64x256xf32> to vector<2x64x256xf32>
    %257 = arith.mulf %221, %256 : vector<2x64x256xf32>
    %cst_110 = arith.constant dense<0.000000e+00> : vector<2x256xf32>
    %258 = vector.multi_reduction <add>, %257, %cst_110 [1] : vector<2x64x256xf32> to vector<2x256xf32>
    %259 = vector.shape_cast %258 : vector<2x256xf32> to vector<2x1x256xf32>
    %cst_111 = arith.constant dense<0.000000e+00> : vector<2x1xf32>
    %260 = vector.multi_reduction <add>, %259, %cst_111 [2] : vector<2x1x256xf32> to vector<2x1xf32>
    %261 = vector.shape_cast %260 : vector<2x1xf32> to vector<2x1x1xf32>
    %c4 = arith.constant 4 : index
    %c0_112 = arith.constant 0 : index
    %c0_113 = arith.constant 0 : index
    %262 = vector.load %arg12[%c4, %c0_112, %c0_113] : memref<6x64x256xbf16, #tpu.memory_space<vmem>>, vector<1x64x256xbf16>
    %263 = vector.shape_cast %262 : vector<1x64x256xbf16> to vector<64x256xbf16>
    %264 = arith.extf %263 : vector<64x256xbf16> to vector<64x256xf32>
    %265 = vector.shape_cast %264 : vector<64x256xf32> to vector<1x64x256xf32>
    %266 = vector.broadcast %265 : vector<1x64x256xf32> to vector<2x64x256xf32>
    %267 = arith.mulf %221, %266 : vector<2x64x256xf32>
    %cst_114 = arith.constant dense<0.000000e+00> : vector<2x256xf32>
    %268 = vector.multi_reduction <add>, %267, %cst_114 [1] : vector<2x64x256xf32> to vector<2x256xf32>
    %269 = vector.shape_cast %268 : vector<2x256xf32> to vector<2x1x256xf32>
    %cst_115 = arith.constant dense<0.000000e+00> : vector<2x1xf32>
    %270 = vector.multi_reduction <add>, %269, %cst_115 [2] : vector<2x1x256xf32> to vector<2x1xf32>
    %271 = vector.shape_cast %270 : vector<2x1xf32> to vector<2x1x1xf32>
    %c5 = arith.constant 5 : index
    %c0_116 = arith.constant 0 : index
    %c0_117 = arith.constant 0 : index
    %272 = vector.load %arg12[%c5, %c0_116, %c0_117] : memref<6x64x256xbf16, #tpu.memory_space<vmem>>, vector<1x64x256xbf16>
    %273 = vector.shape_cast %272 : vector<1x64x256xbf16> to vector<64x256xbf16>
    %274 = arith.extf %273 : vector<64x256xbf16> to vector<64x256xf32>
    %275 = vector.shape_cast %274 : vector<64x256xf32> to vector<1x64x256xf32>
    %276 = vector.broadcast %275 : vector<1x64x256xf32> to vector<2x64x256xf32>
    %277 = arith.mulf %221, %276 : vector<2x64x256xf32>
    %cst_118 = arith.constant dense<0.000000e+00> : vector<2x256xf32>
    %278 = vector.multi_reduction <add>, %277, %cst_118 [1] : vector<2x64x256xf32> to vector<2x256xf32>
    %279 = vector.shape_cast %278 : vector<2x256xf32> to vector<2x1x256xf32>
    %cst_119 = arith.constant dense<0.000000e+00> : vector<2x1xf32>
    %280 = vector.multi_reduction <add>, %279, %cst_119 [2] : vector<2x1x256xf32> to vector<2x1xf32>
    %281 = vector.shape_cast %280 : vector<2x1xf32> to vector<2x1x1xf32>
    %282 = tpu.concatenate %231, %241, %251, %261, %271, %281 in 2 : vector<2x1x1xf32>, vector<2x1x1xf32>, vector<2x1x1xf32>, vector<2x1x1xf32>, vector<2x1x1xf32>, vector<2x1x1xf32> -> vector<2x1x6xf32>
    %c3_120 = arith.constant 3 : index
    %c0_121 = arith.constant 0 : index
    %283 = vector.load %arg5[%c3_120, %c0_121] : memref<4x256xf32, #tpu.memory_space<vmem>>, vector<1x6xf32>
    %284 = vector.shape_cast %283 : vector<1x6xf32> to vector<1x1x6xf32>
    %285 = vector.broadcast %284 : vector<1x1x6xf32> to vector<2x1x6xf32>
    %286 = arith.addf %282, %285 : vector<2x1x6xf32>
    %cst_122 = arith.constant dense<0.000000e+00> : vector<1x6xf32>
    %287 = vector.multi_reduction <add>, %286, %cst_122 [0] : vector<2x1x6xf32> to vector<1x6xf32>
    %288 = vector.shape_cast %287 : vector<1x6xf32> to vector<1x1x6xf32>
    %cst_123 = arith.constant dense<0.000000e+00> : vector<1x6xf32>
    %289 = vector.multi_reduction <add>, %288, %cst_123 [1] : vector<1x1x6xf32> to vector<1x6xf32>
    %290 = vector.shape_cast %289 : vector<1x6xf32> to vector<1x1x6xf32>
    %cst_124 = arith.constant dense<0.000000e+00> : vector<1x1xf32>
    %291 = vector.multi_reduction <add>, %290, %cst_124 [2] : vector<1x1x6xf32> to vector<1x1xf32>
    %292 = vector.shape_cast %291 : vector<1x1xf32> to vector<1x1x1xf32>
    %cst_125 = arith.constant 1.200000e+01 : f32
    %293 = vector.broadcast %cst_125 : f32 to vector<1x1x1xf32>
    %294 = arith.divf %292, %293 : vector<1x1x1xf32>
    %295 = vector.broadcast %294 : vector<1x1x1xf32> to vector<2x1x6xf32>
    %296 = arith.subf %286, %295 : vector<2x1x6xf32>
    %297 = arith.mulf %296, %296 : vector<2x1x6xf32>
    %cst_126 = arith.constant dense<0.000000e+00> : vector<1x6xf32>
    %298 = vector.multi_reduction <add>, %297, %cst_126 [0] : vector<2x1x6xf32> to vector<1x6xf32>
    %299 = vector.shape_cast %298 : vector<1x6xf32> to vector<1x1x6xf32>
    %cst_127 = arith.constant dense<0.000000e+00> : vector<1x6xf32>
    %300 = vector.multi_reduction <add>, %299, %cst_127 [1] : vector<1x1x6xf32> to vector<1x6xf32>
    %301 = vector.shape_cast %300 : vector<1x6xf32> to vector<1x1x6xf32>
    %cst_128 = arith.constant dense<0.000000e+00> : vector<1x1xf32>
    %302 = vector.multi_reduction <add>, %301, %cst_128 [2] : vector<1x1x6xf32> to vector<1x1xf32>
    %303 = vector.shape_cast %302 : vector<1x1xf32> to vector<1x1x1xf32>
    %cst_129 = arith.constant 1.200000e+01 : f32
    %304 = vector.broadcast %cst_129 : f32 to vector<1x1x1xf32>
    %305 = arith.divf %303, %304 : vector<1x1x1xf32>
    %cst_130 = arith.constant 9.99999974E-6 : f32
    %306 = vector.broadcast %cst_130 : f32 to vector<1x1x1xf32>
    %307 = arith.addf %305, %306 : vector<1x1x1xf32>
    %308 = math.rsqrt %307 : vector<1x1x1xf32>
    %309 = vector.broadcast %308 : vector<1x1x1xf32> to vector<2x1x6xf32>
    %310 = arith.mulf %296, %309 : vector<2x1x6xf32>
    %311 = arith.mulf %310, %310 : vector<2x1x6xf32>
    %cst_131 = arith.constant dense<0.000000e+00> : vector<2x1xf32>
    %312 = vector.multi_reduction <add>, %311, %cst_131 [2] : vector<2x1x6xf32> to vector<2x1xf32>
    %313 = vector.shape_cast %312 : vector<2x1xf32> to vector<2x1x1xf32>
    %314 = math.sqrt %313 : vector<2x1x1xf32>
    %cst_132 = arith.constant 9.99999996E-13 : f32
    %315 = vector.broadcast %cst_132 : f32 to vector<2x1x1xf32>
    %316 = arith.maximumf %314, %315 : vector<2x1x1xf32>
    %317 = vector.broadcast %316 : vector<2x1x1xf32> to vector<2x1x6xf32>
    %318 = arith.divf %310, %317 : vector<2x1x6xf32>
    %c0_133 = arith.constant 0 : index
    %c0_134 = arith.constant 0 : index
    %c0_135 = arith.constant 0 : index
    %319 = vector.load %arg8[%c0_133, %c0_134, %c0_135] : memref<2x1x6xf32, #tpu.memory_space<vmem>>, vector<2x1x6xf32>
    tpu.vector_store %arg8[%c0_133, %c0_134, %c0_135], %318 {strides = array<i32>} : memref<2x1x6xf32, #tpu.memory_space<vmem>>, vector<2x1x6xf32>,
    return
  }
}

</mosaic_0001>

<llo_original>
// kernel: net_sc_forward.1
$region0: #{net_sc_forward.1}
  #allocation0 [shape = 'u32[]', space=smem, size = 0x4, offset = 0x4, fixed_abs, tag = 'smem constant byte address 0x4 - core index']
  #allocation1 [shape = 'u32[144,128]{1,0:T(1,128)}', space=vmem, size = 0x12000, scoped, tag = 'internal scratch']
  #allocation2 [shape = 'bf16[2,45,16,64]{3,2,1,0:T(16,128)(2,1)}', space=vmem, size = 0x5a000, scoped, tag = 'scratch operand']
  #allocation3 [shape = 'bf16[2,15,16,128]{3,2,1,0:T(16,128)(2,1)}', space=vmem, size = 0x1e000, scoped, tag = 'scratch operand']
  #allocation4 [shape = 'bf16[768,256]{1,0:T(16,128)(2,1)}', space=vmem, size = 0x60000, scoped, tag = 'scratch operand']
  #allocation5 [shape = 'bf16[6,64,256]{2,1,0:T(16,128)(2,1)}', space=vmem, size = 0x30000, scoped, tag = 'scratch operand']
  #allocation6 [shape = 's32[2]{0}', space=sflag, size = 0x8, scoped, tag = 'scratch operand']
  #allocation9 [shape = 's32[]', space=sflag, size = 0x4, offset = 0, fixed_abs, tag = 'sflag constant byte address 0x0 - dummy sync flag']
  #allocation10 [shape = 's32[]', space=sflag, size = 0x4, offset = 0, fixed_abs, tag = 'sflag constant byte address 0x0 - dummy sync flag']
  %s0 = inlined_call_operand.vmem [shape: bf16[2,42,16,8], index: 0, kind: input, shape index: {}]
  %s1 = inlined_call_operand.vmem [shape: bf16[8,64], index: 1, kind: input, shape index: {}]
  %s2 = inlined_call_operand.vmem [shape: f32[3,64], index: 2, kind: input, shape index: {}]
  %s3 = inlined_call_operand.vmem [shape: bf16[384,128], index: 3, kind: input, shape index: {}]
  %s4 = inlined_call_operand.vmem [shape: f32[3,128], index: 4, kind: input, shape index: {}]
  %s5 = inlined_call_operand.vmem [shape: f32[4,256], index: 5, kind: input, shape index: {}]
  %s6 = inlined_call_operand.vmem [shape: bf16[768,256], index: 6, kind: input, shape index: {}]
  %s7 = inlined_call_operand.vmem [shape: bf16[6,64,256], index: 7, kind: input, shape index: {}]
  %s8 = inlined_call_operand.hbm [shape: f32[2,1,6], index: 8, kind: output, shape index: {}]
  %s9 = sld [smem:[#allocation0]]
  $region108: #{net_sc_forward.1} parent=0
    _
  %s11 = ssub.s32 1, %s9
  %s12 = scalar_select 0, %s11, %s9
  $region1: #{net_sc_forward.1} parent=0
    #allocation7 [shape = 'u8[1024]{0}', space=vmem, size = 0x400, scoped, tag = 'output window, operand 0, single buffered']
    #allocation8 [shape = 's32[1]{0}', space=sflag, size = 0x4, scoped, tag = 'scoped memory for net_sc_forward.1']
    %13 = vsyncpa [#allocation8], 0
    // Predicated region
    $region2: #{net_sc_forward.1} parent=1 // pred_check
      _
    $region3: #{net_sc_forward.1} parent=1 // pred_check_branch
      %15 = sbr.rel (0) target = $region5
    $region4: #{net_sc_forward.1} parent=1 // pred_region
      _
    $region5: #{net_sc_forward.1} parent=1 // pred_fallthru
      _
    // Predicated region
    $region6: #{net_sc_forward.1} parent=1 // pred_check
      _
    $region7: #{net_sc_forward.1} parent=1 // pred_check_branch
      %17 = sbr.rel (0) target = $region9
    $region8: #{net_sc_forward.1} parent=1 // pred_region
      _
    $region9: #{net_sc_forward.1} parent=1 // pred_fallthru
      _
    // Predicated region
    $region10: #{net_sc_forward.1} parent=1 // pred_check
      _
    $region11: #{net_sc_forward.1} parent=1 // pred_check_branch
      %19 = sbr.rel (0) target = $region13
    $region12: #{net_sc_forward.1} parent=1 // pred_region
      _
    $region13: #{net_sc_forward.1} parent=1 // pred_fallthru
      _
    // Predicated region
    $region14: #{net_sc_forward.1} parent=1 // pred_check
      _
    $region15: #{net_sc_forward.1} parent=1 // pred_check_branch
      %21 = sbr.rel (0) target = $region17
    $region16: #{net_sc_forward.1} parent=1 // pred_region
      _
    $region17: #{net_sc_forward.1} parent=1 // pred_fallthru
      _
    // Predicated region
    $region18: #{net_sc_forward.1} parent=1 // pred_check
      _
    $region19: #{net_sc_forward.1} parent=1 // pred_check_branch
      %23 = sbr.rel (0) target = $region21
    $region20: #{net_sc_forward.1} parent=1 // pred_region
      _
    $region21: #{net_sc_forward.1} parent=1 // pred_fallthru
      _
    // Predicated region
    $region22: #{net_sc_forward.1} parent=1 // pred_check
      _
    $region23: #{net_sc_forward.1} parent=1 // pred_check_branch
      %25 = sbr.rel (0) target = $region25
    $region24: #{net_sc_forward.1} parent=1 // pred_region
      _
    $region25: #{net_sc_forward.1} parent=1 // pred_fallthru
      _
    %p28 = scmp.lt.u32.totalorder 4, 8
    %p29 = pneg %p28
    // Predicated region
    $region26: #{net_sc_forward.1} parent=1 // pred_check
      _
    $region27: #{net_sc_forward.1} parent=1 // pred_check_branch
      %31 = sbr.rel (%p28) target = $region29
    $region28: #{net_sc_forward.1} parent=1 // pred_region
      %s428 = sand.u32 4, 7
      %p429 = scmp.eq.s32.totalorder %s428, 0
      %p430 = pneg %p429
      // Predicated region
      $region41: #{net_sc_forward.1} parent=28 // pred_check
        _
      $region42: #{net_sc_forward.1} parent=28 // pred_check_branch
        %432 = sbr.rel (%p429) target = $region44
      $region43: #{net_sc_forward.1} parent=28 // pred_region
        %s433 = sand.u32 4, 7
        %s434 = ssub.s32 4, %s433
        %s435 = scalar_lea.vmem %s6, %s434
        %s436 = ssub.s32 4, %s433
        %s437 = scalar_lea.vmem [#allocation4], %s436
        loop: start=0, step=1, limit=1
        $region45: #{net_sc_forward.1} parent=43 // loop_pre_header
          _
        $region46: #{net_sc_forward.1} parent=43 // loop_header
          %s439 = sphi 0, %s443
          %p440 = scmp.ge.s32.totalorder %s439, 1
          %s444 = sphi %s6, %s6
          %s445 = sphi [#allocation4], [#allocation4]
        $region47: #{net_sc_forward.1} parent=43 // loop_header_branch
          %442 = sbr.rel (%p440) target = $region51
        $region48: #{net_sc_forward.1} parent=43 // loop_body
          _
        $region49: #{net_sc_forward.1} parent=43 // loop_footer
          %s443 = sadd.s32 1, %s439
        $region50: #{net_sc_forward.1} parent=43 // loop_footer_branch
          %438 = sbr.rel target = $region46
        $region51: #{net_sc_forward.1} parent=43 // loop_exit
          _
        %s446 = sshllo.u32 0, %s433
        loop: start=0, step=1, limit=1
        $region52: #{net_sc_forward.1} parent=43 // loop_pre_header
          _
        $region53: #{net_sc_forward.1} parent=43 // loop_header
          %s448 = sphi 0, %s452
          %p449 = scmp.ge.s32.totalorder %s448, 1
          %s453 = sphi %s435, %s435
          %s454 = sphi %s437, %s437
        $region54: #{net_sc_forward.1} parent=43 // loop_header_branch
          %451 = sbr.rel (%p449) target = $region58
        $region55: #{net_sc_forward.1} parent=43 // loop_body
          %v455 = vld [vmem:[%s453] sm:%s446]
          %456 = vst [vmem:[%s454] sm:%s446] %v455
          %v457 = vld [vmem:[%s453 + $0x8] sm:%s446]
          %458 = vst [vmem:[%s454 + $0x4] sm:%s446] %v457
          %v459 = vld [vmem:[%s453 + $0x4] sm:%s446]
          %460 = vst [vmem:[%s454 + $0x8] sm:%s446] %v459
          %v461 = vld [vmem:[%s453 + $0xc] sm:%s446]
          %462 = vst [vmem:[%s454 + $0xc] sm:%s446] %v461
          %v463 = vld [vmem:[%s453 + $0x10] sm:%s446]
          %464 = vst [vmem:[%s454 + $0x10] sm:%s446] %v463
          %v465 = vld [vmem:[%s453 + $0x18] sm:%s446]
          %466 = vst [vmem:[%s454 + $0x14] sm:%s446] %v465
          %v467 = vld [vmem:[%s453 + $0x14] sm:%s446]
          %468 = vst [vmem:[%s454 + $0x18] sm:%s446] %v467
          %v469 = vld [vmem:[%s453 + $0x1c] sm:%s446]
          %470 = vst [vmem:[%s454 + $0x1c] sm:%s446] %v469
          %v471 = vld [vmem:[%s453 + $0x20] sm:%s446]
          %472 = vst [vmem:[%s454 + $0x20] sm:%s446] %v471
          %v473 = vld [vmem:[%s453 + $0x28] sm:%s446]
          %474 = vst [vmem:[%s454 + $0x24] sm:%s446] %v473
          %v475 = vld [vmem:[%s453 + $0x24] sm:%s446]
          %476 = vst [vmem:[%s454 + $0x28] sm:%s446] %v475
          %v477 = vld [vmem:[%s453 + $0x2c] sm:%s446]
          %478 = vst [vmem:[%s454 + $0x2c] sm:%s446] %v477
          %v479 = vld [vmem:[%s453 + $0x30] sm:%s446]
          %480 = vst [vmem:[%s454 + $0x30] sm:%s446] %v479
          %v481 = vld [vmem:[%s453 + $0x38] sm:%s446]
          %482 = vst [vmem:[%s454 + $0x34] sm:%s446] %v481
          %v483 = vld [vmem:[%s453 + $0x34] sm:%s446]
          %484 = vst [vmem:[%s454 + $0x38] sm:%s446] %v483
          %v485 = vld [vmem:[%s453 + $0x3c] sm:%s446]
          %486 = vst [vmem:[%s454 + $0x3c] sm:%s446] %v485
          %v487 = vld [vmem:[%s453 + $0x40] sm:%s446]
          %488 = vst [vmem:[%s454 + $0x40] sm:%s446] %v487
          %v489 = vld [vmem:[%s453 + $0x48] sm:%s446]
          %490 = vst [vmem:[%s454 + $0x44] sm:%s446] %v489
          %v491 = vld [vmem:[%s453 + $0x44] sm:%s446]
          %492 = vst [vmem:[%s454 + $0x48] sm:%s446] %v491
          %v493 = vld [vmem:[%s453 + $0x4c] sm:%s446]
          %494 = vst [vmem:[%s454 + $0x4c] sm:%s446] %v493
          %v495 = vld [vmem:[%s453 + $0x50] sm:%s446]
          %496 = vst [vmem:[%s454 + $0x50] sm:%s446] %v495
          %v497 = vld [vmem:[%s453 + $0x58] sm:%s446]
          %498 = vst [vmem:[%s454 + $0x54] sm:%s446] %v497
          %v499 = vld [vmem:[%s453 + $0x54] sm:%s446]
          %500 = vst [vmem:[%s454 + $0x58] sm:%s446] %v499
          %v501 = vld [vmem:[%s453 + $0x5c] sm:%s446]
          %502 = vst [vmem:[%s454 + $0x5c] sm:%s446] %v501
          %v503 = vld [vmem:[%s453 + $0x60] sm:%s446]
          %504 = vst [vmem:[%s454 + $0x60] sm:%s446] %v503
          %v505 = vld [vmem:[%s453 + $0x68] sm:%s446]
          %506 = vst [vmem:[%s454 + $0x64] sm:%s446] %v505
          %v507 = vld [vmem:[%s453 + $0x64] sm:%s446]
          %508 = vst [vmem:[%s454 + $0x68] sm:%s446] %v507
          %v509 = vld [vmem:[%s453 + $0x6c] sm:%s446]
          %510 = vst [vmem:[%s454 + $0x6c] sm:%s446] %v509
          %v511 = vld [vmem:[%s453 + $0x70] sm:%s446]
          %512 = vst [vmem:[%s454 + $0x70] sm:%s446] %v511
          %v513 = vld [vmem:[%s453 + $0x78] sm:%s446]
          %514 = vst [vmem:[%s454 + $0x74] sm:%s446] %v513
          %v515 = vld [vmem:[%s453 + $0x74] sm:%s446]
          %516 = vst [vmem:[%s454 + $0x78] sm:%s446] %v515
          %v517 = vld [vmem:[%s453 + $0x7c] sm:%s446]
          %518 = vst [vmem:[%s454 + $0x7c] sm:%s446] %v517
          %v519 = vld [vmem:[%s453 + $0x80] sm:%s446]
          %520 = vst [vmem:[%s454 + $0x80] sm:%s446] %v519
          %v521 = vld [vmem:[%s453 + $0x88] sm:%s446]
          %522 = vst [vmem:[%s454 + $0x84] sm:%s446] %v521
          %v523 = vld [vmem:[%s453 + $0x84] sm:%s446]
          %524 = vst [vmem:[%s454 + $0x88] sm:%s446] %v523
          %v525 = vld [vmem:[%s453 + $0x8c] sm:%s446]
          %526 = vst [vmem:[%s454 + $0x8c] sm:%s446] %v525
          %v527 = vld [vmem:[%s453 + $0x90] sm:%s446]
          %528 = vst [vmem:[%s454 + $0x90] sm:%s446] %v527
          %v529 = vld [vmem:[%s453 + $0x98] sm:%s446]
          %530 = vst [vmem:[%s454 + $0x94] sm:%s446] %v529
          %v531 = vld [vmem:[%s453 + $0x94] sm:%s446]
          %532 = vst [vmem:[%s454 + $0x98] sm:%s446] %v531
          %v533 = vld [vmem:[%s453 + $0x9c] sm:%s446]
          %534 = vst [vmem:[%s454 + $0x9c] sm:%s446] %v533
          %v535 = vld [vmem:[%s453 + $0xa0] sm:%s446]
          %536 = vst [vmem:[%s454 + $0xa0] sm:%s446] %v535
          %v537 = vld [vmem:[%s453 + $0xa8] sm:%s446]
          %538 = vst [vmem:[%s454 + $0xa4] sm:%s446] %v537
          %v539 = vld [vmem:[%s453 + $0xa4] sm:%s446]
          %540 = vst [vmem:[%s454 + $0xa8] sm:%s446] %v539
          %v541 = vld [vmem:[%s453 + $0xac] sm:%s446]
          %542 = vst [vmem:[%s454 + $0xac] sm:%s446] %v541
          %v543 = vld [vmem:[%s453 + $0xb0] sm:%s446]
          %544 = vst [vmem:[%s454 + $0xb0] sm:%s446] %v543
          %v545 = vld [vmem:[%s453 + $0xb8] sm:%s446]
          %546 = vst [vmem:[%s454 + $0xb4] sm:%s446] %v545
          %v547 = vld [vmem:[%s453 + $0xb4] sm:%s446]
          %548 = vst [vmem:[%s454 + $0xb8] sm:%s446] %v547
          %v549 = vld [vmem:[%s453 + $0xbc] sm:%s446]
          %550 = vst [vmem:[%s454 + $0xbc] sm:%s446] %v549
          %v551 = vld [vmem:[%s453 + $0xc0] sm:%s446]
          %552 = vst [vmem:[%s454 + $0xc0] sm:%s446] %v551
          %v553 = vld [vmem:[%s453 + $0xc8] sm:%s446]
          %554 = vst [vmem:[%s454 + $0xc4] sm:%s446] %v553
          %v555 = vld [vmem:[%s453 + $0xc4] sm:%s446]
          %556 = vst [vmem:[%s454 + $0xc8] sm:%s446] %v555
          %v557 = vld [vmem:[%s453 + $0xcc] sm:%s446]
          %558 = vst [vmem:[%s454 + $0xcc] sm:%s446] %v557
          %v559 = vld [vmem:[%s453 + $0xd0] sm:%s446]
          %560 = vst [vmem:[%s454 + $0xd0] sm:%s446] %v559
          %v561 = vld [vmem:[%s453 + $0xd8] sm:%s446]
          %562 = vst [vmem:[%s454 + $0xd4] sm:%s446] %v561
          %v563 = vld [vmem:[%s453 + $0xd4] sm:%s446]
          %564 = vst [vmem:[%s454 + $0xd8] sm:%s446] %v563
          %v565 = vld [vmem:[%s453 + $0xdc] sm:%s446]
          %566 = vst [vmem:[%s454 + $0xdc] sm:%s446] %v565
          %v567 = vld [vmem:[%s453 + $0xe0] sm:%s446]
          %568 = vst [vmem:[%s454 + $0xe0] sm:%s446] %v567
          %v569 = vld [vmem:[%s453 + $0xe8] sm:%s446]
          %570 = vst [vmem:[%s454 + $0xe4] sm:%s446] %v569
          %v571 = vld [vmem:[%s453 + $0xe4] sm:%s446]
          %572 = vst [vmem:[%s454 + $0xe8] sm:%s446] %v571
          %v573 = vld [vmem:[%s453 + $0xec] sm:%s446]
          %574 = vst [vmem:[%s454 + $0xec] sm:%s446] %v573
          %v575 = vld [vmem:[%s453 + $0xf0] sm:%s446]
          %576 = vst [vmem:[%s454 + $0xf0] sm:%s446] %v575
          %v577 = vld [vmem:[%s453 + $0xf8] sm:%s446]
          %578 = vst [vmem:[%s454 + $0xf4] sm:%s446] %v577
          %v579 = vld [vmem:[%s453 + $0xf4] sm:%s446]
          %580 = vst [vmem:[%s454 + $0xf8] sm:%s446] %v579
          %v581 = vld [vmem:[%s453 + $0xfc] sm:%s446]
          %582 = vst [vmem:[%s454 + $0xfc] sm:%s446] %v581
          %v583 = vld [vmem:[%s453 + $0x100] sm:%s446]
          %584 = vst [vmem:[%s454 + $0x100] sm:%s446] %v583
          %v585 = vld [vmem:[%s453 + $0x108] sm:%s446]
          %586 = vst [vmem:[%s454 + $0x104] sm:%s446] %v585
          %v587 = vld [vmem:[%s453 + $0x104] sm:%s446]
          %588 = vst [vmem:[%s454 + $0x108] sm:%s446] %v587
          %v589 = vld [vmem:[%s453 + $0x10c] sm:%s446]
          %590 = vst [vmem:[%s454 + $0x10c] sm:%s446] %v589
          %v591 = vld [vmem:[%s453 + $0x110] sm:%s446]
          %592 = vst [vmem:[%s454 + $0x110] sm:%s446] %v591
          %v593 = vld [vmem:[%s453 + $0x118] sm:%s446]
          %594 = vst [vmem:[%s454 + $0x114] sm:%s446] %v593
          %v595 = vld [vmem:[%s453 + $0x114] sm:%s446]
          %596 = vst [vmem:[%s454 + $0x118] sm:%s446] %v595
          %v597 = vld [vmem:[%s453 + $0x11c] sm:%s446]
          %598 = vst [vmem:[%s454 + $0x11c] sm:%s446] %v597
          %v599 = vld [vmem:[%s453 + $0x120] sm:%s446]
          %600 = vst [vmem:[%s454 + $0x120] sm:%s446] %v599
          %v601 = vld [vmem:[%s453 + $0x128] sm:%s446]
          %602 = vst [vmem:[%s454 + $0x124] sm:%s446] %v601
          %v603 = vld [vmem:[%s453 + $0x124] sm:%s446]
          %604 = vst [vmem:[%s454 + $0x128] sm:%s446] %v603
          %v605 = vld [vmem:[%s453 + $0x12c] sm:%s446]
          %606 = vst [vmem:[%s454 + $0x12c] sm:%s446] %v605
          %v607 = vld [vmem:[%s453 + $0x130] sm:%s446]
          %608 = vst [vmem:[%s454 + $0x130] sm:%s446] %v607
          %v609 = vld [vmem:[%s453 + $0x138] sm:%s446]
          %610 = vst [vmem:[%s454 + $0x134] sm:%s446] %v609
          %v611 = vld [vmem:[%s453 + $0x134] sm:%s446]
          %612 = vst [vmem:[%s454 + $0x138] sm:%s446] %v611
          %v613 = vld [vmem:[%s453 + $0x13c] sm:%s446]
          %614 = vst [vmem:[%s454 + $0x13c] sm:%s446] %v613
          %v615 = vld [vmem:[%s453 + $0x140] sm:%s446]
          %616 = vst [vmem:[%s454 + $0x140] sm:%s446] %v615
          %v617 = vld [vmem:[%s453 + $0x148] sm:%s446]
          %618 = vst [vmem:[%s454 + $0x144] sm:%s446] %v617
          %v619 = vld [vmem:[%s453 + $0x144] sm:%s446]
          %620 = vst [vmem:[%s454 + $0x148] sm:%s446] %v619
          %v621 = vld [vmem:[%s453 + $0x14c] sm:%s446]
          %622 = vst [vmem:[%s454 + $0x14c] sm:%s446] %v621
          %v623 = vld [vmem:[%s453 + $0x150] sm:%s446]
          %624 = vst [vmem:[%s454 + $0x150] sm:%s446] %v623
          %v625 = vld [vmem:[%s453 + $0x158] sm:%s446]
          %626 = vst [vmem:[%s454 + $0x154] sm:%s446] %v625
          %v627 = vld [vmem:[%s453 + $0x154] sm:%s446]
          %628 = vst [vmem:[%s454 + $0x158] sm:%s446] %v627
          %v629 = vld [vmem:[%s453 + $0x15c] sm:%s446]
          %630 = vst [vmem:[%s454 + $0x15c] sm:%s446] %v629
          %v631 = vld [vmem:[%s453 + $0x160] sm:%s446]
          %632 = vst [vmem:[%s454 + $0x160] sm:%s446] %v631
          %v633 = vld [vmem:[%s453 + $0x168] sm:%s446]
          %634 = vst [vmem:[%s454 + $0x164] sm:%s446] %v633
          %v635 = vld [vmem:[%s453 + $0x164] sm:%s446]
          %636 = vst [vmem:[%s454 + $0x168] sm:%s446] %v635
          %v637 = vld [vmem:[%s453 + $0x16c] sm:%s446]
          %638 = vst [vmem:[%s454 + $0x16c] sm:%s446] %v637
          %v639 = vld [vmem:[%s453 + $0x170] sm:%s446]
          %640 = vst [vmem:[%s454 + $0x170] sm:%s446] %v639
          %v641 = vld [vmem:[%s453 + $0x178] sm:%s446]
          %642 = vst [vmem:[%s454 + $0x174] sm:%s446] %v641
          %v643 = vld [vmem:[%s453 + $0x174] sm:%s446]
          %644 = vst [vmem:[%s454 + $0x178] sm:%s446] %v643
          %v645 = vld [vmem:[%s453 + $0x17c] sm:%s446]
          %646 = vst [vmem:[%s454 + $0x17c] sm:%s446] %v645
          %v647 = vld [vmem:[%s453 + $0x180] sm:%s446]
          %648 = vst [vmem:[%s454 + $0x180] sm:%s446] %v647
          %v649 = vld [vmem:[%s453 + $0x188] sm:%s446]
          %650 = vst [vmem:[%s454 + $0x184] sm:%s446] %v649
          %v651 = vld [vmem:[%s453 + $0x184] sm:%s446]
          %652 = vst [vmem:[%s454 + $0x188] sm:%s446] %v651
          %v653 = vld [vmem:[%s453 + $0x18c] sm:%s446]
          %654 = vst [vmem:[%s454 + $0x18c] sm:%s446] %v653
          %v655 = vld [vmem:[%s453 + $0x190] sm:%s446]
          %656 = vst [vmem:[%s454 + $0x190] sm:%s446] %v655
          %v657 = vld [vmem:[%s453 + $0x198] sm:%s446]
          %658 = vst [vmem:[%s454 + $0x194] sm:%s446] %v657
          %v659 = vld [vmem:[%s453 + $0x194] sm:%s446]
          %660 = vst [vmem:[%s454 + $0x198] sm:%s446] %v659
          %v661 = vld [vmem:[%s453 + $0x19c] sm:%s446]
          %662 = vst [vmem:[%s454 + $0x19c] sm:%s446] %v661
          %v663 = vld [vmem:[%s453 + $0x1a0] sm:%s446]
          %664 = vst [vmem:[%s454 + $0x1a0] sm:%s446] %v663
          %v665 = vld [vmem:[%s453 + $0x1a8] sm:%s446]
          %666 = vst [vmem:[%s454 + $0x1a4] sm:%s446] %v665
          %v667 = vld [vmem:[%s453 + $0x1a4] sm:%s446]
          %668 = vst [vmem:[%s454 + $0x1a8] sm:%s446] %v667
          %v669 = vld [vmem:[%s453 + $0x1ac] sm:%s446]
          %670 = vst [vmem:[%s454 + $0x1ac] sm:%s446] %v669
          %v671 = vld [vmem:[%s453 + $0x1b0] sm:%s446]
          %672 = vst [vmem:[%s454 + $0x1b0] sm:%s446] %v671
          %v673 = vld [vmem:[%s453 + $0x1b8] sm:%s446]
          %674 = vst [vmem:[%s454 + $0x1b4] sm:%s446] %v673
          %v675 = vld [vmem:[%s453 + $0x1b4] sm:%s446]
          %676 = vst [vmem:[%s454 + $0x1b8] sm:%s446] %v675
          %v677 = vld [vmem:[%s453 + $0x1bc] sm:%s446]
          %678 = vst [vmem:[%s454 + $0x1bc] sm:%s446] %v677
          %v679 = vld [vmem:[%s453 + $0x1c0] sm:%s446]
          %680 = vst [vmem:[%s454 + $0x1c0] sm:%s446] %v679
          %v681 = vld [vmem:[%s453 + $0x1c8] sm:%s446]
          %682 = vst [vmem:[%s454 + $0x1c4] sm:%s446] %v681
          %v683 = vld [vmem:[%s453 + $0x1c4] sm:%s446]
          %684 = vst [vmem:[%s454 + $0x1c8] sm:%s446] %v683
          %v685 = vld [vmem:[%s453 + $0x1cc] sm:%s446]
          %686 = vst [vmem:[%s454 + $0x1cc] sm:%s446] %v685
          %v687 = vld [vmem:[%s453 + $0x1d0] sm:%s446]
          %688 = vst [vmem:[%s454 + $0x1d0] sm:%s446] %v687
          %v689 = vld [vmem:[%s453 + $0x1d8] sm:%s446]
          %690 = vst [vmem:[%s454 + $0x1d4] sm:%s446] %v689
          %v691 = vld [vmem:[%s453 + $0x1d4] sm:%s446]
          %692 = vst [vmem:[%s454 + $0x1d8] sm:%s446] %v691
          %v693 = vld [vmem:[%s453 + $0x1dc] sm:%s446]
          %694 = vst [vmem:[%s454 + $0x1dc] sm:%s446] %v693
          %v695 = vld [vmem:[%s453 + $0x1e0] sm:%s446]
          %696 = vst [vmem:[%s454 + $0x1e0] sm:%s446] %v695
          %v697 = vld [vmem:[%s453 + $0x1e8] sm:%s446]
          %698 = vst [vmem:[%s454 + $0x1e4] sm:%s446] %v697
          %v699 = vld [vmem:[%s453 + $0x1e4] sm:%s446]
          %700 = vst [vmem:[%s454 + $0x1e8] sm:%s446] %v699
          %v701 = vld [vmem:[%s453 + $0x1ec] sm:%s446]
          %702 = vst [vmem:[%s454 + $0x1ec] sm:%s446] %v701
          %v703 = vld [vmem:[%s453 + $0x1f0] sm:%s446]
          %704 = vst [vmem:[%s454 + $0x1f0] sm:%s446] %v703
          %v705 = vld [vmem:[%s453 + $0x1f8] sm:%s446]
          %706 = vst [vmem:[%s454 + $0x1f4] sm:%s446] %v705
          %v707 = vld [vmem:[%s453 + $0x1f4] sm:%s446]
          %708 = vst [vmem:[%s454 + $0x1f8] sm:%s446] %v707
          %v709 = vld [vmem:[%s453 + $0x1fc] sm:%s446]
          %710 = vst [vmem:[%s454 + $0x1fc] sm:%s446] %v709
          %v711 = vld [vmem:[%s453 + $0x200] sm:%s446]
          %712 = vst [vmem:[%s454 + $0x200] sm:%s446] %v711
          %v713 = vld [vmem:[%s453 + $0x208] sm:%s446]
          %714 = vst [vmem:[%s454 + $0x204] sm:%s446] %v713
          %v715 = vld [vmem:[%s453 + $0x204] sm:%s446]
          %716 = vst [vmem:[%s454 + $0x208] sm:%s446] %v715
          %v717 = vld [vmem:[%s453 + $0x20c] sm:%s446]
          %718 = vst [vmem:[%s454 + $0x20c] sm:%s446] %v717
          %v719 = vld [vmem:[%s453 + $0x210] sm:%s446]
          %720 = vst [vmem:[%s454 + $0x210] sm:%s446] %v719
          %v721 = vld [vmem:[%s453 + $0x218] sm:%s446]
          %722 = vst [vmem:[%s454 + $0x214] sm:%s446] %v721
          %v723 = vld [vmem:[%s453 + $0x214] sm:%s446]
          %724 = vst [vmem:[%s454 + $0x218] sm:%s446] %v723
          %v725 = vld [vmem:[%s453 + $0x21c] sm:%s446]
          %726 = vst [vmem:[%s454 + $0x21c] sm:%s446] %v725
          %v727 = vld [vmem:[%s453 + $0x220] sm:%s446]
          %728 = vst [vmem:[%s454 + $0x220] sm:%s446] %v727
          %v729 = vld [vmem:[%s453 + $0x228] sm:%s446]
          %730 = vst [vmem:[%s454 + $0x224] sm:%s446] %v729
          %v731 = vld [vmem:[%s453 + $0x224] sm:%s446]
          %732 = vst [vmem:[%s454 + $0x228] sm:%s446] %v731
          %v733 = vld [vmem:[%s453 + $0x22c] sm:%s446]
          %734 = vst [vmem:[%s454 + $0x22c] sm:%s446] %v733
          %v735 = vld [vmem:[%s453 + $0x230] sm:%s446]
          %736 = vst [vmem:[%s454 + $0x230] sm:%s446] %v735
          %v737 = vld [vmem:[%s453 + $0x238] sm:%s446]
          %738 = vst [vmem:[%s454 + $0x234] sm:%s446] %v737
          %v739 = vld [vmem:[%s453 + $0x234] sm:%s446]
          %740 = vst [vmem:[%s454 + $0x238] sm:%s446] %v739
          %v741 = vld [vmem:[%s453 + $0x23c] sm:%s446]
          %742 = vst [vmem:[%s454 + $0x23c] sm:%s446] %v741
          %v743 = vld [vmem:[%s453 + $0x240] sm:%s446]
          %744 = vst [vmem:[%s454 + $0x240] sm:%s446] %v743
          %v745 = vld [vmem:[%s453 + $0x248] sm:%s446]
          %746 = vst [vmem:[%s454 + $0x244] sm:%s446] %v745
          %v747 = vld [vmem:[%s453 + $0x244] sm:%s446]
          %748 = vst [vmem:[%s454 + $0x248] sm:%s446] %v747
          %v749 = vld [vmem:[%s453 + $0x24c] sm:%s446]
          %750 = vst [vmem:[%s454 + $0x24c] sm:%s446] %v749
          %v751 = vld [vmem:[%s453 + $0x250] sm:%s446]
          %752 = vst [vmem:[%s454 + $0x250] sm:%s446] %v751
          %v753 = vld [vmem:[%s453 + $0x258] sm:%s446]
          %754 = vst [vmem:[%s454 + $0x254] sm:%s446] %v753
          %v755 = vld [vmem:[%s453 + $0x254] sm:%s446]
          %756 = vst [vmem:[%s454 + $0x258] sm:%s446] %v755
          %v757 = vld [vmem:[%s453 + $0x25c] sm:%s446]
          %758 = vst [vmem:[%s454 + $0x25c] sm:%s446] %v757
          %v759 = vld [vmem:[%s453 + $0x260] sm:%s446]
          %760 = vst [vmem:[%s454 + $0x260] sm:%s446] %v759
          %v761 = vld [vmem:[%s453 + $0x268] sm:%s446]
          %762 = vst [vmem:[%s454 + $0x264] sm:%s446] %v761
          %v763 = vld [vmem:[%s453 + $0x264] sm:%s446]
          %764 = vst [vmem:[%s454 + $0x268] sm:%s446] %v763
          %v765 = vld [vmem:[%s453 + $0x26c] sm:%s446]
          %766 = vst [vmem:[%s454 + $0x26c] sm:%s446] %v765
          %v767 = vld [vmem:[%s453 + $0x270] sm:%s446]
          %768 = vst [vmem:[%s454 + $0x270] sm:%s446] %v767
          %v769 = vld [vmem:[%s453 + $0x278] sm:%s446]
          %770 = vst [vmem:[%s454 + $0x274] sm:%s446] %v769
          %v771 = vld [vmem:[%s453 + $0x274] sm:%s446]
          %772 = vst [vmem:[%s454 + $0x278] sm:%s446] %v771
          %v773 = vld [vmem:[%s453 + $0x27c] sm:%s446]
          %774 = vst [vmem:[%s454 + $0x27c] sm:%s446] %v773
          %v775 = vld [vmem:[%s453 + $0x280] sm:%s446]
          %776 = vst [vmem:[%s454 + $0x280] sm:%s446] %v775
          %v777 = vld [vmem:[%s453 + $0x288] sm:%s446]
          %778 = vst [vmem:[%s454 + $0x284] sm:%s446] %v777
          %v779 = vld [vmem:[%s453 + $0x284] sm:%s446]
          %780 = vst [vmem:[%s454 + $0x288] sm:%s446] %v779
          %v781 = vld [vmem:[%s453 + $0x28c] sm:%s446]
          %782 = vst [vmem:[%s454 + $0x28c] sm:%s446] %v781
          %v783 = vld [vmem:[%s453 + $0x290] sm:%s446]
          %784 = vst [vmem:[%s454 + $0x290] sm:%s446] %v783
          %v785 = vld [vmem:[%s453 + $0x298] sm:%s446]
          %786 = vst [vmem:[%s454 + $0x294] sm:%s446] %v785
          %v787 = vld [vmem:[%s453 + $0x294] sm:%s446]
          %788 = vst [vmem:[%s454 + $0x298] sm:%s446] %v787
          %v789 = vld [vmem:[%s453 + $0x29c] sm:%s446]
          %790 = vst [vmem:[%s454 + $0x29c] sm:%s446] %v789
          %v791 = vld [vmem:[%s453 + $0x2a0] sm:%s446]
          %792 = vst [vmem:[%s454 + $0x2a0] sm:%s446] %v791
          %v793 = vld [vmem:[%s453 + $0x2a8] sm:%s446]
          %794 = vst [vmem:[%s454 + $0x2a4] sm:%s446] %v793
          %v795 = vld [vmem:[%s453 + $0x2a4] sm:%s446]
          %796 = vst [vmem:[%s454 + $0x2a8] sm:%s446] %v795
          %v797 = vld [vmem:[%s453 + $0x2ac] sm:%s446]
          %798 = vst [vmem:[%s454 + $0x2ac] sm:%s446] %v797
          %v799 = vld [vmem:[%s453 + $0x2b0] sm:%s446]
          %800 = vst [vmem:[%s454 + $0x2b0] sm:%s446] %v799
          %v801 = vld [vmem:[%s453 + $0x2b8] sm:%s446]
          %802 = vst [vmem:[%s454 + $0x2b4] sm:%s446] %v801
          %v803 = vld [vmem:[%s453 + $0x2b4] sm:%s446]
          %804 = vst [vmem:[%s454 + $0x2b8] sm:%s446] %v803
          %v805 = vld [vmem:[%s453 + $0x2bc] sm:%s446]
          %806 = vst [vmem:[%s454 + $0x2bc] sm:%s446] %v805
          %v807 = vld [vmem:[%s453 + $0x2c0] sm:%s446]
          %808 = vst [vmem:[%s454 + $0x2c0] sm:%s446] %v807
          %v809 = vld [vmem:[%s453 + $0x2c8] sm:%s446]
          %810 = vst [vmem:[%s454 + $0x2c4] sm:%s446] %v809
          %v811 = vld [vmem:[%s453 + $0x2c4] sm:%s446]
          %812 = vst [vmem:[%s454 + $0x2c8] sm:%s446] %v811
          %v813 = vld [vmem:[%s453 + $0x2cc] sm:%s446]
          %814 = vst [vmem:[%s454 + $0x2cc] sm:%s446] %v813
          %v815 = vld [vmem:[%s453 + $0x2d0] sm:%s446]
          %816 = vst [vmem:[%s454 + $0x2d0] sm:%s446] %v815
          %v817 = vld [vmem:[%s453 + $0x2d8] sm:%s446]
          %818 = vst [vmem:[%s454 + $0x2d4] sm:%s446] %v817
          %v819 = vld [vmem:[%s453 + $0x2d4] sm:%s446]
          %820 = vst [vmem:[%s454 + $0x2d8] sm:%s446] %v819
          %v821 = vld [vmem:[%s453 + $0x2dc] sm:%s446]
          %822 = vst [vmem:[%s454 + $0x2dc] sm:%s446] %v821
          %v823 = vld [vmem:[%s453 + $0x2e0] sm:%s446]
          %824 = vst [vmem:[%s454 + $0x2e0] sm:%s446] %v823
          %v825 = vld [vmem:[%s453 + $0x2e8] sm:%s446]
          %826 = vst [vmem:[%s454 + $0x2e4] sm:%s446] %v825
          %v827 = vld [vmem:[%s453 + $0x2e4] sm:%s446]
          %828 = vst [vmem:[%s454 + $0x2e8] sm:%s446] %v827
          %v829 = vld [vmem:[%s453 + $0x2ec] sm:%s446]
          %830 = vst [vmem:[%s454 + $0x2ec] sm:%s446] %v829
          %v831 = vld [vmem:[%s453 + $0x2f0] sm:%s446]
          %832 = vst [vmem:[%s454 + $0x2f0] sm:%s446] %v831
          %v833 = vld [vmem:[%s453 + $0x2f8] sm:%s446]
          %834 = vst [vmem:[%s454 + $0x2f4] sm:%s446] %v833
          %v835 = vld [vmem:[%s453 + $0x2f4] sm:%s446]
          %836 = vst [vmem:[%s454 + $0x2f8] sm:%s446] %v835
          %v837 = vld [vmem:[%s453 + $0x2fc] sm:%s446]
          %838 = vst [vmem:[%s454 + $0x2fc] sm:%s446] %v837
        $region56: #{net_sc_forward.1} parent=43 // loop_footer
          %s452 = sadd.s32 1, %s448
        $region57: #{net_sc_forward.1} parent=43 // loop_footer_branch
          %447 = sbr.rel target = $region53
        $region58: #{net_sc_forward.1} parent=43 // loop_exit
          _
      $region44: #{net_sc_forward.1} parent=28 // pred_fallthru
        _
    $region29: #{net_sc_forward.1} parent=1 // pred_fallthru
      _
    // Predicated region
    $region30: #{net_sc_forward.1} parent=1 // pred_check
      %p32 = pneg %p28
    $region31: #{net_sc_forward.1} parent=1 // pred_check_branch
      %34 = sbr.rel (%p32) target = $region33
    $region32: #{net_sc_forward.1} parent=1 // pred_region
      %s35 = sshllo.u32 0, 4
      loop: start=0, step=1, limit=1
      $region34: #{net_sc_forward.1} parent=32 // loop_pre_header
        _
      $region35: #{net_sc_forward.1} parent=32 // loop_header
        %s37 = sphi 0, %s41
        %p38 = scmp.ge.s32.totalorder %s37, 1
        %s42 = sphi %s6, %s6
        %s43 = sphi [#allocation4], [#allocation4]
      $region36: #{net_sc_forward.1} parent=32 // loop_header_branch
        %40 = sbr.rel (%p38) target = $region40
      $region37: #{net_sc_forward.1} parent=32 // loop_body
        %v44 = vld [vmem:[%s42] sm:%s35]
        %45 = vst [vmem:[%s43] sm:%s35] %v44
        %v46 = vld [vmem:[%s42 + $0x8] sm:%s35]
        %47 = vst [vmem:[%s43 + $0x4] sm:%s35] %v46
        %v48 = vld [vmem:[%s42 + $0x4] sm:%s35]
        %49 = vst [vmem:[%s43 + $0x8] sm:%s35] %v48
        %v50 = vld [vmem:[%s42 + $0xc] sm:%s35]
        %51 = vst [vmem:[%s43 + $0xc] sm:%s35] %v50
        %v52 = vld [vmem:[%s42 + $0x10] sm:%s35]
        %53 = vst [vmem:[%s43 + $0x10] sm:%s35] %v52
        %v54 = vld [vmem:[%s42 + $0x18] sm:%s35]
        %55 = vst [vmem:[%s43 + $0x14] sm:%s35] %v54
        %v56 = vld [vmem:[%s42 + $0x14] sm:%s35]
        %57 = vst [vmem:[%s43 + $0x18] sm:%s35] %v56
        %v58 = vld [vmem:[%s42 + $0x1c] sm:%s35]
        %59 = vst [vmem:[%s43 + $0x1c] sm:%s35] %v58
        %v60 = vld [vmem:[%s42 + $0x20] sm:%s35]
        %61 = vst [vmem:[%s43 + $0x20] sm:%s35] %v60
        %v62 = vld [vmem:[%s42 + $0x28] sm:%s35]
        %63 = vst [vmem:[%s43 + $0x24] sm:%s35] %v62
        %v64 = vld [vmem:[%s42 + $0x24] sm:%s35]
        %65 = vst [vmem:[%s43 + $0x28] sm:%s35] %v64
        %v66 = vld [vmem:[%s42 + $0x2c] sm:%s35]
        %67 = vst [vmem:[%s43 + $0x2c] sm:%s35] %v66
        %v68 = vld [vmem:[%s42 + $0x30] sm:%s35]
        %69 = vst [vmem:[%s43 + $0x30] sm:%s35] %v68
        %v70 = vld [vmem:[%s42 + $0x38] sm:%s35]
        %71 = vst [vmem:[%s43 + $0x34] sm:%s35] %v70
        %v72 = vld [vmem:[%s42 + $0x34] sm:%s35]
        %73 = vst [vmem:[%s43 + $0x38] sm:%s35] %v72
        %v74 = vld [vmem:[%s42 + $0x3c] sm:%s35]
        %75 = vst [vmem:[%s43 + $0x3c] sm:%s35] %v74
        %v76 = vld [vmem:[%s42 + $0x40] sm:%s35]
        %77 = vst [vmem:[%s43 + $0x40] sm:%s35] %v76
        %v78 = vld [vmem:[%s42 + $0x48] sm:%s35]
        %79 = vst [vmem:[%s43 + $0x44] sm:%s35] %v78
        %v80 = vld [vmem:[%s42 + $0x44] sm:%s35]
        %81 = vst [vmem:[%s43 + $0x48] sm:%s35] %v80
        %v82 = vld [vmem:[%s42 + $0x4c] sm:%s35]
        %83 = vst [vmem:[%s43 + $0x4c] sm:%s35] %v82
        %v84 = vld [vmem:[%s42 + $0x50] sm:%s35]
        %85 = vst [vmem:[%s43 + $0x50] sm:%s35] %v84
        %v86 = vld [vmem:[%s42 + $0x58] sm:%s35]
        %87 = vst [vmem:[%s43 + $0x54] sm:%s35] %v86
        %v88 = vld [vmem:[%s42 + $0x54] sm:%s35]
        %89 = vst [vmem:[%s43 + $0x58] sm:%s35] %v88
        %v90 = vld [vmem:[%s42 + $0x5c] sm:%s35]
        %91 = vst [vmem:[%s43 + $0x5c] sm:%s35] %v90
        %v92 = vld [vmem:[%s42 + $0x60] sm:%s35]
        %93 = vst [vmem:[%s43 + $0x60] sm:%s35] %v92
        %v94 = vld [vmem:[%s42 + $0x68] sm:%s35]
        %95 = vst [vmem:[%s43 + $0x64] sm:%s35] %v94
        %v96 = vld [vmem:[%s42 + $0x64] sm:%s35]
        %97 = vst [vmem:[%s43 + $0x68] sm:%s35] %v96
        %v98 = vld [vmem:[%s42 + $0x6c] sm:%s35]
        %99 = vst [vmem:[%s43 + $0x6c] sm:%s35] %v98
        %v100 = vld [vmem:[%s42 + $0x70] sm:%s35]
        %101 = vst [vmem:[%s43 + $0x70] sm:%s35] %v100
        %v102 = vld [vmem:[%s42 + $0x78] sm:%s35]
        %103 = vst [vmem:[%s43 + $0x74] sm:%s35] %v102
        %v104 = vld [vmem:[%s42 + $0x74] sm:%s35]
        %105 = vst [vmem:[%s43 + $0x78] sm:%s35] %v104
        %v106 = vld [vmem:[%s42 + $0x7c] sm:%s35]
        %107 = vst [vmem:[%s43 + $0x7c] sm:%s35] %v106
        %v108 = vld [vmem:[%s42 + $0x80] sm:%s35]
        %109 = vst [vmem:[%s43 + $0x80] sm:%s35] %v108
        %v110 = vld [vmem:[%s42 + $0x88] sm:%s35]
        %111 = vst [vmem:[%s43 + $0x84] sm:%s35] %v110
        %v112 = vld [vmem:[%s42 + $0x84] sm:%s35]
        %113 = vst [vmem:[%s43 + $0x88] sm:%s35] %v112
        %v114 = vld [vmem:[%s42 + $0x8c] sm:%s35]
        %115 = vst [vmem:[%s43 + $0x8c] sm:%s35] %v114
        %v116 = vld [vmem:[%s42 + $0x90] sm:%s35]
        %117 = vst [vmem:[%s43 + $0x90] sm:%s35] %v116
        %v118 = vld [vmem:[%s42 + $0x98] sm:%s35]
        %119 = vst [vmem:[%s43 + $0x94] sm:%s35] %v118
        %v120 = vld [vmem:[%s42 + $0x94] sm:%s35]
        %121 = vst [vmem:[%s43 + $0x98] sm:%s35] %v120
        %v122 = vld [vmem:[%s42 + $0x9c] sm:%s35]
        %123 = vst [vmem:[%s43 + $0x9c] sm:%s35] %v122
        %v124 = vld [vmem:[%s42 + $0xa0] sm:%s35]
        %125 = vst [vmem:[%s43 + $0xa0] sm:%s35] %v124
        %v126 = vld [vmem:[%s42 + $0xa8] sm:%s35]
        %127 = vst [vmem:[%s43 + $0xa4] sm:%s35] %v126
        %v128 = vld [vmem:[%s42 + $0xa4] sm:%s35]
        %129 = vst [vmem:[%s43 + $0xa8] sm:%s35] %v128
        %v130 = vld [vmem:[%s42 + $0xac] sm:%s35]
        %131 = vst [vmem:[%s43 + $0xac] sm:%s35] %v130
        %v132 = vld [vmem:[%s42 + $0xb0] sm:%s35]
        %133 = vst [vmem:[%s43 + $0xb0] sm:%s35] %v132
        %v134 = vld [vmem:[%s42 + $0xb8] sm:%s35]
        %135 = vst [vmem:[%s43 + $0xb4] sm:%s35] %v134
        %v136 = vld [vmem:[%s42 + $0xb4] sm:%s35]
        %137 = vst [vmem:[%s43 + $0xb8] sm:%s35] %v136
        %v138 = vld [vmem:[%s42 + $0xbc] sm:%s35]
        %139 = vst [vmem:[%s43 + $0xbc] sm:%s35] %v138
        %v140 = vld [vmem:[%s42 + $0xc0] sm:%s35]
        %141 = vst [vmem:[%s43 + $0xc0] sm:%s35] %v140
        %v142 = vld [vmem:[%s42 + $0xc8] sm:%s35]
        %143 = vst [vmem:[%s43 + $0xc4] sm:%s35] %v142
        %v144 = vld [vmem:[%s42 + $0xc4] sm:%s35]
        %145 = vst [vmem:[%s43 + $0xc8] sm:%s35] %v144
        %v146 = vld [vmem:[%s42 + $0xcc] sm:%s35]
        %147 = vst [vmem:[%s43 + $0xcc] sm:%s35] %v146
        %v148 = vld [vmem:[%s42 + $0xd0] sm:%s35]
        %149 = vst [vmem:[%s43 + $0xd0] sm:%s35] %v148
        %v150 = vld [vmem:[%s42 + $0xd8] sm:%s35]
        %151 = vst [vmem:[%s43 + $0xd4] sm:%s35] %v150
        %v152 = vld [vmem:[%s42 + $0xd4] sm:%s35]
        %153 = vst [vmem:[%s43 + $0xd8] sm:%s35] %v152
        %v154 = vld [vmem:[%s42 + $0xdc] sm:%s35]
        %155 = vst [vmem:[%s43 + $0xdc] sm:%s35] %v154
        %v156 = vld [vmem:[%s42 + $0xe0] sm:%s35]
        %157 = vst [vmem:[%s43 + $0xe0] sm:%s35] %v156
        %v158 = vld [vmem:[%s42 + $0xe8] sm:%s35]
        %159 = vst [vmem:[%s43 + $0xe4] sm:%s35] %v158
        %v160 = vld [vmem:[%s42 + $0xe4] sm:%s35]
        %161 = vst [vmem:[%s43 + $0xe8] sm:%s35] %v160
        %v162 = vld [vmem:[%s42 + $0xec] sm:%s35]
        %163 = vst [vmem:[%s43 + $0xec] sm:%s35] %v162
        %v164 = vld [vmem:[%s42 + $0xf0] sm:%s35]
        %165 = vst [vmem:[%s43 + $0xf0] sm:%s35] %v164
        %v166 = vld [vmem:[%s42 + $0xf8] sm:%s35]
        %167 = vst [vmem:[%s43 + $0xf4] sm:%s35] %v166
        %v168 = vld [vmem:[%s42 + $0xf4] sm:%s35]
        %169 = vst [vmem:[%s43 + $0xf8] sm:%s35] %v168
        %v170 = vld [vmem:[%s42 + $0xfc] sm:%s35]
        %171 = vst [vmem:[%s43 + $0xfc] sm:%s35] %v170
        %v172 = vld [vmem:[%s42 + $0x100] sm:%s35]
        %173 = vst [vmem:[%s43 + $0x100] sm:%s35] %v172
        %v174 = vld [vmem:[%s42 + $0x108] sm:%s35]
        %175 = vst [vmem:[%s43 + $0x104] sm:%s35] %v174
        %v176 = vld [vmem:[%s42 + $0x104] sm:%s35]
        %177 = vst [vmem:[%s43 + $0x108] sm:%s35] %v176
        %v178 = vld [vmem:[%s42 + $0x10c] sm:%s35]
        %179 = vst [vmem:[%s43 + $0x10c] sm:%s35] %v178
        %v180 = vld [vmem:[%s42 + $0x110] sm:%s35]
        %181 = vst [vmem:[%s43 + $0x110] sm:%s35] %v180
        %v182 = vld [vmem:[%s42 + $0x118] sm:%s35]
        %183 = vst [vmem:[%s43 + $0x114] sm:%s35] %v182
        %v184 = vld [vmem:[%s42 + $0x114] sm:%s35]
        %185 = vst [vmem:[%s43 + $0x118] sm:%s35] %v184
        %v186 = vld [vmem:[%s42 + $0x11c] sm:%s35]
        %187 = vst [vmem:[%s43 + $0x11c] sm:%s35] %v186
        %v188 = vld [vmem:[%s42 + $0x120] sm:%s35]
        %189 = vst [vmem:[%s43 + $0x120] sm:%s35] %v188
        %v190 = vld [vmem:[%s42 + $0x128] sm:%s35]
        %191 = vst [vmem:[%s43 + $0x124] sm:%s35] %v190
        %v192 = vld [vmem:[%s42 + $0x124] sm:%s35]
        %193 = vst [vmem:[%s43 + $0x128] sm:%s35] %v192
        %v194 = vld [vmem:[%s42 + $0x12c] sm:%s35]
        %195 = vst [vmem:[%s43 + $0x12c] sm:%s35] %v194
        %v196 = vld [vmem:[%s42 + $0x130] sm:%s35]
        %197 = vst [vmem:[%s43 + $0x130] sm:%s35] %v196
        %v198 = vld [vmem:[%s42 + $0x138] sm:%s35]
        %199 = vst [vmem:[%s43 + $0x134] sm:%s35] %v198
        %v200 = vld [vmem:[%s42 + $0x134] sm:%s35]
        %201 = vst [vmem:[%s43 + $0x138] sm:%s35] %v200
        %v202 = vld [vmem:[%s42 + $0x13c] sm:%s35]
        %203 = vst [vmem:[%s43 + $0x13c] sm:%s35] %v202
        %v204 = vld [vmem:[%s42 + $0x140] sm:%s35]
        %205 = vst [vmem:[%s43 + $0x140] sm:%s35] %v204
        %v206 = vld [vmem:[%s42 + $0x148] sm:%s35]
        %207 = vst [vmem:[%s43 + $0x144] sm:%s35] %v206
        %v208 = vld [vmem:[%s42 + $0x144] sm:%s35]
        %209 = vst [vmem:[%s43 + $0x148] sm:%s35] %v208
        %v210 = vld [vmem:[%s42 + $0x14c] sm:%s35]
        %211 = vst [vmem:[%s43 + $0x14c] sm:%s35] %v210
        %v212 = vld [vmem:[%s42 + $0x150] sm:%s35]
        %213 = vst [vmem:[%s43 + $0x150] sm:%s35] %v212
        %v214 = vld [vmem:[%s42 + $0x158] sm:%s35]
        %215 = vst [vmem:[%s43 + $0x154] sm:%s35] %v214
        %v216 = vld [vmem:[%s42 + $0x154] sm:%s35]
        %217 = vst [vmem:[%s43 + $0x158] sm:%s35] %v216
        %v218 = vld [vmem:[%s42 + $0x15c] sm:%s35]
        %219 = vst [vmem:[%s43 + $0x15c] sm:%s35] %v218
        %v220 = vld [vmem:[%s42 + $0x160] sm:%s35]
        %221 = vst [vmem:[%s43 + $0x160] sm:%s35] %v220
        %v222 = vld [vmem:[%s42 + $0x168] sm:%s35]
        %223 = vst [vmem:[%s43 + $0x164] sm:%s35] %v222
        %v224 = vld [vmem:[%s42 + $0x164] sm:%s35]
        %225 = vst [vmem:[%s43 + $0x168] sm:%s35] %v224
        %v226 = vld [vmem:[%s42 + $0x16c] sm:%s35]
        %227 = vst [vmem:[%s43 + $0x16c] sm:%s35] %v226
        %v228 = vld [vmem:[%s42 + $0x170] sm:%s35]
        %229 = vst [vmem:[%s43 + $0x170] sm:%s35] %v228
        %v230 = vld [vmem:[%s42 + $0x178] sm:%s35]
        %231 = vst [vmem:[%s43 + $0x174] sm:%s35] %v230
        %v232 = vld [vmem:[%s42 + $0x174] sm:%s35]
        %233 = vst [vmem:[%s43 + $0x178] sm:%s35] %v232
        %v234 = vld [vmem:[%s42 + $0x17c] sm:%s35]
        %235 = vst [vmem:[%s43 + $0x17c] sm:%s35] %v234
        %v236 = vld [vmem:[%s42 + $0x180] sm:%s35]
        %237 = vst [vmem:[%s43 + $0x180] sm:%s35] %v236
        %v238 = vld [vmem:[%s42 + $0x188] sm:%s35]
        %239 = vst [vmem:[%s43 + $0x184] sm:%s35] %v238
        %v240 = vld [vmem:[%s42 + $0x184] sm:%s35]
        %241 = vst [vmem:[%s43 + $0x188] sm:%s35] %v240
        %v242 = vld [vmem:[%s42 + $0x18c] sm:%s35]
        %243 = vst [vmem:[%s43 + $0x18c] sm:%s35] %v242
        %v244 = vld [vmem:[%s42 + $0x190] sm:%s35]
        %245 = vst [vmem:[%s43 + $0x190] sm:%s35] %v244
        %v246 = vld [vmem:[%s42 + $0x198] sm:%s35]
        %247 = vst [vmem:[%s43 + $0x194] sm:%s35] %v246
        %v248 = vld [vmem:[%s42 + $0x194] sm:%s35]
        %249 = vst [vmem:[%s43 + $0x198] sm:%s35] %v248
        %v250 = vld [vmem:[%s42 + $0x19c] sm:%s35]
        %251 = vst [vmem:[%s43 + $0x19c] sm:%s35] %v250
        %v252 = vld [vmem:[%s42 + $0x1a0] sm:%s35]
        %253 = vst [vmem:[%s43 + $0x1a0] sm:%s35] %v252
        %v254 = vld [vmem:[%s42 + $0x1a8] sm:%s35]
        %255 = vst [vmem:[%s43 + $0x1a4] sm:%s35] %v254
        %v256 = vld [vmem:[%s42 + $0x1a4] sm:%s35]
        %257 = vst [vmem:[%s43 + $0x1a8] sm:%s35] %v256
        %v258 = vld [vmem:[%s42 + $0x1ac] sm:%s35]
        %259 = vst [vmem:[%s43 + $0x1ac] sm:%s35] %v258
        %v260 = vld [vmem:[%s42 + $0x1b0] sm:%s35]
        %261 = vst [vmem:[%s43 + $0x1b0] sm:%s35] %v260
        %v262 = vld [vmem:[%s42 + $0x1b8] sm:%s35]
        %263 = vst [vmem:[%s43 + $0x1b4] sm:%s35] %v262
        %v264 = vld [vmem:[%s42 + $0x1b4] sm:%s35]
        %265 = vst [vmem:[%s43 + $0x1b8] sm:%s35] %v264
        %v266 = vld [vmem:[%s42 + $0x1bc] sm:%s35]
        %267 = vst [vmem:[%s43 + $0x1bc] sm:%s35] %v266
        %v268 = vld [vmem:[%s42 + $0x1c0] sm:%s35]
        %269 = vst [vmem:[%s43 + $0x1c0] sm:%s35] %v268
        %v270 = vld [vmem:[%s42 + $0x1c8] sm:%s35]
        %271 = vst [vmem:[%s43 + $0x1c4] sm:%s35] %v270
        %v272 = vld [vmem:[%s42 + $0x1c4] sm:%s35]
        %273 = vst [vmem:[%s43 + $0x1c8] sm:%s35] %v272
        %v274 = vld [vmem:[%s42 + $0x1cc] sm:%s35]
        %275 = vst [vmem:[%s43 + $0x1cc] sm:%s35] %v274
        %v276 = vld [vmem:[%s42 + $0x1d0] sm:%s35]
        %277 = vst [vmem:[%s43 + $0x1d0] sm:%s35] %v276
        %v278 = vld [vmem:[%s42 + $0x1d8] sm:%s35]
        %279 = vst [vmem:[%s43 + $0x1d4] sm:%s35] %v278
        %v280 = vld [vmem:[%s42 + $0x1d4] sm:%s35]
        %281 = vst [vmem:[%s43 + $0x1d8] sm:%s35] %v280
        %v282 = vld [vmem:[%s42 + $0x1dc] sm:%s35]
        %283 = vst [vmem:[%s43 + $0x1dc] sm:%s35] %v282
        %v284 = vld [vmem:[%s42 + $0x1e0] sm:%s35]
        %285 = vst [vmem:[%s43 + $0x1e0] sm:%s35] %v284
        %v286 = vld [vmem:[%s42 + $0x1e8] sm:%s35]
        %287 = vst [vmem:[%s43 + $0x1e4] sm:%s35] %v286
        %v288 = vld [vmem:[%s42 + $0x1e4] sm:%s35]
        %289 = vst [vmem:[%s43 + $0x1e8] sm:%s35] %v288
        %v290 = vld [vmem:[%s42 + $0x1ec] sm:%s35]
        %291 = vst [vmem:[%s43 + $0x1ec] sm:%s35] %v290
        %v292 = vld [vmem:[%s42 + $0x1f0] sm:%s35]
        %293 = vst [vmem:[%s43 + $0x1f0] sm:%s35] %v292
        %v294 = vld [vmem:[%s42 + $0x1f8] sm:%s35]
        %295 = vst [vmem:[%s43 + $0x1f4] sm:%s35] %v294
        %v296 = vld [vmem:[%s42 + $0x1f4] sm:%s35]
        %297 = vst [vmem:[%s43 + $0x1f8] sm:%s35] %v296
        %v298 = vld [vmem:[%s42 + $0x1fc] sm:%s35]
        %299 = vst [vmem:[%s43 + $0x1fc] sm:%s35] %v298
        %v300 = vld [vmem:[%s42 + $0x200] sm:%s35]
        %301 = vst [vmem:[%s43 + $0x200] sm:%s35] %v300
        %v302 = vld [vmem:[%s42 + $0x208] sm:%s35]
        %303 = vst [vmem:[%s43 + $0x204] sm:%s35] %v302
        %v304 = vld [vmem:[%s42 + $0x204] sm:%s35]
        %305 = vst [vmem:[%s43 + $0x208] sm:%s35] %v304
        %v306 = vld [vmem:[%s42 + $0x20c] sm:%s35]
        %307 = vst [vmem:[%s43 + $0x20c] sm:%s35] %v306
        %v308 = vld [vmem:[%s42 + $0x210] sm:%s35]
        %309 = vst [vmem:[%s43 + $0x210] sm:%s35] %v308
        %v310 = vld [vmem:[%s42 + $0x218] sm:%s35]
        %311 = vst [vmem:[%s43 + $0x214] sm:%s35] %v310
        %v312 = vld [vmem:[%s42 + $0x214] sm:%s35]
        %313 = vst [vmem:[%s43 + $0x218] sm:%s35] %v312
        %v314 = vld [vmem:[%s42 + $0x21c] sm:%s35]
        %315 = vst [vmem:[%s43 + $0x21c] sm:%s35] %v314
        %v316 = vld [vmem:[%s42 + $0x220] sm:%s35]
        %317 = vst [vmem:[%s43 + $0x220] sm:%s35] %v316
        %v318 = vld [vmem:[%s42 + $0x228] sm:%s35]
        %319 = vst [vmem:[%s43 + $0x224] sm:%s35] %v318
        %v320 = vld [vmem:[%s42 + $0x224] sm:%s35]
        %321 = vst [vmem:[%s43 + $0x228] sm:%s35] %v320
        %v322 = vld [vmem:[%s42 + $0x22c] sm:%s35]
        %323 = vst [vmem:[%s43 + $0x22c] sm:%s35] %v322
        %v324 = vld [vmem:[%s42 + $0x230] sm:%s35]
        %325 = vst [vmem:[%s43 + $0x230] sm:%s35] %v324
        %v326 = vld [vmem:[%s42 + $0x238] sm:%s35]
        %327 = vst [vmem:[%s43 + $0x234] sm:%s35] %v326
        %v328 = vld [vmem:[%s42 + $0x234] sm:%s35]
        %329 = vst [vmem:[%s43 + $0x238] sm:%s35] %v328
        %v330 = vld [vmem:[%s42 + $0x23c] sm:%s35]
        %331 = vst [vmem:[%s43 + $0x23c] sm:%s35] %v330
        %v332 = vld [vmem:[%s42 + $0x240] sm:%s35]
        %333 = vst [vmem:[%s43 + $0x240] sm:%s35] %v332
        %v334 = vld [vmem:[%s42 + $0x248] sm:%s35]
        %335 = vst [vmem:[%s43 + $0x244] sm:%s35] %v334
        %v336 = vld [vmem:[%s42 + $0x244] sm:%s35]
        %337 = vst [vmem:[%s43 + $0x248] sm:%s35] %v336
        %v338 = vld [vmem:[%s42 + $0x24c] sm:%s35]
        %339 = vst [vmem:[%s43 + $0x24c] sm:%s35] %v338
        %v340 = vld [vmem:[%s42 + $0x250] sm:%s35]
        %341 = vst [vmem:[%s43 + $0x250] sm:%s35] %v340
        %v342 = vld [vmem:[%s42 + $0x258] sm:%s35]
        %343 = vst [vmem:[%s43 + $0x254] sm:%s35] %v342
        %v344 = vld [vmem:[%s42 + $0x254] sm:%s35]
        %345 = vst [vmem:[%s43 + $0x258] sm:%s35] %v344
        %v346 = vld [vmem:[%s42 + $0x25c] sm:%s35]
        %347 = vst [vmem:[%s43 + $0x25c] sm:%s35] %v346
        %v348 = vld [vmem:[%s42 + $0x260] sm:%s35]
        %349 = vst [vmem:[%s43 + $0x260] sm:%s35] %v348
        %v350 = vld [vmem:[%s42 + $0x268] sm:%s35]
        %351 = vst [vmem:[%s43 + $0x264] sm:%s35] %v350
        %v352 = vld [vmem:[%s42 + $0x264] sm:%s35]
        %353 = vst [vmem:[%s43 + $0x268] sm:%s35] %v352
        %v354 = vld [vmem:[%s42 + $0x26c] sm:%s35]
        %355 = vst [vmem:[%s43 + $0x26c] sm:%s35] %v354
        %v356 = vld [vmem:[%s42 + $0x270] sm:%s35]
        %357 = vst [vmem:[%s43 + $0x270] sm:%s35] %v356
        %v358 = vld [vmem:[%s42 + $0x278] sm:%s35]
        %359 = vst [vmem:[%s43 + $0x274] sm:%s35] %v358
        %v360 = vld [vmem:[%s42 + $0x274] sm:%s35]
        %361 = vst [vmem:[%s43 + $0x278] sm:%s35] %v360
        %v362 = vld [vmem:[%s42 + $0x27c] sm:%s35]
        %363 = vst [vmem:[%s43 + $0x27c] sm:%s35] %v362
        %v364 = vld [vmem:[%s42 + $0x280] sm:%s35]
        %365 = vst [vmem:[%s43 + $0x280] sm:%s35] %v364
        %v366 = vld [vmem:[%s42 + $0x288] sm:%s35]
        %367 = vst [vmem:[%s43 + $0x284] sm:%s35] %v366
        %v368 = vld [vmem:[%s42 + $0x284] sm:%s35]
        %369 = vst [vmem:[%s43 + $0x288] sm:%s35] %v368
        %v370 = vld [vmem:[%s42 + $0x28c] sm:%s35]
        %371 = vst [vmem:[%s43 + $0x28c] sm:%s35] %v370
        %v372 = vld [vmem:[%s42 + $0x290] sm:%s35]
        %373 = vst [vmem:[%s43 + $0x290] sm:%s35] %v372
        %v374 = vld [vmem:[%s42 + $0x298] sm:%s35]
        %375 = vst [vmem:[%s43 + $0x294] sm:%s35] %v374
        %v376 = vld [vmem:[%s42 + $0x294] sm:%s35]
        %377 = vst [vmem:[%s43 + $0x298] sm:%s35] %v376
        %v378 = vld [vmem:[%s42 + $0x29c] sm:%s35]
        %379 = vst [vmem:[%s43 + $0x29c] sm:%s35] %v378
        %v380 = vld [vmem:[%s42 + $0x2a0] sm:%s35]
        %381 = vst [vmem:[%s43 + $0x2a0] sm:%s35] %v380
        %v382 = vld [vmem:[%s42 + $0x2a8] sm:%s35]
        %383 = vst [vmem:[%s43 + $0x2a4] sm:%s35] %v382
        %v384 = vld [vmem:[%s42 + $0x2a4] sm:%s35]
        %385 = vst [vmem:[%s43 + $0x2a8] sm:%s35] %v384
        %v386 = vld [vmem:[%s42 + $0x2ac] sm:%s35]
        %387 = vst [vmem:[%s43 + $0x2ac] sm:%s35] %v386
        %v388 = vld [vmem:[%s42 + $0x2b0] sm:%s35]
        %389 = vst [vmem:[%s43 + $0x2b0] sm:%s35] %v388
        %v390 = vld [vmem:[%s42 + $0x2b8] sm:%s35]
        %391 = vst [vmem:[%s43 + $0x2b4] sm:%s35] %v390
        %v392 = vld [vmem:[%s42 + $0x2b4] sm:%s35]
        %393 = vst [vmem:[%s43 + $0x2b8] sm:%s35] %v392
        %v394 = vld [vmem:[%s42 + $0x2bc] sm:%s35]
        %395 = vst [vmem:[%s43 + $0x2bc] sm:%s35] %v394
        %v396 = vld [vmem:[%s42 + $0x2c0] sm:%s35]
        %397 = vst [vmem:[%s43 + $0x2c0] sm:%s35] %v396
        %v398 = vld [vmem:[%s42 + $0x2c8] sm:%s35]
        %399 = vst [vmem:[%s43 + $0x2c4] sm:%s35] %v398
        %v400 = vld [vmem:[%s42 + $0x2c4] sm:%s35]
        %401 = vst [vmem:[%s43 + $0x2c8] sm:%s35] %v400
        %v402 = vld [vmem:[%s42 + $0x2cc] sm:%s35]
        %403 = vst [vmem:[%s43 + $0x2cc] sm:%s35] %v402
        %v404 = vld [vmem:[%s42 + $0x2d0] sm:%s35]
        %405 = vst [vmem:[%s43 + $0x2d0] sm:%s35] %v404
        %v406 = vld [vmem:[%s42 + $0x2d8] sm:%s35]
        %407 = vst [vmem:[%s43 + $0x2d4] sm:%s35] %v406
        %v408 = vld [vmem:[%s42 + $0x2d4] sm:%s35]
        %409 = vst [vmem:[%s43 + $0x2d8] sm:%s35] %v408
        %v410 = vld [vmem:[%s42 + $0x2dc] sm:%s35]
        %411 = vst [vmem:[%s43 + $0x2dc] sm:%s35] %v410
        %v412 = vld [vmem:[%s42 + $0x2e0] sm:%s35]
        %413 = vst [vmem:[%s43 + $0x2e0] sm:%s35] %v412
        %v414 = vld [vmem:[%s42 + $0x2e8] sm:%s35]
        %415 = vst [vmem:[%s43 + $0x2e4] sm:%s35] %v414
        %v416 = vld [vmem:[%s42 + $0x2e4] sm:%s35]
        %417 = vst [vmem:[%s43 + $0x2e8] sm:%s35] %v416
        %v418 = vld [vmem:[%s42 + $0x2ec] sm:%s35]
        %419 = vst [vmem:[%s43 + $0x2ec] sm:%s35] %v418
        %v420 = vld [vmem:[%s42 + $0x2f0] sm:%s35]
        %421 = vst [vmem:[%s43 + $0x2f0] sm:%s35] %v420
        %v422 = vld [vmem:[%s42 + $0x2f8] sm:%s35]
        %423 = vst [vmem:[%s43 + $0x2f4] sm:%s35] %v422
        %v424 = vld [vmem:[%s42 + $0x2f4] sm:%s35]
        %425 = vst [vmem:[%s43 + $0x2f8] sm:%s35] %v424
        %v426 = vld [vmem:[%s42 + $0x2fc] sm:%s35]
        %427 = vst [vmem:[%s43 + $0x2fc] sm:%s35] %v426
      $region38: #{net_sc_forward.1} parent=32 // loop_footer
        %s41 = sadd.s32 1, %s37
      $region39: #{net_sc_forward.1} parent=32 // loop_footer_branch
        %36 = sbr.rel target = $region35
      $region40: #{net_sc_forward.1} parent=32 // loop_exit
        _
    $region33: #{net_sc_forward.1} parent=1 // pred_fallthru
      _
    // Predicated region
    $region59: #{net_sc_forward.1} parent=1 // pred_check
      _
    $region60: #{net_sc_forward.1} parent=1 // pred_check_branch
      %841 = sbr.rel (0) target = $region62
    $region61: #{net_sc_forward.1} parent=1 // pred_region
      %842 = vsyncadd [#allocation6], 12288
    $region62: #{net_sc_forward.1} parent=1 // pred_fallthru
      _
    %s843 = scalar_lea.sflag [#allocation6], 1
    %p845 = scmp.lt.u32.totalorder 4, 8
    %p846 = pneg %p845
    // Predicated region
    $region63: #{net_sc_forward.1} parent=1 // pred_check
      _
    $region64: #{net_sc_forward.1} parent=1 // pred_check_branch
      %848 = sbr.rel (%p845) target = $region66
    $region65: #{net_sc_forward.1} parent=1 // pred_region
      %s1053 = sand.u32 4, 7
      %p1054 = scmp.eq.s32.totalorder %s1053, 0
      %p1055 = pneg %p1054
      // Predicated region
      $region78: #{net_sc_forward.1} parent=65 // pred_check
        _
      $region79: #{net_sc_forward.1} parent=65 // pred_check_branch
        %1057 = sbr.rel (%p1054) target = $region81
      $region80: #{net_sc_forward.1} parent=65 // pred_region
        %s1058 = sand.u32 4, 7
        %s1059 = ssub.s32 4, %s1058
        %s1060 = scalar_lea.vmem %s7, %s1059
        %s1061 = ssub.s32 4, %s1058
        %s1062 = scalar_lea.vmem [#allocation5], %s1061
        loop: start=0, step=1, limit=1
        $region82: #{net_sc_forward.1} parent=80 // loop_pre_header
          _
        $region83: #{net_sc_forward.1} parent=80 // loop_header
          %s1064 = sphi 0, %s1068
          %p1065 = scmp.ge.s32.totalorder %s1064, 1
          %s1069 = sphi %s7, %s7
          %s1070 = sphi [#allocation5], [#allocation5]
        $region84: #{net_sc_forward.1} parent=80 // loop_header_branch
          %1067 = sbr.rel (%p1065) target = $region88
        $region85: #{net_sc_forward.1} parent=80 // loop_body
          _
        $region86: #{net_sc_forward.1} parent=80 // loop_footer
          %s1068 = sadd.s32 1, %s1064
        $region87: #{net_sc_forward.1} parent=80 // loop_footer_branch
          %1063 = sbr.rel target = $region83
        $region88: #{net_sc_forward.1} parent=80 // loop_exit
          _
        %s1071 = sshllo.u32 0, %s1058
        loop: start=0, step=1, limit=1
        $region89: #{net_sc_forward.1} parent=80 // loop_pre_header
          _
        $region90: #{net_sc_forward.1} parent=80 // loop_header
          %s1073 = sphi 0, %s1077
          %p1074 = scmp.ge.s32.totalorder %s1073, 1
          %s1078 = sphi %s1060, %s1060
          %s1079 = sphi %s1062, %s1062
        $region91: #{net_sc_forward.1} parent=80 // loop_header_branch
          %1076 = sbr.rel (%p1074) target = $region95
        $region92: #{net_sc_forward.1} parent=80 // loop_body
          %v1080 = vld [vmem:[%s1078] sm:%s1071]
          %1081 = vst [vmem:[%s1079] sm:%s1071] %v1080
          %v1082 = vld [vmem:[%s1078 + $0x8] sm:%s1071]
          %1083 = vst [vmem:[%s1079 + $0x4] sm:%s1071] %v1082
          %v1084 = vld [vmem:[%s1078 + $0x4] sm:%s1071]
          %1085 = vst [vmem:[%s1079 + $0x8] sm:%s1071] %v1084
          %v1086 = vld [vmem:[%s1078 + $0xc] sm:%s1071]
          %1087 = vst [vmem:[%s1079 + $0xc] sm:%s1071] %v1086
          %v1088 = vld [vmem:[%s1078 + $0x10] sm:%s1071]
          %1089 = vst [vmem:[%s1079 + $0x10] sm:%s1071] %v1088
          %v1090 = vld [vmem:[%s1078 + $0x18] sm:%s1071]
          %1091 = vst [vmem:[%s1079 + $0x14] sm:%s1071] %v1090
          %v1092 = vld [vmem:[%s1078 + $0x14] sm:%s1071]
          %1093 = vst [vmem:[%s1079 + $0x18] sm:%s1071] %v1092
          %v1094 = vld [vmem:[%s1078 + $0x1c] sm:%s1071]
          %1095 = vst [vmem:[%s1079 + $0x1c] sm:%s1071] %v1094
          %v1096 = vld [vmem:[%s1078 + $0x20] sm:%s1071]
          %1097 = vst [vmem:[%s1079 + $0x20] sm:%s1071] %v1096
          %v1098 = vld [vmem:[%s1078 + $0x28] sm:%s1071]
          %1099 = vst [vmem:[%s1079 + $0x24] sm:%s1071] %v1098
          %v1100 = vld [vmem:[%s1078 + $0x24] sm:%s1071]
          %1101 = vst [vmem:[%s1079 + $0x28] sm:%s1071] %v1100
          %v1102 = vld [vmem:[%s1078 + $0x2c] sm:%s1071]
          %1103 = vst [vmem:[%s1079 + $0x2c] sm:%s1071] %v1102
          %v1104 = vld [vmem:[%s1078 + $0x30] sm:%s1071]
          %1105 = vst [vmem:[%s1079 + $0x30] sm:%s1071] %v1104
          %v1106 = vld [vmem:[%s1078 + $0x38] sm:%s1071]
          %1107 = vst [vmem:[%s1079 + $0x34] sm:%s1071] %v1106
          %v1108 = vld [vmem:[%s1078 + $0x34] sm:%s1071]
          %1109 = vst [vmem:[%s1079 + $0x38] sm:%s1071] %v1108
          %v1110 = vld [vmem:[%s1078 + $0x3c] sm:%s1071]
          %1111 = vst [vmem:[%s1079 + $0x3c] sm:%s1071] %v1110
          %v1112 = vld [vmem:[%s1078 + $0x40] sm:%s1071]
          %1113 = vst [vmem:[%s1079 + $0x40] sm:%s1071] %v1112
          %v1114 = vld [vmem:[%s1078 + $0x48] sm:%s1071]
          %1115 = vst [vmem:[%s1079 + $0x44] sm:%s1071] %v1114
          %v1116 = vld [vmem:[%s1078 + $0x44] sm:%s1071]
          %1117 = vst [vmem:[%s1079 + $0x48] sm:%s1071] %v1116
          %v1118 = vld [vmem:[%s1078 + $0x4c] sm:%s1071]
          %1119 = vst [vmem:[%s1079 + $0x4c] sm:%s1071] %v1118
          %v1120 = vld [vmem:[%s1078 + $0x50] sm:%s1071]
          %1121 = vst [vmem:[%s1079 + $0x50] sm:%s1071] %v1120
          %v1122 = vld [vmem:[%s1078 + $0x58] sm:%s1071]
          %1123 = vst [vmem:[%s1079 + $0x54] sm:%s1071] %v1122
          %v1124 = vld [vmem:[%s1078 + $0x54] sm:%s1071]
          %1125 = vst [vmem:[%s1079 + $0x58] sm:%s1071] %v1124
          %v1126 = vld [vmem:[%s1078 + $0x5c] sm:%s1071]
          %1127 = vst [vmem:[%s1079 + $0x5c] sm:%s1071] %v1126
          %v1128 = vld [vmem:[%s1078 + $0x60] sm:%s1071]
          %1129 = vst [vmem:[%s1079 + $0x60] sm:%s1071] %v1128
          %v1130 = vld [vmem:[%s1078 + $0x68] sm:%s1071]
          %1131 = vst [vmem:[%s1079 + $0x64] sm:%s1071] %v1130
          %v1132 = vld [vmem:[%s1078 + $0x64] sm:%s1071]
          %1133 = vst [vmem:[%s1079 + $0x68] sm:%s1071] %v1132
          %v1134 = vld [vmem:[%s1078 + $0x6c] sm:%s1071]
          %1135 = vst [vmem:[%s1079 + $0x6c] sm:%s1071] %v1134
          %v1136 = vld [vmem:[%s1078 + $0x70] sm:%s1071]
          %1137 = vst [vmem:[%s1079 + $0x70] sm:%s1071] %v1136
          %v1138 = vld [vmem:[%s1078 + $0x78] sm:%s1071]
          %1139 = vst [vmem:[%s1079 + $0x74] sm:%s1071] %v1138
          %v1140 = vld [vmem:[%s1078 + $0x74] sm:%s1071]
          %1141 = vst [vmem:[%s1079 + $0x78] sm:%s1071] %v1140
          %v1142 = vld [vmem:[%s1078 + $0x7c] sm:%s1071]
          %1143 = vst [vmem:[%s1079 + $0x7c] sm:%s1071] %v1142
          %v1144 = vld [vmem:[%s1078 + $0x80] sm:%s1071]
          %1145 = vst [vmem:[%s1079 + $0x80] sm:%s1071] %v1144
          %v1146 = vld [vmem:[%s1078 + $0x88] sm:%s1071]
          %1147 = vst [vmem:[%s1079 + $0x84] sm:%s1071] %v1146
          %v1148 = vld [vmem:[%s1078 + $0x84] sm:%s1071]
          %1149 = vst [vmem:[%s1079 + $0x88] sm:%s1071] %v1148
          %v1150 = vld [vmem:[%s1078 + $0x8c] sm:%s1071]
          %1151 = vst [vmem:[%s1079 + $0x8c] sm:%s1071] %v1150
          %v1152 = vld [vmem:[%s1078 + $0x90] sm:%s1071]
          %1153 = vst [vmem:[%s1079 + $0x90] sm:%s1071] %v1152
          %v1154 = vld [vmem:[%s1078 + $0x98] sm:%s1071]
          %1155 = vst [vmem:[%s1079 + $0x94] sm:%s1071] %v1154
          %v1156 = vld [vmem:[%s1078 + $0x94] sm:%s1071]
          %1157 = vst [vmem:[%s1079 + $0x98] sm:%s1071] %v1156
          %v1158 = vld [vmem:[%s1078 + $0x9c] sm:%s1071]
          %1159 = vst [vmem:[%s1079 + $0x9c] sm:%s1071] %v1158
          %v1160 = vld [vmem:[%s1078 + $0xa0] sm:%s1071]
          %1161 = vst [vmem:[%s1079 + $0xa0] sm:%s1071] %v1160
          %v1162 = vld [vmem:[%s1078 + $0xa8] sm:%s1071]
          %1163 = vst [vmem:[%s1079 + $0xa4] sm:%s1071] %v1162
          %v1164 = vld [vmem:[%s1078 + $0xa4] sm:%s1071]
          %1165 = vst [vmem:[%s1079 + $0xa8] sm:%s1071] %v1164
          %v1166 = vld [vmem:[%s1078 + $0xac] sm:%s1071]
          %1167 = vst [vmem:[%s1079 + $0xac] sm:%s1071] %v1166
          %v1168 = vld [vmem:[%s1078 + $0xb0] sm:%s1071]
          %1169 = vst [vmem:[%s1079 + $0xb0] sm:%s1071] %v1168
          %v1170 = vld [vmem:[%s1078 + $0xb8] sm:%s1071]
          %1171 = vst [vmem:[%s1079 + $0xb4] sm:%s1071] %v1170
          %v1172 = vld [vmem:[%s1078 + $0xb4] sm:%s1071]
          %1173 = vst [vmem:[%s1079 + $0xb8] sm:%s1071] %v1172
          %v1174 = vld [vmem:[%s1078 + $0xbc] sm:%s1071]
          %1175 = vst [vmem:[%s1079 + $0xbc] sm:%s1071] %v1174
          %v1176 = vld [vmem:[%s1078 + $0xc0] sm:%s1071]
          %1177 = vst [vmem:[%s1079 + $0xc0] sm:%s1071] %v1176
          %v1178 = vld [vmem:[%s1078 + $0xc8] sm:%s1071]
          %1179 = vst [vmem:[%s1079 + $0xc4] sm:%s1071] %v1178
          %v1180 = vld [vmem:[%s1078 + $0xc4] sm:%s1071]
          %1181 = vst [vmem:[%s1079 + $0xc8] sm:%s1071] %v1180
          %v1182 = vld [vmem:[%s1078 + $0xcc] sm:%s1071]
          %1183 = vst [vmem:[%s1079 + $0xcc] sm:%s1071] %v1182
          %v1184 = vld [vmem:[%s1078 + $0xd0] sm:%s1071]
          %1185 = vst [vmem:[%s1079 + $0xd0] sm:%s1071] %v1184
          %v1186 = vld [vmem:[%s1078 + $0xd8] sm:%s1071]
          %1187 = vst [vmem:[%s1079 + $0xd4] sm:%s1071] %v1186
          %v1188 = vld [vmem:[%s1078 + $0xd4] sm:%s1071]
          %1189 = vst [vmem:[%s1079 + $0xd8] sm:%s1071] %v1188
          %v1190 = vld [vmem:[%s1078 + $0xdc] sm:%s1071]
          %1191 = vst [vmem:[%s1079 + $0xdc] sm:%s1071] %v1190
          %v1192 = vld [vmem:[%s1078 + $0xe0] sm:%s1071]
          %1193 = vst [vmem:[%s1079 + $0xe0] sm:%s1071] %v1192
          %v1194 = vld [vmem:[%s1078 + $0xe8] sm:%s1071]
          %1195 = vst [vmem:[%s1079 + $0xe4] sm:%s1071] %v1194
          %v1196 = vld [vmem:[%s1078 + $0xe4] sm:%s1071]
          %1197 = vst [vmem:[%s1079 + $0xe8] sm:%s1071] %v1196
          %v1198 = vld [vmem:[%s1078 + $0xec] sm:%s1071]
          %1199 = vst [vmem:[%s1079 + $0xec] sm:%s1071] %v1198
          %v1200 = vld [vmem:[%s1078 + $0xf0] sm:%s1071]
          %1201 = vst [vmem:[%s1079 + $0xf0] sm:%s1071] %v1200
          %v1202 = vld [vmem:[%s1078 + $0xf8] sm:%s1071]
          %1203 = vst [vmem:[%s1079 + $0xf4] sm:%s1071] %v1202
          %v1204 = vld [vmem:[%s1078 + $0xf4] sm:%s1071]
          %1205 = vst [vmem:[%s1079 + $0xf8] sm:%s1071] %v1204
          %v1206 = vld [vmem:[%s1078 + $0xfc] sm:%s1071]
          %1207 = vst [vmem:[%s1079 + $0xfc] sm:%s1071] %v1206
          %v1208 = vld [vmem:[%s1078 + $0x100] sm:%s1071]
          %1209 = vst [vmem:[%s1079 + $0x100] sm:%s1071] %v1208
          %v1210 = vld [vmem:[%s1078 + $0x108] sm:%s1071]
          %1211 = vst [vmem:[%s1079 + $0x104] sm:%s1071] %v1210
          %v1212 = vld [vmem:[%s1078 + $0x104] sm:%s1071]
          %1213 = vst [vmem:[%s1079 + $0x108] sm:%s1071] %v1212
          %v1214 = vld [vmem:[%s1078 + $0x10c] sm:%s1071]
          %1215 = vst [vmem:[%s1079 + $0x10c] sm:%s1071] %v1214
          %v1216 = vld [vmem:[%s1078 + $0x110] sm:%s1071]
          %1217 = vst [vmem:[%s1079 + $0x110] sm:%s1071] %v1216
          %v1218 = vld [vmem:[%s1078 + $0x118] sm:%s1071]
          %1219 = vst [vmem:[%s1079 + $0x114] sm:%s1071] %v1218
          %v1220 = vld [vmem:[%s1078 + $0x114] sm:%s1071]
          %1221 = vst [vmem:[%s1079 + $0x118] sm:%s1071] %v1220
          %v1222 = vld [vmem:[%s1078 + $0x11c] sm:%s1071]
          %1223 = vst [vmem:[%s1079 + $0x11c] sm:%s1071] %v1222
          %v1224 = vld [vmem:[%s1078 + $0x120] sm:%s1071]
          %1225 = vst [vmem:[%s1079 + $0x120] sm:%s1071] %v1224
          %v1226 = vld [vmem:[%s1078 + $0x128] sm:%s1071]
          %1227 = vst [vmem:[%s1079 + $0x124] sm:%s1071] %v1226
          %v1228 = vld [vmem:[%s1078 + $0x124] sm:%s1071]
          %1229 = vst [vmem:[%s1079 + $0x128] sm:%s1071] %v1228
          %v1230 = vld [vmem:[%s1078 + $0x12c] sm:%s1071]
          %1231 = vst [vmem:[%s1079 + $0x12c] sm:%s1071] %v1230
          %v1232 = vld [vmem:[%s1078 + $0x130] sm:%s1071]
          %1233 = vst [vmem:[%s1079 + $0x130] sm:%s1071] %v1232
          %v1234 = vld [vmem:[%s1078 + $0x138] sm:%s1071]
          %1235 = vst [vmem:[%s1079 + $0x134] sm:%s1071] %v1234
          %v1236 = vld [vmem:[%s1078 + $0x134] sm:%s1071]
          %1237 = vst [vmem:[%s1079 + $0x138] sm:%s1071] %v1236
          %v1238 = vld [vmem:[%s1078 + $0x13c] sm:%s1071]
          %1239 = vst [vmem:[%s1079 + $0x13c] sm:%s1071] %v1238
          %v1240 = vld [vmem:[%s1078 + $0x140] sm:%s1071]
          %1241 = vst [vmem:[%s1079 + $0x140] sm:%s1071] %v1240
          %v1242 = vld [vmem:[%s1078 + $0x148] sm:%s1071]
          %1243 = vst [vmem:[%s1079 + $0x144] sm:%s1071] %v1242
          %v1244 = vld [vmem:[%s1078 + $0x144] sm:%s1071]
          %1245 = vst [vmem:[%s1079 + $0x148] sm:%s1071] %v1244
          %v1246 = vld [vmem:[%s1078 + $0x14c] sm:%s1071]
          %1247 = vst [vmem:[%s1079 + $0x14c] sm:%s1071] %v1246
          %v1248 = vld [vmem:[%s1078 + $0x150] sm:%s1071]
          %1249 = vst [vmem:[%s1079 + $0x150] sm:%s1071] %v1248
          %v1250 = vld [vmem:[%s1078 + $0x158] sm:%s1071]
          %1251 = vst [vmem:[%s1079 + $0x154] sm:%s1071] %v1250
          %v1252 = vld [vmem:[%s1078 + $0x154] sm:%s1071]
          %1253 = vst [vmem:[%s1079 + $0x158] sm:%s1071] %v1252
          %v1254 = vld [vmem:[%s1078 + $0x15c] sm:%s1071]
          %1255 = vst [vmem:[%s1079 + $0x15c] sm:%s1071] %v1254
          %v1256 = vld [vmem:[%s1078 + $0x160] sm:%s1071]
          %1257 = vst [vmem:[%s1079 + $0x160] sm:%s1071] %v1256
          %v1258 = vld [vmem:[%s1078 + $0x168] sm:%s1071]
          %1259 = vst [vmem:[%s1079 + $0x164] sm:%s1071] %v1258
          %v1260 = vld [vmem:[%s1078 + $0x164] sm:%s1071]
          %1261 = vst [vmem:[%s1079 + $0x168] sm:%s1071] %v1260
          %v1262 = vld [vmem:[%s1078 + $0x16c] sm:%s1071]
          %1263 = vst [vmem:[%s1079 + $0x16c] sm:%s1071] %v1262
          %v1264 = vld [vmem:[%s1078 + $0x170] sm:%s1071]
          %1265 = vst [vmem:[%s1079 + $0x170] sm:%s1071] %v1264
          %v1266 = vld [vmem:[%s1078 + $0x178] sm:%s1071]
          %1267 = vst [vmem:[%s1079 + $0x174] sm:%s1071] %v1266
          %v1268 = vld [vmem:[%s1078 + $0x174] sm:%s1071]
          %1269 = vst [vmem:[%s1079 + $0x178] sm:%s1071] %v1268
          %v1270 = vld [vmem:[%s1078 + $0x17c] sm:%s1071]
          %1271 = vst [vmem:[%s1079 + $0x17c] sm:%s1071] %v1270
        $region93: #{net_sc_forward.1} parent=80 // loop_footer
          %s1077 = sadd.s32 1, %s1073
        $region94: #{net_sc_forward.1} parent=80 // loop_footer_branch
          %1072 = sbr.rel target = $region90
        $region95: #{net_sc_forward.1} parent=80 // loop_exit
          _
      $region81: #{net_sc_forward.1} parent=65 // pred_fallthru
        _
    $region66: #{net_sc_forward.1} parent=1 // pred_fallthru
      _
    // Predicated region
    $region67: #{net_sc_forward.1} parent=1 // pred_check
      %p849 = pneg %p845
    $region68: #{net_sc_forward.1} parent=1 // pred_check_branch
      %851 = sbr.rel (%p849) target = $region70
    $region69: #{net_sc_forward.1} parent=1 // pred_region
      %s852 = sshllo.u32 0, 4
      loop: start=0, step=1, limit=1
      $region71: #{net_sc_forward.1} parent=69 // loop_pre_header
        _
      $region72: #{net_sc_forward.1} parent=69 // loop_header
        %s854 = sphi 0, %s858
        %p855 = scmp.ge.s32.totalorder %s854, 1
        %s859 = sphi %s7, %s7
        %s860 = sphi [#allocation5], [#allocation5]
      $region73: #{net_sc_forward.1} parent=69 // loop_header_branch
        %857 = sbr.rel (%p855) target = $region77
      $region74: #{net_sc_forward.1} parent=69 // loop_body
        %v861 = vld [vmem:[%s859] sm:%s852]
        %862 = vst [vmem:[%s860] sm:%s852] %v861
        %v863 = vld [vmem:[%s859 + $0x8] sm:%s852]
        %864 = vst [vmem:[%s860 + $0x4] sm:%s852] %v863
        %v865 = vld [vmem:[%s859 + $0x4] sm:%s852]
        %866 = vst [vmem:[%s860 + $0x8] sm:%s852] %v865
        %v867 = vld [vmem:[%s859 + $0xc] sm:%s852]
        %868 = vst [vmem:[%s860 + $0xc] sm:%s852] %v867
        %v869 = vld [vmem:[%s859 + $0x10] sm:%s852]
        %870 = vst [vmem:[%s860 + $0x10] sm:%s852] %v869
        %v871 = vld [vmem:[%s859 + $0x18] sm:%s852]
        %872 = vst [vmem:[%s860 + $0x14] sm:%s852] %v871
        %v873 = vld [vmem:[%s859 + $0x14] sm:%s852]
        %874 = vst [vmem:[%s860 + $0x18] sm:%s852] %v873
        %v875 = vld [vmem:[%s859 + $0x1c] sm:%s852]
        %876 = vst [vmem:[%s860 + $0x1c] sm:%s852] %v875
        %v877 = vld [vmem:[%s859 + $0x20] sm:%s852]
        %878 = vst [vmem:[%s860 + $0x20] sm:%s852] %v877
        %v879 = vld [vmem:[%s859 + $0x28] sm:%s852]
        %880 = vst [vmem:[%s860 + $0x24] sm:%s852] %v879
        %v881 = vld [vmem:[%s859 + $0x24] sm:%s852]
        %882 = vst [vmem:[%s860 + $0x28] sm:%s852] %v881
        %v883 = vld [vmem:[%s859 + $0x2c] sm:%s852]
        %884 = vst [vmem:[%s860 + $0x2c] sm:%s852] %v883
        %v885 = vld [vmem:[%s859 + $0x30] sm:%s852]
        %886 = vst [vmem:[%s860 + $0x30] sm:%s852] %v885
        %v887 = vld [vmem:[%s859 + $0x38] sm:%s852]
        %888 = vst [vmem:[%s860 + $0x34] sm:%s852] %v887
        %v889 = vld [vmem:[%s859 + $0x34] sm:%s852]
        %890 = vst [vmem:[%s860 + $0x38] sm:%s852] %v889
        %v891 = vld [vmem:[%s859 + $0x3c] sm:%s852]
        %892 = vst [vmem:[%s860 + $0x3c] sm:%s852] %v891
        %v893 = vld [vmem:[%s859 + $0x40] sm:%s852]
        %894 = vst [vmem:[%s860 + $0x40] sm:%s852] %v893
        %v895 = vld [vmem:[%s859 + $0x48] sm:%s852]
        %896 = vst [vmem:[%s860 + $0x44] sm:%s852] %v895
        %v897 = vld [vmem:[%s859 + $0x44] sm:%s852]
        %898 = vst [vmem:[%s860 + $0x48] sm:%s852] %v897
        %v899 = vld [vmem:[%s859 + $0x4c] sm:%s852]
        %900 = vst [vmem:[%s860 + $0x4c] sm:%s852] %v899
        %v901 = vld [vmem:[%s859 + $0x50] sm:%s852]
        %902 = vst [vmem:[%s860 + $0x50] sm:%s852] %v901
        %v903 = vld [vmem:[%s859 + $0x58] sm:%s852]
        %904 = vst [vmem:[%s860 + $0x54] sm:%s852] %v903
        %v905 = vld [vmem:[%s859 + $0x54] sm:%s852]
        %906 = vst [vmem:[%s860 + $0x58] sm:%s852] %v905
        %v907 = vld [vmem:[%s859 + $0x5c] sm:%s852]
        %908 = vst [vmem:[%s860 + $0x5c] sm:%s852] %v907
        %v909 = vld [vmem:[%s859 + $0x60] sm:%s852]
        %910 = vst [vmem:[%s860 + $0x60] sm:%s852] %v909
        %v911 = vld [vmem:[%s859 + $0x68] sm:%s852]
        %912 = vst [vmem:[%s860 + $0x64] sm:%s852] %v911
        %v913 = vld [vmem:[%s859 + $0x64] sm:%s852]
        %914 = vst [vmem:[%s860 + $0x68] sm:%s852] %v913
        %v915 = vld [vmem:[%s859 + $0x6c] sm:%s852]
        %916 = vst [vmem:[%s860 + $0x6c] sm:%s852] %v915
        %v917 = vld [vmem:[%s859 + $0x70] sm:%s852]
        %918 = vst [vmem:[%s860 + $0x70] sm:%s852] %v917
        %v919 = vld [vmem:[%s859 + $0x78] sm:%s852]
        %920 = vst [vmem:[%s860 + $0x74] sm:%s852] %v919
        %v921 = vld [vmem:[%s859 + $0x74] sm:%s852]
        %922 = vst [vmem:[%s860 + $0x78] sm:%s852] %v921
        %v923 = vld [vmem:[%s859 + $0x7c] sm:%s852]
        %924 = vst [vmem:[%s860 + $0x7c] sm:%s852] %v923
        %v925 = vld [vmem:[%s859 + $0x80] sm:%s852]
        %926 = vst [vmem:[%s860 + $0x80] sm:%s852] %v925
        %v927 = vld [vmem:[%s859 + $0x88] sm:%s852]
        %928 = vst [vmem:[%s860 + $0x84] sm:%s852] %v927
        %v929 = vld [vmem:[%s859 + $0x84] sm:%s852]
        %930 = vst [vmem:[%s860 + $0x88] sm:%s852] %v929
        %v931 = vld [vmem:[%s859 + $0x8c] sm:%s852]
        %932 = vst [vmem:[%s860 + $0x8c] sm:%s852] %v931
        %v933 = vld [vmem:[%s859 + $0x90] sm:%s852]
        %934 = vst [vmem:[%s860 + $0x90] sm:%s852] %v933
        %v935 = vld [vmem:[%s859 + $0x98] sm:%s852]
        %936 = vst [vmem:[%s860 + $0x94] sm:%s852] %v935
        %v937 = vld [vmem:[%s859 + $0x94] sm:%s852]
        %938 = vst [vmem:[%s860 + $0x98] sm:%s852] %v937
        %v939 = vld [vmem:[%s859 + $0x9c] sm:%s852]
        %940 = vst [vmem:[%s860 + $0x9c] sm:%s852] %v939
        %v941 = vld [vmem:[%s859 + $0xa0] sm:%s852]
        %942 = vst [vmem:[%s860 + $0xa0] sm:%s852] %v941
        %v943 = vld [vmem:[%s859 + $0xa8] sm:%s852]
        %944 = vst [vmem:[%s860 + $0xa4] sm:%s852] %v943
        %v945 = vld [vmem:[%s859 + $0xa4] sm:%s852]
        %946 = vst [vmem:[%s860 + $0xa8] sm:%s852] %v945
        %v947 = vld [vmem:[%s859 + $0xac] sm:%s852]
        %948 = vst [vmem:[%s860 + $0xac] sm:%s852] %v947
        %v949 = vld [vmem:[%s859 + $0xb0] sm:%s852]
        %950 = vst [vmem:[%s860 + $0xb0] sm:%s852] %v949
        %v951 = vld [vmem:[%s859 + $0xb8] sm:%s852]
        %952 = vst [vmem:[%s860 + $0xb4] sm:%s852] %v951
        %v953 = vld [vmem:[%s859 + $0xb4] sm:%s852]
        %954 = vst [vmem:[%s860 + $0xb8] sm:%s852] %v953
        %v955 = vld [vmem:[%s859 + $0xbc] sm:%s852]
        %956 = vst [vmem:[%s860 + $0xbc] sm:%s852] %v955
        %v957 = vld [vmem:[%s859 + $0xc0] sm:%s852]
        %958 = vst [vmem:[%s860 + $0xc0] sm:%s852] %v957
        %v959 = vld [vmem:[%s859 + $0xc8] sm:%s852]
        %960 = vst [vmem:[%s860 + $0xc4] sm:%s852] %v959
        %v961 = vld [vmem:[%s859 + $0xc4] sm:%s852]
        %962 = vst [vmem:[%s860 + $0xc8] sm:%s852] %v961
        %v963 = vld [vmem:[%s859 + $0xcc] sm:%s852]
        %964 = vst [vmem:[%s860 + $0xcc] sm:%s852] %v963
        %v965 = vld [vmem:[%s859 + $0xd0] sm:%s852]
        %966 = vst [vmem:[%s860 + $0xd0] sm:%s852] %v965
        %v967 = vld [vmem:[%s859 + $0xd8] sm:%s852]
        %968 = vst [vmem:[%s860 + $0xd4] sm:%s852] %v967
        %v969 = vld [vmem:[%s859 + $0xd4] sm:%s852]
        %970 = vst [vmem:[%s860 + $0xd8] sm:%s852] %v969
        %v971 = vld [vmem:[%s859 + $0xdc] sm:%s852]
        %972 = vst [vmem:[%s860 + $0xdc] sm:%s852] %v971
        %v973 = vld [vmem:[%s859 + $0xe0] sm:%s852]
        %974 = vst [vmem:[%s860 + $0xe0] sm:%s852] %v973
        %v975 = vld [vmem:[%s859 + $0xe8] sm:%s852]
        %976 = vst [vmem:[%s860 + $0xe4] sm:%s852] %v975
        %v977 = vld [vmem:[%s859 + $0xe4] sm:%s852]
        %978 = vst [vmem:[%s860 + $0xe8] sm:%s852] %v977
        %v979 = vld [vmem:[%s859 + $0xec] sm:%s852]
        %980 = vst [vmem:[%s860 + $0xec] sm:%s852] %v979
        %v981 = vld [vmem:[%s859 + $0xf0] sm:%s852]
        %982 = vst [vmem:[%s860 + $0xf0] sm:%s852] %v981
        %v983 = vld [vmem:[%s859 + $0xf8] sm:%s852]
        %984 = vst [vmem:[%s860 + $0xf4] sm:%s852] %v983
        %v985 = vld [vmem:[%s859 + $0xf4] sm:%s852]
        %986 = vst [vmem:[%s860 + $0xf8] sm:%s852] %v985
        %v987 = vld [vmem:[%s859 + $0xfc] sm:%s852]
        %988 = vst [vmem:[%s860 + $0xfc] sm:%s852] %v987
        %v989 = vld [vmem:[%s859 + $0x100] sm:%s852]
        %990 = vst [vmem:[%s860 + $0x100] sm:%s852] %v989
        %v991 = vld [vmem:[%s859 + $0x108] sm:%s852]
        %992 = vst [vmem:[%s860 + $0x104] sm:%s852] %v991
        %v993 = vld [vmem:[%s859 + $0x104] sm:%s852]
        %994 = vst [vmem:[%s860 + $0x108] sm:%s852] %v993
        %v995 = vld [vmem:[%s859 + $0x10c] sm:%s852]
        %996 = vst [vmem:[%s860 + $0x10c] sm:%s852] %v995
        %v997 = vld [vmem:[%s859 + $0x110] sm:%s852]
        %998 = vst [vmem:[%s860 + $0x110] sm:%s852] %v997
        %v999 = vld [vmem:[%s859 + $0x118] sm:%s852]
        %1000 = vst [vmem:[%s860 + $0x114] sm:%s852] %v999
        %v1001 = vld [vmem:[%s859 + $0x114] sm:%s852]
        %1002 = vst [vmem:[%s860 + $0x118] sm:%s852] %v1001
        %v1003 = vld [vmem:[%s859 + $0x11c] sm:%s852]
        %1004 = vst [vmem:[%s860 + $0x11c] sm:%s852] %v1003
        %v1005 = vld [vmem:[%s859 + $0x120] sm:%s852]
        %1006 = vst [vmem:[%s860 + $0x120] sm:%s852] %v1005
        %v1007 = vld [vmem:[%s859 + $0x128] sm:%s852]
        %1008 = vst [vmem:[%s860 + $0x124] sm:%s852] %v1007
        %v1009 = vld [vmem:[%s859 + $0x124] sm:%s852]
        %1010 = vst [vmem:[%s860 + $0x128] sm:%s852] %v1009
        %v1011 = vld [vmem:[%s859 + $0x12c] sm:%s852]
        %1012 = vst [vmem:[%s860 + $0x12c] sm:%s852] %v1011
        %v1013 = vld [vmem:[%s859 + $0x130] sm:%s852]
        %1014 = vst [vmem:[%s860 + $0x130] sm:%s852] %v1013
        %v1015 = vld [vmem:[%s859 + $0x138] sm:%s852]
        %1016 = vst [vmem:[%s860 + $0x134] sm:%s852] %v1015
        %v1017 = vld [vmem:[%s859 + $0x134] sm:%s852]
        %1018 = vst [vmem:[%s860 + $0x138] sm:%s852] %v1017
        %v1019 = vld [vmem:[%s859 + $0x13c] sm:%s852]
        %1020 = vst [vmem:[%s860 + $0x13c] sm:%s852] %v1019
        %v1021 = vld [vmem:[%s859 + $0x140] sm:%s852]
        %1022 = vst [vmem:[%s860 + $0x140] sm:%s852] %v1021
        %v1023 = vld [vmem:[%s859 + $0x148] sm:%s852]
        %1024 = vst [vmem:[%s860 + $0x144] sm:%s852] %v1023
        %v1025 = vld [vmem:[%s859 + $0x144] sm:%s852]
        %1026 = vst [vmem:[%s860 + $0x148] sm:%s852] %v1025
        %v1027 = vld [vmem:[%s859 + $0x14c] sm:%s852]
        %1028 = vst [vmem:[%s860 + $0x14c] sm:%s852] %v1027
        %v1029 = vld [vmem:[%s859 + $0x150] sm:%s852]
        %1030 = vst [vmem:[%s860 + $0x150] sm:%s852] %v1029
        %v1031 = vld [vmem:[%s859 + $0x158] sm:%s852]
        %1032 = vst [vmem:[%s860 + $0x154] sm:%s852] %v1031
        %v1033 = vld [vmem:[%s859 + $0x154] sm:%s852]
        %1034 = vst [vmem:[%s860 + $0x158] sm:%s852] %v1033
        %v1035 = vld [vmem:[%s859 + $0x15c] sm:%s852]
        %1036 = vst [vmem:[%s860 + $0x15c] sm:%s852] %v1035
        %v1037 = vld [vmem:[%s859 + $0x160] sm:%s852]
        %1038 = vst [vmem:[%s860 + $0x160] sm:%s852] %v1037
        %v1039 = vld [vmem:[%s859 + $0x168] sm:%s852]
        %1040 = vst [vmem:[%s860 + $0x164] sm:%s852] %v1039
        %v1041 = vld [vmem:[%s859 + $0x164] sm:%s852]
        %1042 = vst [vmem:[%s860 + $0x168] sm:%s852] %v1041
        %v1043 = vld [vmem:[%s859 + $0x16c] sm:%s852]
        %1044 = vst [vmem:[%s860 + $0x16c] sm:%s852] %v1043
        %v1045 = vld [vmem:[%s859 + $0x170] sm:%s852]
        %1046 = vst [vmem:[%s860 + $0x170] sm:%s852] %v1045
        %v1047 = vld [vmem:[%s859 + $0x178] sm:%s852]
        %1048 = vst [vmem:[%s860 + $0x174] sm:%s852] %v1047
        %v1049 = vld [vmem:[%s859 + $0x174] sm:%s852]
        %1050 = vst [vmem:[%s860 + $0x178] sm:%s852] %v1049
        %v1051 = vld [vmem:[%s859 + $0x17c] sm:%s852]
        %1052 = vst [vmem:[%s860 + $0x17c] sm:%s852] %v1051
      $region75: #{net_sc_forward.1} parent=69 // loop_footer
        %s858 = sadd.s32 1, %s854
      $region76: #{net_sc_forward.1} parent=69 // loop_footer_branch
        %853 = sbr.rel target = $region72
      $region77: #{net_sc_forward.1} parent=69 // loop_exit
        _
    $region70: #{net_sc_forward.1} parent=1 // pred_fallthru
      _
    // Predicated region
    $region96: #{net_sc_forward.1} parent=1 // pred_check
      _
    $region97: #{net_sc_forward.1} parent=1 // pred_check_branch
      %1274 = sbr.rel (0) target = $region99
    $region98: #{net_sc_forward.1} parent=1 // pred_region
      %1275 = vsyncadd %s843, 6144
    $region99: #{net_sc_forward.1} parent=1 // pred_fallthru
      _
    %v1276 = vlaneseq
    %v1277 = vshrl.u32 %v1276, 7
    %v1278 = vadd.s32 %v1277, 8
    %vm1279 = vcmp.ge.s32.totalorder %v1277, 2
    %vm1280 = vcmp.ge.s32.totalorder %v1278, 2
    %vm1281 = vcmp.le.s32.totalorder %v1277, 12
    %vm1282 = vcmp.le.s32.totalorder %v1278, 12
    %vm1283 = vmand %vm1279, %vm1281
    %vm1284 = vmand %vm1280, %vm1282
    %v1285 = vsel %vm1283, 1, 0
    %v1286 = vsel %vm1284, 1, 0
    %v1287 = vcvt.s32.f32 %v1285
    %v1288 = vcvt.s32.f32 %v1286
    %vm1289 = vcmp.ge.s32.totalorder %v1277, 1
    %vm1290 = vcmp.ge.s32.totalorder %v1278, 1
    %vm1291 = vcmp.le.s32.totalorder %v1277, 13
    %vm1292 = vcmp.le.s32.totalorder %v1278, 13
    %vm1293 = vmand %vm1289, %vm1291
    %vm1294 = vmand %vm1290, %vm1292
    %v1295 = vsel %vm1293, 1, 0
    %v1296 = vsel %vm1294, 1, 0
    %v1297 = vcvt.s32.f32 %v1295
    %v1298 = vcvt.s32.f32 %v1296
    %vm1299 = vcmp.le.s32.totalorder %v1277, 14
    %vm1300 = vcmp.le.s32.totalorder %v1278, 14
    %v1301 = vsel %vm1299, 1, 0
    %v1302 = vsel %vm1300, 1, 0
    %v1303 = vcvt.s32.f32 %v1301
    %v1304 = vcvt.s32.f32 %v1302
    %v1305 = vld [vmem:[%s0] sm:$0xf]
    %v1306 = vld [vmem:[%s0 + $0x4] sm:$0xf]
    %v1307 = vld [vmem:[%s0 + $0x8] sm:$0xf]
    %v1308 = vld [vmem:[%s0 + $0xc] sm:$0xf]
    %v1309 = vld [vmem:[%s0 + $0x10] sm:$0xf]
    %v1310 = vld [vmem:[%s0 + $0x14] sm:$0xf]
    %v1311 = vld [vmem:[%s0 + $0x18] sm:$0xf]
    %v1312 = vld [vmem:[%s0 + $0x1c] sm:$0xf]
    %v1313 = vld [vmem:[%s0 + $0x20] sm:$0xf]
    %v1314 = vld [vmem:[%s0 + $0x24] sm:$0xf]
    %v1315 = vld [vmem:[%s0 + $0x28] sm:$0xf]
    %v1316 = vld [vmem:[%s0 + $0x2c] sm:$0xf]
    %v1317 = vld [vmem:[%s0 + $0x30] sm:$0xf]
    %v1318 = vld [vmem:[%s0 + $0x34] sm:$0xf]
    %v1319 = vld [vmem:[%s0 + $0x38] sm:$0xf]
    %v1320 = vld [vmem:[%s0 + $0x3c] sm:$0xf]
    %v1321 = vld [vmem:[%s0 + $0x40] sm:$0xf]
    %v1322 = vld [vmem:[%s0 + $0x44] sm:$0xf]
    %v1323 = vld [vmem:[%s0 + $0x48] sm:$0xf]
    %v1324 = vld [vmem:[%s0 + $0x4c] sm:$0xf]
    %v1325 = vld [vmem:[%s0 + $0x50] sm:$0xf]
    %v1326 = vld [vmem:[%s0 + $0x54] sm:$0xf]
    %v1327 = vld [vmem:[%s0 + $0x58] sm:$0xf]
    %v1328 = vld [vmem:[%s0 + $0x5c] sm:$0xf]
    %v1329 = vld [vmem:[%s0 + $0x60] sm:$0xf]
    %v1330 = vld [vmem:[%s0 + $0x64] sm:$0xf]
    %v1331 = vld [vmem:[%s0 + $0x68] sm:$0xf]
    %v1332 = vld [vmem:[%s0 + $0x6c] sm:$0xf]
    %v1333 = vld [vmem:[%s0 + $0x70] sm:$0xf]
    %v1334 = vld [vmem:[%s0 + $0x74] sm:$0xf]
    %v1335 = vld [vmem:[%s0 + $0x78] sm:$0xf]
    %v1336 = vld [vmem:[%s0 + $0x7c] sm:$0xf]
    %v1337 = vld [vmem:[%s0 + $0x80] sm:$0xf]
    %v1338 = vld [vmem:[%s0 + $0x84] sm:$0xf]
    %v1339 = vld [vmem:[%s0 + $0x88] sm:$0xf]
    %v1340 = vld [vmem:[%s0 + $0x8c] sm:$0xf]
    %v1341 = vld [vmem:[%s0 + $0x90] sm:$0xf]
    %v1342 = vld [vmem:[%s0 + $0x94] sm:$0xf]
    %v1343 = vld [vmem:[%s0 + $0x98] sm:$0xf]
    %v1344 = vld [vmem:[%s0 + $0x9c] sm:$0xf]
    %v1345 = vld [vmem:[%s0 + $0xa0] sm:$0xf]
    %v1346 = vld [vmem:[%s0 + $0xa4] sm:$0xf]
    %v1347 = vld [vmem:[%s0 + $0xa8] sm:$0xf]
    %v1348 = vld [vmem:[%s0 + $0xac] sm:$0xf]
    %v1349 = vld [vmem:[%s0 + $0xb0] sm:$0xf]
    %v1350 = vld [vmem:[%s0 + $0xb4] sm:$0xf]
    %v1351 = vld [vmem:[%s0 + $0xb8] sm:$0xf]
    %v1352 = vld [vmem:[%s0 + $0xbc] sm:$0xf]
    %v1353 = vld [vmem:[%s0 + $0xc0] sm:$0xf]
    %v1354 = vld [vmem:[%s0 + $0xc4] sm:$0xf]
    %v1355 = vld [vmem:[%s0 + $0xc8] sm:$0xf]
    %v1356 = vld [vmem:[%s0 + $0xcc] sm:$0xf]
    %v1357 = vld [vmem:[%s0 + $0xd0] sm:$0xf]
    %v1358 = vld [vmem:[%s0 + $0xd4] sm:$0xf]
    %v1359 = vld [vmem:[%s0 + $0xd8] sm:$0xf]
    %v1360 = vld [vmem:[%s0 + $0xdc] sm:$0xf]
    %v1361 = vld [vmem:[%s0 + $0xe0] sm:$0xf]
    %v1362 = vld [vmem:[%s0 + $0xe4] sm:$0xf]
    %v1363 = vld [vmem:[%s0 + $0xe8] sm:$0xf]
    %v1364 = vld [vmem:[%s0 + $0xec] sm:$0xf]
    %v1365 = vld [vmem:[%s0 + $0xf0] sm:$0xf]
    %v1366 = vld [vmem:[%s0 + $0xf4] sm:$0xf]
    %v1367 = vld [vmem:[%s0 + $0xf8] sm:$0xf]
    %v1368 = vld [vmem:[%s0 + $0xfc] sm:$0xf]
    %v1369 = vld [vmem:[%s0 + $0x100] sm:$0xf]
    %v1370 = vld [vmem:[%s0 + $0x104] sm:$0xf]
    %v1371 = vld [vmem:[%s0 + $0x108] sm:$0xf]
    %v1372 = vld [vmem:[%s0 + $0x10c] sm:$0xf]
    %v1373 = vld [vmem:[%s0 + $0x110] sm:$0xf]
    %v1374 = vld [vmem:[%s0 + $0x114] sm:$0xf]
    %v1375 = vld [vmem:[%s0 + $0x118] sm:$0xf]
    %v1376 = vld [vmem:[%s0 + $0x11c] sm:$0xf]
    %v1377 = vld [vmem:[%s0 + $0x120] sm:$0xf]
    %v1378 = vld [vmem:[%s0 + $0x124] sm:$0xf]
    %v1379 = vld [vmem:[%s0 + $0x128] sm:$0xf]
    %v1380 = vld [vmem:[%s0 + $0x12c] sm:$0xf]
    %v1381 = vld [vmem:[%s0 + $0x130] sm:$0xf]
    %v1382 = vld [vmem:[%s0 + $0x134] sm:$0xf]
    %v1383 = vld [vmem:[%s0 + $0x138] sm:$0xf]
    %v1384 = vld [vmem:[%s0 + $0x13c] sm:$0xf]
    %v1385 = vld [vmem:[%s0 + $0x140] sm:$0xf]
    %v1386 = vld [vmem:[%s0 + $0x144] sm:$0xf]
    %v1387 = vld [vmem:[%s0 + $0x148] sm:$0xf]
    %v1388 = vld [vmem:[%s0 + $0x14c] sm:$0xf]
    %v1389 = vld [vmem:[%s0 + $0x150] sm:$0xf]
    %v1390 = vld [vmem:[%s0 + $0x154] sm:$0xf]
    %v1391 = vld [vmem:[%s0 + $0x158] sm:$0xf]
    %v1392 = vld [vmem:[%s0 + $0x15c] sm:$0xf]
    %v1393 = vld [vmem:[%s0 + $0x160] sm:$0xf]
    %v1394 = vld [vmem:[%s0 + $0x164] sm:$0xf]
    %v1395 = vld [vmem:[%s0 + $0x168] sm:$0xf]
    %v1396 = vld [vmem:[%s0 + $0x16c] sm:$0xf]
    %v1397 = vld [vmem:[%s0 + $0x170] sm:$0xf]
    %v1398 = vld [vmem:[%s0 + $0x174] sm:$0xf]
    %v1399 = vld [vmem:[%s0 + $0x178] sm:$0xf]
    %v1400 = vld [vmem:[%s0 + $0x17c] sm:$0xf]
    %v1401 = vld [vmem:[%s0 + $0x180] sm:$0xf]
    %v1402 = vld [vmem:[%s0 + $0x184] sm:$0xf]
    %v1403 = vld [vmem:[%s0 + $0x188] sm:$0xf]
    %v1404 = vld [vmem:[%s0 + $0x18c] sm:$0xf]
    %v1405 = vld [vmem:[%s0 + $0x190] sm:$0xf]
    %v1406 = vld [vmem:[%s0 + $0x194] sm:$0xf]
    %v1407 = vld [vmem:[%s0 + $0x198] sm:$0xf]
    %v1408 = vld [vmem:[%s0 + $0x19c] sm:$0xf]
    %v1409 = vld [vmem:[%s0 + $0x1a0] sm:$0xf]
    %v1410 = vld [vmem:[%s0 + $0x1a4] sm:$0xf]
    %v1411 = vld [vmem:[%s0 + $0x1a8] sm:$0xf]
    %v1412 = vld [vmem:[%s0 + $0x1ac] sm:$0xf]
    %v1413 = vld [vmem:[%s0 + $0x1b0] sm:$0xf]
    %v1414 = vld [vmem:[%s0 + $0x1b4] sm:$0xf]
    %v1415 = vld [vmem:[%s0 + $0x1b8] sm:$0xf]
    %v1416 = vld [vmem:[%s0 + $0x1bc] sm:$0xf]
    %v1417 = vld [vmem:[%s0 + $0x1c0] sm:$0xf]
    %v1418 = vld [vmem:[%s0 + $0x1c4] sm:$0xf]
    %v1419 = vld [vmem:[%s0 + $0x1c8] sm:$0xf]
    %v1420 = vld [vmem:[%s0 + $0x1cc] sm:$0xf]
    %v1421 = vld [vmem:[%s0 + $0x1d0] sm:$0xf]
    %v1422 = vld [vmem:[%s0 + $0x1d4] sm:$0xf]
    %v1423 = vld [vmem:[%s0 + $0x1d8] sm:$0xf]
    %v1424 = vld [vmem:[%s0 + $0x1dc] sm:$0xf]
    %v1425 = vld [vmem:[%s0 + $0x1e0] sm:$0xf]
    %v1426 = vld [vmem:[%s0 + $0x1e4] sm:$0xf]
    %v1427 = vld [vmem:[%s0 + $0x1e8] sm:$0xf]
    %v1428 = vld [vmem:[%s0 + $0x1ec] sm:$0xf]
    %v1429 = vld [vmem:[%s0 + $0x1f0] sm:$0xf]
    %v1430 = vld [vmem:[%s0 + $0x1f4] sm:$0xf]
    %v1431 = vld [vmem:[%s0 + $0x1f8] sm:$0xf]
    %v1432 = vld [vmem:[%s0 + $0x1fc] sm:$0xf]
    %v1433 = vld [vmem:[%s0 + $0x200] sm:$0xf]
    %v1434 = vld [vmem:[%s0 + $0x204] sm:$0xf]
    %v1435 = vld [vmem:[%s0 + $0x208] sm:$0xf]
    %v1436 = vld [vmem:[%s0 + $0x20c] sm:$0xf]
    %v1437 = vld [vmem:[%s0 + $0x210] sm:$0xf]
    %v1438 = vld [vmem:[%s0 + $0x214] sm:$0xf]
    %v1439 = vld [vmem:[%s0 + $0x218] sm:$0xf]
    %v1440 = vld [vmem:[%s0 + $0x21c] sm:$0xf]
    %v1441 = vld [vmem:[%s0 + $0x220] sm:$0xf]
    %v1442 = vld [vmem:[%s0 + $0x224] sm:$0xf]
    %v1443 = vld [vmem:[%s0 + $0x228] sm:$0xf]
    %v1444 = vld [vmem:[%s0 + $0x22c] sm:$0xf]
    %v1445 = vld [vmem:[%s0 + $0x230] sm:$0xf]
    %v1446 = vld [vmem:[%s0 + $0x234] sm:$0xf]
    %v1447 = vld [vmem:[%s0 + $0x238] sm:$0xf]
    %v1448 = vld [vmem:[%s0 + $0x23c] sm:$0xf]
    %v1449 = vld [vmem:[%s0 + $0x240] sm:$0xf]
    %v1450 = vld [vmem:[%s0 + $0x244] sm:$0xf]
    %v1451 = vld [vmem:[%s0 + $0x248] sm:$0xf]
    %v1452 = vld [vmem:[%s0 + $0x24c] sm:$0xf]
    %v1453 = vld [vmem:[%s0 + $0x250] sm:$0xf]
    %v1454 = vld [vmem:[%s0 + $0x254] sm:$0xf]
    %v1455 = vld [vmem:[%s0 + $0x258] sm:$0xf]
    %v1456 = vld [vmem:[%s0 + $0x25c] sm:$0xf]
    %v1457 = vld [vmem:[%s0 + $0x260] sm:$0xf]
    %v1458 = vld [vmem:[%s0 + $0x264] sm:$0xf]
    %v1459 = vld [vmem:[%s0 + $0x268] sm:$0xf]
    %v1460 = vld [vmem:[%s0 + $0x26c] sm:$0xf]
    %v1461 = vld [vmem:[%s0 + $0x270] sm:$0xf]
    %v1462 = vld [vmem:[%s0 + $0x274] sm:$0xf]
    %v1463 = vld [vmem:[%s0 + $0x278] sm:$0xf]
    %v1464 = vld [vmem:[%s0 + $0x27c] sm:$0xf]
    %v1465 = vld [vmem:[%s0 + $0x280] sm:$0xf]
    %v1466 = vld [vmem:[%s0 + $0x284] sm:$0xf]
    %v1467 = vld [vmem:[%s0 + $0x288] sm:$0xf]
    %v1468 = vld [vmem:[%s0 + $0x28c] sm:$0xf]
    %v1469 = vld [vmem:[%s0 + $0x290] sm:$0xf]
    %v1470 = vld [vmem:[%s0 + $0x294] sm:$0xf]
    %v1471 = vld [vmem:[%s0 + $0x298] sm:$0xf]
    %v1472 = vld [vmem:[%s0 + $0x29c] sm:$0xf]
    %v1473 = vld [vmem:[%s1] sm:$0xf]
    %v1642 = vunpack.c.l.b16 %v1305
    %v1643 = vunpack.c.l.b16 %v1306
    %v1644 = vunpack.c.l.b16 %v1307
    %v1645 = vunpack.c.l.b16 %v1308
    %v1646 = vunpack.c.l.b16 %v1309
    %v1647 = vunpack.c.l.b16 %v1310
    %v1648 = vunpack.c.l.b16 %v1311
    %v1649 = vunpack.c.l.b16 %v1312
    %v1650 = vunpack.c.l.b16 %v1313
    %v1651 = vunpack.c.l.b16 %v1314
    %v1652 = vunpack.c.l.b16 %v1315
    %v1653 = vunpack.c.l.b16 %v1316
    %v1654 = vunpack.c.l.b16 %v1317
    %v1655 = vunpack.c.l.b16 %v1318
    %v1656 = vunpack.c.l.b16 %v1319
    %v1657 = vunpack.c.l.b16 %v1320
    %v1658 = vunpack.c.l.b16 %v1321
    %v1659 = vunpack.c.l.b16 %v1322
    %v1660 = vunpack.c.l.b16 %v1323
    %v1661 = vunpack.c.l.b16 %v1324
    %v1662 = vunpack.c.l.b16 %v1325
    %v1663 = vunpack.c.l.b16 %v1326
    %v1664 = vunpack.c.l.b16 %v1327
    %v1665 = vunpack.c.l.b16 %v1328
    %v1666 = vunpack.c.l.b16 %v1329
    %v1667 = vunpack.c.l.b16 %v1330
    %v1668 = vunpack.c.l.b16 %v1331
    %v1669 = vunpack.c.l.b16 %v1332
    %v1670 = vunpack.c.l.b16 %v1333
    %v1671 = vunpack.c.l.b16 %v1334
    %v1672 = vunpack.c.l.b16 %v1335
    %v1673 = vunpack.c.l.b16 %v1336
    %v1674 = vunpack.c.l.b16 %v1337
    %v1675 = vunpack.c.l.b16 %v1338
    %v1676 = vunpack.c.l.b16 %v1339
    %v1677 = vunpack.c.l.b16 %v1340
    %v1678 = vunpack.c.l.b16 %v1341
    %v1679 = vunpack.c.l.b16 %v1342
    %v1680 = vunpack.c.l.b16 %v1343
    %v1681 = vunpack.c.l.b16 %v1344
    %v1682 = vunpack.c.l.b16 %v1345
    %v1683 = vunpack.c.l.b16 %v1346
    %v1684 = vunpack.c.l.b16 %v1347
    %v1685 = vunpack.c.l.b16 %v1348
    %v1686 = vunpack.c.l.b16 %v1349
    %v1687 = vunpack.c.l.b16 %v1350
    %v1688 = vunpack.c.l.b16 %v1351
    %v1689 = vunpack.c.l.b16 %v1352
    %v1690 = vunpack.c.l.b16 %v1353
    %v1691 = vunpack.c.l.b16 %v1354
    %v1692 = vunpack.c.l.b16 %v1355
    %v1693 = vunpack.c.l.b16 %v1356
    %v1694 = vunpack.c.l.b16 %v1357
    %v1695 = vunpack.c.l.b16 %v1358
    %v1696 = vunpack.c.l.b16 %v1359
    %v1697 = vunpack.c.l.b16 %v1360
    %v1698 = vunpack.c.l.b16 %v1361
    %v1699 = vunpack.c.l.b16 %v1362
    %v1700 = vunpack.c.l.b16 %v1363
    %v1701 = vunpack.c.l.b16 %v1364
    %v1702 = vunpack.c.l.b16 %v1365
    %v1703 = vunpack.c.l.b16 %v1366
    %v1704 = vunpack.c.l.b16 %v1367
    %v1705 = vunpack.c.l.b16 %v1368
    %v1706 = vunpack.c.l.b16 %v1369
    %v1707 = vunpack.c.l.b16 %v1370
    %v1708 = vunpack.c.l.b16 %v1371
    %v1709 = vunpack.c.l.b16 %v1372
    %v1710 = vunpack.c.l.b16 %v1373
    %v1711 = vunpack.c.l.b16 %v1374
    %v1712 = vunpack.c.l.b16 %v1375
    %v1713 = vunpack.c.l.b16 %v1376
    %v1714 = vunpack.c.l.b16 %v1377
    %v1715 = vunpack.c.l.b16 %v1378
    %v1716 = vunpack.c.l.b16 %v1379
    %v1717 = vunpack.c.l.b16 %v1380
    %v1718 = vunpack.c.l.b16 %v1381
    %v1719 = vunpack.c.l.b16 %v1382
    %v1720 = vunpack.c.l.b16 %v1383
    %v1721 = vunpack.c.l.b16 %v1384
    %v1722 = vunpack.c.l.b16 %v1385
    %v1723 = vunpack.c.l.b16 %v1386
    %v1724 = vunpack.c.l.b16 %v1387
    %v1725 = vunpack.c.l.b16 %v1388
    %v1726 = vunpack.c.l.b16 %v1389
    %v1727 = vunpack.c.l.b16 %v1390
    %v1728 = vunpack.c.l.b16 %v1391
    %v1729 = vunpack.c.l.b16 %v1392
    %v1730 = vunpack.c.l.b16 %v1393
    %v1731 = vunpack.c.l.b16 %v1394
    %v1732 = vunpack.c.l.b16 %v1395
    %v1733 = vunpack.c.l.b16 %v1396
    %v1734 = vunpack.c.l.b16 %v1397
    %v1735 = vunpack.c.l.b16 %v1398
    %v1736 = vunpack.c.l.b16 %v1399
    %v1737 = vunpack.c.l.b16 %v1400
    %v1738 = vunpack.c.l.b16 %v1401
    %v1739 = vunpack.c.l.b16 %v1402
    %v1740 = vunpack.c.l.b16 %v1403
    %v1741 = vunpack.c.l.b16 %v1404
    %v1742 = vunpack.c.l.b16 %v1405
    %v1743 = vunpack.c.l.b16 %v1406
    %v1744 = vunpack.c.l.b16 %v1407
    %v1745 = vunpack.c.l.b16 %v1408
    %v1746 = vunpack.c.l.b16 %v1409
    %v1747 = vunpack.c.l.b16 %v1410
    %v1748 = vunpack.c.l.b16 %v1411
    %v1749 = vunpack.c.l.b16 %v1412
    %v1750 = vunpack.c.l.b16 %v1413
    %v1751 = vunpack.c.l.b16 %v1414
    %v1752 = vunpack.c.l.b16 %v1415
    %v1753 = vunpack.c.l.b16 %v1416
    %v1754 = vunpack.c.l.b16 %v1417
    %v1755 = vunpack.c.l.b16 %v1418
    %v1756 = vunpack.c.l.b16 %v1419
    %v1757 = vunpack.c.l.b16 %v1420
    %v1758 = vunpack.c.l.b16 %v1421
    %v1759 = vunpack.c.l.b16 %v1422
    %v1760 = vunpack.c.l.b16 %v1423
    %v1761 = vunpack.c.l.b16 %v1424
    %v1762 = vunpack.c.l.b16 %v1425
    %v1763 = vunpack.c.l.b16 %v1426
    %v1764 = vunpack.c.l.b16 %v1427
    %v1765 = vunpack.c.l.b16 %v1428
    %v1766 = vunpack.c.l.b16 %v1429
    %v1767 = vunpack.c.l.b16 %v1430
    %v1768 = vunpack.c.l.b16 %v1431
    %v1769 = vunpack.c.l.b16 %v1432
    %v1770 = vunpack.c.l.b16 %v1433
    %v1771 = vunpack.c.l.b16 %v1434
    %v1772 = vunpack.c.l.b16 %v1435
    %v1773 = vunpack.c.l.b16 %v1436
    %v1774 = vunpack.c.l.b16 %v1437
    %v1775 = vunpack.c.l.b16 %v1438
    %v1776 = vunpack.c.l.b16 %v1439
    %v1777 = vunpack.c.l.b16 %v1440
    %v1778 = vunpack.c.l.b16 %v1441
    %v1779 = vunpack.c.l.b16 %v1442
    %v1780 = vunpack.c.l.b16 %v1443
    %v1781 = vunpack.c.l.b16 %v1444
    %v1782 = vunpack.c.l.b16 %v1445
    %v1783 = vunpack.c.l.b16 %v1446
    %v1784 = vunpack.c.l.b16 %v1447
    %v1785 = vunpack.c.l.b16 %v1448
    %v1786 = vunpack.c.l.b16 %v1449
    %v1787 = vunpack.c.l.b16 %v1450
    %v1788 = vunpack.c.l.b16 %v1451
    %v1789 = vunpack.c.l.b16 %v1452
    %v1790 = vunpack.c.l.b16 %v1453
    %v1791 = vunpack.c.l.b16 %v1454
    %v1792 = vunpack.c.l.b16 %v1455
    %v1793 = vunpack.c.l.b16 %v1456
    %v1794 = vunpack.c.l.b16 %v1457
    %v1795 = vunpack.c.l.b16 %v1458
    %v1796 = vunpack.c.l.b16 %v1459
    %v1797 = vunpack.c.l.b16 %v1460
    %v1798 = vunpack.c.l.b16 %v1461
    %v1799 = vunpack.c.l.b16 %v1462
    %v1800 = vunpack.c.l.b16 %v1463
    %v1801 = vunpack.c.l.b16 %v1464
    %v1802 = vunpack.c.l.b16 %v1465
    %v1803 = vunpack.c.l.b16 %v1466
    %v1804 = vunpack.c.l.b16 %v1467
    %v1805 = vunpack.c.l.b16 %v1468
    %v1806 = vunpack.c.l.b16 %v1469
    %v1807 = vunpack.c.l.b16 %v1470
    %v1808 = vunpack.c.l.b16 %v1471
    %v1809 = vunpack.c.l.b16 %v1472
    %v1810 = vpack.c.b16 %v1643, %v1642
    %v1811 = vpack.c.b16 %v1645, %v1644
    %v1812 = vpack.c.b16 %v1647, %v1646
    %v1813 = vpack.c.b16 %v1649, %v1648
    %v1814 = vpack.c.b16 %v1651, %v1650
    %v1815 = vpack.c.b16 %v1653, %v1652
    %v1816 = vpack.c.b16 %v1655, %v1654
    %v1817 = vpack.c.b16 %v1657, %v1656
    %v1818 = vpack.c.b16 %v1659, %v1658
    %v1819 = vpack.c.b16 %v1661, %v1660
    %v1820 = vpack.c.b16 %v1663, %v1662
    %v1821 = vpack.c.b16 %v1665, %v1664
    %v1822 = vpack.c.b16 %v1667, %v1666
    %v1823 = vpack.c.b16 %v1669, %v1668
    %v1824 = vpack.c.b16 %v1671, %v1670
    %v1825 = vpack.c.b16 %v1673, %v1672
    %v1826 = vpack.c.b16 %v1675, %v1674
    %v1827 = vpack.c.b16 %v1677, %v1676
    %v1828 = vpack.c.b16 %v1679, %v1678
    %v1829 = vpack.c.b16 %v1681, %v1680
    %v1830 = vpack.c.b16 %v1683, %v1682
    %v1831 = vpack.c.b16 %v1685, %v1684
    %v1832 = vpack.c.b16 %v1687, %v1686
    %v1833 = vpack.c.b16 %v1689, %v1688
    %v1834 = vpack.c.b16 %v1691, %v1690
    %v1835 = vpack.c.b16 %v1693, %v1692
    %v1836 = vpack.c.b16 %v1695, %v1694
    %v1837 = vpack.c.b16 %v1697, %v1696
    %v1838 = vpack.c.b16 %v1699, %v1698
    %v1839 = vpack.c.b16 %v1701, %v1700
    %v1840 = vpack.c.b16 %v1703, %v1702
    %v1841 = vpack.c.b16 %v1705, %v1704
    %v1842 = vpack.c.b16 %v1707, %v1706
    %v1843 = vpack.c.b16 %v1709, %v1708
    %v1844 = vpack.c.b16 %v1711, %v1710
    %v1845 = vpack.c.b16 %v1713, %v1712
    %v1846 = vpack.c.b16 %v1715, %v1714
    %v1847 = vpack.c.b16 %v1717, %v1716
    %v1848 = vpack.c.b16 %v1719, %v1718
    %v1849 = vpack.c.b16 %v1721, %v1720
    %v1850 = vpack.c.b16 %v1723, %v1722
    %v1851 = vpack.c.b16 %v1725, %v1724
    %v1852 = vpack.c.b16 %v1727, %v1726
    %v1853 = vpack.c.b16 %v1729, %v1728
    %v1854 = vpack.c.b16 %v1731, %v1730
    %v1855 = vpack.c.b16 %v1733, %v1732
    %v1856 = vpack.c.b16 %v1735, %v1734
    %v1857 = vpack.c.b16 %v1737, %v1736
    %v1858 = vpack.c.b16 %v1739, %v1738
    %v1859 = vpack.c.b16 %v1741, %v1740
    %v1860 = vpack.c.b16 %v1743, %v1742
    %v1861 = vpack.c.b16 %v1745, %v1744
    %v1862 = vpack.c.b16 %v1747, %v1746
    %v1863 = vpack.c.b16 %v1749, %v1748
    %v1864 = vpack.c.b16 %v1751, %v1750
    %v1865 = vpack.c.b16 %v1753, %v1752
    %v1866 = vpack.c.b16 %v1755, %v1754
    %v1867 = vpack.c.b16 %v1757, %v1756
    %v1868 = vpack.c.b16 %v1759, %v1758
    %v1869 = vpack.c.b16 %v1761, %v1760
    %v1870 = vpack.c.b16 %v1763, %v1762
    %v1871 = vpack.c.b16 %v1765, %v1764
    %v1872 = vpack.c.b16 %v1767, %v1766
    %v1873 = vpack.c.b16 %v1769, %v1768
    %v1874 = vpack.c.b16 %v1771, %v1770
    %v1875 = vpack.c.b16 %v1773, %v1772
    %v1876 = vpack.c.b16 %v1775, %v1774
    %v1877 = vpack.c.b16 %v1777, %v1776
    %v1878 = vpack.c.b16 %v1779, %v1778
    %v1879 = vpack.c.b16 %v1781, %v1780
    %v1880 = vpack.c.b16 %v1783, %v1782
    %v1881 = vpack.c.b16 %v1785, %v1784
    %v1882 = vpack.c.b16 %v1787, %v1786
    %v1883 = vpack.c.b16 %v1789, %v1788
    %v1884 = vpack.c.b16 %v1791, %v1790
    %v1885 = vpack.c.b16 %v1793, %v1792
    %v1886 = vpack.c.b16 %v1795, %v1794
    %v1887 = vpack.c.b16 %v1797, %v1796
    %v1888 = vpack.c.b16 %v1799, %v1798
    %v1889 = vpack.c.b16 %v1801, %v1800
    %v1890 = vpack.c.b16 %v1803, %v1802
    %v1891 = vpack.c.b16 %v1805, %v1804
    %v1892 = vpack.c.b16 %v1807, %v1806
    %v1893 = vpack.c.b16 %v1809, %v1808
    %vm1894 = vcmask 64512
    %v1896 = vsel %vm1894, %v1810, 0
    %v1899 = vsel %vm1894, %v1811, 0
    %v1902 = vsel %vm1894, %v1812, 0
    %v1905 = vsel %vm1894, %v1813, 0
    %v1908 = vsel %vm1894, %v1814, 0
    %v1911 = vsel %vm1894, %v1815, 0
    %v1914 = vsel %vm1894, %v1816, 0
    %v1917 = vsel %vm1894, %v1817, 0
    %v1920 = vsel %vm1894, %v1818, 0
    %v1923 = vsel %vm1894, %v1819, 0
    %v1926 = vsel %vm1894, %v1820, 0
    %v1929 = vsel %vm1894, %v1821, 0
    %v1932 = vsel %vm1894, %v1822, 0
    %v1935 = vsel %vm1894, %v1823, 0
    %v1938 = vsel %vm1894, %v1824, 0
    %v1941 = vsel %vm1894, %v1825, 0
    %v1944 = vsel %vm1894, %v1826, 0
    %v1947 = vsel %vm1894, %v1827, 0
    %v1950 = vsel %vm1894, %v1828, 0
    %v1953 = vsel %vm1894, %v1829, 0
    %v1956 = vsel %vm1894, %v1830, 0
    %v1959 = vsel %vm1894, %v1831, 0
    %v1962 = vsel %vm1894, %v1832, 0
    %v1965 = vsel %vm1894, %v1833, 0
    %v1968 = vsel %vm1894, %v1834, 0
    %v1971 = vsel %vm1894, %v1835, 0
    %v1974 = vsel %vm1894, %v1836, 0
    %v1977 = vsel %vm1894, %v1837, 0
    %v1980 = vsel %vm1894, %v1838, 0
    %v1983 = vsel %vm1894, %v1839, 0
    %v1986 = vsel %vm1894, %v1840, 0
    %v1989 = vsel %vm1894, %v1841, 0
    %v1992 = vsel %vm1894, %v1842, 0
    %v1995 = vsel %vm1894, %v1843, 0
    %v1998 = vsel %vm1894, %v1844, 0
    %v2001 = vsel %vm1894, %v1845, 0
    %v2004 = vsel %vm1894, %v1846, 0
    %v2007 = vsel %vm1894, %v1847, 0
    %v2010 = vsel %vm1894, %v1848, 0
    %v2013 = vsel %vm1894, %v1849, 0
    %v2016 = vsel %vm1894, %v1850, 0
    %v2019 = vsel %vm1894, %v1851, 0
    %v2022 = vsel %vm1894, %v1852, 0
    %v2025 = vsel %vm1894, %v1853, 0
    %v2028 = vsel %vm1894, %v1854, 0
    %v2031 = vsel %vm1894, %v1855, 0
    %v2034 = vsel %vm1894, %v1856, 0
    %v2037 = vsel %vm1894, %v1857, 0
    %v2040 = vsel %vm1894, %v1858, 0
    %v2043 = vsel %vm1894, %v1859, 0
    %v2046 = vsel %vm1894, %v1860, 0
    %v2049 = vsel %vm1894, %v1861, 0
    %v2052 = vsel %vm1894, %v1862, 0
    %v2055 = vsel %vm1894, %v1863, 0
    %v2058 = vsel %vm1894, %v1864, 0
    %v2061 = vsel %vm1894, %v1865, 0
    %v2064 = vsel %vm1894, %v1866, 0
    %v2067 = vsel %vm1894, %v1867, 0
    %v2070 = vsel %vm1894, %v1868, 0
    %v2073 = vsel %vm1894, %v1869, 0
    %v2076 = vsel %vm1894, %v1870, 0
    %v2079 = vsel %vm1894, %v1871, 0
    %v2082 = vsel %vm1894, %v1872, 0
    %v2085 = vsel %vm1894, %v1873, 0
    %v2088 = vsel %vm1894, %v1874, 0
    %v2091 = vsel %vm1894, %v1875, 0
    %v2094 = vsel %vm1894, %v1876, 0
    %v2097 = vsel %vm1894, %v1877, 0
    %v2100 = vsel %vm1894, %v1878, 0
    %v2103 = vsel %vm1894, %v1879, 0
    %v2106 = vsel %vm1894, %v1880, 0
    %v2109 = vsel %vm1894, %v1881, 0
    %v2112 = vsel %vm1894, %v1882, 0
    %v2115 = vsel %vm1894, %v1883, 0
    %v2118 = vsel %vm1894, %v1884, 0
    %v2121 = vsel %vm1894, %v1885, 0
    %v2124 = vsel %vm1894, %v1886, 0
    %v2127 = vsel %vm1894, %v1887, 0
    %v2130 = vsel %vm1894, %v1888, 0
    %v2133 = vsel %vm1894, %v1889, 0
    %v2136 = vsel %vm1894, %v1890, 0
    %v2139 = vsel %vm1894, %v1891, 0
    %v2142 = vsel %vm1894, %v1892, 0
    %v2145 = vsel %vm1894, %v1893, 0
    %vm2147 = vcmask 1043456
    %v2149 = vsel %vm2147, %v1473, 0
    %2151 = vmatprep.subr.bf16.mxu0 0
    %2152 = vmatpush1.bf16.msra.mxu0 %v2149
    %2153 = vmatprep.subr.bf16.mxu0 0
    %2154 = vmatpush1.bf16.msra.mxu0 0
    %2155 = vmatprep.subr.bf16.mxu0 0
    %2156 = vmatpush1.bf16.msra.mxu0 0
    %2157 = vmatprep.subr.bf16.mxu0 0
    %2158 = vmatpush1.bf16.msra.mxu0 0
    %2159 = vmatprep.subr.bf16.mxu0 0
    %2160 = vmatpush1.bf16.msra.mxu0 0
    %2161 = vmatprep.subr.bf16.mxu0 0
    %2162 = vmatpush1.bf16.msra.mxu0 0
    %2163 = vmatprep.subr.bf16.mxu0 0
    %2164 = vmatpush1.bf16.msra.mxu0 0
    %2165 = vmatprep.subr.bf16.mxu0 0
    %2166 = vmatpush1.bf16.msra.mxu0 0
    %2167 = vmatprep.subr.bf16.mxu0 0
    %2168 = vmatpush1.bf16.msra.mxu0 0
    %2169 = vmatprep.subr.bf16.mxu0 0
    %2170 = vmatpush1.bf16.msra.mxu0 0
    %2171 = vmatprep.subr.bf16.mxu0 0
    %2172 = vmatpush1.bf16.msra.mxu0 0
    %2173 = vmatprep.subr.bf16.mxu0 0
    %2174 = vmatpush1.bf16.msra.mxu0 0
    %2175 = vmatprep.subr.bf16.mxu0 0
    %2176 = vmatpush1.bf16.msra.mxu0 0
    %2177 = vmatprep.subr.bf16.mxu0 0
    %2178 = vmatpush1.bf16.msra.mxu0 0
    %2179 = vmatprep.subr.bf16.mxu0 0
    %2180 = vmatpush1.bf16.msra.mxu0 0
    %2181 = vmatprep.subr.bf16.mxu0 0
    %2182 = vmatpush1.bf16.msra.mxu0 0
    %2183 = vmatprep.mubr.bf16.mxu0 0
    %2184 = vmatmul.mubr.bf16.gmra.mrb[0].mxu0 %v1896
    %v2185 = vpop.f32.mrb[0].mxu0
    %v2186 = vadd.f32 0.0, %v2185
    %v2187 = vpop.f32.mrb[0].mxu0
    %v2188 = vpop.f32.mrb[0].mxu0
    %v2189 = vadd.f32 0.0, %v2188
    %v2190 = vpop.f32.mrb[0].mxu0
    %2191 = vmatprep.mubr.bf16.mxu0 0
    %2192 = vmatmul.mubr.bf16.gmra.mrb[0].mxu0 %v1899
    %v2193 = vpop.f32.mrb[0].mxu0
    %v2194 = vadd.f32 0.0, %v2193
    %v2195 = vpop.f32.mrb[0].mxu0
    %v2196 = vpop.f32.mrb[0].mxu0
    %v2197 = vadd.f32 0.0, %v2196
    %v2198 = vpop.f32.mrb[0].mxu0
    %2199 = vmatprep.mubr.bf16.mxu0 0
    %2200 = vmatmul.mubr.bf16.gmra.mrb[0].mxu0 %v1902
    %v2201 = vpop.f32.mrb[0].mxu0
    %v2202 = vadd.f32 0.0, %v2201
    %v2203 = vpop.f32.mrb[0].mxu0
    %v2204 = vpop.f32.mrb[0].mxu0
    %v2205 = vadd.f32 0.0, %v2204
    %v2206 = vpop.f32.mrb[0].mxu0
    %2207 = vmatprep.mubr.bf16.mxu0 0
    %2208 = vmatmul.mubr.bf16.gmra.mrb[0].mxu0 %v1905
    %v2209 = vpop.f32.mrb[0].mxu0
    %v2210 = vadd.f32 0.0, %v2209
    %v2211 = vpop.f32.mrb[0].mxu0
    %v2212 = vpop.f32.mrb[0].mxu0
    %v2213 = vadd.f32 0.0, %v2212
    %v2214 = vpop.f32.mrb[0].mxu0
    %2215 = vmatprep.mubr.bf16.mxu0 0
    %2216 = vmatmul.mubr.bf16.gmra.mrb[0].mxu0 %v1908
    %v2217 = vpop.f32.mrb[0].mxu0
    %v2218 = vadd.f32 0.0, %v2217
    %v2219 = vpop.f32.mrb[0].mxu0
    %v2220 = vpop.f32.mrb[0].mxu0
    %v2221 = vadd.f32 0.0, %v2220
    %v2222 = vpop.f32.mrb[0].mxu0
    %2223 = vmatprep.mubr.bf16.mxu0 0
    %2224 = vmatmul.mubr.bf16.gmra.mrb[0].mxu0 %v1911
    %v2225 = vpop.f32.mrb[0].mxu0
    %v2226 = vadd.f32 0.0, %v2225
    %v2227 = vpop.f32.mrb[0].mxu0
    %v2228 = vpop.f32.mrb[0].mxu0
    %v2229 = vadd.f32 0.0, %v2228
    %v2230 = vpop.f32.mrb[0].mxu0
    %2231 = vmatprep.mubr.bf16.mxu0 0
    %2232 = vmatmul.mubr.bf16.gmra.mrb[0].mxu0 %v1914
    %v2233 = vpop.f32.mrb[0].mxu0
    %v2234 = vadd.f32 0.0, %v2233
    %v2235 = vpop.f32.mrb[0].mxu0
    %v2236 = vpop.f32.mrb[0].mxu0
    %v2237 = vadd.f32 0.0, %v2236
    %v2238 = vpop.f32.mrb[0].mxu0
    %2239 = vmatprep.mubr.bf16.mxu0 0
    %2240 = vmatmul.mubr.bf16.gmra.mrb[0].mxu0 %v1917
    %v2241 = vpop.f32.mrb[0].mxu0
    %v2242 = vadd.f32 0.0, %v2241
    %v2243 = vpop.f32.mrb[0].mxu0
    %v2244 = vpop.f32.mrb[0].mxu0
    %v2245 = vadd.f32 0.0, %v2244
    %v2246 = vpop.f32.mrb[0].mxu0
    %2247 = vmatprep.mubr.bf16.mxu0 0
    %2248 = vmatmul.mubr.bf16.gmra.mrb[0].mxu0 %v1920
    %v2249 = vpop.f32.mrb[0].mxu0
    %v2250 = vadd.f32 0.0, %v2249
    %v2251 = vpop.f32.mrb[0].mxu0
    %v2252 = vpop.f32.mrb[0].mxu0
    %v2253 = vadd.f32 0.0, %v2252
    %v2254 = vpop.f32.mrb[0].mxu0
    %2255 = vmatprep.mubr.bf16.mxu0 0
    %2256 = vmatmul.mubr.bf16.gmra.mrb[0].mxu0 %v1923
    %v2257 = vpop.f32.mrb[0].mxu0
    %v2258 = vadd.f32 0.0, %v2257
    %v2259 = vpop.f32.mrb[0].mxu0
    %v2260 = vpop.f32.mrb[0].mxu0
    %v2261 = vadd.f32 0.0, %v2260
    %v2262 = vpop.f32.mrb[0].mxu0
    %2263 = vmatprep.mubr.bf16.mxu0 0
    %2264 = vmatmul.mubr.bf16.gmra.mrb[0].mxu0 %v1926
    %v2265 = vpop.f32.mrb[0].mxu0
    %v2266 = vadd.f32 0.0, %v2265
    %v2267 = vpop.f32.mrb[0].mxu0
    %v2268 = vpop.f32.mrb[0].mxu0
    %v2269 = vadd.f32 0.0, %v2268
    %v2270 = vpop.f32.mrb[0].mxu0
    %2271 = vmatprep.mubr.bf16.mxu0 0
    %2272 = vmatmul.mubr.bf16.gmra.mrb[0].mxu0 %v1929
    %v2273 = vpop.f32.mrb[0].mxu0
    %v2274 = vadd.f32 0.0, %v2273
    %v2275 = vpop.f32.mrb[0].mxu0
    %v2276 = vpop.f32.mrb[0].mxu0
    %v2277 = vadd.f32 0.0, %v2276
    %v2278 = vpop.f32.mrb[0].mxu0
    %2279 = vmatprep.mubr.bf16.mxu0 0
    %2280 = vmatmul.mubr.bf16.gmra.mrb[0].mxu0 %v1932
    %v2281 = vpop.f32.mrb[0].mxu0
    %v2282 = vadd.f32 0.0, %v2281
    %v2283 = vpop.f32.mrb[0].mxu0
    %v2284 = vpop.f32.mrb[0].mxu0
    %v2285 = vadd.f32 0.0, %v2284
    %v2286 = vpop.f32.mrb[0].mxu0
    %2287 = vmatprep.mubr.bf16.mxu0 0
    %2288 = vmatmul.mubr.bf16.gmra.mrb[0].mxu0 %v1935
    %v2289 = vpop.f32.mrb[0].mxu0
    %v2290 = vadd.f32 0.0, %v2289
    %v2291 = vpop.f32.mrb[0].mxu0
    %v2292 = vpop.f32.mrb[0].mxu0
    %v2293 = vadd.f32 0.0, %v2292
    %v2294 = vpop.f32.mrb[0].mxu0
    %2295 = vmatprep.mubr.bf16.mxu0 0
    %2296 = vmatmul.mubr.bf16.gmra.mrb[0].mxu0 %v1938
    %v2297 = vpop.f32.mrb[0].mxu0
    %v2298 = vadd.f32 0.0, %v2297
    %v2299 = vpop.f32.mrb[0].mxu0
    %v2300 = vpop.f32.mrb[0].mxu0
    %v2301 = vadd.f32 0.0, %v2300
    %v2302 = vpop.f32.mrb[0].mxu0
    %2303 = vmatprep.mubr.bf16.mxu0 0
    %2304 = vmatmul.mubr.bf16.gmra.mrb[0].mxu0 %v1941
    %v2305 = vpop.f32.mrb[0].mxu0
    %v2306 = vadd.f32 0.0, %v2305
    %v2307 = vpop.f32.mrb[0].mxu0
    %v2308 = vpop.f32.mrb[0].mxu0
    %v2309 = vadd.f32 0.0, %v2308
    %v2310 = vpop.f32.mrb[0].mxu0
    %2311 = vmatprep.mubr.bf16.mxu0 0
    %2312 = vmatmul.mubr.bf16.gmra.mrb[0].mxu0 %v1944
    %v2313 = vpop.f32.mrb[0].mxu0
    %v2314 = vadd.f32 0.0, %v2313
    %v2315 = vpop.f32.mrb[0].mxu0
    %v2316 = vpop.f32.mrb[0].mxu0
    %v2317 = vadd.f32 0.0, %v2316
    %v2318 = vpop.f32.mrb[0].mxu0
    %2319 = vmatprep.mubr.bf16.mxu0 0
    %2320 = vmatmul.mubr.bf16.gmra.mrb[0].mxu0 %v1947
    %v2321 = vpop.f32.mrb[0].mxu0
    %v2322 = vadd.f32 0.0, %v2321
    %v2323 = vpop.f32.mrb[0].mxu0
    %v2324 = vpop.f32.mrb[0].mxu0
    %v2325 = vadd.f32 0.0, %v2324
    %v2326 = vpop.f32.mrb[0].mxu0
    %2327 = vmatprep.mubr.bf16.mxu0 0
    %2328 = vmatmul.mubr.bf16.gmra.mrb[0].mxu0 %v1950
    %v2329 = vpop.f32.mrb[0].mxu0
    %v2330 = vadd.f32 0.0, %v2329
    %v2331 = vpop.f32.mrb[0].mxu0
    %v2332 = vpop.f32.mrb[0].mxu0
    %v2333 = vadd.f32 0.0, %v2332
    %v2334 = vpop.f32.mrb[0].mxu0
    %2335 = vmatprep.mubr.bf16.mxu0 0
    %2336 = vmatmul.mubr.bf16.gmra.mrb[0].mxu0 %v1953
    %v2337 = vpop.f32.mrb[0].mxu0
    %v2338 = vadd.f32 0.0, %v2337
    %v2339 = vpop.f32.mrb[0].mxu0
    %v2340 = vpop.f32.mrb[0].mxu0
    %v2341 = vadd.f32 0.0, %v2340
    %v2342 = vpop.f32.mrb[0].mxu0
    %2343 = vmatprep.mubr.bf16.mxu0 0
    %2344 = vmatmul.mubr.bf16.gmra.mrb[0].mxu0 %v1956
    %v2345 = vpop.f32.mrb[0].mxu0
    %v2346 = vadd.f32 0.0, %v2345
    %v2347 = vpop.f32.mrb[0].mxu0
    %v2348 = vpop.f32.mrb[0].mxu0
    %v2349 = vadd.f32 0.0, %v2348
    %v2350 = vpop.f32.mrb[0].mxu0
    %2351 = vmatprep.mubr.bf16.mxu0 0
    %2352 = vmatmul.mubr.bf16.gmra.mrb[0].mxu0 %v1959
    %v2353 = vpop.f32.mrb[0].mxu0
    %v2354 = vadd.f32 0.0, %v2353
    %v2355 = vpop.f32.mrb[0].mxu0
    %v2356 = vpop.f32.mrb[0].mxu0
    %v2357 = vadd.f32 0.0, %v2356
    %v2358 = vpop.f32.mrb[0].mxu0
    %2359 = vmatprep.mubr.bf16.mxu0 0
    %2360 = vmatmul.mubr.bf16.gmra.mrb[0].mxu0 %v1962
    %v2361 = vpop.f32.mrb[0].mxu0
    %v2362 = vadd.f32 0.0, %v2361
    %v2363 = vpop.f32.mrb[0].mxu0
    %v2364 = vpop.f32.mrb[0].mxu0
    %v2365 = vadd.f32 0.0, %v2364
    %v2366 = vpop.f32.mrb[0].mxu0
    %2367 = vmatprep.mubr.bf16.mxu0 0
    %2368 = vmatmul.mubr.bf16.gmra.mrb[0].mxu0 %v1965
    %v2369 = vpop.f32.mrb[0].mxu0
    %v2370 = vadd.f32 0.0, %v2369
    %v2371 = vpop.f32.mrb[0].mxu0
    %v2372 = vpop.f32.mrb[0].mxu0
    %v2373 = vadd.f32 0.0, %v2372
    %v2374 = vpop.f32.mrb[0].mxu0
    %2375 = vmatprep.mubr.bf16.mxu0 0
    %2376 = vmatmul.mubr.bf16.gmra.mrb[0].mxu0 %v1968
    %v2377 = vpop.f32.mrb[0].mxu0
    %v2378 = vadd.f32 0.0, %v2377
    %v2379 = vpop.f32.mrb[0].mxu0
    %v2380 = vpop.f32.mrb[0].mxu0
    %v2381 = vadd.f32 0.0, %v2380
    %v2382 = vpop.f32.mrb[0].mxu0
    %2383 = vmatprep.mubr.bf16.mxu0 0
    %2384 = vmatmul.mubr.bf16.gmra.mrb[0].mxu0 %v1971
    %v2385 = vpop.f32.mrb[0].mxu0
    %v2386 = vadd.f32 0.0, %v2385
    %v2387 = vpop.f32.mrb[0].mxu0
    %v2388 = vpop.f32.mrb[0].mxu0
    %v2389 = vadd.f32 0.0, %v2388
    %v2390 = vpop.f32.mrb[0].mxu0
    %2391 = vmatprep.mubr.bf16.mxu0 0
    %2392 = vmatmul.mubr.bf16.gmra.mrb[0].mxu0 %v1974
    %v2393 = vpop.f32.mrb[0].mxu0
    %v2394 = vadd.f32 0.0, %v2393
    %v2395 = vpop.f32.mrb[0].mxu0
    %v2396 = vpop.f32.mrb[0].mxu0
    %v2397 = vadd.f32 0.0, %v2396
    %v2398 = vpop.f32.mrb[0].mxu0
    %2399 = vmatprep.mubr.bf16.mxu0 0
    %2400 = vmatmul.mubr.bf16.gmra.mrb[0].mxu0 %v1977
    %v2401 = vpop.f32.mrb[0].mxu0
    %v2402 = vadd.f32 0.0, %v2401
    %v2403 = vpop.f32.mrb[0].mxu0
    %v2404 = vpop.f32.mrb[0].mxu0
    %v2405 = vadd.f32 0.0, %v2404
    %v2406 = vpop.f32.mrb[0].mxu0
    %2407 = vmatprep.mubr.bf16.mxu0 0
    %2408 = vmatmul.mubr.bf16.gmra.mrb[0].mxu0 %v1980
    %v2409 = vpop.f32.mrb[0].mxu0
    %v2410 = vadd.f32 0.0, %v2409
    %v2411 = vpop.f32.mrb[0].mxu0
    %v2412 = vpop.f32.mrb[0].mxu0
    %v2413 = vadd.f32 0.0, %v2412
    %v2414 = vpop.f32.mrb[0].mxu0
    %2415 = vmatprep.mubr.bf16.mxu0 0
    %2416 = vmatmul.mubr.bf16.gmra.mrb[0].mxu0 %v1983
    %v2417 = vpop.f32.mrb[0].mxu0
    %v2418 = vadd.f32 0.0, %v2417
    %v2419 = vpop.f32.mrb[0].mxu0
    %v2420 = vpop.f32.mrb[0].mxu0
    %v2421 = vadd.f32 0.0, %v2420
    %v2422 = vpop.f32.mrb[0].mxu0
    %2423 = vmatprep.mubr.bf16.mxu0 0
    %2424 = vmatmul.mubr.bf16.gmra.mrb[0].mxu0 %v1986
    %v2425 = vpop.f32.mrb[0].mxu0
    %v2426 = vadd.f32 0.0, %v2425
    %v2427 = vpop.f32.mrb[0].mxu0
    %v2428 = vpop.f32.mrb[0].mxu0
    %v2429 = vadd.f32 0.0, %v2428
    %v2430 = vpop.f32.mrb[0].mxu0
    %2431 = vmatprep.mubr.bf16.mxu0 0
    %2432 = vmatmul.mubr.bf16.gmra.mrb[0].mxu0 %v1989
    %v2433 = vpop.f32.mrb[0].mxu0
    %v2434 = vadd.f32 0.0, %v2433
    %v2435 = vpop.f32.mrb[0].mxu0
    %v2436 = vpop.f32.mrb[0].mxu0
    %v2437 = vadd.f32 0.0, %v2436
    %v2438 = vpop.f32.mrb[0].mxu0
    %2439 = vmatprep.mubr.bf16.mxu0 0
    %2440 = vmatmul.mubr.bf16.gmra.mrb[0].mxu0 %v1992
    %v2441 = vpop.f32.mrb[0].mxu0
    %v2442 = vadd.f32 0.0, %v2441
    %v2443 = vpop.f32.mrb[0].mxu0
    %v2444 = vpop.f32.mrb[0].mxu0
    %v2445 = vadd.f32 0.0, %v2444
    %v2446 = vpop.f32.mrb[0].mxu0
    %2447 = vmatprep.mubr.bf16.mxu0 0
    %2448 = vmatmul.mubr.bf16.gmra.mrb[0].mxu0 %v1995
    %v2449 = vpop.f32.mrb[0].mxu0
    %v2450 = vadd.f32 0.0, %v2449
    %v2451 = vpop.f32.mrb[0].mxu0
    %v2452 = vpop.f32.mrb[0].mxu0
    %v2453 = vadd.f32 0.0, %v2452
    %v2454 = vpop.f32.mrb[0].mxu0
    %2455 = vmatprep.mubr.bf16.mxu0 0
    %2456 = vmatmul.mubr.bf16.gmra.mrb[0].mxu0 %v1998
    %v2457 = vpop.f32.mrb[0].mxu0
    %v2458 = vadd.f32 0.0, %v2457
    %v2459 = vpop.f32.mrb[0].mxu0
    %v2460 = vpop.f32.mrb[0].mxu0
    %v2461 = vadd.f32 0.0, %v2460
    %v2462 = vpop.f32.mrb[0].mxu0
    %2463 = vmatprep.mubr.bf16.mxu0 0
    %2464 = vmatmul.mubr.bf16.gmra.mrb[0].mxu0 %v2001
    %v2465 = vpop.f32.mrb[0].mxu0
    %v2466 = vadd.f32 0.0, %v2465
    %v2467 = vpop.f32.mrb[0].mxu0
    %v2468 = vpop.f32.mrb[0].mxu0
    %v2469 = vadd.f32 0.0, %v2468
    %v2470 = vpop.f32.mrb[0].mxu0
    %2471 = vmatprep.mubr.bf16.mxu0 0
    %2472 = vmatmul.mubr.bf16.gmra.mrb[0].mxu0 %v2004
    %v2473 = vpop.f32.mrb[0].mxu0
    %v2474 = vadd.f32 0.0, %v2473
    %v2475 = vpop.f32.mrb[0].mxu0
    %v2476 = vpop.f32.mrb[0].mxu0
    %v2477 = vadd.f32 0.0, %v2476
    %v2478 = vpop.f32.mrb[0].mxu0
    %2479 = vmatprep.mubr.bf16.mxu0 0
    %2480 = vmatmul.mubr.bf16.gmra.mrb[0].mxu0 %v2007
    %v2481 = vpop.f32.mrb[0].mxu0
    %v2482 = vadd.f32 0.0, %v2481
    %v2483 = vpop.f32.mrb[0].mxu0
    %v2484 = vpop.f32.mrb[0].mxu0
    %v2485 = vadd.f32 0.0, %v2484
    %v2486 = vpop.f32.mrb[0].mxu0
    %2487 = vmatprep.mubr.bf16.mxu0 0
    %2488 = vmatmul.mubr.bf16.gmra.mrb[0].mxu0 %v2010
    %v2489 = vpop.f32.mrb[0].mxu0
    %v2490 = vadd.f32 0.0, %v2489
    %v2491 = vpop.f32.mrb[0].mxu0
    %v2492 = vpop.f32.mrb[0].mxu0
    %v2493 = vadd.f32 0.0, %v2492
    %v2494 = vpop.f32.mrb[0].mxu0
    %2495 = vmatprep.mubr.bf16.mxu0 0
    %2496 = vmatmul.mubr.bf16.gmra.mrb[0].mxu0 %v2013
    %v2497 = vpop.f32.mrb[0].mxu0
    %v2498 = vadd.f32 0.0, %v2497
    %v2499 = vpop.f32.mrb[0].mxu0
    %v2500 = vpop.f32.mrb[0].mxu0
    %v2501 = vadd.f32 0.0, %v2500
    %v2502 = vpop.f32.mrb[0].mxu0
    %2503 = vmatprep.mubr.bf16.mxu0 0
    %2504 = vmatmul.mubr.bf16.gmra.mrb[0].mxu0 %v2016
    %v2505 = vpop.f32.mrb[0].mxu0
    %v2506 = vadd.f32 0.0, %v2505
    %v2507 = vpop.f32.mrb[0].mxu0
    %v2508 = vpop.f32.mrb[0].mxu0
    %v2509 = vadd.f32 0.0, %v2508
    %v2510 = vpop.f32.mrb[0].mxu0
    %2511 = vmatprep.mubr.bf16.mxu0 0
    %2512 = vmatmul.mubr.bf16.gmra.mrb[0].mxu0 %v2019
    %v2513 = vpop.f32.mrb[0].mxu0
    %v2514 = vadd.f32 0.0, %v2513
    %v2515 = vpop.f32.mrb[0].mxu0
    %v2516 = vpop.f32.mrb[0].mxu0
    %v2517 = vadd.f32 0.0, %v2516
    %v2518 = vpop.f32.mrb[0].mxu0
    %2519 = vmatprep.mubr.bf16.mxu0 0
    %2520 = vmatmul.mubr.bf16.gmra.mrb[0].mxu0 %v2022
    %v2521 = vpop.f32.mrb[0].mxu0
    %v2522 = vadd.f32 0.0, %v2521
    %v2523 = vpop.f32.mrb[0].mxu0
    %v2524 = vpop.f32.mrb[0].mxu0
    %v2525 = vadd.f32 0.0, %v2524
    %v2526 = vpop.f32.mrb[0].mxu0
    %2527 = vmatprep.mubr.bf16.mxu0 0
    %2528 = vmatmul.mubr.bf16.gmra.mrb[0].mxu0 %v2025
    %v2529 = vpop.f32.mrb[0].mxu0
    %v2530 = vadd.f32 0.0, %v2529
    %v2531 = vpop.f32.mrb[0].mxu0
    %v2532 = vpop.f32.mrb[0].mxu0
    %v2533 = vadd.f32 0.0, %v2532
    %v2534 = vpop.f32.mrb[0].mxu0
    %2535 = vmatprep.mubr.bf16.mxu0 0
    %2536 = vmatmul.mubr.bf16.gmra.mrb[0].mxu0 %v2028
    %v2537 = vpop.f32.mrb[0].mxu0
    %v2538 = vadd.f32 0.0, %v2537
    %v2539 = vpop.f32.mrb[0].mxu0
    %v2540 = vpop.f32.mrb[0].mxu0
    %v2541 = vadd.f32 0.0, %v2540
    %v2542 = vpop.f32.mrb[0].mxu0
    %2543 = vmatprep.mubr.bf16.mxu0 0
    %2544 = vmatmul.mubr.bf16.gmra.mrb[0].mxu0 %v2031
    %v2545 = vpop.f32.mrb[0].mxu0
    %v2546 = vadd.f32 0.0, %v2545
    %v2547 = vpop.f32.mrb[0].mxu0
    %v2548 = vpop.f32.mrb[0].mxu0
    %v2549 = vadd.f32 0.0, %v2548
    %v2550 = vpop.f32.mrb[0].mxu0
    %2551 = vmatprep.mubr.bf16.mxu0 0
    %2552 = vmatmul.mubr.bf16.gmra.mrb[0].mxu0 %v2034
    %v2553 = vpop.f32.mrb[0].mxu0
    %v2554 = vadd.f32 0.0, %v2553
    %v2555 = vpop.f32.mrb[0].mxu0
    %v2556 = vpop.f32.mrb[0].mxu0
    %v2557 = vadd.f32 0.0, %v2556
    %v2558 = vpop.f32.mrb[0].mxu0
    %2559 = vmatprep.mubr.bf16.mxu0 0
    %2560 = vmatmul.mubr.bf16.gmra.mrb[0].mxu0 %v2037
    %v2561 = vpop.f32.mrb[0].mxu0
    %v2562 = vadd.f32 0.0, %v2561
    %v2563 = vpop.f32.mrb[0].mxu0
    %v2564 = vpop.f32.mrb[0].mxu0
    %v2565 = vadd.f32 0.0, %v2564
    %v2566 = vpop.f32.mrb[0].mxu0
    %2567 = vmatprep.mubr.bf16.mxu0 0
    %2568 = vmatmul.mubr.bf16.gmra.mrb[0].mxu0 %v2040
    %v2569 = vpop.f32.mrb[0].mxu0
    %v2570 = vadd.f32 0.0, %v2569
    %v2571 = vpop.f32.mrb[0].mxu0
    %v2572 = vpop.f32.mrb[0].mxu0
    %v2573 = vadd.f32 0.0, %v2572
    %v2574 = vpop.f32.mrb[0].mxu0
    %2575 = vmatprep.mubr.bf16.mxu0 0
    %2576 = vmatmul.mubr.bf16.gmra.mrb[0].mxu0 %v2043
    %v2577 = vpop.f32.mrb[0].mxu0
    %v2578 = vadd.f32 0.0, %v2577
    %v2579 = vpop.f32.mrb[0].mxu0
    %v2580 = vpop.f32.mrb[0].mxu0
    %v2581 = vadd.f32 0.0, %v2580
    %v2582 = vpop.f32.mrb[0].mxu0
    %2583 = vmatprep.mubr.bf16.mxu0 0
    %2584 = vmatmul.mubr.bf16.gmra.mrb[0].mxu0 %v2046
    %v2585 = vpop.f32.mrb[0].mxu0
    %v2586 = vadd.f32 0.0, %v2585
    %v2587 = vpop.f32.mrb[0].mxu0
    %v2588 = vpop.f32.mrb[0].mxu0
    %v2589 = vadd.f32 0.0, %v2588
    %v2590 = vpop.f32.mrb[0].mxu0
    %2591 = vmatprep.mubr.bf16.mxu0 0
    %2592 = vmatmul.mubr.bf16.gmra.mrb[0].mxu0 %v2049
    %v2593 = vpop.f32.mrb[0].mxu0
    %v2594 = vadd.f32 0.0, %v2593
    %v2595 = vpop.f32.mrb[0].mxu0
    %v2596 = vpop.f32.mrb[0].mxu0
    %v2597 = vadd.f32 0.0, %v2596
    %v2598 = vpop.f32.mrb[0].mxu0
    %2599 = vmatprep.mubr.bf16.mxu0 0
    %2600 = vmatmul.mubr.bf16.gmra.mrb[0].mxu0 %v2052
    %v2601 = vpop.f32.mrb[0].mxu0
    %v2602 = vadd.f32 0.0, %v2601
    %v2603 = vpop.f32.mrb[0].mxu0
    %v2604 = vpop.f32.mrb[0].mxu0
    %v2605 = vadd.f32 0.0, %v2604
    %v2606 = vpop.f32.mrb[0].mxu0
    %2607 = vmatprep.mubr.bf16.mxu0 0
    %2608 = vmatmul.mubr.bf16.gmra.mrb[0].mxu0 %v2055
    %v2609 = vpop.f32.mrb[0].mxu0
    %v2610 = vadd.f32 0.0, %v2609
    %v2611 = vpop.f32.mrb[0].mxu0
    %v2612 = vpop.f32.mrb[0].mxu0
    %v2613 = vadd.f32 0.0, %v2612
    %v2614 = vpop.f32.mrb[0].mxu0
    %2615 = vmatprep.mubr.bf16.mxu0 0
    %2616 = vmatmul.mubr.bf16.gmra.mrb[0].mxu0 %v2058
    %v2617 = vpop.f32.mrb[0].mxu0
    %v2618 = vadd.f32 0.0, %v2617
    %v2619 = vpop.f32.mrb[0].mxu0
    %v2620 = vpop.f32.mrb[0].mxu0
    %v2621 = vadd.f32 0.0, %v2620
    %v2622 = vpop.f32.mrb[0].mxu0
    %2623 = vmatprep.mubr.bf16.mxu0 0
    %2624 = vmatmul.mubr.bf16.gmra.mrb[0].mxu0 %v2061
    %v2625 = vpop.f32.mrb[0].mxu0
    %v2626 = vadd.f32 0.0, %v2625
    %v2627 = vpop.f32.mrb[0].mxu0
    %v2628 = vpop.f32.mrb[0].mxu0
    %v2629 = vadd.f32 0.0, %v2628
    %v2630 = vpop.f32.mrb[0].mxu0
    %2631 = vmatprep.mubr.bf16.mxu0 0
    %2632 = vmatmul.mubr.bf16.gmra.mrb[0].mxu0 %v2064
    %v2633 = vpop.f32.mrb[0].mxu0
    %v2634 = vadd.f32 0.0, %v2633
    %v2635 = vpop.f32.mrb[0].mxu0
    %v2636 = vpop.f32.mrb[0].mxu0
    %v2637 = vadd.f32 0.0, %v2636
    %v2638 = vpop.f32.mrb[0].mxu0
    %2639 = vmatprep.mubr.bf16.mxu0 0
    %2640 = vmatmul.mubr.bf16.gmra.mrb[0].mxu0 %v2067
    %v2641 = vpop.f32.mrb[0].mxu0
    %v2642 = vadd.f32 0.0, %v2641
    %v2643 = vpop.f32.mrb[0].mxu0
    %v2644 = vpop.f32.mrb[0].mxu0
    %v2645 = vadd.f32 0.0, %v2644
    %v2646 = vpop.f32.mrb[0].mxu0
    %2647 = vmatprep.mubr.bf16.mxu0 0
    %2648 = vmatmul.mubr.bf16.gmra.mrb[0].mxu0 %v2070
    %v2649 = vpop.f32.mrb[0].mxu0
    %v2650 = vadd.f32 0.0, %v2649
    %v2651 = vpop.f32.mrb[0].mxu0
    %v2652 = vpop.f32.mrb[0].mxu0
    %v2653 = vadd.f32 0.0, %v2652
    %v2654 = vpop.f32.mrb[0].mxu0
    %2655 = vmatprep.mubr.bf16.mxu0 0
    %2656 = vmatmul.mubr.bf16.gmra.mrb[0].mxu0 %v2073
    %v2657 = vpop.f32.mrb[0].mxu0
    %v2658 = vadd.f32 0.0, %v2657
    %v2659 = vpop.f32.mrb[0].mxu0
    %v2660 = vpop.f32.mrb[0].mxu0
    %v2661 = vadd.f32 0.0, %v2660
    %v2662 = vpop.f32.mrb[0].mxu0
    %2663 = vmatprep.mubr.bf16.mxu0 0
    %2664 = vmatmul.mubr.bf16.gmra.mrb[0].mxu0 %v2076
    %v2665 = vpop.f32.mrb[0].mxu0
    %v2666 = vadd.f32 0.0, %v2665
    %v2667 = vpop.f32.mrb[0].mxu0
    %v2668 = vpop.f32.mrb[0].mxu0
    %v2669 = vadd.f32 0.0, %v2668
    %v2670 = vpop.f32.mrb[0].mxu0
    %2671 = vmatprep.mubr.bf16.mxu0 0
    %2672 = vmatmul.mubr.bf16.gmra.mrb[0].mxu0 %v2079
    %v2673 = vpop.f32.mrb[0].mxu0
    %v2674 = vadd.f32 0.0, %v2673
    %v2675 = vpop.f32.mrb[0].mxu0
    %v2676 = vpop.f32.mrb[0].mxu0
    %v2677 = vadd.f32 0.0, %v2676
    %v2678 = vpop.f32.mrb[0].mxu0
    %2679 = vmatprep.mubr.bf16.mxu0 0
    %2680 = vmatmul.mubr.bf16.gmra.mrb[0].mxu0 %v2082
    %v2681 = vpop.f32.mrb[0].mxu0
    %v2682 = vadd.f32 0.0, %v2681
    %v2683 = vpop.f32.mrb[0].mxu0
    %v2684 = vpop.f32.mrb[0].mxu0
    %v2685 = vadd.f32 0.0, %v2684
    %v2686 = vpop.f32.mrb[0].mxu0
    %2687 = vmatprep.mubr.bf16.mxu0 0
    %2688 = vmatmul.mubr.bf16.gmra.mrb[0].mxu0 %v2085
    %v2689 = vpop.f32.mrb[0].mxu0
    %v2690 = vadd.f32 0.0, %v2689
    %v2691 = vpop.f32.mrb[0].mxu0
    %v2692 = vpop.f32.mrb[0].mxu0
    %v2693 = vadd.f32 0.0, %v2692
    %v2694 = vpop.f32.mrb[0].mxu0
    %2695 = vmatprep.mubr.bf16.mxu0 0
    %2696 = vmatmul.mubr.bf16.gmra.mrb[0].mxu0 %v2088
    %v2697 = vpop.f32.mrb[0].mxu0
    %v2698 = vadd.f32 0.0, %v2697
    %v2699 = vpop.f32.mrb[0].mxu0
    %v2700 = vpop.f32.mrb[0].mxu0
    %v2701 = vadd.f32 0.0, %v2700
    %v2702 = vpop.f32.mrb[0].mxu0
    %2703 = vmatprep.mubr.bf16.mxu0 0
    %2704 = vmatmul.mubr.bf16.gmra.mrb[0].mxu0 %v2091
    %v2705 = vpop.f32.mrb[0].mxu0
    %v2706 = vadd.f32 0.0, %v2705
    %v2707 = vpop.f32.mrb[0].mxu0
    %v2708 = vpop.f32.mrb[0].mxu0
    %v2709 = vadd.f32 0.0, %v2708
    %v2710 = vpop.f32.mrb[0].mxu0
    %2711 = vmatprep.mubr.bf16.mxu0 0
    %2712 = vmatmul.mubr.bf16.gmra.mrb[0].mxu0 %v2094
    %v2713 = vpop.f32.mrb[0].mxu0
    %v2714 = vadd.f32 0.0, %v2713
    %v2715 = vpop.f32.mrb[0].mxu0
    %v2716 = vpop.f32.mrb[0].mxu0
    %v2717 = vadd.f32 0.0, %v2716
    %v2718 = vpop.f32.mrb[0].mxu0
    %2719 = vmatprep.mubr.bf16.mxu0 0
    %2720 = vmatmul.mubr.bf16.gmra.mrb[0].mxu0 %v2097
    %v2721 = vpop.f32.mrb[0].mxu0
    %v2722 = vadd.f32 0.0, %v2721
    %v2723 = vpop.f32.mrb[0].mxu0
    %v2724 = vpop.f32.mrb[0].mxu0
    %v2725 = vadd.f32 0.0, %v2724
    %v2726 = vpop.f32.mrb[0].mxu0
    %2727 = vmatprep.mubr.bf16.mxu0 0
    %2728 = vmatmul.mubr.bf16.gmra.mrb[0].mxu0 %v2100
    %v2729 = vpop.f32.mrb[0].mxu0
    %v2730 = vadd.f32 0.0, %v2729
    %v2731 = vpop.f32.mrb[0].mxu0
    %v2732 = vpop.f32.mrb[0].mxu0
    %v2733 = vadd.f32 0.0, %v2732
    %v2734 = vpop.f32.mrb[0].mxu0
    %2735 = vmatprep.mubr.bf16.mxu0 0
    %2736 = vmatmul.mubr.bf16.gmra.mrb[0].mxu0 %v2103
    %v2737 = vpop.f32.mrb[0].mxu0
    %v2738 = vadd.f32 0.0, %v2737
    %v2739 = vpop.f32.mrb[0].mxu0
    %v2740 = vpop.f32.mrb[0].mxu0
    %v2741 = vadd.f32 0.0, %v2740
    %v2742 = vpop.f32.mrb[0].mxu0
    %2743 = vmatprep.mubr.bf16.mxu0 0
    %2744 = vmatmul.mubr.bf16.gmra.mrb[0].mxu0 %v2106
    %v2745 = vpop.f32.mrb[0].mxu0
    %v2746 = vadd.f32 0.0, %v2745
    %v2747 = vpop.f32.mrb[0].mxu0
    %v2748 = vpop.f32.mrb[0].mxu0
    %v2749 = vadd.f32 0.0, %v2748
    %v2750 = vpop.f32.mrb[0].mxu0
    %2751 = vmatprep.mubr.bf16.mxu0 0
    %2752 = vmatmul.mubr.bf16.gmra.mrb[0].mxu0 %v2109
    %v2753 = vpop.f32.mrb[0].mxu0
    %v2754 = vadd.f32 0.0, %v2753
    %v2755 = vpop.f32.mrb[0].mxu0
    %v2756 = vpop.f32.mrb[0].mxu0
    %v2757 = vadd.f32 0.0, %v2756
    %v2758 = vpop.f32.mrb[0].mxu0
    %2759 = vmatprep.mubr.bf16.mxu0 0
    %2760 = vmatmul.mubr.bf16.gmra.mrb[0].mxu0 %v2112
    %v2761 = vpop.f32.mrb[0].mxu0
    %v2762 = vadd.f32 0.0, %v2761
    %v2763 = vpop.f32.mrb[0].mxu0
    %v2764 = vpop.f32.mrb[0].mxu0
    %v2765 = vadd.f32 0.0, %v2764
    %v2766 = vpop.f32.mrb[0].mxu0
    %2767 = vmatprep.mubr.bf16.mxu0 0
    %2768 = vmatmul.mubr.bf16.gmra.mrb[0].mxu0 %v2115
    %v2769 = vpop.f32.mrb[0].mxu0
    %v2770 = vadd.f32 0.0, %v2769
    %v2771 = vpop.f32.mrb[0].mxu0
    %v2772 = vpop.f32.mrb[0].mxu0
    %v2773 = vadd.f32 0.0, %v2772
    %v2774 = vpop.f32.mrb[0].mxu0
    %2775 = vmatprep.mubr.bf16.mxu0 0
    %2776 = vmatmul.mubr.bf16.gmra.mrb[0].mxu0 %v2118
    %v2777 = vpop.f32.mrb[0].mxu0
    %v2778 = vadd.f32 0.0, %v2777
    %v2779 = vpop.f32.mrb[0].mxu0
    %v2780 = vpop.f32.mrb[0].mxu0
    %v2781 = vadd.f32 0.0, %v2780
    %v2782 = vpop.f32.mrb[0].mxu0
    %2783 = vmatprep.mubr.bf16.mxu0 0
    %2784 = vmatmul.mubr.bf16.gmra.mrb[0].mxu0 %v2121
    %v2785 = vpop.f32.mrb[0].mxu0
    %v2786 = vadd.f32 0.0, %v2785
    %v2787 = vpop.f32.mrb[0].mxu0
    %v2788 = vpop.f32.mrb[0].mxu0
    %v2789 = vadd.f32 0.0, %v2788
    %v2790 = vpop.f32.mrb[0].mxu0
    %2791 = vmatprep.mubr.bf16.mxu0 0
    %2792 = vmatmul.mubr.bf16.gmra.mrb[0].mxu0 %v2124
    %v2793 = vpop.f32.mrb[0].mxu0
    %v2794 = vadd.f32 0.0, %v2793
    %v2795 = vpop.f32.mrb[0].mxu0
    %v2796 = vpop.f32.mrb[0].mxu0
    %v2797 = vadd.f32 0.0, %v2796
    %v2798 = vpop.f32.mrb[0].mxu0
    %2799 = vmatprep.mubr.bf16.mxu0 0
    %2800 = vmatmul.mubr.bf16.gmra.mrb[0].mxu0 %v2127
    %v2801 = vpop.f32.mrb[0].mxu0
    %v2802 = vadd.f32 0.0, %v2801
    %v2803 = vpop.f32.mrb[0].mxu0
    %v2804 = vpop.f32.mrb[0].mxu0
    %v2805 = vadd.f32 0.0, %v2804
    %v2806 = vpop.f32.mrb[0].mxu0
    %2807 = vmatprep.mubr.bf16.mxu0 0
    %2808 = vmatmul.mubr.bf16.gmra.mrb[0].mxu0 %v2130
    %v2809 = vpop.f32.mrb[0].mxu0
    %v2810 = vadd.f32 0.0, %v2809
    %v2811 = vpop.f32.mrb[0].mxu0
    %v2812 = vpop.f32.mrb[0].mxu0
    %v2813 = vadd.f32 0.0, %v2812
    %v2814 = vpop.f32.mrb[0].mxu0
    %2815 = vmatprep.mubr.bf16.mxu0 0
    %2816 = vmatmul.mubr.bf16.gmra.mrb[0].mxu0 %v2133
    %v2817 = vpop.f32.mrb[0].mxu0
    %v2818 = vadd.f32 0.0, %v2817
    %v2819 = vpop.f32.mrb[0].mxu0
    %v2820 = vpop.f32.mrb[0].mxu0
    %v2821 = vadd.f32 0.0, %v2820
    %v2822 = vpop.f32.mrb[0].mxu0
    %2823 = vmatprep.mubr.bf16.mxu0 0
    %2824 = vmatmul.mubr.bf16.gmra.mrb[0].mxu0 %v2136
    %v2825 = vpop.f32.mrb[0].mxu0
    %v2826 = vadd.f32 0.0, %v2825
    %v2827 = vpop.f32.mrb[0].mxu0
    %v2828 = vpop.f32.mrb[0].mxu0
    %v2829 = vadd.f32 0.0, %v2828
    %v2830 = vpop.f32.mrb[0].mxu0
    %2831 = vmatprep.mubr.bf16.mxu0 0
    %2832 = vmatmul.mubr.bf16.gmra.mrb[0].mxu0 %v2139
    %v2833 = vpop.f32.mrb[0].mxu0
    %v2834 = vadd.f32 0.0, %v2833
    %v2835 = vpop.f32.mrb[0].mxu0
    %v2836 = vpop.f32.mrb[0].mxu0
    %v2837 = vadd.f32 0.0, %v2836
    %v2838 = vpop.f32.mrb[0].mxu0
    %2839 = vmatprep.mubr.bf16.mxu0 0
    %2840 = vmatmul.mubr.bf16.gmra.mrb[0].mxu0 %v2142
    %v2841 = vpop.f32.mrb[0].mxu0
    %v2842 = vadd.f32 0.0, %v2841
    %v2843 = vpop.f32.mrb[0].mxu0
    %v2844 = vpop.f32.mrb[0].mxu0
    %v2845 = vadd.f32 0.0, %v2844
    %v2846 = vpop.f32.mrb[0].mxu0
    %2847 = vmatprep.mubr.bf16.mxu0 0
    %2848 = vmatmul.mubr.bf16.gmra.mrb[0].mxu0 %v2145
    %v2849 = vpop.f32.mrb[0].mxu0
    %v2850 = vadd.f32 0.0, %v2849
    %v2851 = vpop.f32.mrb[0].mxu0
    %v2852 = vpop.f32.mrb[0].mxu0
    %v2853 = vadd.f32 0.0, %v2852
    %v2854 = vpop.f32.mrb[0].mxu0
    %2855 = vdwg.mxu0
    %v2856 = vld [vmem:[%s2] sm:$0x1]
    %v2857 = vlaneseq
    %v2858 = vshrl.u32 %v2857, 7
    %v2859 = vsub.s32 0, %v2858
    %v2860 = vrot.slane %v2856, %v2859
    %v2861 = vadd.f32 %v2186, %v2860
    %v2862 = vadd.f32 %v2189, %v2860
    %v2863 = vadd.f32 %v2194, %v2860
    %v2864 = vadd.f32 %v2197, %v2860
    %v2865 = vadd.f32 %v2202, %v2860
    %v2866 = vadd.f32 %v2205, %v2860
    %v2867 = vadd.f32 %v2210, %v2860
    %v2868 = vadd.f32 %v2213, %v2860
    %v2869 = vadd.f32 %v2218, %v2860
    %v2870 = vadd.f32 %v2221, %v2860
    %v2871 = vadd.f32 %v2226, %v2860
    %v2872 = vadd.f32 %v2229, %v2860
    %v2873 = vadd.f32 %v2234, %v2860
    %v2874 = vadd.f32 %v2237, %v2860
    %v2875 = vadd.f32 %v2242, %v2860
    %v2876 = vadd.f32 %v2245, %v2860
    %v2877 = vadd.f32 %v2250, %v2860
    %v2878 = vadd.f32 %v2253, %v2860
    %v2879 = vadd.f32 %v2258, %v2860
    %v2880 = vadd.f32 %v2261, %v2860
    %v2881 = vadd.f32 %v2266, %v2860
    %v2882 = vadd.f32 %v2269, %v2860
    %v2883 = vadd.f32 %v2274, %v2860
    %v2884 = vadd.f32 %v2277, %v2860
    %v2885 = vadd.f32 %v2282, %v2860
    %v2886 = vadd.f32 %v2285, %v2860
    %v2887 = vadd.f32 %v2290, %v2860
    %v2888 = vadd.f32 %v2293, %v2860
    %v2889 = vadd.f32 %v2298, %v2860
    %v2890 = vadd.f32 %v2301, %v2860
    %v2891 = vadd.f32 %v2306, %v2860
    %v2892 = vadd.f32 %v2309, %v2860
    %v2893 = vadd.f32 %v2314, %v2860
    %v2894 = vadd.f32 %v2317, %v2860
    %v2895 = vadd.f32 %v2322, %v2860
    %v2896 = vadd.f32 %v2325, %v2860
    %v2897 = vadd.f32 %v2330, %v2860
    %v2898 = vadd.f32 %v2333, %v2860
    %v2899 = vadd.f32 %v2338, %v2860
    %v2900 = vadd.f32 %v2341, %v2860
    %v2901 = vadd.f32 %v2346, %v2860
    %v2902 = vadd.f32 %v2349, %v2860
    %v2903 = vadd.f32 %v2354, %v2860
    %v2904 = vadd.f32 %v2357, %v2860
    %v2905 = vadd.f32 %v2362, %v2860
    %v2906 = vadd.f32 %v2365, %v2860
    %v2907 = vadd.f32 %v2370, %v2860
    %v2908 = vadd.f32 %v2373, %v2860
    %v2909 = vadd.f32 %v2378, %v2860
    %v2910 = vadd.f32 %v2381, %v2860
    %v2911 = vadd.f32 %v2386, %v2860
    %v2912 = vadd.f32 %v2389, %v2860
    %v2913 = vadd.f32 %v2394, %v2860
    %v2914 = vadd.f32 %v2397, %v2860
    %v2915 = vadd.f32 %v2402, %v2860
    %v2916 = vadd.f32 %v2405, %v2860
    %v2917 = vadd.f32 %v2410, %v2860
    %v2918 = vadd.f32 %v2413, %v2860
    %v2919 = vadd.f32 %v2418, %v2860
    %v2920 = vadd.f32 %v2421, %v2860
    %v2921 = vadd.f32 %v2426, %v2860
    %v2922 = vadd.f32 %v2429, %v2860
    %v2923 = vadd.f32 %v2434, %v2860
    %v2924 = vadd.f32 %v2437, %v2860
    %v2925 = vadd.f32 %v2442, %v2860
    %v2926 = vadd.f32 %v2445, %v2860
    %v2927 = vadd.f32 %v2450, %v2860
    %v2928 = vadd.f32 %v2453, %v2860
    %v2929 = vadd.f32 %v2458, %v2860
    %v2930 = vadd.f32 %v2461, %v2860
    %v2931 = vadd.f32 %v2466, %v2860
    %v2932 = vadd.f32 %v2469, %v2860
    %v2933 = vadd.f32 %v2474, %v2860
    %v2934 = vadd.f32 %v2477, %v2860
    %v2935 = vadd.f32 %v2482, %v2860
    %v2936 = vadd.f32 %v2485, %v2860
    %v2937 = vadd.f32 %v2490, %v2860
    %v2938 = vadd.f32 %v2493, %v2860
    %v2939 = vadd.f32 %v2498, %v2860
    %v2940 = vadd.f32 %v2501, %v2860
    %v2941 = vadd.f32 %v2506, %v2860
    %v2942 = vadd.f32 %v2509, %v2860
    %v2943 = vadd.f32 %v2514, %v2860
    %v2944 = vadd.f32 %v2517, %v2860
    %v2945 = vadd.f32 %v2522, %v2860
    %v2946 = vadd.f32 %v2525, %v2860
    %v2947 = vadd.f32 %v2530, %v2860
    %v2948 = vadd.f32 %v2533, %v2860
    %v2949 = vadd.f32 %v2538, %v2860
    %v2950 = vadd.f32 %v2541, %v2860
    %v2951 = vadd.f32 %v2546, %v2860
    %v2952 = vadd.f32 %v2549, %v2860
    %v2953 = vadd.f32 %v2554, %v2860
    %v2954 = vadd.f32 %v2557, %v2860
    %v2955 = vadd.f32 %v2562, %v2860
    %v2956 = vadd.f32 %v2565, %v2860
    %v2957 = vadd.f32 %v2570, %v2860
    %v2958 = vadd.f32 %v2573, %v2860
    %v2959 = vadd.f32 %v2578, %v2860
    %v2960 = vadd.f32 %v2581, %v2860
    %v2961 = vadd.f32 %v2586, %v2860
    %v2962 = vadd.f32 %v2589, %v2860
    %v2963 = vadd.f32 %v2594, %v2860
    %v2964 = vadd.f32 %v2597, %v2860
    %v2965 = vadd.f32 %v2602, %v2860
    %v2966 = vadd.f32 %v2605, %v2860
    %v2967 = vadd.f32 %v2610, %v2860
    %v2968 = vadd.f32 %v2613, %v2860
    %v2969 = vadd.f32 %v2618, %v2860
    %v2970 = vadd.f32 %v2621, %v2860
    %v2971 = vadd.f32 %v2626, %v2860
    %v2972 = vadd.f32 %v2629, %v2860
    %v2973 = vadd.f32 %v2634, %v2860
    %v2974 = vadd.f32 %v2637, %v2860
    %v2975 = vadd.f32 %v2642, %v2860
    %v2976 = vadd.f32 %v2645, %v2860
    %v2977 = vadd.f32 %v2650, %v2860
    %v2978 = vadd.f32 %v2653, %v2860
    %v2979 = vadd.f32 %v2658, %v2860
    %v2980 = vadd.f32 %v2661, %v2860
    %v2981 = vadd.f32 %v2666, %v2860
    %v2982 = vadd.f32 %v2669, %v2860
    %v2983 = vadd.f32 %v2674, %v2860
    %v2984 = vadd.f32 %v2677, %v2860
    %v2985 = vadd.f32 %v2682, %v2860
    %v2986 = vadd.f32 %v2685, %v2860
    %v2987 = vadd.f32 %v2690, %v2860
    %v2988 = vadd.f32 %v2693, %v2860
    %v2989 = vadd.f32 %v2698, %v2860
    %v2990 = vadd.f32 %v2701, %v2860
    %v2991 = vadd.f32 %v2706, %v2860
    %v2992 = vadd.f32 %v2709, %v2860
    %v2993 = vadd.f32 %v2714, %v2860
    %v2994 = vadd.f32 %v2717, %v2860
    %v2995 = vadd.f32 %v2722, %v2860
    %v2996 = vadd.f32 %v2725, %v2860
    %v2997 = vadd.f32 %v2730, %v2860
    %v2998 = vadd.f32 %v2733, %v2860
    %v2999 = vadd.f32 %v2738, %v2860
    %v3000 = vadd.f32 %v2741, %v2860
    %v3001 = vadd.f32 %v2746, %v2860
    %v3002 = vadd.f32 %v2749, %v2860
    %v3003 = vadd.f32 %v2754, %v2860
    %v3004 = vadd.f32 %v2757, %v2860
    %v3005 = vadd.f32 %v2762, %v2860
    %v3006 = vadd.f32 %v2765, %v2860
    %v3007 = vadd.f32 %v2770, %v2860
    %v3008 = vadd.f32 %v2773, %v2860
    %v3009 = vadd.f32 %v2778, %v2860
    %v3010 = vadd.f32 %v2781, %v2860
    %v3011 = vadd.f32 %v2786, %v2860
    %v3012 = vadd.f32 %v2789, %v2860
    %v3013 = vadd.f32 %v2794, %v2860
    %v3014 = vadd.f32 %v2797, %v2860
    %v3015 = vadd.f32 %v2802, %v2860
    %v3016 = vadd.f32 %v2805, %v2860
    %v3017 = vadd.f32 %v2810, %v2860
    %v3018 = vadd.f32 %v2813, %v2860
    %v3019 = vadd.f32 %v2818, %v2860
    %v3020 = vadd.f32 %v2821, %v2860
    %v3021 = vadd.f32 %v2826, %v2860
    %v3022 = vadd.f32 %v2829, %v2860
    %v3023 = vadd.f32 %v2834, %v2860
    %v3024 = vadd.f32 %v2837, %v2860
    %v3025 = vadd.f32 %v2842, %v2860
    %v3026 = vadd.f32 %v2845, %v2860
    %v3027 = vadd.f32 %v2850, %v2860
    %v3028 = vadd.f32 %v2853, %v2860
    %v3029 = vld [vmem:[%s2 + $0x1] sm:$0x1]
    %v3030 = vld [vmem:[%s2 + $0x2] sm:$0x1]
    %v3031 = vmul.f32 %v2861, %v1287
    %v3032 = vmul.f32 %v2862, %v1288
    %v3033 = vmul.f32 %v2863, %v1287
    %v3034 = vmul.f32 %v2864, %v1288
    %v3035 = vmul.f32 %v2865, %v1287
    %v3036 = vmul.f32 %v2866, %v1288
    %v3037 = vmul.f32 %v2867, %v1287
    %v3038 = vmul.f32 %v2868, %v1288
    %v3039 = vmul.f32 %v2869, %v1287
    %v3040 = vmul.f32 %v2870, %v1288
    %v3041 = vmul.f32 %v2871, %v1287
    %v3042 = vmul.f32 %v2872, %v1288
    %v3043 = vmul.f32 %v2873, %v1287
    %v3044 = vmul.f32 %v2874, %v1288
    %v3045 = vmul.f32 %v2875, %v1287
    %v3046 = vmul.f32 %v2876, %v1288
    %v3047 = vmul.f32 %v2877, %v1287
    %v3048 = vmul.f32 %v2878, %v1288
    %v3049 = vmul.f32 %v2879, %v1287
    %v3050 = vmul.f32 %v2880, %v1288
    %v3051 = vmul.f32 %v2881, %v1287
    %v3052 = vmul.f32 %v2882, %v1288
    %v3053 = vmul.f32 %v2883, %v1287
    %v3054 = vmul.f32 %v2884, %v1288
    %v3055 = vmul.f32 %v2885, %v1287
    %v3056 = vmul.f32 %v2886, %v1288
    %v3057 = vmul.f32 %v2887, %v1287
    %v3058 = vmul.f32 %v2888, %v1288
    %v3059 = vmul.f32 %v2889, %v1287
    %v3060 = vmul.f32 %v2890, %v1288
    %v3061 = vmul.f32 %v2891, %v1287
    %v3062 = vmul.f32 %v2892, %v1288
    %v3063 = vmul.f32 %v2893, %v1287
    %v3064 = vmul.f32 %v2894, %v1288
    %v3065 = vmul.f32 %v2895, %v1287
    %v3066 = vmul.f32 %v2896, %v1288
    %v3067 = vmul.f32 %v2897, %v1287
    %v3068 = vmul.f32 %v2898, %v1288
    %v3069 = vmul.f32 %v2899, %v1287
    %v3070 = vmul.f32 %v2900, %v1288
    %v3071 = vmul.f32 %v2901, %v1287
    %v3072 = vmul.f32 %v2902, %v1288
    %v3073 = vmul.f32 %v2903, %v1287
    %v3074 = vmul.f32 %v2904, %v1288
    %v3075 = vmul.f32 %v2905, %v1287
    %v3076 = vmul.f32 %v2906, %v1288
    %v3077 = vmul.f32 %v2907, %v1287
    %v3078 = vmul.f32 %v2908, %v1288
    %v3079 = vmul.f32 %v2909, %v1287
    %v3080 = vmul.f32 %v2910, %v1288
    %v3081 = vmul.f32 %v2911, %v1287
    %v3082 = vmul.f32 %v2912, %v1288
    %v3083 = vmul.f32 %v2913, %v1287
    %v3084 = vmul.f32 %v2914, %v1288
    %v3085 = vmul.f32 %v2915, %v1287
    %v3086 = vmul.f32 %v2916, %v1288
    %v3087 = vmul.f32 %v2917, %v1287
    %v3088 = vmul.f32 %v2918, %v1288
    %v3089 = vmul.f32 %v2919, %v1287
    %v3090 = vmul.f32 %v2920, %v1288
    %v3091 = vmul.f32 %v2921, %v1287
    %v3092 = vmul.f32 %v2922, %v1288
    %v3093 = vmul.f32 %v2923, %v1287
    %v3094 = vmul.f32 %v2924, %v1288
    %v3095 = vmul.f32 %v2925, %v1287
    %v3096 = vmul.f32 %v2926, %v1288
    %v3097 = vmul.f32 %v2927, %v1287
    %v3098 = vmul.f32 %v2928, %v1288
    %v3099 = vmul.f32 %v2929, %v1287
    %v3100 = vmul.f32 %v2930, %v1288
    %v3101 = vmul.f32 %v2931, %v1287
    %v3102 = vmul.f32 %v2932, %v1288
    %v3103 = vmul.f32 %v2933, %v1287
    %v3104 = vmul.f32 %v2934, %v1288
    %v3105 = vmul.f32 %v2935, %v1287
    %v3106 = vmul.f32 %v2936, %v1288
    %v3107 = vmul.f32 %v2937, %v1287
    %v3108 = vmul.f32 %v2938, %v1288
    %v3109 = vmul.f32 %v2939, %v1287
    %v3110 = vmul.f32 %v2940, %v1288
    %v3111 = vmul.f32 %v2941, %v1287
    %v3112 = vmul.f32 %v2942, %v1288
    %v3113 = vmul.f32 %v2943, %v1287
    %v3114 = vmul.f32 %v2944, %v1288
    %v3115 = vmul.f32 %v2945, %v1287
    %v3116 = vmul.f32 %v2946, %v1288
    %v3117 = vmul.f32 %v2947, %v1287
    %v3118 = vmul.f32 %v2948, %v1288
    %v3119 = vmul.f32 %v2949, %v1287
    %v3120 = vmul.f32 %v2950, %v1288
    %v3121 = vmul.f32 %v2951, %v1287
    %v3122 = vmul.f32 %v2952, %v1288
    %v3123 = vmul.f32 %v2953, %v1287
    %v3124 = vmul.f32 %v2954, %v1288
    %v3125 = vmul.f32 %v2955, %v1287
    %v3126 = vmul.f32 %v2956, %v1288
    %v3127 = vmul.f32 %v2957, %v1287
    %v3128 = vmul.f32 %v2958, %v1288
    %v3129 = vmul.f32 %v2959, %v1287
    %v3130 = vmul.f32 %v2960, %v1288
    %v3131 = vmul.f32 %v2961, %v1287
    %v3132 = vmul.f32 %v2962, %v1288
    %v3133 = vmul.f32 %v2963, %v1287
    %v3134 = vmul.f32 %v2964, %v1288
    %v3135 = vmul.f32 %v2965, %v1287
    %v3136 = vmul.f32 %v2966, %v1288
    %v3137 = vmul.f32 %v2967, %v1287
    %v3138 = vmul.f32 %v2968, %v1288
    %v3139 = vmul.f32 %v2969, %v1287
    %v3140 = vmul.f32 %v2970, %v1288
    %v3141 = vmul.f32 %v2971, %v1287
    %v3142 = vmul.f32 %v2972, %v1288
    %v3143 = vmul.f32 %v2973, %v1287
    %v3144 = vmul.f32 %v2974, %v1288
    %v3145 = vmul.f32 %v2975, %v1287
    %v3146 = vmul.f32 %v2976, %v1288
    %v3147 = vmul.f32 %v2977, %v1287
    %v3148 = vmul.f32 %v2978, %v1288
    %v3149 = vmul.f32 %v2979, %v1287
    %v3150 = vmul.f32 %v2980, %v1288
    %v3151 = vmul.f32 %v2981, %v1287
    %v3152 = vmul.f32 %v2982, %v1288
    %v3153 = vmul.f32 %v2983, %v1287
    %v3154 = vmul.f32 %v2984, %v1288
    %v3155 = vmul.f32 %v2985, %v1287
    %v3156 = vmul.f32 %v2986, %v1288
    %v3157 = vmul.f32 %v2987, %v1287
    %v3158 = vmul.f32 %v2988, %v1288
    %v3159 = vmul.f32 %v2989, %v1287
    %v3160 = vmul.f32 %v2990, %v1288
    %v3161 = vmul.f32 %v2991, %v1287
    %v3162 = vmul.f32 %v2992, %v1288
    %v3163 = vmul.f32 %v2993, %v1287
    %v3164 = vmul.f32 %v2994, %v1288
    %v3165 = vmul.f32 %v2995, %v1287
    %v3166 = vmul.f32 %v2996, %v1288
    %v3167 = vmul.f32 %v2997, %v1287
    %v3168 = vmul.f32 %v2998, %v1288
    %v3169 = vmul.f32 %v2999, %v1287
    %v3170 = vmul.f32 %v3000, %v1288
    %v3171 = vmul.f32 %v3001, %v1287
    %v3172 = vmul.f32 %v3002, %v1288
    %v3173 = vmul.f32 %v3003, %v1287
    %v3174 = vmul.f32 %v3004, %v1288
    %v3175 = vmul.f32 %v3005, %v1287
    %v3176 = vmul.f32 %v3006, %v1288
    %v3177 = vmul.f32 %v3007, %v1287
    %v3178 = vmul.f32 %v3008, %v1288
    %v3179 = vmul.f32 %v3009, %v1287
    %v3180 = vmul.f32 %v3010, %v1288
    %v3181 = vmul.f32 %v3011, %v1287
    %v3182 = vmul.f32 %v3012, %v1288
    %v3183 = vmul.f32 %v3013, %v1287
    %v3184 = vmul.f32 %v3014, %v1288
    %v3185 = vmul.f32 %v3015, %v1287
    %v3186 = vmul.f32 %v3016, %v1288
    %v3187 = vmul.f32 %v3017, %v1287
    %v3188 = vmul.f32 %v3018, %v1288
    %v3189 = vmul.f32 %v3019, %v1287
    %v3190 = vmul.f32 %v3020, %v1288
    %v3191 = vmul.f32 %v3021, %v1287
    %v3192 = vmul.f32 %v3022, %v1288
    %v3193 = vmul.f32 %v3023, %v1287
    %v3194 = vmul.f32 %v3024, %v1288
    %v3195 = vmul.f32 %v3025, %v1287
    %v3196 = vmul.f32 %v3026, %v1288
    %v3197 = vmul.f32 %v3027, %v1287
    %v3198 = vmul.f32 %v3028, %v1288
    %vm3199 = vcmask 523264
    %v3200 = vsel %vm3199, %v3031, 0.0
    %v3201 = vsel %vm3199, %v3115, 0.0
    %v3202 = vadd.f32 %v3200, %v3201
    %v3203 = vsel %vm3199, %v3032, 0.0
    %v3204 = vsel %vm3199, %v3116, 0.0
    %v3205 = vadd.f32 %v3203, %v3204
    %v3206 = vsel %vm3199, %v3033, 0.0
    %v3207 = vsel %vm3199, %v3117, 0.0
    %v3208 = vadd.f32 %v3206, %v3207
    %v3209 = vsel %vm3199, %v3034, 0.0
    %v3210 = vsel %vm3199, %v3118, 0.0
    %v3211 = vadd.f32 %v3209, %v3210
    %v3212 = vsel %vm3199, %v3035, 0.0
    %v3213 = vsel %vm3199, %v3119, 0.0
    %v3214 = vadd.f32 %v3212, %v3213
    %v3215 = vsel %vm3199, %v3036, 0.0
    %v3216 = vsel %vm3199, %v3120, 0.0
    %v3217 = vadd.f32 %v3215, %v3216
    %v3218 = vsel %vm3199, %v3037, 0.0
    %v3219 = vsel %vm3199, %v3121, 0.0
    %v3220 = vadd.f32 %v3218, %v3219
    %v3221 = vsel %vm3199, %v3038, 0.0
    %v3222 = vsel %vm3199, %v3122, 0.0
    %v3223 = vadd.f32 %v3221, %v3222
    %v3224 = vsel %vm3199, %v3039, 0.0
    %v3225 = vsel %vm3199, %v3123, 0.0
    %v3226 = vadd.f32 %v3224, %v3225
    %v3227 = vsel %vm3199, %v3040, 0.0
    %v3228 = vsel %vm3199, %v3124, 0.0
    %v3229 = vadd.f32 %v3227, %v3228
    %v3230 = vsel %vm3199, %v3041, 0.0
    %v3231 = vsel %vm3199, %v3125, 0.0
    %v3232 = vadd.f32 %v3230, %v3231
    %v3233 = vsel %vm3199, %v3042, 0.0
    %v3234 = vsel %vm3199, %v3126, 0.0
    %v3235 = vadd.f32 %v3233, %v3234
    %v3236 = vsel %vm3199, %v3043, 0.0
    %v3237 = vsel %vm3199, %v3127, 0.0
    %v3238 = vadd.f32 %v3236, %v3237
    %v3239 = vsel %vm3199, %v3044, 0.0
    %v3240 = vsel %vm3199, %v3128, 0.0
    %v3241 = vadd.f32 %v3239, %v3240
    %v3242 = vsel %vm3199, %v3045, 0.0
    %v3243 = vsel %vm3199, %v3129, 0.0
    %v3244 = vadd.f32 %v3242, %v3243
    %v3245 = vsel %vm3199, %v3046, 0.0
    %v3246 = vsel %vm3199, %v3130, 0.0
    %v3247 = vadd.f32 %v3245, %v3246
    %v3248 = vsel %vm3199, %v3047, 0.0
    %v3249 = vsel %vm3199, %v3131, 0.0
    %v3250 = vadd.f32 %v3248, %v3249
    %v3251 = vsel %vm3199, %v3048, 0.0
    %v3252 = vsel %vm3199, %v3132, 0.0
    %v3253 = vadd.f32 %v3251, %v3252
    %v3254 = vsel %vm3199, %v3049, 0.0
    %v3255 = vsel %vm3199, %v3133, 0.0
    %v3256 = vadd.f32 %v3254, %v3255
    %v3257 = vsel %vm3199, %v3050, 0.0
    %v3258 = vsel %vm3199, %v3134, 0.0
    %v3259 = vadd.f32 %v3257, %v3258
    %v3260 = vsel %vm3199, %v3051, 0.0
    %v3261 = vsel %vm3199, %v3135, 0.0
    %v3262 = vadd.f32 %v3260, %v3261
    %v3263 = vsel %vm3199, %v3052, 0.0
    %v3264 = vsel %vm3199, %v3136, 0.0
    %v3265 = vadd.f32 %v3263, %v3264
    %v3266 = vsel %vm3199, %v3053, 0.0
    %v3267 = vsel %vm3199, %v3137, 0.0
    %v3268 = vadd.f32 %v3266, %v3267
    %v3269 = vsel %vm3199, %v3054, 0.0
    %v3270 = vsel %vm3199, %v3138, 0.0
    %v3271 = vadd.f32 %v3269, %v3270
    %v3272 = vsel %vm3199, %v3055, 0.0
    %v3273 = vsel %vm3199, %v3139, 0.0
    %v3274 = vadd.f32 %v3272, %v3273
    %v3275 = vsel %vm3199, %v3056, 0.0
    %v3276 = vsel %vm3199, %v3140, 0.0
    %v3277 = vadd.f32 %v3275, %v3276
    %v3278 = vsel %vm3199, %v3057, 0.0
    %v3279 = vsel %vm3199, %v3141, 0.0
    %v3280 = vadd.f32 %v3278, %v3279
    %v3281 = vsel %vm3199, %v3058, 0.0
    %v3282 = vsel %vm3199, %v3142, 0.0
    %v3283 = vadd.f32 %v3281, %v3282
    %v3284 = vsel %vm3199, %v3059, 0.0
    %v3285 = vsel %vm3199, %v3143, 0.0
    %v3286 = vadd.f32 %v3284, %v3285
    %v3287 = vsel %vm3199, %v3060, 0.0
    %v3288 = vsel %vm3199, %v3144, 0.0
    %v3289 = vadd.f32 %v3287, %v3288
    %v3290 = vsel %vm3199, %v3061, 0.0
    %v3291 = vsel %vm3199, %v3145, 0.0
    %v3292 = vadd.f32 %v3290, %v3291
    %v3293 = vsel %vm3199, %v3062, 0.0
    %v3294 = vsel %vm3199, %v3146, 0.0
    %v3295 = vadd.f32 %v3293, %v3294
    %v3296 = vsel %vm3199, %v3063, 0.0
    %v3297 = vsel %vm3199, %v3147, 0.0
    %v3298 = vadd.f32 %v3296, %v3297
    %v3299 = vsel %vm3199, %v3064, 0.0
    %v3300 = vsel %vm3199, %v3148, 0.0
    %v3301 = vadd.f32 %v3299, %v3300
    %v3302 = vsel %vm3199, %v3065, 0.0
    %v3303 = vsel %vm3199, %v3149, 0.0
    %v3304 = vadd.f32 %v3302, %v3303
    %v3305 = vsel %vm3199, %v3066, 0.0
    %v3306 = vsel %vm3199, %v3150, 0.0
    %v3307 = vadd.f32 %v3305, %v3306
    %v3308 = vsel %vm3199, %v3067, 0.0
    %v3309 = vsel %vm3199, %v3151, 0.0
    %v3310 = vadd.f32 %v3308, %v3309
    %v3311 = vsel %vm3199, %v3068, 0.0
    %v3312 = vsel %vm3199, %v3152, 0.0
    %v3313 = vadd.f32 %v3311, %v3312
    %v3314 = vsel %vm3199, %v3069, 0.0
    %v3315 = vsel %vm3199, %v3153, 0.0
    %v3316 = vadd.f32 %v3314, %v3315
    %v3317 = vsel %vm3199, %v3070, 0.0
    %v3318 = vsel %vm3199, %v3154, 0.0
    %v3319 = vadd.f32 %v3317, %v3318
    %v3320 = vsel %vm3199, %v3071, 0.0
    %v3321 = vsel %vm3199, %v3155, 0.0
    %v3322 = vadd.f32 %v3320, %v3321
    %v3323 = vsel %vm3199, %v3072, 0.0
    %v3324 = vsel %vm3199, %v3156, 0.0
    %v3325 = vadd.f32 %v3323, %v3324
    %v3326 = vsel %vm3199, %v3073, 0.0
    %v3327 = vsel %vm3199, %v3157, 0.0
    %v3328 = vadd.f32 %v3326, %v3327
    %v3329 = vsel %vm3199, %v3074, 0.0
    %v3330 = vsel %vm3199, %v3158, 0.0
    %v3331 = vadd.f32 %v3329, %v3330
    %v3332 = vsel %vm3199, %v3075, 0.0
    %v3333 = vsel %vm3199, %v3159, 0.0
    %v3334 = vadd.f32 %v3332, %v3333
    %v3335 = vsel %vm3199, %v3076, 0.0
    %v3336 = vsel %vm3199, %v3160, 0.0
    %v3337 = vadd.f32 %v3335, %v3336
    %v3338 = vsel %vm3199, %v3077, 0.0
    %v3339 = vsel %vm3199, %v3161, 0.0
    %v3340 = vadd.f32 %v3338, %v3339
    %v3341 = vsel %vm3199, %v3078, 0.0
    %v3342 = vsel %vm3199, %v3162, 0.0
    %v3343 = vadd.f32 %v3341, %v3342
    %v3344 = vsel %vm3199, %v3079, 0.0
    %v3345 = vsel %vm3199, %v3163, 0.0
    %v3346 = vadd.f32 %v3344, %v3345
    %v3347 = vsel %vm3199, %v3080, 0.0
    %v3348 = vsel %vm3199, %v3164, 0.0
    %v3349 = vadd.f32 %v3347, %v3348
    %v3350 = vsel %vm3199, %v3081, 0.0
    %v3351 = vsel %vm3199, %v3165, 0.0
    %v3352 = vadd.f32 %v3350, %v3351
    %v3353 = vsel %vm3199, %v3082, 0.0
    %v3354 = vsel %vm3199, %v3166, 0.0
    %v3355 = vadd.f32 %v3353, %v3354
    %v3356 = vsel %vm3199, %v3083, 0.0
    %v3357 = vsel %vm3199, %v3167, 0.0
    %v3358 = vadd.f32 %v3356, %v3357
    %v3359 = vsel %vm3199, %v3084, 0.0
    %v3360 = vsel %vm3199, %v3168, 0.0
    %v3361 = vadd.f32 %v3359, %v3360
    %v3362 = vsel %vm3199, %v3085, 0.0
    %v3363 = vsel %vm3199, %v3169, 0.0
    %v3364 = vadd.f32 %v3362, %v3363
    %v3365 = vsel %vm3199, %v3086, 0.0
    %v3366 = vsel %vm3199, %v3170, 0.0
    %v3367 = vadd.f32 %v3365, %v3366
    %v3368 = vsel %vm3199, %v3087, 0.0
    %v3369 = vsel %vm3199, %v3171, 0.0
    %v3370 = vadd.f32 %v3368, %v3369
    %v3371 = vsel %vm3199, %v3088, 0.0
    %v3372 = vsel %vm3199, %v3172, 0.0
    %v3373 = vadd.f32 %v3371, %v3372
    %v3374 = vsel %vm3199, %v3089, 0.0
    %v3375 = vsel %vm3199, %v3173, 0.0
    %v3376 = vadd.f32 %v3374, %v3375
    %v3377 = vsel %vm3199, %v3090, 0.0
    %v3378 = vsel %vm3199, %v3174, 0.0
    %v3379 = vadd.f32 %v3377, %v3378
    %v3380 = vsel %vm3199, %v3091, 0.0
    %v3381 = vsel %vm3199, %v3175, 0.0
    %v3382 = vadd.f32 %v3380, %v3381
    %v3383 = vsel %vm3199, %v3092, 0.0
    %v3384 = vsel %vm3199, %v3176, 0.0
    %v3385 = vadd.f32 %v3383, %v3384
    %v3386 = vsel %vm3199, %v3093, 0.0
    %v3387 = vsel %vm3199, %v3177, 0.0
    %v3388 = vadd.f32 %v3386, %v3387
    %v3389 = vsel %vm3199, %v3094, 0.0
    %v3390 = vsel %vm3199, %v3178, 0.0
    %v3391 = vadd.f32 %v3389, %v3390
    %v3392 = vsel %vm3199, %v3095, 0.0
    %v3393 = vsel %vm3199, %v3179, 0.0
    %v3394 = vadd.f32 %v3392, %v3393
    %v3395 = vsel %vm3199, %v3096, 0.0
    %v3396 = vsel %vm3199, %v3180, 0.0
    %v3397 = vadd.f32 %v3395, %v3396
    %v3398 = vsel %vm3199, %v3097, 0.0
    %v3399 = vsel %vm3199, %v3181, 0.0
    %v3400 = vadd.f32 %v3398, %v3399
    %v3401 = vsel %vm3199, %v3098, 0.0
    %v3402 = vsel %vm3199, %v3182, 0.0
    %v3403 = vadd.f32 %v3401, %v3402
    %v3404 = vsel %vm3199, %v3099, 0.0
    %v3405 = vsel %vm3199, %v3183, 0.0
    %v3406 = vadd.f32 %v3404, %v3405
    %v3407 = vsel %vm3199, %v3100, 0.0
    %v3408 = vsel %vm3199, %v3184, 0.0
    %v3409 = vadd.f32 %v3407, %v3408
    %v3410 = vsel %vm3199, %v3101, 0.0
    %v3411 = vsel %vm3199, %v3185, 0.0
    %v3412 = vadd.f32 %v3410, %v3411
    %v3413 = vsel %vm3199, %v3102, 0.0
    %v3414 = vsel %vm3199, %v3186, 0.0
    %v3415 = vadd.f32 %v3413, %v3414
    %v3416 = vsel %vm3199, %v3103, 0.0
    %v3417 = vsel %vm3199, %v3187, 0.0
    %v3418 = vadd.f32 %v3416, %v3417
    %v3419 = vsel %vm3199, %v3104, 0.0
    %v3420 = vsel %vm3199, %v3188, 0.0
    %v3421 = vadd.f32 %v3419, %v3420
    %v3422 = vsel %vm3199, %v3105, 0.0
    %v3423 = vsel %vm3199, %v3189, 0.0
    %v3424 = vadd.f32 %v3422, %v3423
    %v3425 = vsel %vm3199, %v3106, 0.0
    %v3426 = vsel %vm3199, %v3190, 0.0
    %v3427 = vadd.f32 %v3425, %v3426
    %v3428 = vsel %vm3199, %v3107, 0.0
    %v3429 = vsel %vm3199, %v3191, 0.0
    %v3430 = vadd.f32 %v3428, %v3429
    %v3431 = vsel %vm3199, %v3108, 0.0
    %v3432 = vsel %vm3199, %v3192, 0.0
    %v3433 = vadd.f32 %v3431, %v3432
    %v3434 = vsel %vm3199, %v3109, 0.0
    %v3435 = vsel %vm3199, %v3193, 0.0
    %v3436 = vadd.f32 %v3434, %v3435
    %v3437 = vsel %vm3199, %v3110, 0.0
    %v3438 = vsel %vm3199, %v3194, 0.0
    %v3439 = vadd.f32 %v3437, %v3438
    %v3440 = vsel %vm3199, %v3111, 0.0
    %v3441 = vsel %vm3199, %v3195, 0.0
    %v3442 = vadd.f32 %v3440, %v3441
    %v3443 = vsel %vm3199, %v3112, 0.0
    %v3444 = vsel %vm3199, %v3196, 0.0
    %v3445 = vadd.f32 %v3443, %v3444
    %v3446 = vsel %vm3199, %v3113, 0.0
    %v3447 = vsel %vm3199, %v3197, 0.0
    %v3448 = vadd.f32 %v3446, %v3447
    %v3449 = vsel %vm3199, %v3114, 0.0
    %v3450 = vsel %vm3199, %v3198, 0.0
    %v3451 = vadd.f32 %v3449, %v3450
    %v3452 = vsel %vm3199, %v3202, 0.0
    %v3453 = vsel %vm3199, %v3208, 0.0
    %v3454 = vadd.f32 %v3452, %v3453
    %v3455 = vsel %vm3199, %v3214, 0.0
    %v3456 = vadd.f32 %v3454, %v3455
    %v3457 = vsel %vm3199, %v3220, 0.0
    %v3458 = vadd.f32 %v3456, %v3457
    %v3459 = vsel %vm3199, %v3226, 0.0
    %v3460 = vadd.f32 %v3458, %v3459
    %v3461 = vsel %vm3199, %v3232, 0.0
    %v3462 = vadd.f32 %v3460, %v3461
    %v3463 = vsel %vm3199, %v3238, 0.0
    %v3464 = vadd.f32 %v3462, %v3463
    %v3465 = vsel %vm3199, %v3244, 0.0
    %v3466 = vadd.f32 %v3464, %v3465
    %v3467 = vsel %vm3199, %v3250, 0.0
    %v3468 = vadd.f32 %v3466, %v3467
    %v3469 = vsel %vm3199, %v3256, 0.0
    %v3470 = vadd.f32 %v3468, %v3469
    %v3471 = vsel %vm3199, %v3262, 0.0
    %v3472 = vadd.f32 %v3470, %v3471
    %v3473 = vsel %vm3199, %v3268, 0.0
    %v3474 = vadd.f32 %v3472, %v3473
    %v3475 = vsel %vm3199, %v3274, 0.0
    %v3476 = vadd.f32 %v3474, %v3475
    %v3477 = vsel %vm3199, %v3280, 0.0
    %v3478 = vadd.f32 %v3476, %v3477
    %v3479 = vsel %vm3199, %v3286, 0.0
    %v3480 = vadd.f32 %v3478, %v3479
    %v3481 = vsel %vm3199, %v3292, 0.0
    %v3482 = vadd.f32 %v3480, %v3481
    %v3483 = vsel %vm3199, %v3298, 0.0
    %v3484 = vadd.f32 %v3482, %v3483
    %v3485 = vsel %vm3199, %v3304, 0.0
    %v3486 = vadd.f32 %v3484, %v3485
    %v3487 = vsel %vm3199, %v3310, 0.0
    %v3488 = vadd.f32 %v3486, %v3487
    %v3489 = vsel %vm3199, %v3316, 0.0
    %v3490 = vadd.f32 %v3488, %v3489
    %v3491 = vsel %vm3199, %v3322, 0.0
    %v3492 = vadd.f32 %v3490, %v3491
    %v3493 = vsel %vm3199, %v3328, 0.0
    %v3494 = vadd.f32 %v3492, %v3493
    %v3495 = vsel %vm3199, %v3334, 0.0
    %v3496 = vadd.f32 %v3494, %v3495
    %v3497 = vsel %vm3199, %v3340, 0.0
    %v3498 = vadd.f32 %v3496, %v3497
    %v3499 = vsel %vm3199, %v3346, 0.0
    %v3500 = vadd.f32 %v3498, %v3499
    %v3501 = vsel %vm3199, %v3352, 0.0
    %v3502 = vadd.f32 %v3500, %v3501
    %v3503 = vsel %vm3199, %v3358, 0.0
    %v3504 = vadd.f32 %v3502, %v3503
    %v3505 = vsel %vm3199, %v3364, 0.0
    %v3506 = vadd.f32 %v3504, %v3505
    %v3507 = vsel %vm3199, %v3370, 0.0
    %v3508 = vadd.f32 %v3506, %v3507
    %v3509 = vsel %vm3199, %v3376, 0.0
    %v3510 = vadd.f32 %v3508, %v3509
    %v3511 = vsel %vm3199, %v3382, 0.0
    %v3512 = vadd.f32 %v3510, %v3511
    %v3513 = vsel %vm3199, %v3388, 0.0
    %v3514 = vadd.f32 %v3512, %v3513
    %v3515 = vsel %vm3199, %v3394, 0.0
    %v3516 = vadd.f32 %v3514, %v3515
    %v3517 = vsel %vm3199, %v3400, 0.0
    %v3518 = vadd.f32 %v3516, %v3517
    %v3519 = vsel %vm3199, %v3406, 0.0
    %v3520 = vadd.f32 %v3518, %v3519
    %v3521 = vsel %vm3199, %v3412, 0.0
    %v3522 = vadd.f32 %v3520, %v3521
    %v3523 = vsel %vm3199, %v3418, 0.0
    %v3524 = vadd.f32 %v3522, %v3523
    %v3525 = vsel %vm3199, %v3424, 0.0
    %v3526 = vadd.f32 %v3524, %v3525
    %v3527 = vsel %vm3199, %v3430, 0.0
    %v3528 = vadd.f32 %v3526, %v3527
    %v3529 = vsel %vm3199, %v3436, 0.0
    %v3530 = vadd.f32 %v3528, %v3529
    %v3531 = vsel %vm3199, %v3442, 0.0
    %v3532 = vadd.f32 %v3530, %v3531
    %v3533 = vsel %vm3199, %v3448, 0.0
    %v3534 = vadd.f32 %v3532, %v3533
    %v3535 = vsel %vm3199, %v3205, 0.0
    %v3536 = vsel %vm3199, %v3211, 0.0
    %v3537 = vadd.f32 %v3535, %v3536
    %v3538 = vsel %vm3199, %v3217, 0.0
    %v3539 = vadd.f32 %v3537, %v3538
    %v3540 = vsel %vm3199, %v3223, 0.0
    %v3541 = vadd.f32 %v3539, %v3540
    %v3542 = vsel %vm3199, %v3229, 0.0
    %v3543 = vadd.f32 %v3541, %v3542
    %v3544 = vsel %vm3199, %v3235, 0.0
    %v3545 = vadd.f32 %v3543, %v3544
    %v3546 = vsel %vm3199, %v3241, 0.0
    %v3547 = vadd.f32 %v3545, %v3546
    %v3548 = vsel %vm3199, %v3247, 0.0
    %v3549 = vadd.f32 %v3547, %v3548
    %v3550 = vsel %vm3199, %v3253, 0.0
    %v3551 = vadd.f32 %v3549, %v3550
    %v3552 = vsel %vm3199, %v3259, 0.0
    %v3553 = vadd.f32 %v3551, %v3552
    %v3554 = vsel %vm3199, %v3265, 0.0
    %v3555 = vadd.f32 %v3553, %v3554
    %v3556 = vsel %vm3199, %v3271, 0.0
    %v3557 = vadd.f32 %v3555, %v3556
    %v3558 = vsel %vm3199, %v3277, 0.0
    %v3559 = vadd.f32 %v3557, %v3558
    %v3560 = vsel %vm3199, %v3283, 0.0
    %v3561 = vadd.f32 %v3559, %v3560
    %v3562 = vsel %vm3199, %v3289, 0.0
    %v3563 = vadd.f32 %v3561, %v3562
    %v3564 = vsel %vm3199, %v3295, 0.0
    %v3565 = vadd.f32 %v3563, %v3564
    %v3566 = vsel %vm3199, %v3301, 0.0
    %v3567 = vadd.f32 %v3565, %v3566
    %v3568 = vsel %vm3199, %v3307, 0.0
    %v3569 = vadd.f32 %v3567, %v3568
    %v3570 = vsel %vm3199, %v3313, 0.0
    %v3571 = vadd.f32 %v3569, %v3570
    %v3572 = vsel %vm3199, %v3319, 0.0
    %v3573 = vadd.f32 %v3571, %v3572
    %v3574 = vsel %vm3199, %v3325, 0.0
    %v3575 = vadd.f32 %v3573, %v3574
    %v3576 = vsel %vm3199, %v3331, 0.0
    %v3577 = vadd.f32 %v3575, %v3576
    %v3578 = vsel %vm3199, %v3337, 0.0
    %v3579 = vadd.f32 %v3577, %v3578
    %v3580 = vsel %vm3199, %v3343, 0.0
    %v3581 = vadd.f32 %v3579, %v3580
    %v3582 = vsel %vm3199, %v3349, 0.0
    %v3583 = vadd.f32 %v3581, %v3582
    %v3584 = vsel %vm3199, %v3355, 0.0
    %v3585 = vadd.f32 %v3583, %v3584
    %v3586 = vsel %vm3199, %v3361, 0.0
    %v3587 = vadd.f32 %v3585, %v3586
    %v3588 = vsel %vm3199, %v3367, 0.0
    %v3589 = vadd.f32 %v3587, %v3588
    %v3590 = vsel %vm3199, %v3373, 0.0
    %v3591 = vadd.f32 %v3589, %v3590
    %v3592 = vsel %vm3199, %v3379, 0.0
    %v3593 = vadd.f32 %v3591, %v3592
    %v3594 = vsel %vm3199, %v3385, 0.0
    %v3595 = vadd.f32 %v3593, %v3594
    %v3596 = vsel %vm3199, %v3391, 0.0
    %v3597 = vadd.f32 %v3595, %v3596
    %v3598 = vsel %vm3199, %v3397, 0.0
    %v3599 = vadd.f32 %v3597, %v3598
    %v3600 = vsel %vm3199, %v3403, 0.0
    %v3601 = vadd.f32 %v3599, %v3600
    %v3602 = vsel %vm3199, %v3409, 0.0
    %v3603 = vadd.f32 %v3601, %v3602
    %v3604 = vsel %vm3199, %v3415, 0.0
    %v3605 = vadd.f32 %v3603, %v3604
    %v3606 = vsel %vm3199, %v3421, 0.0
    %v3607 = vadd.f32 %v3605, %v3606
    %v3608 = vsel %vm3199, %v3427, 0.0
    %v3609 = vadd.f32 %v3607, %v3608
    %v3610 = vsel %vm3199, %v3433, 0.0
    %v3611 = vadd.f32 %v3609, %v3610
    %v3612 = vsel %vm3199, %v3439, 0.0
    %v3613 = vadd.f32 %v3611, %v3612
    %v3614 = vsel %vm3199, %v3445, 0.0
    %v3615 = vadd.f32 %v3613, %v3614
    %v3616 = vsel %vm3199, %v3451, 0.0
    %v3617 = vadd.f32 %v3615, %v3616
    %v3618 = vsel %vm3199, %v3534, 0.0
    %v3619 = vsel %vm3199, %v3617, 0.0
    %v3620 = vadd.f32 %v3618, %v3619
    %v3621 = vrot.slane %v3620, 4
    %v3622 = vadd.f32 %v3620, %v3621
    %v3623 = vrot.slane %v3622, 2
    %v3624 = vadd.f32 %v3622, %v3623
    %v3625 = vrot.slane %v3624, 1
    %v3626 = vadd.f32 %v3624, %v3625
    %v3627 = vmul.f32 %v3031, %v3031
    %v3628 = vmul.f32 %v3032, %v3032
    %v3629 = vmul.f32 %v3033, %v3033
    %v3630 = vmul.f32 %v3034, %v3034
    %v3631 = vmul.f32 %v3035, %v3035
    %v3632 = vmul.f32 %v3036, %v3036
    %v3633 = vmul.f32 %v3037, %v3037
    %v3634 = vmul.f32 %v3038, %v3038
    %v3635 = vmul.f32 %v3039, %v3039
    %v3636 = vmul.f32 %v3040, %v3040
    %v3637 = vmul.f32 %v3041, %v3041
    %v3638 = vmul.f32 %v3042, %v3042
    %v3639 = vmul.f32 %v3043, %v3043
    %v3640 = vmul.f32 %v3044, %v3044
    %v3641 = vmul.f32 %v3045, %v3045
    %v3642 = vmul.f32 %v3046, %v3046
    %v3643 = vmul.f32 %v3047, %v3047
    %v3644 = vmul.f32 %v3048, %v3048
    %v3645 = vmul.f32 %v3049, %v3049
    %v3646 = vmul.f32 %v3050, %v3050
    %v3647 = vmul.f32 %v3051, %v3051
    %v3648 = vmul.f32 %v3052, %v3052
    %v3649 = vmul.f32 %v3053, %v3053
    %v3650 = vmul.f32 %v3054, %v3054
    %v3651 = vmul.f32 %v3055, %v3055
    %v3652 = vmul.f32 %v3056, %v3056
    %v3653 = vmul.f32 %v3057, %v3057
    %v3654 = vmul.f32 %v3058, %v3058
    %v3655 = vmul.f32 %v3059, %v3059
    %v3656 = vmul.f32 %v3060, %v3060
    %v3657 = vmul.f32 %v3061, %v3061
    %v3658 = vmul.f32 %v3062, %v3062
    %v3659 = vmul.f32 %v3063, %v3063
    %v3660 = vmul.f32 %v3064, %v3064
    %v3661 = vmul.f32 %v3065, %v3065
    %v3662 = vmul.f32 %v3066, %v3066
    %v3663 = vmul.f32 %v3067, %v3067
    %v3664 = vmul.f32 %v3068, %v3068
    %v3665 = vmul.f32 %v3069, %v3069
    %v3666 = vmul.f32 %v3070, %v3070
    %v3667 = vmul.f32 %v3071, %v3071
    %v3668 = vmul.f32 %v3072, %v3072
    %v3669 = vmul.f32 %v3073, %v3073
    %v3670 = vmul.f32 %v3074, %v3074
    %v3671 = vmul.f32 %v3075, %v3075
    %v3672 = vmul.f32 %v3076, %v3076
    %v3673 = vmul.f32 %v3077, %v3077
    %v3674 = vmul.f32 %v3078, %v3078
    %v3675 = vmul.f32 %v3079, %v3079
    %v3676 = vmul.f32 %v3080, %v3080
    %v3677 = vmul.f32 %v3081, %v3081
    %v3678 = vmul.f32 %v3082, %v3082
    %v3679 = vmul.f32 %v3083, %v3083
    %v3680 = vmul.f32 %v3084, %v3084
    %v3681 = vmul.f32 %v3085, %v3085
    %v3682 = vmul.f32 %v3086, %v3086
    %v3683 = vmul.f32 %v3087, %v3087
    %v3684 = vmul.f32 %v3088, %v3088
    %v3685 = vmul.f32 %v3089, %v3089
    %v3686 = vmul.f32 %v3090, %v3090
    %v3687 = vmul.f32 %v3091, %v3091
    %v3688 = vmul.f32 %v3092, %v3092
    %v3689 = vmul.f32 %v3093, %v3093
    %v3690 = vmul.f32 %v3094, %v3094
    %v3691 = vmul.f32 %v3095, %v3095
    %v3692 = vmul.f32 %v3096, %v3096
    %v3693 = vmul.f32 %v3097, %v3097
    %v3694 = vmul.f32 %v3098, %v3098
    %v3695 = vmul.f32 %v3099, %v3099
    %v3696 = vmul.f32 %v3100, %v3100
    %v3697 = vmul.f32 %v3101, %v3101
    %v3698 = vmul.f32 %v3102, %v3102
    %v3699 = vmul.f32 %v3103, %v3103
    %v3700 = vmul.f32 %v3104, %v3104
    %v3701 = vmul.f32 %v3105, %v3105
    %v3702 = vmul.f32 %v3106, %v3106
    %v3703 = vmul.f32 %v3107, %v3107
    %v3704 = vmul.f32 %v3108, %v3108
    %v3705 = vmul.f32 %v3109, %v3109
    %v3706 = vmul.f32 %v3110, %v3110
    %v3707 = vmul.f32 %v3111, %v3111
    %v3708 = vmul.f32 %v3112, %v3112
    %v3709 = vmul.f32 %v3113, %v3113
    %v3710 = vmul.f32 %v3114, %v3114
    %v3711 = vmul.f32 %v3115, %v3115
    %v3712 = vmul.f32 %v3116, %v3116
    %v3713 = vmul.f32 %v3117, %v3117
    %v3714 = vmul.f32 %v3118, %v3118
    %v3715 = vmul.f32 %v3119, %v3119
    %v3716 = vmul.f32 %v3120, %v3120
    %v3717 = vmul.f32 %v3121, %v3121
    %v3718 = vmul.f32 %v3122, %v3122
    %v3719 = vmul.f32 %v3123, %v3123
    %v3720 = vmul.f32 %v3124, %v3124
    %v3721 = vmul.f32 %v3125, %v3125
    %v3722 = vmul.f32 %v3126, %v3126
    %v3723 = vmul.f32 %v3127, %v3127
    %v3724 = vmul.f32 %v3128, %v3128
    %v3725 = vmul.f32 %v3129, %v3129
    %v3726 = vmul.f32 %v3130, %v3130
    %v3727 = vmul.f32 %v3131, %v3131
    %v3728 = vmul.f32 %v3132, %v3132
    %v3729 = vmul.f32 %v3133, %v3133
    %v3730 = vmul.f32 %v3134, %v3134
    %v3731 = vmul.f32 %v3135, %v3135
    %v3732 = vmul.f32 %v3136, %v3136
    %v3733 = vmul.f32 %v3137, %v3137
    %v3734 = vmul.f32 %v3138, %v3138
    %v3735 = vmul.f32 %v3139, %v3139
    %v3736 = vmul.f32 %v3140, %v3140
    %v3737 = vmul.f32 %v3141, %v3141
    %v3738 = vmul.f32 %v3142, %v3142
    %v3739 = vmul.f32 %v3143, %v3143
    %v3740 = vmul.f32 %v3144, %v3144
    %v3741 = vmul.f32 %v3145, %v3145
    %v3742 = vmul.f32 %v3146, %v3146
    %v3743 = vmul.f32 %v3147, %v3147
    %v3744 = vmul.f32 %v3148, %v3148
    %v3745 = vmul.f32 %v3149, %v3149
    %v3746 = vmul.f32 %v3150, %v3150
    %v3747 = vmul.f32 %v3151, %v3151
    %v3748 = vmul.f32 %v3152, %v3152
    %v3749 = vmul.f32 %v3153, %v3153
    %v3750 = vmul.f32 %v3154, %v3154
    %v3751 = vmul.f32 %v3155, %v3155
    %v3752 = vmul.f32 %v3156, %v3156
    %v3753 = vmul.f32 %v3157, %v3157
    %v3754 = vmul.f32 %v3158, %v3158
    %v3755 = vmul.f32 %v3159, %v3159
    %v3756 = vmul.f32 %v3160, %v3160
    %v3757 = vmul.f32 %v3161, %v3161
    %v3758 = vmul.f32 %v3162, %v3162
    %v3759 = vmul.f32 %v3163, %v3163
    %v3760 = vmul.f32 %v3164, %v3164
    %v3761 = vmul.f32 %v3165, %v3165
    %v3762 = vmul.f32 %v3166, %v3166
    %v3763 = vmul.f32 %v3167, %v3167
    %v3764 = vmul.f32 %v3168, %v3168
    %v3765 = vmul.f32 %v3169, %v3169
    %v3766 = vmul.f32 %v3170, %v3170
    %v3767 = vmul.f32 %v3171, %v3171
    %v3768 = vmul.f32 %v3172, %v3172
    %v3769 = vmul.f32 %v3173, %v3173
    %v3770 = vmul.f32 %v3174, %v3174
    %v3771 = vmul.f32 %v3175, %v3175
    %v3772 = vmul.f32 %v3176, %v3176
    %v3773 = vmul.f32 %v3177, %v3177
    %v3774 = vmul.f32 %v3178, %v3178
    %v3775 = vmul.f32 %v3179, %v3179
    %v3776 = vmul.f32 %v3180, %v3180
    %v3777 = vmul.f32 %v3181, %v3181
    %v3778 = vmul.f32 %v3182, %v3182
    %v3779 = vmul.f32 %v3183, %v3183
    %v3780 = vmul.f32 %v3184, %v3184
    %v3781 = vmul.f32 %v3185, %v3185
    %v3782 = vmul.f32 %v3186, %v3186
    %v3783 = vmul.f32 %v3187, %v3187
    %v3784 = vmul.f32 %v3188, %v3188
    %v3785 = vmul.f32 %v3189, %v3189
    %v3786 = vmul.f32 %v3190, %v3190
    %v3787 = vmul.f32 %v3191, %v3191
    %v3788 = vmul.f32 %v3192, %v3192
    %v3789 = vmul.f32 %v3193, %v3193
    %v3790 = vmul.f32 %v3194, %v3194
    %v3791 = vmul.f32 %v3195, %v3195
    %v3792 = vmul.f32 %v3196, %v3196
    %v3793 = vmul.f32 %v3197, %v3197
    %v3794 = vmul.f32 %v3198, %v3198
    %v3795 = vsel %vm3199, %v3627, 0.0
    %v3796 = vsel %vm3199, %v3711, 0.0
    %v3797 = vadd.f32 %v3795, %v3796
    %v3798 = vsel %vm3199, %v3628, 0.0
    %v3799 = vsel %vm3199, %v3712, 0.0
    %v3800 = vadd.f32 %v3798, %v3799
    %v3801 = vsel %vm3199, %v3629, 0.0
    %v3802 = vsel %vm3199, %v3713, 0.0
    %v3803 = vadd.f32 %v3801, %v3802
    %v3804 = vsel %vm3199, %v3630, 0.0
    %v3805 = vsel %vm3199, %v3714, 0.0
    %v3806 = vadd.f32 %v3804, %v3805
    %v3807 = vsel %vm3199, %v3631, 0.0
    %v3808 = vsel %vm3199, %v3715, 0.0
    %v3809 = vadd.f32 %v3807, %v3808
    %v3810 = vsel %vm3199, %v3632, 0.0
    %v3811 = vsel %vm3199, %v3716, 0.0
    %v3812 = vadd.f32 %v3810, %v3811
    %v3813 = vsel %vm3199, %v3633, 0.0
    %v3814 = vsel %vm3199, %v3717, 0.0
    %v3815 = vadd.f32 %v3813, %v3814
    %v3816 = vsel %vm3199, %v3634, 0.0
    %v3817 = vsel %vm3199, %v3718, 0.0
    %v3818 = vadd.f32 %v3816, %v3817
    %v3819 = vsel %vm3199, %v3635, 0.0
    %v3820 = vsel %vm3199, %v3719, 0.0
    %v3821 = vadd.f32 %v3819, %v3820
    %v3822 = vsel %vm3199, %v3636, 0.0
    %v3823 = vsel %vm3199, %v3720, 0.0
    %v3824 = vadd.f32 %v3822, %v3823
    %v3825 = vsel %vm3199, %v3637, 0.0
    %v3826 = vsel %vm3199, %v3721, 0.0
    %v3827 = vadd.f32 %v3825, %v3826
    %v3828 = vsel %vm3199, %v3638, 0.0
    %v3829 = vsel %vm3199, %v3722, 0.0
    %v3830 = vadd.f32 %v3828, %v3829
    %v3831 = vsel %vm3199, %v3639, 0.0
    %v3832 = vsel %vm3199, %v3723, 0.0
    %v3833 = vadd.f32 %v3831, %v3832
    %v3834 = vsel %vm3199, %v3640, 0.0
    %v3835 = vsel %vm3199, %v3724, 0.0
    %v3836 = vadd.f32 %v3834, %v3835
    %v3837 = vsel %vm3199, %v3641, 0.0
    %v3838 = vsel %vm3199, %v3725, 0.0
    %v3839 = vadd.f32 %v3837, %v3838
    %v3840 = vsel %vm3199, %v3642, 0.0
    %v3841 = vsel %vm3199, %v3726, 0.0
    %v3842 = vadd.f32 %v3840, %v3841
    %v3843 = vsel %vm3199, %v3643, 0.0
    %v3844 = vsel %vm3199, %v3727, 0.0
    %v3845 = vadd.f32 %v3843, %v3844
    %v3846 = vsel %vm3199, %v3644, 0.0
    %v3847 = vsel %vm3199, %v3728, 0.0
    %v3848 = vadd.f32 %v3846, %v3847
    %v3849 = vsel %vm3199, %v3645, 0.0
    %v3850 = vsel %vm3199, %v3729, 0.0
    %v3851 = vadd.f32 %v3849, %v3850
    %v3852 = vsel %vm3199, %v3646, 0.0
    %v3853 = vsel %vm3199, %v3730, 0.0
    %v3854 = vadd.f32 %v3852, %v3853
    %v3855 = vsel %vm3199, %v3647, 0.0
    %v3856 = vsel %vm3199, %v3731, 0.0
    %v3857 = vadd.f32 %v3855, %v3856
    %v3858 = vsel %vm3199, %v3648, 0.0
    %v3859 = vsel %vm3199, %v3732, 0.0
    %v3860 = vadd.f32 %v3858, %v3859
    %v3861 = vsel %vm3199, %v3649, 0.0
    %v3862 = vsel %vm3199, %v3733, 0.0
    %v3863 = vadd.f32 %v3861, %v3862
    %v3864 = vsel %vm3199, %v3650, 0.0
    %v3865 = vsel %vm3199, %v3734, 0.0
    %v3866 = vadd.f32 %v3864, %v3865
    %v3867 = vsel %vm3199, %v3651, 0.0
    %v3868 = vsel %vm3199, %v3735, 0.0
    %v3869 = vadd.f32 %v3867, %v3868
    %v3870 = vsel %vm3199, %v3652, 0.0
    %v3871 = vsel %vm3199, %v3736, 0.0
    %v3872 = vadd.f32 %v3870, %v3871
    %v3873 = vsel %vm3199, %v3653, 0.0
    %v3874 = vsel %vm3199, %v3737, 0.0
    %v3875 = vadd.f32 %v3873, %v3874
    %v3876 = vsel %vm3199, %v3654, 0.0
    %v3877 = vsel %vm3199, %v3738, 0.0
    %v3878 = vadd.f32 %v3876, %v3877
    %v3879 = vsel %vm3199, %v3655, 0.0
    %v3880 = vsel %vm3199, %v3739, 0.0
    %v3881 = vadd.f32 %v3879, %v3880
    %v3882 = vsel %vm3199, %v3656, 0.0
    %v3883 = vsel %vm3199, %v3740, 0.0
    %v3884 = vadd.f32 %v3882, %v3883
    %v3885 = vsel %vm3199, %v3657, 0.0
    %v3886 = vsel %vm3199, %v3741, 0.0
    %v3887 = vadd.f32 %v3885, %v3886
    %v3888 = vsel %vm3199, %v3658, 0.0
    %v3889 = vsel %vm3199, %v3742, 0.0
    %v3890 = vadd.f32 %v3888, %v3889
    %v3891 = vsel %vm3199, %v3659, 0.0
    %v3892 = vsel %vm3199, %v3743, 0.0
    %v3893 = vadd.f32 %v3891, %v3892
    %v3894 = vsel %vm3199, %v3660, 0.0
    %v3895 = vsel %vm3199, %v3744, 0.0
    %v3896 = vadd.f32 %v3894, %v3895
    %v3897 = vsel %vm3199, %v3661, 0.0
    %v3898 = vsel %vm3199, %v3745, 0.0
    %v3899 = vadd.f32 %v3897, %v3898
    %v3900 = vsel %vm3199, %v3662, 0.0
    %v3901 = vsel %vm3199, %v3746, 0.0
    %v3902 = vadd.f32 %v3900, %v3901
    %v3903 = vsel %vm3199, %v3663, 0.0
    %v3904 = vsel %vm3199, %v3747, 0.0
    %v3905 = vadd.f32 %v3903, %v3904
    %v3906 = vsel %vm3199, %v3664, 0.0
    %v3907 = vsel %vm3199, %v3748, 0.0
    %v3908 = vadd.f32 %v3906, %v3907
    %v3909 = vsel %vm3199, %v3665, 0.0
    %v3910 = vsel %vm3199, %v3749, 0.0
    %v3911 = vadd.f32 %v3909, %v3910
    %v3912 = vsel %vm3199, %v3666, 0.0
    %v3913 = vsel %vm3199, %v3750, 0.0
    %v3914 = vadd.f32 %v3912, %v3913
    %v3915 = vsel %vm3199, %v3667, 0.0
    %v3916 = vsel %vm3199, %v3751, 0.0
    %v3917 = vadd.f32 %v3915, %v3916
    %v3918 = vsel %vm3199, %v3668, 0.0
    %v3919 = vsel %vm3199, %v3752, 0.0
    %v3920 = vadd.f32 %v3918, %v3919
    %v3921 = vsel %vm3199, %v3669, 0.0
    %v3922 = vsel %vm3199, %v3753, 0.0
    %v3923 = vadd.f32 %v3921, %v3922
    %v3924 = vsel %vm3199, %v3670, 0.0
    %v3925 = vsel %vm3199, %v3754, 0.0
    %v3926 = vadd.f32 %v3924, %v3925
    %v3927 = vsel %vm3199, %v3671, 0.0
    %v3928 = vsel %vm3199, %v3755, 0.0
    %v3929 = vadd.f32 %v3927, %v3928
    %v3930 = vsel %vm3199, %v3672, 0.0
    %v3931 = vsel %vm3199, %v3756, 0.0
    %v3932 = vadd.f32 %v3930, %v3931
    %v3933 = vsel %vm3199, %v3673, 0.0
    %v3934 = vsel %vm3199, %v3757, 0.0
    %v3935 = vadd.f32 %v3933, %v3934
    %v3936 = vsel %vm3199, %v3674, 0.0
    %v3937 = vsel %vm3199, %v3758, 0.0
    %v3938 = vadd.f32 %v3936, %v3937
    %v3939 = vsel %vm3199, %v3675, 0.0
    %v3940 = vsel %vm3199, %v3759, 0.0
    %v3941 = vadd.f32 %v3939, %v3940
    %v3942 = vsel %vm3199, %v3676, 0.0
    %v3943 = vsel %vm3199, %v3760, 0.0
    %v3944 = vadd.f32 %v3942, %v3943
    %v3945 = vsel %vm3199, %v3677, 0.0
    %v3946 = vsel %vm3199, %v3761, 0.0
    %v3947 = vadd.f32 %v3945, %v3946
    %v3948 = vsel %vm3199, %v3678, 0.0
    %v3949 = vsel %vm3199, %v3762, 0.0
    %v3950 = vadd.f32 %v3948, %v3949
    %v3951 = vsel %vm3199, %v3679, 0.0
    %v3952 = vsel %vm3199, %v3763, 0.0
    %v3953 = vadd.f32 %v3951, %v3952
    %v3954 = vsel %vm3199, %v3680, 0.0
    %v3955 = vsel %vm3199, %v3764, 0.0
    %v3956 = vadd.f32 %v3954, %v3955
    %v3957 = vsel %vm3199, %v3681, 0.0
    %v3958 = vsel %vm3199, %v3765, 0.0
    %v3959 = vadd.f32 %v3957, %v3958
    %v3960 = vsel %vm3199, %v3682, 0.0
    %v3961 = vsel %vm3199, %v3766, 0.0
    %v3962 = vadd.f32 %v3960, %v3961
    %v3963 = vsel %vm3199, %v3683, 0.0
    %v3964 = vsel %vm3199, %v3767, 0.0
    %v3965 = vadd.f32 %v3963, %v3964
    %v3966 = vsel %vm3199, %v3684, 0.0
    %v3967 = vsel %vm3199, %v3768, 0.0
    %v3968 = vadd.f32 %v3966, %v3967
    %v3969 = vsel %vm3199, %v3685, 0.0
    %v3970 = vsel %vm3199, %v3769, 0.0
    %v3971 = vadd.f32 %v3969, %v3970
    %v3972 = vsel %vm3199, %v3686, 0.0
    %v3973 = vsel %vm3199, %v3770, 0.0
    %v3974 = vadd.f32 %v3972, %v3973
    %v3975 = vsel %vm3199, %v3687, 0.0
    %v3976 = vsel %vm3199, %v3771, 0.0
    %v3977 = vadd.f32 %v3975, %v3976
    %v3978 = vsel %vm3199, %v3688, 0.0
    %v3979 = vsel %vm3199, %v3772, 0.0
    %v3980 = vadd.f32 %v3978, %v3979
    %v3981 = vsel %vm3199, %v3689, 0.0
    %v3982 = vsel %vm3199, %v3773, 0.0
    %v3983 = vadd.f32 %v3981, %v3982
    %v3984 = vsel %vm3199, %v3690, 0.0
    %v3985 = vsel %vm3199, %v3774, 0.0
    %v3986 = vadd.f32 %v3984, %v3985
    %v3987 = vsel %vm3199, %v3691, 0.0
    %v3988 = vsel %vm3199, %v3775, 0.0
    %v3989 = vadd.f32 %v3987, %v3988
    %v3990 = vsel %vm3199, %v3692, 0.0
    %v3991 = vsel %vm3199, %v3776, 0.0
    %v3992 = vadd.f32 %v3990, %v3991
    %v3993 = vsel %vm3199, %v3693, 0.0
    %v3994 = vsel %vm3199, %v3777, 0.0
    %v3995 = vadd.f32 %v3993, %v3994
    %v3996 = vsel %vm3199, %v3694, 0.0
    %v3997 = vsel %vm3199, %v3778, 0.0
    %v3998 = vadd.f32 %v3996, %v3997
    %v3999 = vsel %vm3199, %v3695, 0.0
    %v4000 = vsel %vm3199, %v3779, 0.0
    %v4001 = vadd.f32 %v3999, %v4000
    %v4002 = vsel %vm3199, %v3696, 0.0
    %v4003 = vsel %vm3199, %v3780, 0.0
    %v4004 = vadd.f32 %v4002, %v4003
    %v4005 = vsel %vm3199, %v3697, 0.0
    %v4006 = vsel %vm3199, %v3781, 0.0
    %v4007 = vadd.f32 %v4005, %v4006
    %v4008 = vsel %vm3199, %v3698, 0.0
    %v4009 = vsel %vm3199, %v3782, 0.0
    %v4010 = vadd.f32 %v4008, %v4009
    %v4011 = vsel %vm3199, %v3699, 0.0
    %v4012 = vsel %vm3199, %v3783, 0.0
    %v4013 = vadd.f32 %v4011, %v4012
    %v4014 = vsel %vm3199, %v3700, 0.0
    %v4015 = vsel %vm3199, %v3784, 0.0
    %v4016 = vadd.f32 %v4014, %v4015
    %v4017 = vsel %vm3199, %v3701, 0.0
    %v4018 = vsel %vm3199, %v3785, 0.0
    %v4019 = vadd.f32 %v4017, %v4018
    %v4020 = vsel %vm3199, %v3702, 0.0
    %v4021 = vsel %vm3199, %v3786, 0.0
    %v4022 = vadd.f32 %v4020, %v4021
    %v4023 = vsel %vm3199, %v3703, 0.0
    %v4024 = vsel %vm3199, %v3787, 0.0
    %v4025 = vadd.f32 %v4023, %v4024
    %v4026 = vsel %vm3199, %v3704, 0.0
    %v4027 = vsel %vm3199, %v3788, 0.0
    %v4028 = vadd.f32 %v4026, %v4027
    %v4029 = vsel %vm3199, %v3705, 0.0
    %v4030 = vsel %vm3199, %v3789, 0.0
    %v4031 = vadd.f32 %v4029, %v4030
    %v4032 = vsel %vm3199, %v3706, 0.0
    %v4033 = vsel %vm3199, %v3790, 0.0
    %v4034 = vadd.f32 %v4032, %v4033
    %v4035 = vsel %vm3199, %v3707, 0.0
    %v4036 = vsel %vm3199, %v3791, 0.0
    %v4037 = vadd.f32 %v4035, %v4036
    %v4038 = vsel %vm3199, %v3708, 0.0
    %v4039 = vsel %vm3199, %v3792, 0.0
    %v4040 = vadd.f32 %v4038, %v4039
    %v4041 = vsel %vm3199, %v3709, 0.0
    %v4042 = vsel %vm3199, %v3793, 0.0
    %v4043 = vadd.f32 %v4041, %v4042
    %v4044 = vsel %vm3199, %v3710, 0.0
    %v4045 = vsel %vm3199, %v3794, 0.0
    %v4046 = vadd.f32 %v4044, %v4045
    %v4047 = vsel %vm3199, %v3797, 0.0
    %v4048 = vsel %vm3199, %v3803, 0.0
    %v4049 = vadd.f32 %v4047, %v4048
    %v4050 = vsel %vm3199, %v3809, 0.0
    %v4051 = vadd.f32 %v4049, %v4050
    %v4052 = vsel %vm3199, %v3815, 0.0
    %v4053 = vadd.f32 %v4051, %v4052
    %v4054 = vsel %vm3199, %v3821, 0.0
    %v4055 = vadd.f32 %v4053, %v4054
    %v4056 = vsel %vm3199, %v3827, 0.0
    %v4057 = vadd.f32 %v4055, %v4056
    %v4058 = vsel %vm3199, %v3833, 0.0
    %v4059 = vadd.f32 %v4057, %v4058
    %v4060 = vsel %vm3199, %v3839, 0.0
    %v4061 = vadd.f32 %v4059, %v4060
    %v4062 = vsel %vm3199, %v3845, 0.0
    %v4063 = vadd.f32 %v4061, %v4062
    %v4064 = vsel %vm3199, %v3851, 0.0
    %v4065 = vadd.f32 %v4063, %v4064
    %v4066 = vsel %vm3199, %v3857, 0.0
    %v4067 = vadd.f32 %v4065, %v4066
    %v4068 = vsel %vm3199, %v3863, 0.0
    %v4069 = vadd.f32 %v4067, %v4068
    %v4070 = vsel %vm3199, %v3869, 0.0
    %v4071 = vadd.f32 %v4069, %v4070
    %v4072 = vsel %vm3199, %v3875, 0.0
    %v4073 = vadd.f32 %v4071, %v4072
    %v4074 = vsel %vm3199, %v3881, 0.0
    %v4075 = vadd.f32 %v4073, %v4074
    %v4076 = vsel %vm3199, %v3887, 0.0
    %v4077 = vadd.f32 %v4075, %v4076
    %v4078 = vsel %vm3199, %v3893, 0.0
    %v4079 = vadd.f32 %v4077, %v4078
    %v4080 = vsel %vm3199, %v3899, 0.0
    %v4081 = vadd.f32 %v4079, %v4080
    %v4082 = vsel %vm3199, %v3905, 0.0
    %v4083 = vadd.f32 %v4081, %v4082
    %v4084 = vsel %vm3199, %v3911, 0.0
    %v4085 = vadd.f32 %v4083, %v4084
    %v4086 = vsel %vm3199, %v3917, 0.0
    %v4087 = vadd.f32 %v4085, %v4086
    %v4088 = vsel %vm3199, %v3923, 0.0
    %v4089 = vadd.f32 %v4087, %v4088
    %v4090 = vsel %vm3199, %v3929, 0.0
    %v4091 = vadd.f32 %v4089, %v4090
    %v4092 = vsel %vm3199, %v3935, 0.0
    %v4093 = vadd.f32 %v4091, %v4092
    %v4094 = vsel %vm3199, %v3941, 0.0
    %v4095 = vadd.f32 %v4093, %v4094
    %v4096 = vsel %vm3199, %v3947, 0.0
    %v4097 = vadd.f32 %v4095, %v4096
    %v4098 = vsel %vm3199, %v3953, 0.0
    %v4099 = vadd.f32 %v4097, %v4098
    %v4100 = vsel %vm3199, %v3959, 0.0
    %v4101 = vadd.f32 %v4099, %v4100
    %v4102 = vsel %vm3199, %v3965, 0.0
    %v4103 = vadd.f32 %v4101, %v4102
    %v4104 = vsel %vm3199, %v3971, 0.0
    %v4105 = vadd.f32 %v4103, %v4104
    %v4106 = vsel %vm3199, %v3977, 0.0
    %v4107 = vadd.f32 %v4105, %v4106
    %v4108 = vsel %vm3199, %v3983, 0.0
    %v4109 = vadd.f32 %v4107, %v4108
    %v4110 = vsel %vm3199, %v3989, 0.0
    %v4111 = vadd.f32 %v4109, %v4110
    %v4112 = vsel %vm3199, %v3995, 0.0
    %v4113 = vadd.f32 %v4111, %v4112
    %v4114 = vsel %vm3199, %v4001, 0.0
    %v4115 = vadd.f32 %v4113, %v4114
    %v4116 = vsel %vm3199, %v4007, 0.0
    %v4117 = vadd.f32 %v4115, %v4116
    %v4118 = vsel %vm3199, %v4013, 0.0
    %v4119 = vadd.f32 %v4117, %v4118
    %v4120 = vsel %vm3199, %v4019, 0.0
    %v4121 = vadd.f32 %v4119, %v4120
    %v4122 = vsel %vm3199, %v4025, 0.0
    %v4123 = vadd.f32 %v4121, %v4122
    %v4124 = vsel %vm3199, %v4031, 0.0
    %v4125 = vadd.f32 %v4123, %v4124
    %v4126 = vsel %vm3199, %v4037, 0.0
    %v4127 = vadd.f32 %v4125, %v4126
    %v4128 = vsel %vm3199, %v4043, 0.0
    %v4129 = vadd.f32 %v4127, %v4128
    %v4130 = vsel %vm3199, %v3800, 0.0
    %v4131 = vsel %vm3199, %v3806, 0.0
    %v4132 = vadd.f32 %v4130, %v4131
    %v4133 = vsel %vm3199, %v3812, 0.0
    %v4134 = vadd.f32 %v4132, %v4133
    %v4135 = vsel %vm3199, %v3818, 0.0
    %v4136 = vadd.f32 %v4134, %v4135
    %v4137 = vsel %vm3199, %v3824, 0.0
    %v4138 = vadd.f32 %v4136, %v4137
    %v4139 = vsel %vm3199, %v3830, 0.0
    %v4140 = vadd.f32 %v4138, %v4139
    %v4141 = vsel %vm3199, %v3836, 0.0
    %v4142 = vadd.f32 %v4140, %v4141
    %v4143 = vsel %vm3199, %v3842, 0.0
    %v4144 = vadd.f32 %v4142, %v4143
    %v4145 = vsel %vm3199, %v3848, 0.0
    %v4146 = vadd.f32 %v4144, %v4145
    %v4147 = vsel %vm3199, %v3854, 0.0
    %v4148 = vadd.f32 %v4146, %v4147
    %v4149 = vsel %vm3199, %v3860, 0.0
    %v4150 = vadd.f32 %v4148, %v4149
    %v4151 = vsel %vm3199, %v3866, 0.0
    %v4152 = vadd.f32 %v4150, %v4151
    %v4153 = vsel %vm3199, %v3872, 0.0
    %v4154 = vadd.f32 %v4152, %v4153
    %v4155 = vsel %vm3199, %v3878, 0.0
    %v4156 = vadd.f32 %v4154, %v4155
    %v4157 = vsel %vm3199, %v3884, 0.0
    %v4158 = vadd.f32 %v4156, %v4157
    %v4159 = vsel %vm3199, %v3890, 0.0
    %v4160 = vadd.f32 %v4158, %v4159
    %v4161 = vsel %vm3199, %v3896, 0.0
    %v4162 = vadd.f32 %v4160, %v4161
    %v4163 = vsel %vm3199, %v3902, 0.0
    %v4164 = vadd.f32 %v4162, %v4163
    %v4165 = vsel %vm3199, %v3908, 0.0
    %v4166 = vadd.f32 %v4164, %v4165
    %v4167 = vsel %vm3199, %v3914, 0.0
    %v4168 = vadd.f32 %v4166, %v4167
    %v4169 = vsel %vm3199, %v3920, 0.0
    %v4170 = vadd.f32 %v4168, %v4169
    %v4171 = vsel %vm3199, %v3926, 0.0
    %v4172 = vadd.f32 %v4170, %v4171
    %v4173 = vsel %vm3199, %v3932, 0.0
    %v4174 = vadd.f32 %v4172, %v4173
    %v4175 = vsel %vm3199, %v3938, 0.0
    %v4176 = vadd.f32 %v4174, %v4175
    %v4177 = vsel %vm3199, %v3944, 0.0
    %v4178 = vadd.f32 %v4176, %v4177
    %v4179 = vsel %vm3199, %v3950, 0.0
    %v4180 = vadd.f32 %v4178, %v4179
    %v4181 = vsel %vm3199, %v3956, 0.0
    %v4182 = vadd.f32 %v4180, %v4181
    %v4183 = vsel %vm3199, %v3962, 0.0
    %v4184 = vadd.f32 %v4182, %v4183
    %v4185 = vsel %vm3199, %v3968, 0.0
    %v4186 = vadd.f32 %v4184, %v4185
    %v4187 = vsel %vm3199, %v3974, 0.0
    %v4188 = vadd.f32 %v4186, %v4187
    %v4189 = vsel %vm3199, %v3980, 0.0
    %v4190 = vadd.f32 %v4188, %v4189
    %v4191 = vsel %vm3199, %v3986, 0.0
    %v4192 = vadd.f32 %v4190, %v4191
    %v4193 = vsel %vm3199, %v3992, 0.0
    %v4194 = vadd.f32 %v4192, %v4193
    %v4195 = vsel %vm3199, %v3998, 0.0
    %v4196 = vadd.f32 %v4194, %v4195
    %v4197 = vsel %vm3199, %v4004, 0.0
    %v4198 = vadd.f32 %v4196, %v4197
    %v4199 = vsel %vm3199, %v4010, 0.0
    %v4200 = vadd.f32 %v4198, %v4199
    %v4201 = vsel %vm3199, %v4016, 0.0
    %v4202 = vadd.f32 %v4200, %v4201
    %v4203 = vsel %vm3199, %v4022, 0.0
    %v4204 = vadd.f32 %v4202, %v4203
    %v4205 = vsel %vm3199, %v4028, 0.0
    %v4206 = vadd.f32 %v4204, %v4205
    %v4207 = vsel %vm3199, %v4034, 0.0
    %v4208 = vadd.f32 %v4206, %v4207
    %v4209 = vsel %vm3199, %v4040, 0.0
    %v4210 = vadd.f32 %v4208, %v4209
    %v4211 = vsel %vm3199, %v4046, 0.0
    %v4212 = vadd.f32 %v4210, %v4211
    %v4213 = vsel %vm3199, %v4129, 0.0
    %v4214 = vsel %vm3199, %v4212, 0.0
    %v4215 = vadd.f32 %v4213, %v4214
    %v4216 = vrot.slane %v4215, 4
    %v4217 = vadd.f32 %v4215, %v4216
    %v4218 = vrot.slane %v4217, 2
    %v4219 = vadd.f32 %v4217, %v4218
    %v4220 = vrot.slane %v4219, 1
    %v4221 = vadd.f32 %v4219, %v4220
    %v4222 = vrcp.pop 924.0
    %v4223 = vmul.f32 %v3626, %v4222
    %v4224 = vmul.f32 %v4221, %v4222
    %v4225 = vmul.f32 %v4223, %v4223
    %v4226 = vsub.f32 %v4224, %v4225
    %v4227 = vmax.f32 %v4226, 0.0
    %v4228 = vadd.f32 %v4227, 1e-05
    %v4229 = vrsqrt.pop %v4228
    %v4230 = vmul.f32 %v4229, %v3029
    %v4231 = vmul.f32 %v4223, %v4230
    %v4232 = vsub.f32 %v3030, %v4231
    %v4233 = vlaneseq
    %v4234 = vshrl.u32 %v4233, 7
    %v4235 = vsub.s32 0, %v4234
    %v4236 = vrot.slane %v4230, %v4235
    %v4237 = vmul.f32 %v2861, %v4236
    %v4238 = vmul.f32 %v2862, %v4236
    %v4239 = vmul.f32 %v2863, %v4236
    %v4240 = vmul.f32 %v2864, %v4236
    %v4241 = vmul.f32 %v2865, %v4236
    %v4242 = vmul.f32 %v2866, %v4236
    %v4243 = vmul.f32 %v2867, %v4236
    %v4244 = vmul.f32 %v2868, %v4236
    %v4245 = vmul.f32 %v2869, %v4236
    %v4246 = vmul.f32 %v2870, %v4236
    %v4247 = vmul.f32 %v2871, %v4236
    %v4248 = vmul.f32 %v2872, %v4236
    %v4249 = vmul.f32 %v2873, %v4236
    %v4250 = vmul.f32 %v2874, %v4236
    %v4251 = vmul.f32 %v2875, %v4236
    %v4252 = vmul.f32 %v2876, %v4236
    %v4253 = vmul.f32 %v2877, %v4236
    %v4254 = vmul.f32 %v2878, %v4236
    %v4255 = vmul.f32 %v2879, %v4236
    %v4256 = vmul.f32 %v2880, %v4236
    %v4257 = vmul.f32 %v2881, %v4236
    %v4258 = vmul.f32 %v2882, %v4236
    %v4259 = vmul.f32 %v2883, %v4236
    %v4260 = vmul.f32 %v2884, %v4236
    %v4261 = vmul.f32 %v2885, %v4236
    %v4262 = vmul.f32 %v2886, %v4236
    %v4263 = vmul.f32 %v2887, %v4236
    %v4264 = vmul.f32 %v2888, %v4236
    %v4265 = vmul.f32 %v2889, %v4236
    %v4266 = vmul.f32 %v2890, %v4236
    %v4267 = vmul.f32 %v2891, %v4236
    %v4268 = vmul.f32 %v2892, %v4236
    %v4269 = vmul.f32 %v2893, %v4236
    %v4270 = vmul.f32 %v2894, %v4236
    %v4271 = vmul.f32 %v2895, %v4236
    %v4272 = vmul.f32 %v2896, %v4236
    %v4273 = vmul.f32 %v2897, %v4236
    %v4274 = vmul.f32 %v2898, %v4236
    %v4275 = vmul.f32 %v2899, %v4236
    %v4276 = vmul.f32 %v2900, %v4236
    %v4277 = vmul.f32 %v2901, %v4236
    %v4278 = vmul.f32 %v2902, %v4236
    %v4279 = vmul.f32 %v2903, %v4236
    %v4280 = vmul.f32 %v2904, %v4236
    %v4281 = vmul.f32 %v2905, %v4236
    %v4282 = vmul.f32 %v2906, %v4236
    %v4283 = vmul.f32 %v2907, %v4236
    %v4284 = vmul.f32 %v2908, %v4236
    %v4285 = vmul.f32 %v2909, %v4236
    %v4286 = vmul.f32 %v2910, %v4236
    %v4287 = vmul.f32 %v2911, %v4236
    %v4288 = vmul.f32 %v2912, %v4236
    %v4289 = vmul.f32 %v2913, %v4236
    %v4290 = vmul.f32 %v2914, %v4236
    %v4291 = vmul.f32 %v2915, %v4236
    %v4292 = vmul.f32 %v2916, %v4236
    %v4293 = vmul.f32 %v2917, %v4236
    %v4294 = vmul.f32 %v2918, %v4236
    %v4295 = vmul.f32 %v2919, %v4236
    %v4296 = vmul.f32 %v2920, %v4236
    %v4297 = vmul.f32 %v2921, %v4236
    %v4298 = vmul.f32 %v2922, %v4236
    %v4299 = vmul.f32 %v2923, %v4236
    %v4300 = vmul.f32 %v2924, %v4236
    %v4301 = vmul.f32 %v2925, %v4236
    %v4302 = vmul.f32 %v2926, %v4236
    %v4303 = vmul.f32 %v2927, %v4236
    %v4304 = vmul.f32 %v2928, %v4236
    %v4305 = vmul.f32 %v2929, %v4236
    %v4306 = vmul.f32 %v2930, %v4236
    %v4307 = vmul.f32 %v2931, %v4236
    %v4308 = vmul.f32 %v2932, %v4236
    %v4309 = vmul.f32 %v2933, %v4236
    %v4310 = vmul.f32 %v2934, %v4236
    %v4311 = vmul.f32 %v2935, %v4236
    %v4312 = vmul.f32 %v2936, %v4236
    %v4313 = vmul.f32 %v2937, %v4236
    %v4314 = vmul.f32 %v2938, %v4236
    %v4315 = vmul.f32 %v2939, %v4236
    %v4316 = vmul.f32 %v2940, %v4236
    %v4317 = vmul.f32 %v2941, %v4236
    %v4318 = vmul.f32 %v2942, %v4236
    %v4319 = vmul.f32 %v2943, %v4236
    %v4320 = vmul.f32 %v2944, %v4236
    %v4321 = vmul.f32 %v2945, %v4236
    %v4322 = vmul.f32 %v2946, %v4236
    %v4323 = vmul.f32 %v2947, %v4236
    %v4324 = vmul.f32 %v2948, %v4236
    %v4325 = vmul.f32 %v2949, %v4236
    %v4326 = vmul.f32 %v2950, %v4236
    %v4327 = vmul.f32 %v2951, %v4236
    %v4328 = vmul.f32 %v2952, %v4236
    %v4329 = vmul.f32 %v2953, %v4236
    %v4330 = vmul.f32 %v2954, %v4236
    %v4331 = vmul.f32 %v2955, %v4236
    %v4332 = vmul.f32 %v2956, %v4236
    %v4333 = vmul.f32 %v2957, %v4236
    %v4334 = vmul.f32 %v2958, %v4236
    %v4335 = vmul.f32 %v2959, %v4236
    %v4336 = vmul.f32 %v2960, %v4236
    %v4337 = vmul.f32 %v2961, %v4236
    %v4338 = vmul.f32 %v2962, %v4236
    %v4339 = vmul.f32 %v2963, %v4236
    %v4340 = vmul.f32 %v2964, %v4236
    %v4341 = vmul.f32 %v2965, %v4236
    %v4342 = vmul.f32 %v2966, %v4236
    %v4343 = vmul.f32 %v2967, %v4236
    %v4344 = vmul.f32 %v2968, %v4236
    %v4345 = vmul.f32 %v2969, %v4236
    %v4346 = vmul.f32 %v2970, %v4236
    %v4347 = vmul.f32 %v2971, %v4236
    %v4348 = vmul.f32 %v2972, %v4236
    %v4349 = vmul.f32 %v2973, %v4236
    %v4350 = vmul.f32 %v2974, %v4236
    %v4351 = vmul.f32 %v2975, %v4236
    %v4352 = vmul.f32 %v2976, %v4236
    %v4353 = vmul.f32 %v2977, %v4236
    %v4354 = vmul.f32 %v2978, %v4236
    %v4355 = vmul.f32 %v2979, %v4236
    %v4356 = vmul.f32 %v2980, %v4236
    %v4357 = vmul.f32 %v2981, %v4236
    %v4358 = vmul.f32 %v2982, %v4236
    %v4359 = vmul.f32 %v2983, %v4236
    %v4360 = vmul.f32 %v2984, %v4236
    %v4361 = vmul.f32 %v2985, %v4236
    %v4362 = vmul.f32 %v2986, %v4236
    %v4363 = vmul.f32 %v2987, %v4236
    %v4364 = vmul.f32 %v2988, %v4236
    %v4365 = vmul.f32 %v2989, %v4236
    %v4366 = vmul.f32 %v2990, %v4236
    %v4367 = vmul.f32 %v2991, %v4236
    %v4368 = vmul.f32 %v2992, %v4236
    %v4369 = vmul.f32 %v2993, %v4236
    %v4370 = vmul.f32 %v2994, %v4236
    %v4371 = vmul.f32 %v2995, %v4236
    %v4372 = vmul.f32 %v2996, %v4236
    %v4373 = vmul.f32 %v2997, %v4236
    %v4374 = vmul.f32 %v2998, %v4236
    %v4375 = vmul.f32 %v2999, %v4236
    %v4376 = vmul.f32 %v3000, %v4236
    %v4377 = vmul.f32 %v3001, %v4236
    %v4378 = vmul.f32 %v3002, %v4236
    %v4379 = vmul.f32 %v3003, %v4236
    %v4380 = vmul.f32 %v3004, %v4236
    %v4381 = vmul.f32 %v3005, %v4236
    %v4382 = vmul.f32 %v3006, %v4236
    %v4383 = vmul.f32 %v3007, %v4236
    %v4384 = vmul.f32 %v3008, %v4236
    %v4385 = vmul.f32 %v3009, %v4236
    %v4386 = vmul.f32 %v3010, %v4236
    %v4387 = vmul.f32 %v3011, %v4236
    %v4388 = vmul.f32 %v3012, %v4236
    %v4389 = vmul.f32 %v3013, %v4236
    %v4390 = vmul.f32 %v3014, %v4236
    %v4391 = vmul.f32 %v3015, %v4236
    %v4392 = vmul.f32 %v3016, %v4236
    %v4393 = vmul.f32 %v3017, %v4236
    %v4394 = vmul.f32 %v3018, %v4236
    %v4395 = vmul.f32 %v3019, %v4236
    %v4396 = vmul.f32 %v3020, %v4236
    %v4397 = vmul.f32 %v3021, %v4236
    %v4398 = vmul.f32 %v3022, %v4236
    %v4399 = vmul.f32 %v3023, %v4236
    %v4400 = vmul.f32 %v3024, %v4236
    %v4401 = vmul.f32 %v3025, %v4236
    %v4402 = vmul.f32 %v3026, %v4236
    %v4403 = vmul.f32 %v3027, %v4236
    %v4404 = vmul.f32 %v3028, %v4236
    %v4405 = vlaneseq
    %v4406 = vshrl.u32 %v4405, 7
    %v4407 = vsub.s32 0, %v4406
    %v4408 = vrot.slane %v4232, %v4407
    %v4409 = vadd.f32 %v4237, %v4408
    %v4410 = vadd.f32 %v4238, %v4408
    %v4411 = vadd.f32 %v4239, %v4408
    %v4412 = vadd.f32 %v4240, %v4408
    %v4413 = vadd.f32 %v4241, %v4408
    %v4414 = vadd.f32 %v4242, %v4408
    %v4415 = vadd.f32 %v4243, %v4408
    %v4416 = vadd.f32 %v4244, %v4408
    %v4417 = vadd.f32 %v4245, %v4408
    %v4418 = vadd.f32 %v4246, %v4408
    %v4419 = vadd.f32 %v4247, %v4408
    %v4420 = vadd.f32 %v4248, %v4408
    %v4421 = vadd.f32 %v4249, %v4408
    %v4422 = vadd.f32 %v4250, %v4408
    %v4423 = vadd.f32 %v4251, %v4408
    %v4424 = vadd.f32 %v4252, %v4408
    %v4425 = vadd.f32 %v4253, %v4408
    %v4426 = vadd.f32 %v4254, %v4408
    %v4427 = vadd.f32 %v4255, %v4408
    %v4428 = vadd.f32 %v4256, %v4408
    %v4429 = vadd.f32 %v4257, %v4408
    %v4430 = vadd.f32 %v4258, %v4408
    %v4431 = vadd.f32 %v4259, %v4408
    %v4432 = vadd.f32 %v4260, %v4408
    %v4433 = vadd.f32 %v4261, %v4408
    %v4434 = vadd.f32 %v4262, %v4408
    %v4435 = vadd.f32 %v4263, %v4408
    %v4436 = vadd.f32 %v4264, %v4408
    %v4437 = vadd.f32 %v4265, %v4408
    %v4438 = vadd.f32 %v4266, %v4408
    %v4439 = vadd.f32 %v4267, %v4408
    %v4440 = vadd.f32 %v4268, %v4408
    %v4441 = vadd.f32 %v4269, %v4408
    %v4442 = vadd.f32 %v4270, %v4408
    %v4443 = vadd.f32 %v4271, %v4408
    %v4444 = vadd.f32 %v4272, %v4408
    %v4445 = vadd.f32 %v4273, %v4408
    %v4446 = vadd.f32 %v4274, %v4408
    %v4447 = vadd.f32 %v4275, %v4408
    %v4448 = vadd.f32 %v4276, %v4408
    %v4449 = vadd.f32 %v4277, %v4408
    %v4450 = vadd.f32 %v4278, %v4408
    %v4451 = vadd.f32 %v4279, %v4408
    %v4452 = vadd.f32 %v4280, %v4408
    %v4453 = vadd.f32 %v4281, %v4408
    %v4454 = vadd.f32 %v4282, %v4408
    %v4455 = vadd.f32 %v4283, %v4408
    %v4456 = vadd.f32 %v4284, %v4408
    %v4457 = vadd.f32 %v4285, %v4408
    %v4458 = vadd.f32 %v4286, %v4408
    %v4459 = vadd.f32 %v4287, %v4408
    %v4460 = vadd.f32 %v4288, %v4408
    %v4461 = vadd.f32 %v4289, %v4408
    %v4462 = vadd.f32 %v4290, %v4408
    %v4463 = vadd.f32 %v4291, %v4408
    %v4464 = vadd.f32 %v4292, %v4408
    %v4465 = vadd.f32 %v4293, %v4408
    %v4466 = vadd.f32 %v4294, %v4408
    %v4467 = vadd.f32 %v4295, %v4408
    %v4468 = vadd.f32 %v4296, %v4408
    %v4469 = vadd.f32 %v4297, %v4408
    %v4470 = vadd.f32 %v4298, %v4408
    %v4471 = vadd.f32 %v4299, %v4408
    %v4472 = vadd.f32 %v4300, %v4408
    %v4473 = vadd.f32 %v4301, %v4408
    %v4474 = vadd.f32 %v4302, %v4408
    %v4475 = vadd.f32 %v4303, %v4408
    %v4476 = vadd.f32 %v4304, %v4408
    %v4477 = vadd.f32 %v4305, %v4408
    %v4478 = vadd.f32 %v4306, %v4408
    %v4479 = vadd.f32 %v4307, %v4408
    %v4480 = vadd.f32 %v4308, %v4408
    %v4481 = vadd.f32 %v4309, %v4408
    %v4482 = vadd.f32 %v4310, %v4408
    %v4483 = vadd.f32 %v4311, %v4408
    %v4484 = vadd.f32 %v4312, %v4408
    %v4485 = vadd.f32 %v4313, %v4408
    %v4486 = vadd.f32 %v4314, %v4408
    %v4487 = vadd.f32 %v4315, %v4408
    %v4488 = vadd.f32 %v4316, %v4408
    %v4489 = vadd.f32 %v4317, %v4408
    %v4490 = vadd.f32 %v4318, %v4408
    %v4491 = vadd.f32 %v4319, %v4408
    %v4492 = vadd.f32 %v4320, %v4408
    %v4493 = vadd.f32 %v4321, %v4408
    %v4494 = vadd.f32 %v4322, %v4408
    %v4495 = vadd.f32 %v4323, %v4408
    %v4496 = vadd.f32 %v4324, %v4408
    %v4497 = vadd.f32 %v4325, %v4408
    %v4498 = vadd.f32 %v4326, %v4408
    %v4499 = vadd.f32 %v4327, %v4408
    %v4500 = vadd.f32 %v4328, %v4408
    %v4501 = vadd.f32 %v4329, %v4408
    %v4502 = vadd.f32 %v4330, %v4408
    %v4503 = vadd.f32 %v4331, %v4408
    %v4504 = vadd.f32 %v4332, %v4408
    %v4505 = vadd.f32 %v4333, %v4408
    %v4506 = vadd.f32 %v4334, %v4408
    %v4507 = vadd.f32 %v4335, %v4408
    %v4508 = vadd.f32 %v4336, %v4408
    %v4509 = vadd.f32 %v4337, %v4408
    %v4510 = vadd.f32 %v4338, %v4408
    %v4511 = vadd.f32 %v4339, %v4408
    %v4512 = vadd.f32 %v4340, %v4408
    %v4513 = vadd.f32 %v4341, %v4408
    %v4514 = vadd.f32 %v4342, %v4408
    %v4515 = vadd.f32 %v4343, %v4408
    %v4516 = vadd.f32 %v4344, %v4408
    %v4517 = vadd.f32 %v4345, %v4408
    %v4518 = vadd.f32 %v4346, %v4408
    %v4519 = vadd.f32 %v4347, %v4408
    %v4520 = vadd.f32 %v4348, %v4408
    %v4521 = vadd.f32 %v4349, %v4408
    %v4522 = vadd.f32 %v4350, %v4408
    %v4523 = vadd.f32 %v4351, %v4408
    %v4524 = vadd.f32 %v4352, %v4408
    %v4525 = vadd.f32 %v4353, %v4408
    %v4526 = vadd.f32 %v4354, %v4408
    %v4527 = vadd.f32 %v4355, %v4408
    %v4528 = vadd.f32 %v4356, %v4408
    %v4529 = vadd.f32 %v4357, %v4408
    %v4530 = vadd.f32 %v4358, %v4408
    %v4531 = vadd.f32 %v4359, %v4408
    %v4532 = vadd.f32 %v4360, %v4408
    %v4533 = vadd.f32 %v4361, %v4408
    %v4534 = vadd.f32 %v4362, %v4408
    %v4535 = vadd.f32 %v4363, %v4408
    %v4536 = vadd.f32 %v4364, %v4408
    %v4537 = vadd.f32 %v4365, %v4408
    %v4538 = vadd.f32 %v4366, %v4408
    %v4539 = vadd.f32 %v4367, %v4408
    %v4540 = vadd.f32 %v4368, %v4408
    %v4541 = vadd.f32 %v4369, %v4408
    %v4542 = vadd.f32 %v4370, %v4408
    %v4543 = vadd.f32 %v4371, %v4408
    %v4544 = vadd.f32 %v4372, %v4408
    %v4545 = vadd.f32 %v4373, %v4408
    %v4546 = vadd.f32 %v4374, %v4408
    %v4547 = vadd.f32 %v4375, %v4408
    %v4548 = vadd.f32 %v4376, %v4408
    %v4549 = vadd.f32 %v4377, %v4408
    %v4550 = vadd.f32 %v4378, %v4408
    %v4551 = vadd.f32 %v4379, %v4408
    %v4552 = vadd.f32 %v4380, %v4408
    %v4553 = vadd.f32 %v4381, %v4408
    %v4554 = vadd.f32 %v4382, %v4408
    %v4555 = vadd.f32 %v4383, %v4408
    %v4556 = vadd.f32 %v4384, %v4408
    %v4557 = vadd.f32 %v4385, %v4408
    %v4558 = vadd.f32 %v4386, %v4408
    %v4559 = vadd.f32 %v4387, %v4408
    %v4560 = vadd.f32 %v4388, %v4408
    %v4561 = vadd.f32 %v4389, %v4408
    %v4562 = vadd.f32 %v4390, %v4408
    %v4563 = vadd.f32 %v4391, %v4408
    %v4564 = vadd.f32 %v4392, %v4408
    %v4565 = vadd.f32 %v4393, %v4408
    %v4566 = vadd.f32 %v4394, %v4408
    %v4567 = vadd.f32 %v4395, %v4408
    %v4568 = vadd.f32 %v4396, %v4408
    %v4569 = vadd.f32 %v4397, %v4408
    %v4570 = vadd.f32 %v4398, %v4408
    %v4571 = vadd.f32 %v4399, %v4408
    %v4572 = vadd.f32 %v4400, %v4408
    %v4573 = vadd.f32 %v4401, %v4408
    %v4574 = vadd.f32 %v4402, %v4408
    %v4575 = vadd.f32 %v4403, %v4408
    %v4576 = vadd.f32 %v4404, %v4408
    %v4577 = vmax.f32 %v4409, 0.0
    %v4578 = vmax.f32 %v4410, 0.0
    %v4579 = vmax.f32 %v4411, 0.0
    %v4580 = vmax.f32 %v4412, 0.0
    %v4581 = vmax.f32 %v4413, 0.0
    %v4582 = vmax.f32 %v4414, 0.0
    %v4583 = vmax.f32 %v4415, 0.0
    %v4584 = vmax.f32 %v4416, 0.0
    %v4585 = vmax.f32 %v4417, 0.0
    %v4586 = vmax.f32 %v4418, 0.0
    %v4587 = vmax.f32 %v4419, 0.0
    %v4588 = vmax.f32 %v4420, 0.0
    %v4589 = vmax.f32 %v4421, 0.0
    %v4590 = vmax.f32 %v4422, 0.0
    %v4591 = vmax.f32 %v4423, 0.0
    %v4592 = vmax.f32 %v4424, 0.0
    %v4593 = vmax.f32 %v4425, 0.0
    %v4594 = vmax.f32 %v4426, 0.0
    %v4595 = vmax.f32 %v4427, 0.0
    %v4596 = vmax.f32 %v4428, 0.0
    %v4597 = vmax.f32 %v4429, 0.0
    %v4598 = vmax.f32 %v4430, 0.0
    %v4599 = vmax.f32 %v4431, 0.0
    %v4600 = vmax.f32 %v4432, 0.0
    %v4601 = vmax.f32 %v4433, 0.0
    %v4602 = vmax.f32 %v4434, 0.0
    %v4603 = vmax.f32 %v4435, 0.0
    %v4604 = vmax.f32 %v4436, 0.0
    %v4605 = vmax.f32 %v4437, 0.0
    %v4606 = vmax.f32 %v4438, 0.0
    %v4607 = vmax.f32 %v4439, 0.0
    %v4608 = vmax.f32 %v4440, 0.0
    %v4609 = vmax.f32 %v4441, 0.0
    %v4610 = vmax.f32 %v4442, 0.0
    %v4611 = vmax.f32 %v4443, 0.0
    %v4612 = vmax.f32 %v4444, 0.0
    %v4613 = vmax.f32 %v4445, 0.0
    %v4614 = vmax.f32 %v4446, 0.0
    %v4615 = vmax.f32 %v4447, 0.0
    %v4616 = vmax.f32 %v4448, 0.0
    %v4617 = vmax.f32 %v4449, 0.0
    %v4618 = vmax.f32 %v4450, 0.0
    %v4619 = vmax.f32 %v4451, 0.0
    %v4620 = vmax.f32 %v4452, 0.0
    %v4621 = vmax.f32 %v4453, 0.0
    %v4622 = vmax.f32 %v4454, 0.0
    %v4623 = vmax.f32 %v4455, 0.0
    %v4624 = vmax.f32 %v4456, 0.0
    %v4625 = vmax.f32 %v4457, 0.0
    %v4626 = vmax.f32 %v4458, 0.0
    %v4627 = vmax.f32 %v4459, 0.0
    %v4628 = vmax.f32 %v4460, 0.0
    %v4629 = vmax.f32 %v4461, 0.0
    %v4630 = vmax.f32 %v4462, 0.0
    %v4631 = vmax.f32 %v4463, 0.0
    %v4632 = vmax.f32 %v4464, 0.0
    %v4633 = vmax.f32 %v4465, 0.0
    %v4634 = vmax.f32 %v4466, 0.0
    %v4635 = vmax.f32 %v4467, 0.0
    %v4636 = vmax.f32 %v4468, 0.0
    %v4637 = vmax.f32 %v4469, 0.0
    %v4638 = vmax.f32 %v4470, 0.0
    %v4639 = vmax.f32 %v4471, 0.0
    %v4640 = vmax.f32 %v4472, 0.0
    %v4641 = vmax.f32 %v4473, 0.0
    %v4642 = vmax.f32 %v4474, 0.0
    %v4643 = vmax.f32 %v4475, 0.0
    %v4644 = vmax.f32 %v4476, 0.0
    %v4645 = vmax.f32 %v4477, 0.0
    %v4646 = vmax.f32 %v4478, 0.0
    %v4647 = vmax.f32 %v4479, 0.0
    %v4648 = vmax.f32 %v4480, 0.0
    %v4649 = vmax.f32 %v4481, 0.0
    %v4650 = vmax.f32 %v4482, 0.0
    %v4651 = vmax.f32 %v4483, 0.0
    %v4652 = vmax.f32 %v4484, 0.0
    %v4653 = vmax.f32 %v4485, 0.0
    %v4654 = vmax.f32 %v4486, 0.0
    %v4655 = vmax.f32 %v4487, 0.0
    %v4656 = vmax.f32 %v4488, 0.0
    %v4657 = vmax.f32 %v4489, 0.0
    %v4658 = vmax.f32 %v4490, 0.0
    %v4659 = vmax.f32 %v4491, 0.0
    %v4660 = vmax.f32 %v4492, 0.0
    %v4661 = vmax.f32 %v4493, 0.0
    %v4662 = vmax.f32 %v4494, 0.0
    %v4663 = vmax.f32 %v4495, 0.0
    %v4664 = vmax.f32 %v4496, 0.0
    %v4665 = vmax.f32 %v4497, 0.0
    %v4666 = vmax.f32 %v4498, 0.0
    %v4667 = vmax.f32 %v4499, 0.0
    %v4668 = vmax.f32 %v4500, 0.0
    %v4669 = vmax.f32 %v4501, 0.0
    %v4670 = vmax.f32 %v4502, 0.0
    %v4671 = vmax.f32 %v4503, 0.0
    %v4672 = vmax.f32 %v4504, 0.0
    %v4673 = vmax.f32 %v4505, 0.0
    %v4674 = vmax.f32 %v4506, 0.0
    %v4675 = vmax.f32 %v4507, 0.0
    %v4676 = vmax.f32 %v4508, 0.0
    %v4677 = vmax.f32 %v4509, 0.0
    %v4678 = vmax.f32 %v4510, 0.0
    %v4679 = vmax.f32 %v4511, 0.0
    %v4680 = vmax.f32 %v4512, 0.0
    %v4681 = vmax.f32 %v4513, 0.0
    %v4682 = vmax.f32 %v4514, 0.0
    %v4683 = vmax.f32 %v4515, 0.0
    %v4684 = vmax.f32 %v4516, 0.0
    %v4685 = vmax.f32 %v4517, 0.0
    %v4686 = vmax.f32 %v4518, 0.0
    %v4687 = vmax.f32 %v4519, 0.0
    %v4688 = vmax.f32 %v4520, 0.0
    %v4689 = vmax.f32 %v4521, 0.0
    %v4690 = vmax.f32 %v4522, 0.0
    %v4691 = vmax.f32 %v4523, 0.0
    %v4692 = vmax.f32 %v4524, 0.0
    %v4693 = vmax.f32 %v4525, 0.0
    %v4694 = vmax.f32 %v4526, 0.0
    %v4695 = vmax.f32 %v4527, 0.0
    %v4696 = vmax.f32 %v4528, 0.0
    %v4697 = vmax.f32 %v4529, 0.0
    %v4698 = vmax.f32 %v4530, 0.0
    %v4699 = vmax.f32 %v4531, 0.0
    %v4700 = vmax.f32 %v4532, 0.0
    %v4701 = vmax.f32 %v4533, 0.0
    %v4702 = vmax.f32 %v4534, 0.0
    %v4703 = vmax.f32 %v4535, 0.0
    %v4704 = vmax.f32 %v4536, 0.0
    %v4705 = vmax.f32 %v4537, 0.0
    %v4706 = vmax.f32 %v4538, 0.0
    %v4707 = vmax.f32 %v4539, 0.0
    %v4708 = vmax.f32 %v4540, 0.0
    %v4709 = vmax.f32 %v4541, 0.0
    %v4710 = vmax.f32 %v4542, 0.0
    %v4711 = vmax.f32 %v4543, 0.0
    %v4712 = vmax.f32 %v4544, 0.0
    %v4713 = vmax.f32 %v4545, 0.0
    %v4714 = vmax.f32 %v4546, 0.0
    %v4715 = vmax.f32 %v4547, 0.0
    %v4716 = vmax.f32 %v4548, 0.0
    %v4717 = vmax.f32 %v4549, 0.0
    %v4718 = vmax.f32 %v4550, 0.0
    %v4719 = vmax.f32 %v4551, 0.0
    %v4720 = vmax.f32 %v4552, 0.0
    %v4721 = vmax.f32 %v4553, 0.0
    %v4722 = vmax.f32 %v4554, 0.0
    %v4723 = vmax.f32 %v4555, 0.0
    %v4724 = vmax.f32 %v4556, 0.0
    %v4725 = vmax.f32 %v4557, 0.0
    %v4726 = vmax.f32 %v4558, 0.0
    %v4727 = vmax.f32 %v4559, 0.0
    %v4728 = vmax.f32 %v4560, 0.0
    %v4729 = vmax.f32 %v4561, 0.0
    %v4730 = vmax.f32 %v4562, 0.0
    %v4731 = vmax.f32 %v4563, 0.0
    %v4732 = vmax.f32 %v4564, 0.0
    %v4733 = vmax.f32 %v4565, 0.0
    %v4734 = vmax.f32 %v4566, 0.0
    %v4735 = vmax.f32 %v4567, 0.0
    %v4736 = vmax.f32 %v4568, 0.0
    %v4737 = vmax.f32 %v4569, 0.0
    %v4738 = vmax.f32 %v4570, 0.0
    %v4739 = vmax.f32 %v4571, 0.0
    %v4740 = vmax.f32 %v4572, 0.0
    %v4741 = vmax.f32 %v4573, 0.0
    %v4742 = vmax.f32 %v4574, 0.0
    %v4743 = vmax.f32 %v4575, 0.0
    %v4744 = vmax.f32 %v4576, 0.0
    %v4745 = vmul.f32 %v4577, %v1287
    %v4746 = vmul.f32 %v4578, %v1288
    %v4747 = vmul.f32 %v4579, %v1287
    %v4748 = vmul.f32 %v4580, %v1288
    %v4749 = vmul.f32 %v4581, %v1287
    %v4750 = vmul.f32 %v4582, %v1288
    %v4751 = vmul.f32 %v4583, %v1287
    %v4752 = vmul.f32 %v4584, %v1288
    %v4753 = vmul.f32 %v4585, %v1287
    %v4754 = vmul.f32 %v4586, %v1288
    %v4755 = vmul.f32 %v4587, %v1287
    %v4756 = vmul.f32 %v4588, %v1288
    %v4757 = vmul.f32 %v4589, %v1287
    %v4758 = vmul.f32 %v4590, %v1288
    %v4759 = vmul.f32 %v4591, %v1287
    %v4760 = vmul.f32 %v4592, %v1288
    %v4761 = vmul.f32 %v4593, %v1287
    %v4762 = vmul.f32 %v4594, %v1288
    %v4763 = vmul.f32 %v4595, %v1287
    %v4764 = vmul.f32 %v4596, %v1288
    %v4765 = vmul.f32 %v4597, %v1287
    %v4766 = vmul.f32 %v4598, %v1288
    %v4767 = vmul.f32 %v4599, %v1287
    %v4768 = vmul.f32 %v4600, %v1288
    %v4769 = vmul.f32 %v4601, %v1287
    %v4770 = vmul.f32 %v4602, %v1288
    %v4771 = vmul.f32 %v4603, %v1287
    %v4772 = vmul.f32 %v4604, %v1288
    %v4773 = vmul.f32 %v4605, %v1287
    %v4774 = vmul.f32 %v4606, %v1288
    %v4775 = vmul.f32 %v4607, %v1287
    %v4776 = vmul.f32 %v4608, %v1288
    %v4777 = vmul.f32 %v4609, %v1287
    %v4778 = vmul.f32 %v4610, %v1288
    %v4779 = vmul.f32 %v4611, %v1287
    %v4780 = vmul.f32 %v4612, %v1288
    %v4781 = vmul.f32 %v4613, %v1287
    %v4782 = vmul.f32 %v4614, %v1288
    %v4783 = vmul.f32 %v4615, %v1287
    %v4784 = vmul.f32 %v4616, %v1288
    %v4785 = vmul.f32 %v4617, %v1287
    %v4786 = vmul.f32 %v4618, %v1288
    %v4787 = vmul.f32 %v4619, %v1287
    %v4788 = vmul.f32 %v4620, %v1288
    %v4789 = vmul.f32 %v4621, %v1287
    %v4790 = vmul.f32 %v4622, %v1288
    %v4791 = vmul.f32 %v4623, %v1287
    %v4792 = vmul.f32 %v4624, %v1288
    %v4793 = vmul.f32 %v4625, %v1287
    %v4794 = vmul.f32 %v4626, %v1288
    %v4795 = vmul.f32 %v4627, %v1287
    %v4796 = vmul.f32 %v4628, %v1288
    %v4797 = vmul.f32 %v4629, %v1287
    %v4798 = vmul.f32 %v4630, %v1288
    %v4799 = vmul.f32 %v4631, %v1287
    %v4800 = vmul.f32 %v4632, %v1288
    %v4801 = vmul.f32 %v4633, %v1287
    %v4802 = vmul.f32 %v4634, %v1288
    %v4803 = vmul.f32 %v4635, %v1287
    %v4804 = vmul.f32 %v4636, %v1288
    %v4805 = vmul.f32 %v4637, %v1287
    %v4806 = vmul.f32 %v4638, %v1288
    %v4807 = vmul.f32 %v4639, %v1287
    %v4808 = vmul.f32 %v4640, %v1288
    %v4809 = vmul.f32 %v4641, %v1287
    %v4810 = vmul.f32 %v4642, %v1288
    %v4811 = vmul.f32 %v4643, %v1287
    %v4812 = vmul.f32 %v4644, %v1288
    %v4813 = vmul.f32 %v4645, %v1287
    %v4814 = vmul.f32 %v4646, %v1288
    %v4815 = vmul.f32 %v4647, %v1287
    %v4816 = vmul.f32 %v4648, %v1288
    %v4817 = vmul.f32 %v4649, %v1287
    %v4818 = vmul.f32 %v4650, %v1288
    %v4819 = vmul.f32 %v4651, %v1287
    %v4820 = vmul.f32 %v4652, %v1288
    %v4821 = vmul.f32 %v4653, %v1287
    %v4822 = vmul.f32 %v4654, %v1288
    %v4823 = vmul.f32 %v4655, %v1287
    %v4824 = vmul.f32 %v4656, %v1288
    %v4825 = vmul.f32 %v4657, %v1287
    %v4826 = vmul.f32 %v4658, %v1288
    %v4827 = vmul.f32 %v4659, %v1287
    %v4828 = vmul.f32 %v4660, %v1288
    %v4829 = vmul.f32 %v4661, %v1287
    %v4830 = vmul.f32 %v4662, %v1288
    %v4831 = vmul.f32 %v4663, %v1287
    %v4832 = vmul.f32 %v4664, %v1288
    %v4833 = vmul.f32 %v4665, %v1287
    %v4834 = vmul.f32 %v4666, %v1288
    %v4835 = vmul.f32 %v4667, %v1287
    %v4836 = vmul.f32 %v4668, %v1288
    %v4837 = vmul.f32 %v4669, %v1287
    %v4838 = vmul.f32 %v4670, %v1288
    %v4839 = vmul.f32 %v4671, %v1287
    %v4840 = vmul.f32 %v4672, %v1288
    %v4841 = vmul.f32 %v4673, %v1287
    %v4842 = vmul.f32 %v4674, %v1288
    %v4843 = vmul.f32 %v4675, %v1287
    %v4844 = vmul.f32 %v4676, %v1288
    %v4845 = vmul.f32 %v4677, %v1287
    %v4846 = vmul.f32 %v4678, %v1288
    %v4847 = vmul.f32 %v4679, %v1287
    %v4848 = vmul.f32 %v4680, %v1288
    %v4849 = vmul.f32 %v4681, %v1287
    %v4850 = vmul.f32 %v4682, %v1288
    %v4851 = vmul.f32 %v4683, %v1287
    %v4852 = vmul.f32 %v4684, %v1288
    %v4853 = vmul.f32 %v4685, %v1287
    %v4854 = vmul.f32 %v4686, %v1288
    %v4855 = vmul.f32 %v4687, %v1287
    %v4856 = vmul.f32 %v4688, %v1288
    %v4857 = vmul.f32 %v4689, %v1287
    %v4858 = vmul.f32 %v4690, %v1288
    %v4859 = vmul.f32 %v4691, %v1287
    %v4860 = vmul.f32 %v4692, %v1288
    %v4861 = vmul.f32 %v4693, %v1287
    %v4862 = vmul.f32 %v4694, %v1288
    %v4863 = vmul.f32 %v4695, %v1287
    %v4864 = vmul.f32 %v4696, %v1288
    %v4865 = vmul.f32 %v4697, %v1287
    %v4866 = vmul.f32 %v4698, %v1288
    %v4867 = vmul.f32 %v4699, %v1287
    %v4868 = vmul.f32 %v4700, %v1288
    %v4869 = vmul.f32 %v4701, %v1287
    %v4870 = vmul.f32 %v4702, %v1288
    %v4871 = vmul.f32 %v4703, %v1287
    %v4872 = vmul.f32 %v4704, %v1288
    %v4873 = vmul.f32 %v4705, %v1287
    %v4874 = vmul.f32 %v4706, %v1288
    %v4875 = vmul.f32 %v4707, %v1287
    %v4876 = vmul.f32 %v4708, %v1288
    %v4877 = vmul.f32 %v4709, %v1287
    %v4878 = vmul.f32 %v4710, %v1288
    %v4879 = vmul.f32 %v4711, %v1287
    %v4880 = vmul.f32 %v4712, %v1288
    %v4881 = vmul.f32 %v4713, %v1287
    %v4882 = vmul.f32 %v4714, %v1288
    %v4883 = vmul.f32 %v4715, %v1287
    %v4884 = vmul.f32 %v4716, %v1288
    %v4885 = vmul.f32 %v4717, %v1287
    %v4886 = vmul.f32 %v4718, %v1288
    %v4887 = vmul.f32 %v4719, %v1287
    %v4888 = vmul.f32 %v4720, %v1288
    %v4889 = vmul.f32 %v4721, %v1287
    %v4890 = vmul.f32 %v4722, %v1288
    %v4891 = vmul.f32 %v4723, %v1287
    %v4892 = vmul.f32 %v4724, %v1288
    %v4893 = vmul.f32 %v4725, %v1287
    %v4894 = vmul.f32 %v4726, %v1288
    %v4895 = vmul.f32 %v4727, %v1287
    %v4896 = vmul.f32 %v4728, %v1288
    %v4897 = vmul.f32 %v4729, %v1287
    %v4898 = vmul.f32 %v4730, %v1288
    %v4899 = vmul.f32 %v4731, %v1287
    %v4900 = vmul.f32 %v4732, %v1288
    %v4901 = vmul.f32 %v4733, %v1287
    %v4902 = vmul.f32 %v4734, %v1288
    %v4903 = vmul.f32 %v4735, %v1287
    %v4904 = vmul.f32 %v4736, %v1288
    %v4905 = vmul.f32 %v4737, %v1287
    %v4906 = vmul.f32 %v4738, %v1288
    %v4907 = vmul.f32 %v4739, %v1287
    %v4908 = vmul.f32 %v4740, %v1288
    %v4909 = vmul.f32 %v4741, %v1287
    %v4910 = vmul.f32 %v4742, %v1288
    %v4911 = vmul.f32 %v4743, %v1287
    %v4912 = vmul.f32 %v4744, %v1288
    %v4913 = vpack.c.bf16 %v4746, %v4745
    %v4914 = vpack.c.bf16 %v4748, %v4747
    %v4915 = vpack.c.bf16 %v4750, %v4749
    %v4916 = vpack.c.bf16 %v4752, %v4751
    %v4917 = vpack.c.bf16 %v4754, %v4753
    %v4918 = vpack.c.bf16 %v4756, %v4755
    %v4919 = vpack.c.bf16 %v4758, %v4757
    %v4920 = vpack.c.bf16 %v4760, %v4759
    %v4921 = vpack.c.bf16 %v4762, %v4761
    %v4922 = vpack.c.bf16 %v4764, %v4763
    %v4923 = vpack.c.bf16 %v4766, %v4765
    %v4924 = vpack.c.bf16 %v4768, %v4767
    %v4925 = vpack.c.bf16 %v4770, %v4769
    %v4926 = vpack.c.bf16 %v4772, %v4771
    %v4927 = vpack.c.bf16 %v4774, %v4773
    %v4928 = vpack.c.bf16 %v4776, %v4775
    %v4929 = vpack.c.bf16 %v4778, %v4777
    %v4930 = vpack.c.bf16 %v4780, %v4779
    %v4931 = vpack.c.bf16 %v4782, %v4781
    %v4932 = vpack.c.bf16 %v4784, %v4783
    %v4933 = vpack.c.bf16 %v4786, %v4785
    %v4934 = vpack.c.bf16 %v4788, %v4787
    %v4935 = vpack.c.bf16 %v4790, %v4789
    %v4936 = vpack.c.bf16 %v4792, %v4791
    %v4937 = vpack.c.bf16 %v4794, %v4793
    %v4938 = vpack.c.bf16 %v4796, %v4795
    %v4939 = vpack.c.bf16 %v4798, %v4797
    %v4940 = vpack.c.bf16 %v4800, %v4799
    %v4941 = vpack.c.bf16 %v4802, %v4801
    %v4942 = vpack.c.bf16 %v4804, %v4803
    %v4943 = vpack.c.bf16 %v4806, %v4805
    %v4944 = vpack.c.bf16 %v4808, %v4807
    %v4945 = vpack.c.bf16 %v4810, %v4809
    %v4946 = vpack.c.bf16 %v4812, %v4811
    %v4947 = vpack.c.bf16 %v4814, %v4813
    %v4948 = vpack.c.bf16 %v4816, %v4815
    %v4949 = vpack.c.bf16 %v4818, %v4817
    %v4950 = vpack.c.bf16 %v4820, %v4819
    %v4951 = vpack.c.bf16 %v4822, %v4821
    %v4952 = vpack.c.bf16 %v4824, %v4823
    %v4953 = vpack.c.bf16 %v4826, %v4825
    %v4954 = vpack.c.bf16 %v4828, %v4827
    %v4955 = vpack.c.bf16 %v4830, %v4829
    %v4956 = vpack.c.bf16 %v4832, %v4831
    %v4957 = vpack.c.bf16 %v4834, %v4833
    %v4958 = vpack.c.bf16 %v4836, %v4835
    %v4959 = vpack.c.bf16 %v4838, %v4837
    %v4960 = vpack.c.bf16 %v4840, %v4839
    %v4961 = vpack.c.bf16 %v4842, %v4841
    %v4962 = vpack.c.bf16 %v4844, %v4843
    %v4963 = vpack.c.bf16 %v4846, %v4845
    %v4964 = vpack.c.bf16 %v4848, %v4847
    %v4965 = vpack.c.bf16 %v4850, %v4849
    %v4966 = vpack.c.bf16 %v4852, %v4851
    %v4967 = vpack.c.bf16 %v4854, %v4853
    %v4968 = vpack.c.bf16 %v4856, %v4855
    %v4969 = vpack.c.bf16 %v4858, %v4857
    %v4970 = vpack.c.bf16 %v4860, %v4859
    %v4971 = vpack.c.bf16 %v4862, %v4861
    %v4972 = vpack.c.bf16 %v4864, %v4863
    %v4973 = vpack.c.bf16 %v4866, %v4865
    %v4974 = vpack.c.bf16 %v4868, %v4867
    %v4975 = vpack.c.bf16 %v4870, %v4869
    %v4976 = vpack.c.bf16 %v4872, %v4871
    %v4977 = vpack.c.bf16 %v4874, %v4873
    %v4978 = vpack.c.bf16 %v4876, %v4875
    %v4979 = vpack.c.bf16 %v4878, %v4877
    %v4980 = vpack.c.bf16 %v4880, %v4879
    %v4981 = vpack.c.bf16 %v4882, %v4881
    %v4982 = vpack.c.bf16 %v4884, %v4883
    %v4983 = vpack.c.bf16 %v4886, %v4885
    %v4984 = vpack.c.bf16 %v4888, %v4887
    %v4985 = vpack.c.bf16 %v4890, %v4889
    %v4986 = vpack.c.bf16 %v4892, %v4891
    %v4987 = vpack.c.bf16 %v4894, %v4893
    %v4988 = vpack.c.bf16 %v4896, %v4895
    %v4989 = vpack.c.bf16 %v4898, %v4897
    %v4990 = vpack.c.bf16 %v4900, %v4899
    %v4991 = vpack.c.bf16 %v4902, %v4901
    %v4992 = vpack.c.bf16 %v4904, %v4903
    %v4993 = vpack.c.bf16 %v4906, %v4905
    %v4994 = vpack.c.bf16 %v4908, %v4907
    %v4995 = vpack.c.bf16 %v4910, %v4909
    %v4996 = vpack.c.bf16 %v4912, %v4911
    %s4997 = scalar_lea.vmem [#allocation2], 8
    %4998 = vst.msk [vmem:[%s4997] sm:$0xff] %vm3199, %v4913
    %4999 = vst.msk [vmem:[%s4997 + $0x8] sm:$0xff] %vm3199, %v4914
    %5000 = vst.msk [vmem:[%s4997 + $0x10] sm:$0xff] %vm3199, %v4915
    %5001 = vst.msk [vmem:[%s4997 + $0x18] sm:$0xff] %vm3199, %v4916
    %5002 = vst.msk [vmem:[%s4997 + $0x20] sm:$0xff] %vm3199, %v4917
    %5003 = vst.msk [vmem:[%s4997 + $0x28] sm:$0xff] %vm3199, %v4918
    %5004 = vst.msk [vmem:[%s4997 + $0x30] sm:$0xff] %vm3199, %v4919
    %5005 = vst.msk [vmem:[%s4997 + $0x38] sm:$0xff] %vm3199, %v4920
    %5006 = vst.msk [vmem:[%s4997 + $0x40] sm:$0xff] %vm3199, %v4921
    %5007 = vst.msk [vmem:[%s4997 + $0x48] sm:$0xff] %vm3199, %v4922
    %5008 = vst.msk [vmem:[%s4997 + $0x50] sm:$0xff] %vm3199, %v4923
    %5009 = vst.msk [vmem:[%s4997 + $0x58] sm:$0xff] %vm3199, %v4924
    %5010 = vst.msk [vmem:[%s4997 + $0x60] sm:$0xff] %vm3199, %v4925
    %5011 = vst.msk [vmem:[%s4997 + $0x68] sm:$0xff] %vm3199, %v4926
    %5012 = vst.msk [vmem:[%s4997 + $0x70] sm:$0xff] %vm3199, %v4927
    %5013 = vst.msk [vmem:[%s4997 + $0x78] sm:$0xff] %vm3199, %v4928
    %5014 = vst.msk [vmem:[%s4997 + $0x80] sm:$0xff] %vm3199, %v4929
    %5015 = vst.msk [vmem:[%s4997 + $0x88] sm:$0xff] %vm3199, %v4930
    %5016 = vst.msk [vmem:[%s4997 + $0x90] sm:$0xff] %vm3199, %v4931
    %5017 = vst.msk [vmem:[%s4997 + $0x98] sm:$0xff] %vm3199, %v4932
    %5018 = vst.msk [vmem:[%s4997 + $0xa0] sm:$0xff] %vm3199, %v4933
    %5019 = vst.msk [vmem:[%s4997 + $0xa8] sm:$0xff] %vm3199, %v4934
    %5020 = vst.msk [vmem:[%s4997 + $0xb0] sm:$0xff] %vm3199, %v4935
    %5021 = vst.msk [vmem:[%s4997 + $0xb8] sm:$0xff] %vm3199, %v4936
    %5022 = vst.msk [vmem:[%s4997 + $0xc0] sm:$0xff] %vm3199, %v4937
    %5023 = vst.msk [vmem:[%s4997 + $0xc8] sm:$0xff] %vm3199, %v4938
    %5024 = vst.msk [vmem:[%s4997 + $0xd0] sm:$0xff] %vm3199, %v4939
    %5025 = vst.msk [vmem:[%s4997 + $0xd8] sm:$0xff] %vm3199, %v4940
    %5026 = vst.msk [vmem:[%s4997 + $0xe0] sm:$0xff] %vm3199, %v4941
    %5027 = vst.msk [vmem:[%s4997 + $0xe8] sm:$0xff] %vm3199, %v4942
    %5028 = vst.msk [vmem:[%s4997 + $0xf0] sm:$0xff] %vm3199, %v4943
    %5029 = vst.msk [vmem:[%s4997 + $0xf8] sm:$0xff] %vm3199, %v4944
    %5030 = vst.msk [vmem:[%s4997 + $0x100] sm:$0xff] %vm3199, %v4945
    %5031 = vst.msk [vmem:[%s4997 + $0x108] sm:$0xff] %vm3199, %v4946
    %5032 = vst.msk [vmem:[%s4997 + $0x110] sm:$0xff] %vm3199, %v4947
    %5033 = vst.msk [vmem:[%s4997 + $0x118] sm:$0xff] %vm3199, %v4948
    %5034 = vst.msk [vmem:[%s4997 + $0x120] sm:$0xff] %vm3199, %v4949
    %5035 = vst.msk [vmem:[%s4997 + $0x128] sm:$0xff] %vm3199, %v4950
    %5036 = vst.msk [vmem:[%s4997 + $0x130] sm:$0xff] %vm3199, %v4951
    %5037 = vst.msk [vmem:[%s4997 + $0x138] sm:$0xff] %vm3199, %v4952
    %5038 = vst.msk [vmem:[%s4997 + $0x140] sm:$0xff] %vm3199, %v4953
    %5039 = vst.msk [vmem:[%s4997 + $0x148] sm:$0xff] %vm3199, %v4954
    %5040 = vst.msk [vmem:[%s4997 + $0x168] sm:$0xff] %vm3199, %v4955
    %5041 = vst.msk [vmem:[%s4997 + $0x170] sm:$0xff] %vm3199, %v4956
    %5042 = vst.msk [vmem:[%s4997 + $0x178] sm:$0xff] %vm3199, %v4957
    %5043 = vst.msk [vmem:[%s4997 + $0x180] sm:$0xff] %vm3199, %v4958
    %5044 = vst.msk [vmem:[%s4997 + $0x188] sm:$0xff] %vm3199, %v4959
    %5045 = vst.msk [vmem:[%s4997 + $0x190] sm:$0xff] %vm3199, %v4960
    %5046 = vst.msk [vmem:[%s4997 + $0x198] sm:$0xff] %vm3199, %v4961
    %5047 = vst.msk [vmem:[%s4997 + $0x1a0] sm:$0xff] %vm3199, %v4962
    %5048 = vst.msk [vmem:[%s4997 + $0x1a8] sm:$0xff] %vm3199, %v4963
    %5049 = vst.msk [vmem:[%s4997 + $0x1b0] sm:$0xff] %vm3199, %v4964
    %5050 = vst.msk [vmem:[%s4997 + $0x1b8] sm:$0xff] %vm3199, %v4965
    %5051 = vst.msk [vmem:[%s4997 + $0x1c0] sm:$0xff] %vm3199, %v4966
    %5052 = vst.msk [vmem:[%s4997 + $0x1c8] sm:$0xff] %vm3199, %v4967
    %5053 = vst.msk [vmem:[%s4997 + $0x1d0] sm:$0xff] %vm3199, %v4968
    %5054 = vst.msk [vmem:[%s4997 + $0x1d8] sm:$0xff] %vm3199, %v4969
    %5055 = vst.msk [vmem:[%s4997 + $0x1e0] sm:$0xff] %vm3199, %v4970
    %5056 = vst.msk [vmem:[%s4997 + $0x1e8] sm:$0xff] %vm3199, %v4971
    %5057 = vst.msk [vmem:[%s4997 + $0x1f0] sm:$0xff] %vm3199, %v4972
    %5058 = vst.msk [vmem:[%s4997 + $0x1f8] sm:$0xff] %vm3199, %v4973
    %5059 = vst.msk [vmem:[%s4997 + $0x200] sm:$0xff] %vm3199, %v4974
    %5060 = vst.msk [vmem:[%s4997 + $0x208] sm:$0xff] %vm3199, %v4975
    %5061 = vst.msk [vmem:[%s4997 + $0x210] sm:$0xff] %vm3199, %v4976
    %5062 = vst.msk [vmem:[%s4997 + $0x218] sm:$0xff] %vm3199, %v4977
    %5063 = vst.msk [vmem:[%s4997 + $0x220] sm:$0xff] %vm3199, %v4978
    %5064 = vst.msk [vmem:[%s4997 + $0x228] sm:$0xff] %vm3199, %v4979
    %5065 = vst.msk [vmem:[%s4997 + $0x230] sm:$0xff] %vm3199, %v4980
    %5066 = vst.msk [vmem:[%s4997 + $0x238] sm:$0xff] %vm3199, %v4981
    %5067 = vst.msk [vmem:[%s4997 + $0x240] sm:$0xff] %vm3199, %v4982
    %5068 = vst.msk [vmem:[%s4997 + $0x248] sm:$0xff] %vm3199, %v4983
    %5069 = vst.msk [vmem:[%s4997 + $0x250] sm:$0xff] %vm3199, %v4984
    %5070 = vst.msk [vmem:[%s4997 + $0x258] sm:$0xff] %vm3199, %v4985
    %5071 = vst.msk [vmem:[%s4997 + $0x260] sm:$0xff] %vm3199, %v4986
    %5072 = vst.msk [vmem:[%s4997 + $0x268] sm:$0xff] %vm3199, %v4987
    %5073 = vst.msk [vmem:[%s4997 + $0x270] sm:$0xff] %vm3199, %v4988
    %5074 = vst.msk [vmem:[%s4997 + $0x278] sm:$0xff] %vm3199, %v4989
    %5075 = vst.msk [vmem:[%s4997 + $0x280] sm:$0xff] %vm3199, %v4990
    %5076 = vst.msk [vmem:[%s4997 + $0x288] sm:$0xff] %vm3199, %v4991
    %5077 = vst.msk [vmem:[%s4997 + $0x290] sm:$0xff] %vm3199, %v4992
    %5078 = vst.msk [vmem:[%s4997 + $0x298] sm:$0xff] %vm3199, %v4993
    %5079 = vst.msk [vmem:[%s4997 + $0x2a0] sm:$0xff] %vm3199, %v4994
    %5080 = vst.msk [vmem:[%s4997 + $0x2a8] sm:$0xff] %vm3199, %v4995
    %5081 = vst.msk [vmem:[%s4997 + $0x2b0] sm:$0xff] %vm3199, %v4996
    %5082 = vst.msk [vmem:[#allocation2] sm:$0xff] %vm3199, 0
    %5083 = vst.msk [vmem:[#allocation2 + $0x168] sm:$0xff] %vm3199, 0
    %v5084 = vld [vmem:[#allocation2] sm:$0xff]
    %v5085 = vld [vmem:[#allocation2 + $0x8] sm:$0xff]
    %v5086 = vld [vmem:[#allocation2 + $0x10] sm:$0xff]
    %v5087 = vld [vmem:[#allocation2 + $0x18] sm:$0xff]
    %v5088 = vld [vmem:[#allocation2 + $0x20] sm:$0xff]
    %v5089 = vld [vmem:[#allocation2 + $0x28] sm:$0xff]
    %v5090 = vld [vmem:[#allocation2 + $0x30] sm:$0xff]
    %v5091 = vld [vmem:[#allocation2 + $0x38] sm:$0xff]
    %v5092 = vld [vmem:[#allocation2 + $0x40] sm:$0xff]
    %v5093 = vld [vmem:[#allocation2 + $0x48] sm:$0xff]
    %v5094 = vld [vmem:[#allocation2 + $0x50] sm:$0xff]
    %v5095 = vld [vmem:[#allocation2 + $0x58] sm:$0xff]
    %v5096 = vld [vmem:[#allocation2 + $0x60] sm:$0xff]
    %v5097 = vld [vmem:[#allocation2 + $0x68] sm:$0xff]
    %v5098 = vld [vmem:[#allocation2 + $0x70] sm:$0xff]
    %v5099 = vld [vmem:[#allocation2 + $0x78] sm:$0xff]
    %v5100 = vld [vmem:[#allocation2 + $0x80] sm:$0xff]
    %v5101 = vld [vmem:[#allocation2 + $0x88] sm:$0xff]
    %v5102 = vld [vmem:[#allocation2 + $0x90] sm:$0xff]
    %v5103 = vld [vmem:[#allocation2 + $0x98] sm:$0xff]
    %v5104 = vld [vmem:[#allocation2 + $0xa0] sm:$0xff]
    %v5105 = vld [vmem:[#allocation2 + $0xa8] sm:$0xff]
    %v5106 = vld [vmem:[#allocation2 + $0xb0] sm:$0xff]
    %v5107 = vld [vmem:[#allocation2 + $0xb8] sm:$0xff]
    %v5108 = vld [vmem:[#allocation2 + $0xc0] sm:$0xff]
    %v5109 = vld [vmem:[#allocation2 + $0xc8] sm:$0xff]
    %v5110 = vld [vmem:[#allocation2 + $0xd0] sm:$0xff]
    %v5111 = vld [vmem:[#allocation2 + $0xd8] sm:$0xff]
    %v5112 = vld [vmem:[#allocation2 + $0xe0] sm:$0xff]
    %v5113 = vld [vmem:[#allocation2 + $0xe8] sm:$0xff]
    %v5114 = vld [vmem:[#allocation2 + $0xf0] sm:$0xff]
    %v5115 = vld [vmem:[#allocation2 + $0xf8] sm:$0xff]
    %v5116 = vld [vmem:[#allocation2 + $0x100] sm:$0xff]
    %v5117 = vld [vmem:[#allocation2 + $0x108] sm:$0xff]
    %v5118 = vld [vmem:[#allocation2 + $0x110] sm:$0xff]
    %v5119 = vld [vmem:[#allocation2 + $0x118] sm:$0xff]
    %v5120 = vld [vmem:[#allocation2 + $0x120] sm:$0xff]
    %v5121 = vld [vmem:[#allocation2 + $0x128] sm:$0xff]
    %v5122 = vld [vmem:[#allocation2 + $0x130] sm:$0xff]
    %v5123 = vld [vmem:[#allocation2 + $0x138] sm:$0xff]
    %v5124 = vld [vmem:[#allocation2 + $0x140] sm:$0xff]
    %v5125 = vld [vmem:[#allocation2 + $0x148] sm:$0xff]
    %v5126 = vld [vmem:[#allocation2 + $0x168] sm:$0xff]
    %v5127 = vld [vmem:[#allocation2 + $0x170] sm:$0xff]
    %v5128 = vld [vmem:[#allocation2 + $0x178] sm:$0xff]
    %v5129 = vld [vmem:[#allocation2 + $0x180] sm:$0xff]
    %v5130 = vld [vmem:[#allocation2 + $0x188] sm:$0xff]
    %v5131 = vld [vmem:[#allocation2 + $0x190] sm:$0xff]
    %v5132 = vld [vmem:[#allocation2 + $0x198] sm:$0xff]
    %v5133 = vld [vmem:[#allocation2 + $0x1a0] sm:$0xff]
    %v5134 = vld [vmem:[#allocation2 + $0x1a8] sm:$0xff]
    %v5135 = vld [vmem:[#allocation2 + $0x1b0] sm:$0xff]
    %v5136 = vld [vmem:[#allocation2 + $0x1b8] sm:$0xff]
    %v5137 = vld [vmem:[#allocation2 + $0x1c0] sm:$0xff]
    %v5138 = vld [vmem:[#allocation2 + $0x1c8] sm:$0xff]
    %v5139 = vld [vmem:[#allocation2 + $0x1d0] sm:$0xff]
    %v5140 = vld [vmem:[#allocation2 + $0x1d8] sm:$0xff]
    %v5141 = vld [vmem:[#allocation2 + $0x1e0] sm:$0xff]
    %v5142 = vld [vmem:[#allocation2 + $0x1e8] sm:$0xff]
    %v5143 = vld [vmem:[#allocation2 + $0x1f0] sm:$0xff]
    %v5144 = vld [vmem:[#allocation2 + $0x1f8] sm:$0xff]
    %v5145 = vld [vmem:[#allocation2 + $0x200] sm:$0xff]
    %v5146 = vld [vmem:[#allocation2 + $0x208] sm:$0xff]
    %v5147 = vld [vmem:[#allocation2 + $0x210] sm:$0xff]
    %v5148 = vld [vmem:[#allocation2 + $0x218] sm:$0xff]
    %v5149 = vld [vmem:[#allocation2 + $0x220] sm:$0xff]
    %v5150 = vld [vmem:[#allocation2 + $0x228] sm:$0xff]
    %v5151 = vld [vmem:[#allocation2 + $0x230] sm:$0xff]
    %v5152 = vld [vmem:[#allocation2 + $0x238] sm:$0xff]
    %v5153 = vld [vmem:[#allocation2 + $0x240] sm:$0xff]
    %v5154 = vld [vmem:[#allocation2 + $0x248] sm:$0xff]
    %v5155 = vld [vmem:[#allocation2 + $0x250] sm:$0xff]
    %v5156 = vld [vmem:[#allocation2 + $0x258] sm:$0xff]
    %v5157 = vld [vmem:[#allocation2 + $0x260] sm:$0xff]
    %v5158 = vld [vmem:[#allocation2 + $0x268] sm:$0xff]
    %v5159 = vld [vmem:[#allocation2 + $0x270] sm:$0xff]
    %v5160 = vld [vmem:[#allocation2 + $0x278] sm:$0xff]
    %v5161 = vld [vmem:[#allocation2 + $0x280] sm:$0xff]
    %v5162 = vld [vmem:[#allocation2 + $0x288] sm:$0xff]
    %v5163 = vld [vmem:[#allocation2 + $0x290] sm:$0xff]
    %v5164 = vld [vmem:[#allocation2 + $0x298] sm:$0xff]
    %v5165 = vld [vmem:[#allocation2 + $0x2a0] sm:$0xff]
    %v5166 = vld [vmem:[#allocation2 + $0x2a8] sm:$0xff]
    %v5167 = vld [vmem:[#allocation2 + $0x2b0] sm:$0xff]
    %5194 = vrot.lane.b32.xlu0 %v5085, 64
    %v5195 = vpop.permute.xlu0 %5194
    %5196 = vrot.lane.b32.xlu0 %v5088, 64
    %v5197 = vpop.permute.xlu0 %5196
    %5198 = vrot.lane.b32.xlu0 %v5091, 64
    %v5199 = vpop.permute.xlu0 %5198
    %5200 = vrot.lane.b32.xlu0 %v5094, 64
    %v5201 = vpop.permute.xlu0 %5200
    %5202 = vrot.lane.b32.xlu0 %v5097, 64
    %v5203 = vpop.permute.xlu0 %5202
    %5204 = vrot.lane.b32.xlu0 %v5100, 64
    %v5205 = vpop.permute.xlu0 %5204
    %5206 = vrot.lane.b32.xlu0 %v5103, 64
    %v5207 = vpop.permute.xlu0 %5206
    %5208 = vrot.lane.b32.xlu0 %v5106, 64
    %v5209 = vpop.permute.xlu0 %5208
    %5210 = vrot.lane.b32.xlu0 %v5109, 64
    %v5211 = vpop.permute.xlu0 %5210
    %5212 = vrot.lane.b32.xlu0 %v5112, 64
    %v5213 = vpop.permute.xlu0 %5212
    %5214 = vrot.lane.b32.xlu0 %v5115, 64
    %v5215 = vpop.permute.xlu0 %5214
    %5216 = vrot.lane.b32.xlu0 %v5118, 64
    %v5217 = vpop.permute.xlu0 %5216
    %5218 = vrot.lane.b32.xlu0 %v5121, 64
    %v5219 = vpop.permute.xlu0 %5218
    %5220 = vrot.lane.b32.xlu0 %v5127, 64
    %v5221 = vpop.permute.xlu0 %5220
    %5222 = vrot.lane.b32.xlu0 %v5130, 64
    %v5223 = vpop.permute.xlu0 %5222
    %5224 = vrot.lane.b32.xlu0 %v5133, 64
    %v5225 = vpop.permute.xlu0 %5224
    %5226 = vrot.lane.b32.xlu0 %v5136, 64
    %v5227 = vpop.permute.xlu0 %5226
    %5228 = vrot.lane.b32.xlu0 %v5139, 64
    %v5229 = vpop.permute.xlu0 %5228
    %5230 = vrot.lane.b32.xlu0 %v5142, 64
    %v5231 = vpop.permute.xlu0 %5230
    %5232 = vrot.lane.b32.xlu0 %v5145, 64
    %v5233 = vpop.permute.xlu0 %5232
    %5234 = vrot.lane.b32.xlu0 %v5148, 64
    %v5235 = vpop.permute.xlu0 %5234
    %5236 = vrot.lane.b32.xlu0 %v5151, 64
    %v5237 = vpop.permute.xlu0 %5236
    %5238 = vrot.lane.b32.xlu0 %v5154, 64
    %v5239 = vpop.permute.xlu0 %5238
    %5240 = vrot.lane.b32.xlu0 %v5157, 64
    %v5241 = vpop.permute.xlu0 %5240
    %5242 = vrot.lane.b32.xlu0 %v5160, 64
    %v5243 = vpop.permute.xlu0 %5242
    %5244 = vrot.lane.b32.xlu0 %v5163, 64
    %v5245 = vpop.permute.xlu0 %5244
    %5272 = vrot.lane.b32.xlu0 %v5087, 64
    %v5273 = vpop.permute.xlu0 %5272
    %5274 = vrot.lane.b32.xlu0 %v5090, 64
    %v5275 = vpop.permute.xlu0 %5274
    %5276 = vrot.lane.b32.xlu0 %v5093, 64
    %v5277 = vpop.permute.xlu0 %5276
    %5278 = vrot.lane.b32.xlu0 %v5096, 64
    %v5279 = vpop.permute.xlu0 %5278
    %5280 = vrot.lane.b32.xlu0 %v5099, 64
    %v5281 = vpop.permute.xlu0 %5280
    %5282 = vrot.lane.b32.xlu0 %v5102, 64
    %v5283 = vpop.permute.xlu0 %5282
    %5284 = vrot.lane.b32.xlu0 %v5105, 64
    %v5285 = vpop.permute.xlu0 %5284
    %5286 = vrot.lane.b32.xlu0 %v5108, 64
    %v5287 = vpop.permute.xlu0 %5286
    %5288 = vrot.lane.b32.xlu0 %v5111, 64
    %v5289 = vpop.permute.xlu0 %5288
    %5290 = vrot.lane.b32.xlu0 %v5114, 64
    %v5291 = vpop.permute.xlu0 %5290
    %5292 = vrot.lane.b32.xlu0 %v5117, 64
    %v5293 = vpop.permute.xlu0 %5292
    %5294 = vrot.lane.b32.xlu0 %v5120, 64
    %v5295 = vpop.permute.xlu0 %5294
    %5296 = vrot.lane.b32.xlu0 %v5123, 64
    %v5297 = vpop.permute.xlu0 %5296
    %5298 = vrot.lane.b32.xlu0 %v5129, 64
    %v5299 = vpop.permute.xlu0 %5298
    %5300 = vrot.lane.b32.xlu0 %v5132, 64
    %v5301 = vpop.permute.xlu0 %5300
    %5302 = vrot.lane.b32.xlu0 %v5135, 64
    %v5303 = vpop.permute.xlu0 %5302
    %5304 = vrot.lane.b32.xlu0 %v5138, 64
    %v5305 = vpop.permute.xlu0 %5304
    %5306 = vrot.lane.b32.xlu0 %v5141, 64
    %v5307 = vpop.permute.xlu0 %5306
    %5308 = vrot.lane.b32.xlu0 %v5144, 64
    %v5309 = vpop.permute.xlu0 %5308
    %5310 = vrot.lane.b32.xlu0 %v5147, 64
    %v5311 = vpop.permute.xlu0 %5310
    %5312 = vrot.lane.b32.xlu0 %v5150, 64
    %v5313 = vpop.permute.xlu0 %5312
    %5314 = vrot.lane.b32.xlu0 %v5153, 64
    %v5315 = vpop.permute.xlu0 %5314
    %5316 = vrot.lane.b32.xlu0 %v5156, 64
    %v5317 = vpop.permute.xlu0 %5316
    %5318 = vrot.lane.b32.xlu0 %v5159, 64
    %v5319 = vpop.permute.xlu0 %5318
    %5320 = vrot.lane.b32.xlu0 %v5162, 64
    %v5321 = vpop.permute.xlu0 %5320
    %5322 = vrot.lane.b32.xlu0 %v5165, 64
    %v5323 = vpop.permute.xlu0 %5322
    %5350 = vrot.lane.b32.xlu0 %v5089, 64
    %v5351 = vpop.permute.xlu0 %5350
    %5352 = vrot.lane.b32.xlu0 %v5092, 64
    %v5353 = vpop.permute.xlu0 %5352
    %5354 = vrot.lane.b32.xlu0 %v5095, 64
    %v5355 = vpop.permute.xlu0 %5354
    %5356 = vrot.lane.b32.xlu0 %v5098, 64
    %v5357 = vpop.permute.xlu0 %5356
    %5358 = vrot.lane.b32.xlu0 %v5101, 64
    %v5359 = vpop.permute.xlu0 %5358
    %5360 = vrot.lane.b32.xlu0 %v5104, 64
    %v5361 = vpop.permute.xlu0 %5360
    %5362 = vrot.lane.b32.xlu0 %v5107, 64
    %v5363 = vpop.permute.xlu0 %5362
    %5364 = vrot.lane.b32.xlu0 %v5110, 64
    %v5365 = vpop.permute.xlu0 %5364
    %5366 = vrot.lane.b32.xlu0 %v5113, 64
    %v5367 = vpop.permute.xlu0 %5366
    %5368 = vrot.lane.b32.xlu0 %v5116, 64
    %v5369 = vpop.permute.xlu0 %5368
    %5370 = vrot.lane.b32.xlu0 %v5119, 64
    %v5371 = vpop.permute.xlu0 %5370
    %5372 = vrot.lane.b32.xlu0 %v5122, 64
    %v5373 = vpop.permute.xlu0 %5372
    %5374 = vrot.lane.b32.xlu0 %v5125, 64
    %v5375 = vpop.permute.xlu0 %5374
    %5376 = vrot.lane.b32.xlu0 %v5131, 64
    %v5377 = vpop.permute.xlu0 %5376
    %5378 = vrot.lane.b32.xlu0 %v5134, 64
    %v5379 = vpop.permute.xlu0 %5378
    %5380 = vrot.lane.b32.xlu0 %v5137, 64
    %v5381 = vpop.permute.xlu0 %5380
    %5382 = vrot.lane.b32.xlu0 %v5140, 64
    %v5383 = vpop.permute.xlu0 %5382
    %5384 = vrot.lane.b32.xlu0 %v5143, 64
    %v5385 = vpop.permute.xlu0 %5384
    %5386 = vrot.lane.b32.xlu0 %v5146, 64
    %v5387 = vpop.permute.xlu0 %5386
    %5388 = vrot.lane.b32.xlu0 %v5149, 64
    %v5389 = vpop.permute.xlu0 %5388
    %5390 = vrot.lane.b32.xlu0 %v5152, 64
    %v5391 = vpop.permute.xlu0 %5390
    %5392 = vrot.lane.b32.xlu0 %v5155, 64
    %v5393 = vpop.permute.xlu0 %5392
    %5394 = vrot.lane.b32.xlu0 %v5158, 64
    %v5395 = vpop.permute.xlu0 %5394
    %5396 = vrot.lane.b32.xlu0 %v5161, 64
    %v5397 = vpop.permute.xlu0 %5396
    %5398 = vrot.lane.b32.xlu0 %v5164, 64
    %v5399 = vpop.permute.xlu0 %5398
    %5400 = vrot.lane.b32.xlu0 %v5167, 64
    %v5401 = vpop.permute.xlu0 %5400
    %v5404 = vsel %vm3199, %v5084, %v5195
    %v5408 = vsel %vm3199, %v5087, %v5197
    %v5412 = vsel %vm3199, %v5090, %v5199
    %v5416 = vsel %vm3199, %v5093, %v5201
    %v5420 = vsel %vm3199, %v5096, %v5203
    %v5424 = vsel %vm3199, %v5099, %v5205
    %v5428 = vsel %vm3199, %v5102, %v5207
    %v5432 = vsel %vm3199, %v5105, %v5209
    %v5436 = vsel %vm3199, %v5108, %v5211
    %v5440 = vsel %vm3199, %v5111, %v5213
    %v5444 = vsel %vm3199, %v5114, %v5215
    %v5448 = vsel %vm3199, %v5117, %v5217
    %v5452 = vsel %vm3199, %v5120, %v5219
    %v5456 = vsel %vm3199, %v5126, %v5221
    %v5460 = vsel %vm3199, %v5129, %v5223
    %v5464 = vsel %vm3199, %v5132, %v5225
    %v5468 = vsel %vm3199, %v5135, %v5227
    %v5472 = vsel %vm3199, %v5138, %v5229
    %v5476 = vsel %vm3199, %v5141, %v5231
    %v5480 = vsel %vm3199, %v5144, %v5233
    %v5484 = vsel %vm3199, %v5147, %v5235
    %v5488 = vsel %vm3199, %v5150, %v5237
    %v5492 = vsel %vm3199, %v5153, %v5239
    %v5496 = vsel %vm3199, %v5156, %v5241
    %v5500 = vsel %vm3199, %v5159, %v5243
    %v5504 = vsel %vm3199, %v5162, %v5245
    %v5508 = vsel %vm3199, %v5086, %v5273
    %v5512 = vsel %vm3199, %v5089, %v5275
    %v5516 = vsel %vm3199, %v5092, %v5277
    %v5520 = vsel %vm3199, %v5095, %v5279
    %v5524 = vsel %vm3199, %v5098, %v5281
    %v5528 = vsel %vm3199, %v5101, %v5283
    %v5532 = vsel %vm3199, %v5104, %v5285
    %v5536 = vsel %vm3199, %v5107, %v5287
    %v5540 = vsel %vm3199, %v5110, %v5289
    %v5544 = vsel %vm3199, %v5113, %v5291
    %v5548 = vsel %vm3199, %v5116, %v5293
    %v5552 = vsel %vm3199, %v5119, %v5295
    %v5556 = vsel %vm3199, %v5122, %v5297
    %v5560 = vsel %vm3199, %v5128, %v5299
    %v5564 = vsel %vm3199, %v5131, %v5301
    %v5568 = vsel %vm3199, %v5134, %v5303
    %v5572 = vsel %vm3199, %v5137, %v5305
    %v5576 = vsel %vm3199, %v5140, %v5307
    %v5580 = vsel %vm3199, %v5143, %v5309
    %v5584 = vsel %vm3199, %v5146, %v5311
    %v5588 = vsel %vm3199, %v5149, %v5313
    %v5592 = vsel %vm3199, %v5152, %v5315
    %v5596 = vsel %vm3199, %v5155, %v5317
    %v5600 = vsel %vm3199, %v5158, %v5319
    %v5604 = vsel %vm3199, %v5161, %v5321
    %v5608 = vsel %vm3199, %v5164, %v5323
    %v5612 = vsel %vm3199, %v5088, %v5351
    %v5616 = vsel %vm3199, %v5091, %v5353
    %v5620 = vsel %vm3199, %v5094, %v5355
    %v5624 = vsel %vm3199, %v5097, %v5357
    %v5628 = vsel %vm3199, %v5100, %v5359
    %v5632 = vsel %vm3199, %v5103, %v5361
    %v5636 = vsel %vm3199, %v5106, %v5363
    %v5640 = vsel %vm3199, %v5109, %v5365
    %v5644 = vsel %vm3199, %v5112, %v5367
    %v5648 = vsel %vm3199, %v5115, %v5369
    %v5652 = vsel %vm3199, %v5118, %v5371
    %v5656 = vsel %vm3199, %v5121, %v5373
    %v5660 = vsel %vm3199, %v5124, %v5375
    %v5664 = vsel %vm3199, %v5130, %v5377
    %v5668 = vsel %vm3199, %v5133, %v5379
    %v5672 = vsel %vm3199, %v5136, %v5381
    %v5676 = vsel %vm3199, %v5139, %v5383
    %v5680 = vsel %vm3199, %v5142, %v5385
    %v5684 = vsel %vm3199, %v5145, %v5387
    %v5688 = vsel %vm3199, %v5148, %v5389
    %v5692 = vsel %vm3199, %v5151, %v5391
    %v5696 = vsel %vm3199, %v5154, %v5393
    %v5700 = vsel %vm3199, %v5157, %v5395
    %v5704 = vsel %vm3199, %v5160, %v5397
    %v5708 = vsel %vm3199, %v5163, %v5399
    %v5712 = vsel %vm3199, %v5166, %v5401
    %v5714 = vld [vmem:[%s3] sm:$0xf]
    %v5715 = vld [vmem:[%s3 + $0x4] sm:$0xf]
    %v5716 = vld [vmem:[%s3 + $0x8] sm:$0xf]
    %v5717 = vld [vmem:[%s3 + $0xc] sm:$0xf]
    %v5718 = vld [vmem:[%s3 + $0x10] sm:$0xf]
    %v5719 = vld [vmem:[%s3 + $0x14] sm:$0xf]
    %v5720 = vld [vmem:[%s3 + $0x18] sm:$0xf]
    %v5721 = vld [vmem:[%s3 + $0x1c] sm:$0xf]
    %v5722 = vld [vmem:[%s3 + $0x20] sm:$0xf]
    %v5723 = vld [vmem:[%s3 + $0x24] sm:$0xf]
    %v5724 = vld [vmem:[%s3 + $0x28] sm:$0xf]
    %v5725 = vld [vmem:[%s3 + $0x2c] sm:$0xf]
    %v5726 = vld [vmem:[%s3 + $0x30] sm:$0xf]
    %v5727 = vld [vmem:[%s3 + $0x34] sm:$0xf]
    %v5728 = vld [vmem:[%s3 + $0x38] sm:$0xf]
    %v5729 = vld [vmem:[%s3 + $0x3c] sm:$0xf]
    %v5730 = vld [vmem:[%s3 + $0x40] sm:$0xf]
    %v5731 = vld [vmem:[%s3 + $0x44] sm:$0xf]
    %v5732 = vld [vmem:[%s3 + $0x48] sm:$0xf]
    %v5733 = vld [vmem:[%s3 + $0x4c] sm:$0xf]
    %v5734 = vld [vmem:[%s3 + $0x50] sm:$0xf]
    %v5735 = vld [vmem:[%s3 + $0x54] sm:$0xf]
    %v5736 = vld [vmem:[%s3 + $0x58] sm:$0xf]
    %v5737 = vld [vmem:[%s3 + $0x5c] sm:$0xf]
    %v5738 = vld [vmem:[%s3 + $0x60] sm:$0xf]
    %v5739 = vld [vmem:[%s3 + $0x64] sm:$0xf]
    %v5740 = vld [vmem:[%s3 + $0x68] sm:$0xf]
    %v5741 = vld [vmem:[%s3 + $0x6c] sm:$0xf]
    %v5742 = vld [vmem:[%s3 + $0x70] sm:$0xf]
    %v5743 = vld [vmem:[%s3 + $0x74] sm:$0xf]
    %v5744 = vld [vmem:[%s3 + $0x78] sm:$0xf]
    %v5745 = vld [vmem:[%s3 + $0x7c] sm:$0xf]
    %v5746 = vld [vmem:[%s3 + $0x80] sm:$0xf]
    %v5747 = vld [vmem:[%s3 + $0x84] sm:$0xf]
    %v5748 = vld [vmem:[%s3 + $0x88] sm:$0xf]
    %v5749 = vld [vmem:[%s3 + $0x8c] sm:$0xf]
    %v5750 = vld [vmem:[%s3 + $0x90] sm:$0xf]
    %v5751 = vld [vmem:[%s3 + $0x94] sm:$0xf]
    %v5752 = vld [vmem:[%s3 + $0x98] sm:$0xf]
    %v5753 = vld [vmem:[%s3 + $0x9c] sm:$0xf]
    %v5754 = vld [vmem:[%s3 + $0xa0] sm:$0xf]
    %v5755 = vld [vmem:[%s3 + $0xa4] sm:$0xf]
    %v5756 = vld [vmem:[%s3 + $0xa8] sm:$0xf]
    %v5757 = vld [vmem:[%s3 + $0xac] sm:$0xf]
    %v5758 = vld [vmem:[%s3 + $0xb0] sm:$0xf]
    %v5759 = vld [vmem:[%s3 + $0xb4] sm:$0xf]
    %v5760 = vld [vmem:[%s3 + $0xb8] sm:$0xf]
    %v5761 = vld [vmem:[%s3 + $0xbc] sm:$0xf]
    %v5810 = vunpack.c.l.b16 %v5714
    %v5811 = vunpack.c.l.b16 %v5715
    %v5812 = vunpack.c.l.b16 %v5716
    %v5813 = vunpack.c.l.b16 %v5717
    %v5814 = vunpack.c.l.b16 %v5718
    %v5815 = vunpack.c.l.b16 %v5719
    %v5816 = vunpack.c.l.b16 %v5720
    %v5817 = vunpack.c.l.b16 %v5721
    %v5818 = vunpack.c.l.b16 %v5722
    %v5819 = vunpack.c.l.b16 %v5723
    %v5820 = vunpack.c.l.b16 %v5724
    %v5821 = vunpack.c.l.b16 %v5725
    %v5822 = vunpack.c.l.b16 %v5726
    %v5823 = vunpack.c.l.b16 %v5727
    %v5824 = vunpack.c.l.b16 %v5728
    %v5825 = vunpack.c.l.b16 %v5729
    %v5826 = vunpack.c.l.b16 %v5730
    %v5827 = vunpack.c.l.b16 %v5731
    %v5828 = vunpack.c.l.b16 %v5732
    %v5829 = vunpack.c.l.b16 %v5733
    %v5830 = vunpack.c.l.b16 %v5734
    %v5831 = vunpack.c.l.b16 %v5735
    %v5832 = vunpack.c.l.b16 %v5736
    %v5833 = vunpack.c.l.b16 %v5737
    %v5834 = vunpack.c.l.b16 %v5738
    %v5835 = vunpack.c.l.b16 %v5739
    %v5836 = vunpack.c.l.b16 %v5740
    %v5837 = vunpack.c.l.b16 %v5741
    %v5838 = vunpack.c.l.b16 %v5742
    %v5839 = vunpack.c.l.b16 %v5743
    %v5840 = vunpack.c.l.b16 %v5744
    %v5841 = vunpack.c.l.b16 %v5745
    %v5842 = vunpack.c.l.b16 %v5746
    %v5843 = vunpack.c.l.b16 %v5747
    %v5844 = vunpack.c.l.b16 %v5748
    %v5845 = vunpack.c.l.b16 %v5749
    %v5846 = vunpack.c.l.b16 %v5750
    %v5847 = vunpack.c.l.b16 %v5751
    %v5848 = vunpack.c.l.b16 %v5752
    %v5849 = vunpack.c.l.b16 %v5753
    %v5850 = vunpack.c.l.b16 %v5754
    %v5851 = vunpack.c.l.b16 %v5755
    %v5852 = vunpack.c.l.b16 %v5756
    %v5853 = vunpack.c.l.b16 %v5757
    %v5854 = vunpack.c.l.b16 %v5758
    %v5855 = vunpack.c.l.b16 %v5759
    %v5856 = vunpack.c.l.b16 %v5760
    %v5857 = vunpack.c.l.b16 %v5761
    %v5858 = vpack.c.b16 %v5811, %v5810
    %v5859 = vpack.c.b16 %v5813, %v5812
    %v5860 = vpack.c.b16 %v5815, %v5814
    %v5861 = vpack.c.b16 %v5817, %v5816
    %v5862 = vpack.c.b16 %v5819, %v5818
    %v5863 = vpack.c.b16 %v5821, %v5820
    %v5864 = vpack.c.b16 %v5823, %v5822
    %v5865 = vpack.c.b16 %v5825, %v5824
    %v5866 = vpack.c.b16 %v5827, %v5826
    %v5867 = vpack.c.b16 %v5829, %v5828
    %v5868 = vpack.c.b16 %v5831, %v5830
    %v5869 = vpack.c.b16 %v5833, %v5832
    %v5870 = vpack.c.b16 %v5835, %v5834
    %v5871 = vpack.c.b16 %v5837, %v5836
    %v5872 = vpack.c.b16 %v5839, %v5838
    %v5873 = vpack.c.b16 %v5841, %v5840
    %v5874 = vpack.c.b16 %v5843, %v5842
    %v5875 = vpack.c.b16 %v5845, %v5844
    %v5876 = vpack.c.b16 %v5847, %v5846
    %v5877 = vpack.c.b16 %v5849, %v5848
    %v5878 = vpack.c.b16 %v5851, %v5850
    %v5879 = vpack.c.b16 %v5853, %v5852
    %v5880 = vpack.c.b16 %v5855, %v5854
    %v5881 = vpack.c.b16 %v5857, %v5856
    %5906 = vmatprep.subr.bf16.mxu0 0
    %5907 = vmatpush1.bf16.msra.mxu0 %v5858
    %5908 = vmatprep.subr.bf16.mxu0 0
    %5909 = vmatpush1.bf16.msra.mxu0 %v5859
    %5910 = vmatprep.subr.bf16.mxu0 0
    %5911 = vmatpush1.bf16.msra.mxu0 %v5860
    %5912 = vmatprep.subr.bf16.mxu0 0
    %5913 = vmatpush1.bf16.msra.mxu0 %v5861
    %5914 = vmatprep.subr.bf16.mxu0 0
    %5915 = vmatpush1.bf16.msra.mxu0 %v5862
    %5916 = vmatprep.subr.bf16.mxu0 0
    %5917 = vmatpush1.bf16.msra.mxu0 %v5863
    %5918 = vmatprep.subr.bf16.mxu0 0
    %5919 = vmatpush1.bf16.msra.mxu0 %v5864
    %5920 = vmatprep.subr.bf16.mxu0 0
    %5921 = vmatpush1.bf16.msra.mxu0 %v5865
    %5922 = vmatprep.subr.bf16.mxu0 0
    %5923 = vmatpush1.bf16.msra.mxu0 %v5866
    %5924 = vmatprep.subr.bf16.mxu0 0
    %5925 = vmatpush1.bf16.msra.mxu0 %v5867
    %5926 = vmatprep.subr.bf16.mxu0 0
    %5927 = vmatpush1.bf16.msra.mxu0 %v5868
    %5928 = vmatprep.subr.bf16.mxu0 0
    %5929 = vmatpush1.bf16.msra.mxu0 %v5869
    %5930 = vmatprep.subr.bf16.mxu0 0
    %5931 = vmatpush1.bf16.msra.mxu0 %v5870
    %5932 = vmatprep.subr.bf16.mxu0 0
    %5933 = vmatpush1.bf16.msra.mxu0 %v5871
    %5934 = vmatprep.subr.bf16.mxu0 0
    %5935 = vmatpush1.bf16.msra.mxu0 %v5872
    %5936 = vmatprep.subr.bf16.mxu0 0
    %5937 = vmatpush1.bf16.msra.mxu0 %v5873
    %5938 = vmatprep.mubr.bf16.mxu0 %v5508
    %5939 = vmatmul.mubr.bf16.gmra.mrb[0].mxu0 %v5404
    %v5940 = vpop.f32.mrb[0].mxu0
    %v5941 = vadd.f32 0.0, %v5940
    %v5942 = vpop.f32.mrb[0].mxu0
    %v5943 = vpop.f32.mrb[0].mxu0
    %v5944 = vadd.f32 0.0, %v5943
    %v5945 = vpop.f32.mrb[0].mxu0
    %5946 = vmatprep.mubr.bf16.mxu0 %v5512
    %5947 = vmatmul.mubr.bf16.gmra.mrb[0].mxu0 %v5408
    %v5948 = vpop.f32.mrb[0].mxu0
    %v5949 = vadd.f32 0.0, %v5948
    %v5950 = vpop.f32.mrb[0].mxu0
    %v5951 = vpop.f32.mrb[0].mxu0
    %v5952 = vadd.f32 0.0, %v5951
    %v5953 = vpop.f32.mrb[0].mxu0
    %5954 = vmatprep.mubr.bf16.mxu0 %v5516
    %5955 = vmatmul.mubr.bf16.gmra.mrb[0].mxu0 %v5412
    %v5956 = vpop.f32.mrb[0].mxu0
    %v5957 = vadd.f32 0.0, %v5956
    %v5958 = vpop.f32.mrb[0].mxu0
    %v5959 = vpop.f32.mrb[0].mxu0
    %v5960 = vadd.f32 0.0, %v5959
    %v5961 = vpop.f32.mrb[0].mxu0
    %5962 = vmatprep.mubr.bf16.mxu0 %v5520
    %5963 = vmatmul.mubr.bf16.gmra.mrb[0].mxu0 %v5416
    %v5964 = vpop.f32.mrb[0].mxu0
    %v5965 = vadd.f32 0.0, %v5964
    %v5966 = vpop.f32.mrb[0].mxu0
    %v5967 = vpop.f32.mrb[0].mxu0
    %v5968 = vadd.f32 0.0, %v5967
    %v5969 = vpop.f32.mrb[0].mxu0
    %5970 = vmatprep.mubr.bf16.mxu0 %v5524
    %5971 = vmatmul.mubr.bf16.gmra.mrb[0].mxu0 %v5420
    %v5972 = vpop.f32.mrb[0].mxu0
    %v5973 = vadd.f32 0.0, %v5972
    %v5974 = vpop.f32.mrb[0].mxu0
    %v5975 = vpop.f32.mrb[0].mxu0
    %v5976 = vadd.f32 0.0, %v5975
    %v5977 = vpop.f32.mrb[0].mxu0
    %5978 = vmatprep.mubr.bf16.mxu0 %v5528
    %5979 = vmatmul.mubr.bf16.gmra.mrb[0].mxu0 %v5424
    %v5980 = vpop.f32.mrb[0].mxu0
    %v5981 = vadd.f32 0.0, %v5980
    %v5982 = vpop.f32.mrb[0].mxu0
    %v5983 = vpop.f32.mrb[0].mxu0
    %v5984 = vadd.f32 0.0, %v5983
    %v5985 = vpop.f32.mrb[0].mxu0
    %5986 = vmatprep.mubr.bf16.mxu0 %v5532
    %5987 = vmatmul.mubr.bf16.gmra.mrb[0].mxu0 %v5428
    %v5988 = vpop.f32.mrb[0].mxu0
    %v5989 = vadd.f32 0.0, %v5988
    %v5990 = vpop.f32.mrb[0].mxu0
    %v5991 = vpop.f32.mrb[0].mxu0
    %v5992 = vadd.f32 0.0, %v5991
    %v5993 = vpop.f32.mrb[0].mxu0
    %5994 = vmatprep.mubr.bf16.mxu0 %v5536
    %5995 = vmatmul.mubr.bf16.gmra.mrb[0].mxu0 %v5432
    %v5996 = vpop.f32.mrb[0].mxu0
    %v5997 = vadd.f32 0.0, %v5996
    %v5998 = vpop.f32.mrb[0].mxu0
    %v5999 = vpop.f32.mrb[0].mxu0
    %v6000 = vadd.f32 0.0, %v5999
    %v6001 = vpop.f32.mrb[0].mxu0
    %6002 = vmatprep.mubr.bf16.mxu0 %v5540
    %6003 = vmatmul.mubr.bf16.gmra.mrb[0].mxu0 %v5436
    %v6004 = vpop.f32.mrb[0].mxu0
    %v6005 = vadd.f32 0.0, %v6004
    %v6006 = vpop.f32.mrb[0].mxu0
    %v6007 = vpop.f32.mrb[0].mxu0
    %v6008 = vadd.f32 0.0, %v6007
    %v6009 = vpop.f32.mrb[0].mxu0
    %6010 = vmatprep.mubr.bf16.mxu0 %v5544
    %6011 = vmatmul.mubr.bf16.gmra.mrb[0].mxu0 %v5440
    %v6012 = vpop.f32.mrb[0].mxu0
    %v6013 = vadd.f32 0.0, %v6012
    %v6014 = vpop.f32.mrb[0].mxu0
    %v6015 = vpop.f32.mrb[0].mxu0
    %v6016 = vadd.f32 0.0, %v6015
    %v6017 = vpop.f32.mrb[0].mxu0
    %6018 = vmatprep.mubr.bf16.mxu0 %v5548
    %6019 = vmatmul.mubr.bf16.gmra.mrb[0].mxu0 %v5444
    %v6020 = vpop.f32.mrb[0].mxu0
    %v6021 = vadd.f32 0.0, %v6020
    %v6022 = vpop.f32.mrb[0].mxu0
    %v6023 = vpop.f32.mrb[0].mxu0
    %v6024 = vadd.f32 0.0, %v6023
    %v6025 = vpop.f32.mrb[0].mxu0
    %6026 = vmatprep.mubr.bf16.mxu0 %v5552
    %6027 = vmatmul.mubr.bf16.gmra.mrb[0].mxu0 %v5448
    %v6028 = vpop.f32.mrb[0].mxu0
    %v6029 = vadd.f32 0.0, %v6028
    %v6030 = vpop.f32.mrb[0].mxu0
    %v6031 = vpop.f32.mrb[0].mxu0
    %v6032 = vadd.f32 0.0, %v6031
    %v6033 = vpop.f32.mrb[0].mxu0
    %6034 = vmatprep.mubr.bf16.mxu0 %v5556
    %6035 = vmatmul.mubr.bf16.gmra.mrb[0].mxu0 %v5452
    %v6036 = vpop.f32.mrb[0].mxu0
    %v6037 = vadd.f32 0.0, %v6036
    %v6038 = vpop.f32.mrb[0].mxu0
    %v6039 = vpop.f32.mrb[0].mxu0
    %v6040 = vadd.f32 0.0, %v6039
    %v6041 = vpop.f32.mrb[0].mxu0
    %6042 = vmatprep.mubr.bf16.mxu0 %v5560
    %6043 = vmatmul.mubr.bf16.gmra.mrb[0].mxu0 %v5456
    %v6044 = vpop.f32.mrb[0].mxu0
    %v6045 = vadd.f32 0.0, %v6044
    %v6046 = vpop.f32.mrb[0].mxu0
    %v6047 = vpop.f32.mrb[0].mxu0
    %v6048 = vadd.f32 0.0, %v6047
    %v6049 = vpop.f32.mrb[0].mxu0
    %6050 = vmatprep.mubr.bf16.mxu0 %v5564
    %6051 = vmatmul.mubr.bf16.gmra.mrb[0].mxu0 %v5460
    %v6052 = vpop.f32.mrb[0].mxu0
    %v6053 = vadd.f32 0.0, %v6052
    %v6054 = vpop.f32.mrb[0].mxu0
    %v6055 = vpop.f32.mrb[0].mxu0
    %v6056 = vadd.f32 0.0, %v6055
    %v6057 = vpop.f32.mrb[0].mxu0
    %6058 = vmatprep.mubr.bf16.mxu0 %v5568
    %6059 = vmatmul.mubr.bf16.gmra.mrb[0].mxu0 %v5464
    %v6060 = vpop.f32.mrb[0].mxu0
    %v6061 = vadd.f32 0.0, %v6060
    %v6062 = vpop.f32.mrb[0].mxu0
    %v6063 = vpop.f32.mrb[0].mxu0
    %v6064 = vadd.f32 0.0, %v6063
    %v6065 = vpop.f32.mrb[0].mxu0
    %6066 = vmatprep.mubr.bf16.mxu0 %v5572
    %6067 = vmatmul.mubr.bf16.gmra.mrb[0].mxu0 %v5468
    %v6068 = vpop.f32.mrb[0].mxu0
    %v6069 = vadd.f32 0.0, %v6068
    %v6070 = vpop.f32.mrb[0].mxu0
    %v6071 = vpop.f32.mrb[0].mxu0
    %v6072 = vadd.f32 0.0, %v6071
    %v6073 = vpop.f32.mrb[0].mxu0
    %6074 = vmatprep.mubr.bf16.mxu0 %v5576
    %6075 = vmatmul.mubr.bf16.gmra.mrb[0].mxu0 %v5472
    %v6076 = vpop.f32.mrb[0].mxu0
    %v6077 = vadd.f32 0.0, %v6076
    %v6078 = vpop.f32.mrb[0].mxu0
    %v6079 = vpop.f32.mrb[0].mxu0
    %v6080 = vadd.f32 0.0, %v6079
    %v6081 = vpop.f32.mrb[0].mxu0
    %6082 = vmatprep.mubr.bf16.mxu0 %v5580
    %6083 = vmatmul.mubr.bf16.gmra.mrb[0].mxu0 %v5476
    %v6084 = vpop.f32.mrb[0].mxu0
    %v6085 = vadd.f32 0.0, %v6084
    %v6086 = vpop.f32.mrb[0].mxu0
    %v6087 = vpop.f32.mrb[0].mxu0
    %v6088 = vadd.f32 0.0, %v6087
    %v6089 = vpop.f32.mrb[0].mxu0
    %6090 = vmatprep.mubr.bf16.mxu0 %v5584
    %6091 = vmatmul.mubr.bf16.gmra.mrb[0].mxu0 %v5480
    %v6092 = vpop.f32.mrb[0].mxu0
    %v6093 = vadd.f32 0.0, %v6092
    %v6094 = vpop.f32.mrb[0].mxu0
    %v6095 = vpop.f32.mrb[0].mxu0
    %v6096 = vadd.f32 0.0, %v6095
    %v6097 = vpop.f32.mrb[0].mxu0
    %6098 = vmatprep.mubr.bf16.mxu0 %v5588
    %6099 = vmatmul.mubr.bf16.gmra.mrb[0].mxu0 %v5484
    %v6100 = vpop.f32.mrb[0].mxu0
    %v6101 = vadd.f32 0.0, %v6100
    %v6102 = vpop.f32.mrb[0].mxu0
    %v6103 = vpop.f32.mrb[0].mxu0
    %v6104 = vadd.f32 0.0, %v6103
    %v6105 = vpop.f32.mrb[0].mxu0
    %6106 = vmatprep.mubr.bf16.mxu0 %v5592
    %6107 = vmatmul.mubr.bf16.gmra.mrb[0].mxu0 %v5488
    %v6108 = vpop.f32.mrb[0].mxu0
    %v6109 = vadd.f32 0.0, %v6108
    %v6110 = vpop.f32.mrb[0].mxu0
    %v6111 = vpop.f32.mrb[0].mxu0
    %v6112 = vadd.f32 0.0, %v6111
    %v6113 = vpop.f32.mrb[0].mxu0
    %6114 = vmatprep.mubr.bf16.mxu0 %v5596
    %6115 = vmatmul.mubr.bf16.gmra.mrb[0].mxu0 %v5492
    %v6116 = vpop.f32.mrb[0].mxu0
    %v6117 = vadd.f32 0.0, %v6116
    %v6118 = vpop.f32.mrb[0].mxu0
    %v6119 = vpop.f32.mrb[0].mxu0
    %v6120 = vadd.f32 0.0, %v6119
    %v6121 = vpop.f32.mrb[0].mxu0
    %6122 = vmatprep.mubr.bf16.mxu0 %v5600
    %6123 = vmatmul.mubr.bf16.gmra.mrb[0].mxu0 %v5496
    %v6124 = vpop.f32.mrb[0].mxu0
    %v6125 = vadd.f32 0.0, %v6124
    %v6126 = vpop.f32.mrb[0].mxu0
    %v6127 = vpop.f32.mrb[0].mxu0
    %v6128 = vadd.f32 0.0, %v6127
    %v6129 = vpop.f32.mrb[0].mxu0
    %6130 = vmatprep.mubr.bf16.mxu0 %v5604
    %6131 = vmatmul.mubr.bf16.gmra.mrb[0].mxu0 %v5500
    %v6132 = vpop.f32.mrb[0].mxu0
    %v6133 = vadd.f32 0.0, %v6132
    %v6134 = vpop.f32.mrb[0].mxu0
    %v6135 = vpop.f32.mrb[0].mxu0
    %v6136 = vadd.f32 0.0, %v6135
    %v6137 = vpop.f32.mrb[0].mxu0
    %6138 = vmatprep.mubr.bf16.mxu0 %v5608
    %6139 = vmatmul.mubr.bf16.gmra.mrb[0].mxu0 %v5504
    %v6140 = vpop.f32.mrb[0].mxu0
    %v6141 = vadd.f32 0.0, %v6140
    %v6142 = vpop.f32.mrb[0].mxu0
    %v6143 = vpop.f32.mrb[0].mxu0
    %v6144 = vadd.f32 0.0, %v6143
    %v6145 = vpop.f32.mrb[0].mxu0
    %6146 = vdwg.mxu0
    %6147 = vmatprep.subr.bf16.mxu0 0
    %6148 = vmatpush1.bf16.msra.mxu0 %v5874
    %6149 = vmatprep.subr.bf16.mxu0 0
    %6150 = vmatpush1.bf16.msra.mxu0 %v5875
    %6151 = vmatprep.subr.bf16.mxu0 0
    %6152 = vmatpush1.bf16.msra.mxu0 %v5876
    %6153 = vmatprep.subr.bf16.mxu0 0
    %6154 = vmatpush1.bf16.msra.mxu0 %v5877
    %6155 = vmatprep.subr.bf16.mxu0 0
    %6156 = vmatpush1.bf16.msra.mxu0 %v5878
    %6157 = vmatprep.subr.bf16.mxu0 0
    %6158 = vmatpush1.bf16.msra.mxu0 %v5879
    %6159 = vmatprep.subr.bf16.mxu0 0
    %6160 = vmatpush1.bf16.msra.mxu0 %v5880
    %6161 = vmatprep.subr.bf16.mxu0 0
    %6162 = vmatpush1.bf16.msra.mxu0 %v5881
    %6163 = vmatprep.subr.bf16.mxu0 0
    %6164 = vmatpush1.bf16.msra.mxu0 0
    %6165 = vmatprep.subr.bf16.mxu0 0
    %6166 = vmatpush1.bf16.msra.mxu0 0
    %6167 = vmatprep.subr.bf16.mxu0 0
    %6168 = vmatpush1.bf16.msra.mxu0 0
    %6169 = vmatprep.subr.bf16.mxu0 0
    %6170 = vmatpush1.bf16.msra.mxu0 0
    %6171 = vmatprep.subr.bf16.mxu0 0
    %6172 = vmatpush1.bf16.msra.mxu0 0
    %6173 = vmatprep.subr.bf16.mxu0 0
    %6174 = vmatpush1.bf16.msra.mxu0 0
    %6175 = vmatprep.subr.bf16.mxu0 0
    %6176 = vmatpush1.bf16.msra.mxu0 0
    %6177 = vmatprep.subr.bf16.mxu0 0
    %6178 = vmatpush1.bf16.msra.mxu0 0
    %6179 = vmatprep.mubr.bf16.mxu0 0
    %6180 = vmatmul.mubr.bf16.gmra.mrb[0].mxu0 %v5612
    %v6181 = vpop.f32.mrb[0].mxu0
    %v6182 = vadd.f32 %v5941, %v6181
    %v6183 = vpop.f32.mrb[0].mxu0
    %v6184 = vpop.f32.mrb[0].mxu0
    %v6185 = vadd.f32 %v5944, %v6184
    %v6186 = vpop.f32.mrb[0].mxu0
    %6187 = vmatprep.mubr.bf16.mxu0 0
    %6188 = vmatmul.mubr.bf16.gmra.mrb[0].mxu0 %v5616
    %v6189 = vpop.f32.mrb[0].mxu0
    %v6190 = vadd.f32 %v5949, %v6189
    %v6191 = vpop.f32.mrb[0].mxu0
    %v6192 = vpop.f32.mrb[0].mxu0
    %v6193 = vadd.f32 %v5952, %v6192
    %v6194 = vpop.f32.mrb[0].mxu0
    %6195 = vmatprep.mubr.bf16.mxu0 0
    %6196 = vmatmul.mubr.bf16.gmra.mrb[0].mxu0 %v5620
    %v6197 = vpop.f32.mrb[0].mxu0
    %v6198 = vadd.f32 %v5957, %v6197
    %v6199 = vpop.f32.mrb[0].mxu0
    %v6200 = vpop.f32.mrb[0].mxu0
    %v6201 = vadd.f32 %v5960, %v6200
    %v6202 = vpop.f32.mrb[0].mxu0
    %6203 = vmatprep.mubr.bf16.mxu0 0
    %6204 = vmatmul.mubr.bf16.gmra.mrb[0].mxu0 %v5624
    %v6205 = vpop.f32.mrb[0].mxu0
    %v6206 = vadd.f32 %v5965, %v6205
    %v6207 = vpop.f32.mrb[0].mxu0
    %v6208 = vpop.f32.mrb[0].mxu0
    %v6209 = vadd.f32 %v5968, %v6208
    %v6210 = vpop.f32.mrb[0].mxu0
    %6211 = vmatprep.mubr.bf16.mxu0 0
    %6212 = vmatmul.mubr.bf16.gmra.mrb[0].mxu0 %v5628
    %v6213 = vpop.f32.mrb[0].mxu0
    %v6214 = vadd.f32 %v5973, %v6213
    %v6215 = vpop.f32.mrb[0].mxu0
    %v6216 = vpop.f32.mrb[0].mxu0
    %v6217 = vadd.f32 %v5976, %v6216
    %v6218 = vpop.f32.mrb[0].mxu0
    %6219 = vmatprep.mubr.bf16.mxu0 0
    %6220 = vmatmul.mubr.bf16.gmra.mrb[0].mxu0 %v5632
    %v6221 = vpop.f32.mrb[0].mxu0
    %v6222 = vadd.f32 %v5981, %v6221
    %v6223 = vpop.f32.mrb[0].mxu0
    %v6224 = vpop.f32.mrb[0].mxu0
    %v6225 = vadd.f32 %v5984, %v6224
    %v6226 = vpop.f32.mrb[0].mxu0
    %6227 = vmatprep.mubr.bf16.mxu0 0
    %6228 = vmatmul.mubr.bf16.gmra.mrb[0].mxu0 %v5636
    %v6229 = vpop.f32.mrb[0].mxu0
    %v6230 = vadd.f32 %v5989, %v6229
    %v6231 = vpop.f32.mrb[0].mxu0
    %v6232 = vpop.f32.mrb[0].mxu0
    %v6233 = vadd.f32 %v5992, %v6232
    %v6234 = vpop.f32.mrb[0].mxu0
    %6235 = vmatprep.mubr.bf16.mxu0 0
    %6236 = vmatmul.mubr.bf16.gmra.mrb[0].mxu0 %v5640
    %v6237 = vpop.f32.mrb[0].mxu0
    %v6238 = vadd.f32 %v5997, %v6237
    %v6239 = vpop.f32.mrb[0].mxu0
    %v6240 = vpop.f32.mrb[0].mxu0
    %v6241 = vadd.f32 %v6000, %v6240
    %v6242 = vpop.f32.mrb[0].mxu0
    %6243 = vmatprep.mubr.bf16.mxu0 0
    %6244 = vmatmul.mubr.bf16.gmra.mrb[0].mxu0 %v5644
    %v6245 = vpop.f32.mrb[0].mxu0
    %v6246 = vadd.f32 %v6005, %v6245
    %v6247 = vpop.f32.mrb[0].mxu0
    %v6248 = vpop.f32.mrb[0].mxu0
    %v6249 = vadd.f32 %v6008, %v6248
    %v6250 = vpop.f32.mrb[0].mxu0
    %6251 = vmatprep.mubr.bf16.mxu0 0
    %6252 = vmatmul.mubr.bf16.gmra.mrb[0].mxu0 %v5648
    %v6253 = vpop.f32.mrb[0].mxu0
    %v6254 = vadd.f32 %v6013, %v6253
    %v6255 = vpop.f32.mrb[0].mxu0
    %v6256 = vpop.f32.mrb[0].mxu0
    %v6257 = vadd.f32 %v6016, %v6256
    %v6258 = vpop.f32.mrb[0].mxu0
    %6259 = vmatprep.mubr.bf16.mxu0 0
    %6260 = vmatmul.mubr.bf16.gmra.mrb[0].mxu0 %v5652
    %v6261 = vpop.f32.mrb[0].mxu0
    %v6262 = vadd.f32 %v6021, %v6261
    %v6263 = vpop.f32.mrb[0].mxu0
    %v6264 = vpop.f32.mrb[0].mxu0
    %v6265 = vadd.f32 %v6024, %v6264
    %v6266 = vpop.f32.mrb[0].mxu0
    %6267 = vmatprep.mubr.bf16.mxu0 0
    %6268 = vmatmul.mubr.bf16.gmra.mrb[0].mxu0 %v5656
    %v6269 = vpop.f32.mrb[0].mxu0
    %v6270 = vadd.f32 %v6029, %v6269
    %v6271 = vpop.f32.mrb[0].mxu0
    %v6272 = vpop.f32.mrb[0].mxu0
    %v6273 = vadd.f32 %v6032, %v6272
    %v6274 = vpop.f32.mrb[0].mxu0
    %6275 = vmatprep.mubr.bf16.mxu0 0
    %6276 = vmatmul.mubr.bf16.gmra.mrb[0].mxu0 %v5660
    %v6277 = vpop.f32.mrb[0].mxu0
    %v6278 = vadd.f32 %v6037, %v6277
    %v6279 = vpop.f32.mrb[0].mxu0
    %v6280 = vpop.f32.mrb[0].mxu0
    %v6281 = vadd.f32 %v6040, %v6280
    %v6282 = vpop.f32.mrb[0].mxu0
    %6283 = vmatprep.mubr.bf16.mxu0 0
    %6284 = vmatmul.mubr.bf16.gmra.mrb[0].mxu0 %v5664
    %v6285 = vpop.f32.mrb[0].mxu0
    %v6286 = vadd.f32 %v6045, %v6285
    %v6287 = vpop.f32.mrb[0].mxu0
    %v6288 = vpop.f32.mrb[0].mxu0
    %v6289 = vadd.f32 %v6048, %v6288
    %v6290 = vpop.f32.mrb[0].mxu0
    %6291 = vmatprep.mubr.bf16.mxu0 0
    %6292 = vmatmul.mubr.bf16.gmra.mrb[0].mxu0 %v5668
    %v6293 = vpop.f32.mrb[0].mxu0
    %v6294 = vadd.f32 %v6053, %v6293
    %v6295 = vpop.f32.mrb[0].mxu0
    %v6296 = vpop.f32.mrb[0].mxu0
    %v6297 = vadd.f32 %v6056, %v6296
    %v6298 = vpop.f32.mrb[0].mxu0
    %6299 = vmatprep.mubr.bf16.mxu0 0
    %6300 = vmatmul.mubr.bf16.gmra.mrb[0].mxu0 %v5672
    %v6301 = vpop.f32.mrb[0].mxu0
    %v6302 = vadd.f32 %v6061, %v6301
    %v6303 = vpop.f32.mrb[0].mxu0
    %v6304 = vpop.f32.mrb[0].mxu0
    %v6305 = vadd.f32 %v6064, %v6304
    %v6306 = vpop.f32.mrb[0].mxu0
    %6307 = vmatprep.mubr.bf16.mxu0 0
    %6308 = vmatmul.mubr.bf16.gmra.mrb[0].mxu0 %v5676
    %v6309 = vpop.f32.mrb[0].mxu0
    %v6310 = vadd.f32 %v6069, %v6309
    %v6311 = vpop.f32.mrb[0].mxu0
    %v6312 = vpop.f32.mrb[0].mxu0
    %v6313 = vadd.f32 %v6072, %v6312
    %v6314 = vpop.f32.mrb[0].mxu0
    %6315 = vmatprep.mubr.bf16.mxu0 0
    %6316 = vmatmul.mubr.bf16.gmra.mrb[0].mxu0 %v5680
    %v6317 = vpop.f32.mrb[0].mxu0
    %v6318 = vadd.f32 %v6077, %v6317
    %v6319 = vpop.f32.mrb[0].mxu0
    %v6320 = vpop.f32.mrb[0].mxu0
    %v6321 = vadd.f32 %v6080, %v6320
    %v6322 = vpop.f32.mrb[0].mxu0
    %6323 = vmatprep.mubr.bf16.mxu0 0
    %6324 = vmatmul.mubr.bf16.gmra.mrb[0].mxu0 %v5684
    %v6325 = vpop.f32.mrb[0].mxu0
    %v6326 = vadd.f32 %v6085, %v6325
    %v6327 = vpop.f32.mrb[0].mxu0
    %v6328 = vpop.f32.mrb[0].mxu0
    %v6329 = vadd.f32 %v6088, %v6328
    %v6330 = vpop.f32.mrb[0].mxu0
    %6331 = vmatprep.mubr.bf16.mxu0 0
    %6332 = vmatmul.mubr.bf16.gmra.mrb[0].mxu0 %v5688
    %v6333 = vpop.f32.mrb[0].mxu0
    %v6334 = vadd.f32 %v6093, %v6333
    %v6335 = vpop.f32.mrb[0].mxu0
    %v6336 = vpop.f32.mrb[0].mxu0
    %v6337 = vadd.f32 %v6096, %v6336
    %v6338 = vpop.f32.mrb[0].mxu0
    %6339 = vmatprep.mubr.bf16.mxu0 0
    %6340 = vmatmul.mubr.bf16.gmra.mrb[0].mxu0 %v5692
    %v6341 = vpop.f32.mrb[0].mxu0
    %v6342 = vadd.f32 %v6101, %v6341
    %v6343 = vpop.f32.mrb[0].mxu0
    %v6344 = vpop.f32.mrb[0].mxu0
    %v6345 = vadd.f32 %v6104, %v6344
    %v6346 = vpop.f32.mrb[0].mxu0
    %6347 = vmatprep.mubr.bf16.mxu0 0
    %6348 = vmatmul.mubr.bf16.gmra.mrb[0].mxu0 %v5696
    %v6349 = vpop.f32.mrb[0].mxu0
    %v6350 = vadd.f32 %v6109, %v6349
    %v6351 = vpop.f32.mrb[0].mxu0
    %v6352 = vpop.f32.mrb[0].mxu0
    %v6353 = vadd.f32 %v6112, %v6352
    %v6354 = vpop.f32.mrb[0].mxu0
    %6355 = vmatprep.mubr.bf16.mxu0 0
    %6356 = vmatmul.mubr.bf16.gmra.mrb[0].mxu0 %v5700
    %v6357 = vpop.f32.mrb[0].mxu0
    %v6358 = vadd.f32 %v6117, %v6357
    %v6359 = vpop.f32.mrb[0].mxu0
    %v6360 = vpop.f32.mrb[0].mxu0
    %v6361 = vadd.f32 %v6120, %v6360
    %v6362 = vpop.f32.mrb[0].mxu0
    %6363 = vmatprep.mubr.bf16.mxu0 0
    %6364 = vmatmul.mubr.bf16.gmra.mrb[0].mxu0 %v5704
    %v6365 = vpop.f32.mrb[0].mxu0
    %v6366 = vadd.f32 %v6125, %v6365
    %v6367 = vpop.f32.mrb[0].mxu0
    %v6368 = vpop.f32.mrb[0].mxu0
    %v6369 = vadd.f32 %v6128, %v6368
    %v6370 = vpop.f32.mrb[0].mxu0
    %6371 = vmatprep.mubr.bf16.mxu0 0
    %6372 = vmatmul.mubr.bf16.gmra.mrb[0].mxu0 %v5708
    %v6373 = vpop.f32.mrb[0].mxu0
    %v6374 = vadd.f32 %v6133, %v6373
    %v6375 = vpop.f32.mrb[0].mxu0
    %v6376 = vpop.f32.mrb[0].mxu0
    %v6377 = vadd.f32 %v6136, %v6376
    %v6378 = vpop.f32.mrb[0].mxu0
    %6379 = vmatprep.mubr.bf16.mxu0 0
    %6380 = vmatmul.mubr.bf16.gmra.mrb[0].mxu0 %v5712
    %v6381 = vpop.f32.mrb[0].mxu0
    %v6382 = vadd.f32 %v6141, %v6381
    %v6383 = vpop.f32.mrb[0].mxu0
    %v6384 = vpop.f32.mrb[0].mxu0
    %v6385 = vadd.f32 %v6144, %v6384
    %v6386 = vpop.f32.mrb[0].mxu0
    %6387 = vdwg.mxu0
    %v6388 = vld [vmem:[%s4] sm:$0x1]
    %v6389 = vlaneseq
    %v6390 = vshrl.u32 %v6389, 7
    %v6391 = vsub.s32 0, %v6390
    %v6392 = vrot.slane %v6388, %v6391
    %v6393 = vadd.f32 %v6182, %v6392
    %v6394 = vadd.f32 %v6185, %v6392
    %v6395 = vadd.f32 %v6190, %v6392
    %v6396 = vadd.f32 %v6193, %v6392
    %v6397 = vadd.f32 %v6198, %v6392
    %v6398 = vadd.f32 %v6201, %v6392
    %v6399 = vadd.f32 %v6206, %v6392
    %v6400 = vadd.f32 %v6209, %v6392
    %v6401 = vadd.f32 %v6214, %v6392
    %v6402 = vadd.f32 %v6217, %v6392
    %v6403 = vadd.f32 %v6222, %v6392
    %v6404 = vadd.f32 %v6225, %v6392
    %v6405 = vadd.f32 %v6230, %v6392
    %v6406 = vadd.f32 %v6233, %v6392
    %v6407 = vadd.f32 %v6238, %v6392
    %v6408 = vadd.f32 %v6241, %v6392
    %v6409 = vadd.f32 %v6246, %v6392
    %v6410 = vadd.f32 %v6249, %v6392
    %v6411 = vadd.f32 %v6254, %v6392
    %v6412 = vadd.f32 %v6257, %v6392
    %v6413 = vadd.f32 %v6262, %v6392
    %v6414 = vadd.f32 %v6265, %v6392
    %v6415 = vadd.f32 %v6270, %v6392
    %v6416 = vadd.f32 %v6273, %v6392
    %v6417 = vadd.f32 %v6278, %v6392
    %v6418 = vadd.f32 %v6281, %v6392
    %v6419 = vadd.f32 %v6286, %v6392
    %v6420 = vadd.f32 %v6289, %v6392
    %v6421 = vadd.f32 %v6294, %v6392
    %v6422 = vadd.f32 %v6297, %v6392
    %v6423 = vadd.f32 %v6302, %v6392
    %v6424 = vadd.f32 %v6305, %v6392
    %v6425 = vadd.f32 %v6310, %v6392
    %v6426 = vadd.f32 %v6313, %v6392
    %v6427 = vadd.f32 %v6318, %v6392
    %v6428 = vadd.f32 %v6321, %v6392
    %v6429 = vadd.f32 %v6326, %v6392
    %v6430 = vadd.f32 %v6329, %v6392
    %v6431 = vadd.f32 %v6334, %v6392
    %v6432 = vadd.f32 %v6337, %v6392
    %v6433 = vadd.f32 %v6342, %v6392
    %v6434 = vadd.f32 %v6345, %v6392
    %v6435 = vadd.f32 %v6350, %v6392
    %v6436 = vadd.f32 %v6353, %v6392
    %v6437 = vadd.f32 %v6358, %v6392
    %v6438 = vadd.f32 %v6361, %v6392
    %v6439 = vadd.f32 %v6366, %v6392
    %v6440 = vadd.f32 %v6369, %v6392
    %v6441 = vadd.f32 %v6374, %v6392
    %v6442 = vadd.f32 %v6377, %v6392
    %v6443 = vadd.f32 %v6382, %v6392
    %v6444 = vadd.f32 %v6385, %v6392
    %v6445 = vld [vmem:[%s4 + $0x1] sm:$0x1]
    %v6446 = vld [vmem:[%s4 + $0x2] sm:$0x1]
    %v6447 = vmul.f32 %v6393, %v1297
    %v6448 = vmul.f32 %v6394, %v1298
    %v6449 = vmul.f32 %v6395, %v1297
    %v6450 = vmul.f32 %v6396, %v1298
    %v6451 = vmul.f32 %v6397, %v1297
    %v6452 = vmul.f32 %v6398, %v1298
    %v6453 = vmul.f32 %v6399, %v1297
    %v6454 = vmul.f32 %v6400, %v1298
    %v6455 = vmul.f32 %v6401, %v1297
    %v6456 = vmul.f32 %v6402, %v1298
    %v6457 = vmul.f32 %v6403, %v1297
    %v6458 = vmul.f32 %v6404, %v1298
    %v6459 = vmul.f32 %v6405, %v1297
    %v6460 = vmul.f32 %v6406, %v1298
    %v6461 = vmul.f32 %v6407, %v1297
    %v6462 = vmul.f32 %v6408, %v1298
    %v6463 = vmul.f32 %v6409, %v1297
    %v6464 = vmul.f32 %v6410, %v1298
    %v6465 = vmul.f32 %v6411, %v1297
    %v6466 = vmul.f32 %v6412, %v1298
    %v6467 = vmul.f32 %v6413, %v1297
    %v6468 = vmul.f32 %v6414, %v1298
    %v6469 = vmul.f32 %v6415, %v1297
    %v6470 = vmul.f32 %v6416, %v1298
    %v6471 = vmul.f32 %v6417, %v1297
    %v6472 = vmul.f32 %v6418, %v1298
    %v6473 = vmul.f32 %v6419, %v1297
    %v6474 = vmul.f32 %v6420, %v1298
    %v6475 = vmul.f32 %v6421, %v1297
    %v6476 = vmul.f32 %v6422, %v1298
    %v6477 = vmul.f32 %v6423, %v1297
    %v6478 = vmul.f32 %v6424, %v1298
    %v6479 = vmul.f32 %v6425, %v1297
    %v6480 = vmul.f32 %v6426, %v1298
    %v6481 = vmul.f32 %v6427, %v1297
    %v6482 = vmul.f32 %v6428, %v1298
    %v6483 = vmul.f32 %v6429, %v1297
    %v6484 = vmul.f32 %v6430, %v1298
    %v6485 = vmul.f32 %v6431, %v1297
    %v6486 = vmul.f32 %v6432, %v1298
    %v6487 = vmul.f32 %v6433, %v1297
    %v6488 = vmul.f32 %v6434, %v1298
    %v6489 = vmul.f32 %v6435, %v1297
    %v6490 = vmul.f32 %v6436, %v1298
    %v6491 = vmul.f32 %v6437, %v1297
    %v6492 = vmul.f32 %v6438, %v1298
    %v6493 = vmul.f32 %v6439, %v1297
    %v6494 = vmul.f32 %v6440, %v1298
    %v6495 = vmul.f32 %v6441, %v1297
    %v6496 = vmul.f32 %v6442, %v1298
    %v6497 = vmul.f32 %v6443, %v1297
    %v6498 = vmul.f32 %v6444, %v1298
    %v6499 = vadd.f32 %v6447, %v6473
    %v6500 = vadd.f32 %v6448, %v6474
    %v6501 = vadd.f32 %v6449, %v6475
    %v6502 = vadd.f32 %v6450, %v6476
    %v6503 = vadd.f32 %v6451, %v6477
    %v6504 = vadd.f32 %v6452, %v6478
    %v6505 = vadd.f32 %v6453, %v6479
    %v6506 = vadd.f32 %v6454, %v6480
    %v6507 = vadd.f32 %v6455, %v6481
    %v6508 = vadd.f32 %v6456, %v6482
    %v6509 = vadd.f32 %v6457, %v6483
    %v6510 = vadd.f32 %v6458, %v6484
    %v6511 = vadd.f32 %v6459, %v6485
    %v6512 = vadd.f32 %v6460, %v6486
    %v6513 = vadd.f32 %v6461, %v6487
    %v6514 = vadd.f32 %v6462, %v6488
    %v6515 = vadd.f32 %v6463, %v6489
    %v6516 = vadd.f32 %v6464, %v6490
    %v6517 = vadd.f32 %v6465, %v6491
    %v6518 = vadd.f32 %v6466, %v6492
    %v6519 = vadd.f32 %v6467, %v6493
    %v6520 = vadd.f32 %v6468, %v6494
    %v6521 = vadd.f32 %v6469, %v6495
    %v6522 = vadd.f32 %v6470, %v6496
    %v6523 = vadd.f32 %v6471, %v6497
    %v6524 = vadd.f32 %v6472, %v6498
    %v6525 = vadd.f32 %v6499, %v6501
    %v6526 = vadd.f32 %v6525, %v6503
    %v6527 = vadd.f32 %v6526, %v6505
    %v6528 = vadd.f32 %v6527, %v6507
    %v6529 = vadd.f32 %v6528, %v6509
    %v6530 = vadd.f32 %v6529, %v6511
    %v6531 = vadd.f32 %v6530, %v6513
    %v6532 = vadd.f32 %v6531, %v6515
    %v6533 = vadd.f32 %v6532, %v6517
    %v6534 = vadd.f32 %v6533, %v6519
    %v6535 = vadd.f32 %v6534, %v6521
    %v6536 = vadd.f32 %v6535, %v6523
    %v6537 = vadd.f32 %v6500, %v6502
    %v6538 = vadd.f32 %v6537, %v6504
    %v6539 = vadd.f32 %v6538, %v6506
    %v6540 = vadd.f32 %v6539, %v6508
    %v6541 = vadd.f32 %v6540, %v6510
    %v6542 = vadd.f32 %v6541, %v6512
    %v6543 = vadd.f32 %v6542, %v6514
    %v6544 = vadd.f32 %v6543, %v6516
    %v6545 = vadd.f32 %v6544, %v6518
    %v6546 = vadd.f32 %v6545, %v6520
    %v6547 = vadd.f32 %v6546, %v6522
    %v6548 = vadd.f32 %v6547, %v6524
    %v6549 = vadd.f32 %v6536, %v6548
    %v6550 = vrot.slane %v6549, 4
    %v6551 = vadd.f32 %v6549, %v6550
    %v6552 = vrot.slane %v6551, 2
    %v6553 = vadd.f32 %v6551, %v6552
    %v6554 = vrot.slane %v6553, 1
    %v6555 = vadd.f32 %v6553, %v6554
    %v6556 = vmul.f32 %v6447, %v6447
    %v6557 = vmul.f32 %v6448, %v6448
    %v6558 = vmul.f32 %v6449, %v6449
    %v6559 = vmul.f32 %v6450, %v6450
    %v6560 = vmul.f32 %v6451, %v6451
    %v6561 = vmul.f32 %v6452, %v6452
    %v6562 = vmul.f32 %v6453, %v6453
    %v6563 = vmul.f32 %v6454, %v6454
    %v6564 = vmul.f32 %v6455, %v6455
    %v6565 = vmul.f32 %v6456, %v6456
    %v6566 = vmul.f32 %v6457, %v6457
    %v6567 = vmul.f32 %v6458, %v6458
    %v6568 = vmul.f32 %v6459, %v6459
    %v6569 = vmul.f32 %v6460, %v6460
    %v6570 = vmul.f32 %v6461, %v6461
    %v6571 = vmul.f32 %v6462, %v6462
    %v6572 = vmul.f32 %v6463, %v6463
    %v6573 = vmul.f32 %v6464, %v6464
    %v6574 = vmul.f32 %v6465, %v6465
    %v6575 = vmul.f32 %v6466, %v6466
    %v6576 = vmul.f32 %v6467, %v6467
    %v6577 = vmul.f32 %v6468, %v6468
    %v6578 = vmul.f32 %v6469, %v6469
    %v6579 = vmul.f32 %v6470, %v6470
    %v6580 = vmul.f32 %v6471, %v6471
    %v6581 = vmul.f32 %v6472, %v6472
    %v6582 = vmul.f32 %v6473, %v6473
    %v6583 = vmul.f32 %v6474, %v6474
    %v6584 = vmul.f32 %v6475, %v6475
    %v6585 = vmul.f32 %v6476, %v6476
    %v6586 = vmul.f32 %v6477, %v6477
    %v6587 = vmul.f32 %v6478, %v6478
    %v6588 = vmul.f32 %v6479, %v6479
    %v6589 = vmul.f32 %v6480, %v6480
    %v6590 = vmul.f32 %v6481, %v6481
    %v6591 = vmul.f32 %v6482, %v6482
    %v6592 = vmul.f32 %v6483, %v6483
    %v6593 = vmul.f32 %v6484, %v6484
    %v6594 = vmul.f32 %v6485, %v6485
    %v6595 = vmul.f32 %v6486, %v6486
    %v6596 = vmul.f32 %v6487, %v6487
    %v6597 = vmul.f32 %v6488, %v6488
    %v6598 = vmul.f32 %v6489, %v6489
    %v6599 = vmul.f32 %v6490, %v6490
    %v6600 = vmul.f32 %v6491, %v6491
    %v6601 = vmul.f32 %v6492, %v6492
    %v6602 = vmul.f32 %v6493, %v6493
    %v6603 = vmul.f32 %v6494, %v6494
    %v6604 = vmul.f32 %v6495, %v6495
    %v6605 = vmul.f32 %v6496, %v6496
    %v6606 = vmul.f32 %v6497, %v6497
    %v6607 = vmul.f32 %v6498, %v6498
    %v6608 = vadd.f32 %v6556, %v6582
    %v6609 = vadd.f32 %v6557, %v6583
    %v6610 = vadd.f32 %v6558, %v6584
    %v6611 = vadd.f32 %v6559, %v6585
    %v6612 = vadd.f32 %v6560, %v6586
    %v6613 = vadd.f32 %v6561, %v6587
    %v6614 = vadd.f32 %v6562, %v6588
    %v6615 = vadd.f32 %v6563, %v6589
    %v6616 = vadd.f32 %v6564, %v6590
    %v6617 = vadd.f32 %v6565, %v6591
    %v6618 = vadd.f32 %v6566, %v6592
    %v6619 = vadd.f32 %v6567, %v6593
    %v6620 = vadd.f32 %v6568, %v6594
    %v6621 = vadd.f32 %v6569, %v6595
    %v6622 = vadd.f32 %v6570, %v6596
    %v6623 = vadd.f32 %v6571, %v6597
    %v6624 = vadd.f32 %v6572, %v6598
    %v6625 = vadd.f32 %v6573, %v6599
    %v6626 = vadd.f32 %v6574, %v6600
    %v6627 = vadd.f32 %v6575, %v6601
    %v6628 = vadd.f32 %v6576, %v6602
    %v6629 = vadd.f32 %v6577, %v6603
    %v6630 = vadd.f32 %v6578, %v6604
    %v6631 = vadd.f32 %v6579, %v6605
    %v6632 = vadd.f32 %v6580, %v6606
    %v6633 = vadd.f32 %v6581, %v6607
    %v6634 = vadd.f32 %v6608, %v6610
    %v6635 = vadd.f32 %v6634, %v6612
    %v6636 = vadd.f32 %v6635, %v6614
    %v6637 = vadd.f32 %v6636, %v6616
    %v6638 = vadd.f32 %v6637, %v6618
    %v6639 = vadd.f32 %v6638, %v6620
    %v6640 = vadd.f32 %v6639, %v6622
    %v6641 = vadd.f32 %v6640, %v6624
    %v6642 = vadd.f32 %v6641, %v6626
    %v6643 = vadd.f32 %v6642, %v6628
    %v6644 = vadd.f32 %v6643, %v6630
    %v6645 = vadd.f32 %v6644, %v6632
    %v6646 = vadd.f32 %v6609, %v6611
    %v6647 = vadd.f32 %v6646, %v6613
    %v6648 = vadd.f32 %v6647, %v6615
    %v6649 = vadd.f32 %v6648, %v6617
    %v6650 = vadd.f32 %v6649, %v6619
    %v6651 = vadd.f32 %v6650, %v6621
    %v6652 = vadd.f32 %v6651, %v6623
    %v6653 = vadd.f32 %v6652, %v6625
    %v6654 = vadd.f32 %v6653, %v6627
    %v6655 = vadd.f32 %v6654, %v6629
    %v6656 = vadd.f32 %v6655, %v6631
    %v6657 = vadd.f32 %v6656, %v6633
    %v6658 = vadd.f32 %v6645, %v6657
    %v6659 = vrot.slane %v6658, 4
    %v6660 = vadd.f32 %v6658, %v6659
    %v6661 = vrot.slane %v6660, 2
    %v6662 = vadd.f32 %v6660, %v6661
    %v6663 = vrot.slane %v6662, 1
    %v6664 = vadd.f32 %v6662, %v6663
    %v6665 = vrcp.pop 338.0
    %v6666 = vmul.f32 %v6555, %v6665
    %v6667 = vmul.f32 %v6664, %v6665
    %v6668 = vmul.f32 %v6666, %v6666
    %v6669 = vsub.f32 %v6667, %v6668
    %v6670 = vmax.f32 %v6669, 0.0
    %v6671 = vadd.f32 %v6670, 1e-05
    %v6672 = vrsqrt.pop %v6671
    %v6673 = vmul.f32 %v6672, %v6445
    %v6674 = vmul.f32 %v6666, %v6673
    %v6675 = vsub.f32 %v6446, %v6674
    %v6676 = vlaneseq
    %v6677 = vshrl.u32 %v6676, 7
    %v6678 = vsub.s32 0, %v6677
    %v6679 = vrot.slane %v6673, %v6678
    %v6680 = vmul.f32 %v6393, %v6679
    %v6681 = vmul.f32 %v6394, %v6679
    %v6682 = vmul.f32 %v6395, %v6679
    %v6683 = vmul.f32 %v6396, %v6679
    %v6684 = vmul.f32 %v6397, %v6679
    %v6685 = vmul.f32 %v6398, %v6679
    %v6686 = vmul.f32 %v6399, %v6679
    %v6687 = vmul.f32 %v6400, %v6679
    %v6688 = vmul.f32 %v6401, %v6679
    %v6689 = vmul.f32 %v6402, %v6679
    %v6690 = vmul.f32 %v6403, %v6679
    %v6691 = vmul.f32 %v6404, %v6679
    %v6692 = vmul.f32 %v6405, %v6679
    %v6693 = vmul.f32 %v6406, %v6679
    %v6694 = vmul.f32 %v6407, %v6679
    %v6695 = vmul.f32 %v6408, %v6679
    %v6696 = vmul.f32 %v6409, %v6679
    %v6697 = vmul.f32 %v6410, %v6679
    %v6698 = vmul.f32 %v6411, %v6679
    %v6699 = vmul.f32 %v6412, %v6679
    %v6700 = vmul.f32 %v6413, %v6679
    %v6701 = vmul.f32 %v6414, %v6679
    %v6702 = vmul.f32 %v6415, %v6679
    %v6703 = vmul.f32 %v6416, %v6679
    %v6704 = vmul.f32 %v6417, %v6679
    %v6705 = vmul.f32 %v6418, %v6679
    %v6706 = vmul.f32 %v6419, %v6679
    %v6707 = vmul.f32 %v6420, %v6679
    %v6708 = vmul.f32 %v6421, %v6679
    %v6709 = vmul.f32 %v6422, %v6679
    %v6710 = vmul.f32 %v6423, %v6679
    %v6711 = vmul.f32 %v6424, %v6679
    %v6712 = vmul.f32 %v6425, %v6679
    %v6713 = vmul.f32 %v6426, %v6679
    %v6714 = vmul.f32 %v6427, %v6679
    %v6715 = vmul.f32 %v6428, %v6679
    %v6716 = vmul.f32 %v6429, %v6679
    %v6717 = vmul.f32 %v6430, %v6679
    %v6718 = vmul.f32 %v6431, %v6679
    %v6719 = vmul.f32 %v6432, %v6679
    %v6720 = vmul.f32 %v6433, %v6679
    %v6721 = vmul.f32 %v6434, %v6679
    %v6722 = vmul.f32 %v6435, %v6679
    %v6723 = vmul.f32 %v6436, %v6679
    %v6724 = vmul.f32 %v6437, %v6679
    %v6725 = vmul.f32 %v6438, %v6679
    %v6726 = vmul.f32 %v6439, %v6679
    %v6727 = vmul.f32 %v6440, %v6679
    %v6728 = vmul.f32 %v6441, %v6679
    %v6729 = vmul.f32 %v6442, %v6679
    %v6730 = vmul.f32 %v6443, %v6679
    %v6731 = vmul.f32 %v6444, %v6679
    %v6732 = vlaneseq
    %v6733 = vshrl.u32 %v6732, 7
    %v6734 = vsub.s32 0, %v6733
    %v6735 = vrot.slane %v6675, %v6734
    %v6736 = vadd.f32 %v6680, %v6735
    %v6737 = vadd.f32 %v6681, %v6735
    %v6738 = vadd.f32 %v6682, %v6735
    %v6739 = vadd.f32 %v6683, %v6735
    %v6740 = vadd.f32 %v6684, %v6735
    %v6741 = vadd.f32 %v6685, %v6735
    %v6742 = vadd.f32 %v6686, %v6735
    %v6743 = vadd.f32 %v6687, %v6735
    %v6744 = vadd.f32 %v6688, %v6735
    %v6745 = vadd.f32 %v6689, %v6735
    %v6746 = vadd.f32 %v6690, %v6735
    %v6747 = vadd.f32 %v6691, %v6735
    %v6748 = vadd.f32 %v6692, %v6735
    %v6749 = vadd.f32 %v6693, %v6735
    %v6750 = vadd.f32 %v6694, %v6735
    %v6751 = vadd.f32 %v6695, %v6735
    %v6752 = vadd.f32 %v6696, %v6735
    %v6753 = vadd.f32 %v6697, %v6735
    %v6754 = vadd.f32 %v6698, %v6735
    %v6755 = vadd.f32 %v6699, %v6735
    %v6756 = vadd.f32 %v6700, %v6735
    %v6757 = vadd.f32 %v6701, %v6735
    %v6758 = vadd.f32 %v6702, %v6735
    %v6759 = vadd.f32 %v6703, %v6735
    %v6760 = vadd.f32 %v6704, %v6735
    %v6761 = vadd.f32 %v6705, %v6735
    %v6762 = vadd.f32 %v6706, %v6735
    %v6763 = vadd.f32 %v6707, %v6735
    %v6764 = vadd.f32 %v6708, %v6735
    %v6765 = vadd.f32 %v6709, %v6735
    %v6766 = vadd.f32 %v6710, %v6735
    %v6767 = vadd.f32 %v6711, %v6735
    %v6768 = vadd.f32 %v6712, %v6735
    %v6769 = vadd.f32 %v6713, %v6735
    %v6770 = vadd.f32 %v6714, %v6735
    %v6771 = vadd.f32 %v6715, %v6735
    %v6772 = vadd.f32 %v6716, %v6735
    %v6773 = vadd.f32 %v6717, %v6735
    %v6774 = vadd.f32 %v6718, %v6735
    %v6775 = vadd.f32 %v6719, %v6735
    %v6776 = vadd.f32 %v6720, %v6735
    %v6777 = vadd.f32 %v6721, %v6735
    %v6778 = vadd.f32 %v6722, %v6735
    %v6779 = vadd.f32 %v6723, %v6735
    %v6780 = vadd.f32 %v6724, %v6735
    %v6781 = vadd.f32 %v6725, %v6735
    %v6782 = vadd.f32 %v6726, %v6735
    %v6783 = vadd.f32 %v6727, %v6735
    %v6784 = vadd.f32 %v6728, %v6735
    %v6785 = vadd.f32 %v6729, %v6735
    %v6786 = vadd.f32 %v6730, %v6735
    %v6787 = vadd.f32 %v6731, %v6735
    %v6788 = vmax.f32 %v6736, 0.0
    %v6789 = vmax.f32 %v6737, 0.0
    %v6790 = vmax.f32 %v6738, 0.0
    %v6791 = vmax.f32 %v6739, 0.0
    %v6792 = vmax.f32 %v6740, 0.0
    %v6793 = vmax.f32 %v6741, 0.0
    %v6794 = vmax.f32 %v6742, 0.0
    %v6795 = vmax.f32 %v6743, 0.0
    %v6796 = vmax.f32 %v6744, 0.0
    %v6797 = vmax.f32 %v6745, 0.0
    %v6798 = vmax.f32 %v6746, 0.0
    %v6799 = vmax.f32 %v6747, 0.0
    %v6800 = vmax.f32 %v6748, 0.0
    %v6801 = vmax.f32 %v6749, 0.0
    %v6802 = vmax.f32 %v6750, 0.0
    %v6803 = vmax.f32 %v6751, 0.0
    %v6804 = vmax.f32 %v6752, 0.0
    %v6805 = vmax.f32 %v6753, 0.0
    %v6806 = vmax.f32 %v6754, 0.0
    %v6807 = vmax.f32 %v6755, 0.0
    %v6808 = vmax.f32 %v6756, 0.0
    %v6809 = vmax.f32 %v6757, 0.0
    %v6810 = vmax.f32 %v6758, 0.0
    %v6811 = vmax.f32 %v6759, 0.0
    %v6812 = vmax.f32 %v6760, 0.0
    %v6813 = vmax.f32 %v6761, 0.0
    %v6814 = vmax.f32 %v6762, 0.0
    %v6815 = vmax.f32 %v6763, 0.0
    %v6816 = vmax.f32 %v6764, 0.0
    %v6817 = vmax.f32 %v6765, 0.0
    %v6818 = vmax.f32 %v6766, 0.0
    %v6819 = vmax.f32 %v6767, 0.0
    %v6820 = vmax.f32 %v6768, 0.0
    %v6821 = vmax.f32 %v6769, 0.0
    %v6822 = vmax.f32 %v6770, 0.0
    %v6823 = vmax.f32 %v6771, 0.0
    %v6824 = vmax.f32 %v6772, 0.0
    %v6825 = vmax.f32 %v6773, 0.0
    %v6826 = vmax.f32 %v6774, 0.0
    %v6827 = vmax.f32 %v6775, 0.0
    %v6828 = vmax.f32 %v6776, 0.0
    %v6829 = vmax.f32 %v6777, 0.0
    %v6830 = vmax.f32 %v6778, 0.0
    %v6831 = vmax.f32 %v6779, 0.0
    %v6832 = vmax.f32 %v6780, 0.0
    %v6833 = vmax.f32 %v6781, 0.0
    %v6834 = vmax.f32 %v6782, 0.0
    %v6835 = vmax.f32 %v6783, 0.0
    %v6836 = vmax.f32 %v6784, 0.0
    %v6837 = vmax.f32 %v6785, 0.0
    %v6838 = vmax.f32 %v6786, 0.0
    %v6839 = vmax.f32 %v6787, 0.0
    %v6840 = vmul.f32 %v6788, %v1297
    %v6841 = vmul.f32 %v6789, %v1298
    %v6842 = vmul.f32 %v6790, %v1297
    %v6843 = vmul.f32 %v6791, %v1298
    %v6844 = vmul.f32 %v6792, %v1297
    %v6845 = vmul.f32 %v6793, %v1298
    %v6846 = vmul.f32 %v6794, %v1297
    %v6847 = vmul.f32 %v6795, %v1298
    %v6848 = vmul.f32 %v6796, %v1297
    %v6849 = vmul.f32 %v6797, %v1298
    %v6850 = vmul.f32 %v6798, %v1297
    %v6851 = vmul.f32 %v6799, %v1298
    %v6852 = vmul.f32 %v6800, %v1297
    %v6853 = vmul.f32 %v6801, %v1298
    %v6854 = vmul.f32 %v6802, %v1297
    %v6855 = vmul.f32 %v6803, %v1298
    %v6856 = vmul.f32 %v6804, %v1297
    %v6857 = vmul.f32 %v6805, %v1298
    %v6858 = vmul.f32 %v6806, %v1297
    %v6859 = vmul.f32 %v6807, %v1298
    %v6860 = vmul.f32 %v6808, %v1297
    %v6861 = vmul.f32 %v6809, %v1298
    %v6862 = vmul.f32 %v6810, %v1297
    %v6863 = vmul.f32 %v6811, %v1298
    %v6864 = vmul.f32 %v6812, %v1297
    %v6865 = vmul.f32 %v6813, %v1298
    %v6866 = vmul.f32 %v6814, %v1297
    %v6867 = vmul.f32 %v6815, %v1298
    %v6868 = vmul.f32 %v6816, %v1297
    %v6869 = vmul.f32 %v6817, %v1298
    %v6870 = vmul.f32 %v6818, %v1297
    %v6871 = vmul.f32 %v6819, %v1298
    %v6872 = vmul.f32 %v6820, %v1297
    %v6873 = vmul.f32 %v6821, %v1298
    %v6874 = vmul.f32 %v6822, %v1297
    %v6875 = vmul.f32 %v6823, %v1298
    %v6876 = vmul.f32 %v6824, %v1297
    %v6877 = vmul.f32 %v6825, %v1298
    %v6878 = vmul.f32 %v6826, %v1297
    %v6879 = vmul.f32 %v6827, %v1298
    %v6880 = vmul.f32 %v6828, %v1297
    %v6881 = vmul.f32 %v6829, %v1298
    %v6882 = vmul.f32 %v6830, %v1297
    %v6883 = vmul.f32 %v6831, %v1298
    %v6884 = vmul.f32 %v6832, %v1297
    %v6885 = vmul.f32 %v6833, %v1298
    %v6886 = vmul.f32 %v6834, %v1297
    %v6887 = vmul.f32 %v6835, %v1298
    %v6888 = vmul.f32 %v6836, %v1297
    %v6889 = vmul.f32 %v6837, %v1298
    %v6890 = vmul.f32 %v6838, %v1297
    %v6891 = vmul.f32 %v6839, %v1298
    %v6892 = vpack.c.bf16 %v6841, %v6840
    %v6893 = vpack.c.bf16 %v6843, %v6842
    %v6894 = vpack.c.bf16 %v6845, %v6844
    %v6895 = vpack.c.bf16 %v6847, %v6846
    %v6896 = vpack.c.bf16 %v6849, %v6848
    %v6897 = vpack.c.bf16 %v6851, %v6850
    %v6898 = vpack.c.bf16 %v6853, %v6852
    %v6899 = vpack.c.bf16 %v6855, %v6854
    %v6900 = vpack.c.bf16 %v6857, %v6856
    %v6901 = vpack.c.bf16 %v6859, %v6858
    %v6902 = vpack.c.bf16 %v6861, %v6860
    %v6903 = vpack.c.bf16 %v6863, %v6862
    %v6904 = vpack.c.bf16 %v6865, %v6864
    %v6905 = vpack.c.bf16 %v6867, %v6866
    %v6906 = vpack.c.bf16 %v6869, %v6868
    %v6907 = vpack.c.bf16 %v6871, %v6870
    %v6908 = vpack.c.bf16 %v6873, %v6872
    %v6909 = vpack.c.bf16 %v6875, %v6874
    %v6910 = vpack.c.bf16 %v6877, %v6876
    %v6911 = vpack.c.bf16 %v6879, %v6878
    %v6912 = vpack.c.bf16 %v6881, %v6880
    %v6913 = vpack.c.bf16 %v6883, %v6882
    %v6914 = vpack.c.bf16 %v6885, %v6884
    %v6915 = vpack.c.bf16 %v6887, %v6886
    %v6916 = vpack.c.bf16 %v6889, %v6888
    %v6917 = vpack.c.bf16 %v6891, %v6890
    %s6918 = scalar_lea.vmem [#allocation3], 8
    %6919 = vst [vmem:[%s6918] sm:$0xff] %v6892
    %6920 = vst [vmem:[%s6918 + $0x8] sm:$0xff] %v6893
    %6921 = vst [vmem:[%s6918 + $0x10] sm:$0xff] %v6894
    %6922 = vst [vmem:[%s6918 + $0x18] sm:$0xff] %v6895
    %6923 = vst [vmem:[%s6918 + $0x20] sm:$0xff] %v6896
    %6924 = vst [vmem:[%s6918 + $0x28] sm:$0xff] %v6897
    %6925 = vst [vmem:[%s6918 + $0x30] sm:$0xff] %v6898
    %6926 = vst [vmem:[%s6918 + $0x38] sm:$0xff] %v6899
    %6927 = vst [vmem:[%s6918 + $0x40] sm:$0xff] %v6900
    %6928 = vst [vmem:[%s6918 + $0x48] sm:$0xff] %v6901
    %6929 = vst [vmem:[%s6918 + $0x50] sm:$0xff] %v6902
    %6930 = vst [vmem:[%s6918 + $0x58] sm:$0xff] %v6903
    %6931 = vst [vmem:[%s6918 + $0x60] sm:$0xff] %v6904
    %6932 = vst [vmem:[%s6918 + $0x78] sm:$0xff] %v6905
    %6933 = vst [vmem:[%s6918 + $0x80] sm:$0xff] %v6906
    %6934 = vst [vmem:[%s6918 + $0x88] sm:$0xff] %v6907
    %6935 = vst [vmem:[%s6918 + $0x90] sm:$0xff] %v6908
    %6936 = vst [vmem:[%s6918 + $0x98] sm:$0xff] %v6909
    %6937 = vst [vmem:[%s6918 + $0xa0] sm:$0xff] %v6910
    %6938 = vst [vmem:[%s6918 + $0xa8] sm:$0xff] %v6911
    %6939 = vst [vmem:[%s6918 + $0xb0] sm:$0xff] %v6912
    %6940 = vst [vmem:[%s6918 + $0xb8] sm:$0xff] %v6913
    %6941 = vst [vmem:[%s6918 + $0xc0] sm:$0xff] %v6914
    %6942 = vst [vmem:[%s6918 + $0xc8] sm:$0xff] %v6915
    %6943 = vst [vmem:[%s6918 + $0xd0] sm:$0xff] %v6916
    %6944 = vst [vmem:[%s6918 + $0xd8] sm:$0xff] %v6917
    %6945 = vst [vmem:[#allocation3] sm:$0xff] 0
    %6946 = vst [vmem:[#allocation3 + $0x78] sm:$0xff] 0
    %s6947 = scalar_lea.vmem [#allocation3], 112
    %6948 = vst [vmem:[%s6947] sm:$0xff] 0
    %6949 = vst [vmem:[%s6947 + $0x78] sm:$0xff] 0
    %s6950 = smul.u32 4, 96
    %s6951 = smul.u32 %s6950, 2
    %s6952 = sshll.u32 %s6951, 4
    %6953 = dma.done [#allocation6], %s6952
    %v6954 = vld [vmem:[#allocation3] sm:$0xff]
    %v6955 = vld [vmem:[#allocation3 + $0x8] sm:$0xff]
    %v6956 = vld [vmem:[#allocation3 + $0x10] sm:$0xff]
    %v6957 = vld [vmem:[#allocation3 + $0x18] sm:$0xff]
    %v6958 = vld [vmem:[#allocation3 + $0x20] sm:$0xff]
    %v6959 = vld [vmem:[#allocation3 + $0x28] sm:$0xff]
    %v6960 = vld [vmem:[#allocation3 + $0x30] sm:$0xff]
    %v6961 = vld [vmem:[#allocation3 + $0x38] sm:$0xff]
    %v6962 = vld [vmem:[#allocation3 + $0x40] sm:$0xff]
    %v6963 = vld [vmem:[#allocation3 + $0x48] sm:$0xff]
    %v6964 = vld [vmem:[#allocation3 + $0x50] sm:$0xff]
    %v6965 = vld [vmem:[#allocation3 + $0x58] sm:$0xff]
    %v6966 = vld [vmem:[#allocation3 + $0x60] sm:$0xff]
    %v6967 = vld [vmem:[#allocation3 + $0x68] sm:$0xff]
    %v6968 = vld [vmem:[#allocation3 + $0x70] sm:$0xff]
    %v6969 = vld [vmem:[#allocation3 + $0x78] sm:$0xff]
    %v6970 = vld [vmem:[#allocation3 + $0x80] sm:$0xff]
    %v6971 = vld [vmem:[#allocation3 + $0x88] sm:$0xff]
    %v6972 = vld [vmem:[#allocation3 + $0x90] sm:$0xff]
    %v6973 = vld [vmem:[#allocation3 + $0x98] sm:$0xff]
    %v6974 = vld [vmem:[#allocation3 + $0xa0] sm:$0xff]
    %v6975 = vld [vmem:[#allocation3 + $0xa8] sm:$0xff]
    %v6976 = vld [vmem:[#allocation3 + $0xb0] sm:$0xff]
    %v6977 = vld [vmem:[#allocation3 + $0xb8] sm:$0xff]
    %v6978 = vld [vmem:[#allocation3 + $0xc0] sm:$0xff]
    %v6979 = vld [vmem:[#allocation3 + $0xc8] sm:$0xff]
    %v6980 = vld [vmem:[#allocation3 + $0xd0] sm:$0xff]
    %v6981 = vld [vmem:[#allocation3 + $0xd8] sm:$0xff]
    %v6982 = vld [vmem:[#allocation3 + $0xe0] sm:$0xff]
    %v6983 = vld [vmem:[#allocation3 + $0xe8] sm:$0xff]
    %v6984 = vld [vmem:[#allocation4] sm:$0xff]
    %v6985 = vld [vmem:[#allocation4 + $0x8] sm:$0xff]
    %v6986 = vld [vmem:[#allocation4 + $0x10] sm:$0xff]
    %v6987 = vld [vmem:[#allocation4 + $0x18] sm:$0xff]
    %v6988 = vld [vmem:[#allocation4 + $0x20] sm:$0xff]
    %v6989 = vld [vmem:[#allocation4 + $0x28] sm:$0xff]
    %v6990 = vld [vmem:[#allocation4 + $0x30] sm:$0xff]
    %v6991 = vld [vmem:[#allocation4 + $0x38] sm:$0xff]
    %v6992 = vld [vmem:[#allocation4 + $0x40] sm:$0xff]
    %v6993 = vld [vmem:[#allocation4 + $0x48] sm:$0xff]
    %v6994 = vld [vmem:[#allocation4 + $0x50] sm:$0xff]
    %v6995 = vld [vmem:[#allocation4 + $0x58] sm:$0xff]
    %v6996 = vld [vmem:[#allocation4 + $0x60] sm:$0xff]
    %v6997 = vld [vmem:[#allocation4 + $0x68] sm:$0xff]
    %v6998 = vld [vmem:[#allocation4 + $0x70] sm:$0xff]
    %v6999 = vld [vmem:[#allocation4 + $0x78] sm:$0xff]
    %v7000 = vld [vmem:[#allocation4 + $0x80] sm:$0xff]
    %v7001 = vld [vmem:[#allocation4 + $0x88] sm:$0xff]
    %v7002 = vld [vmem:[#allocation4 + $0x90] sm:$0xff]
    %v7003 = vld [vmem:[#allocation4 + $0x98] sm:$0xff]
    %v7004 = vld [vmem:[#allocation4 + $0xa0] sm:$0xff]
    %v7005 = vld [vmem:[#allocation4 + $0xa8] sm:$0xff]
    %v7006 = vld [vmem:[#allocation4 + $0xb0] sm:$0xff]
    %v7007 = vld [vmem:[#allocation4 + $0xb8] sm:$0xff]
    %v7008 = vld [vmem:[#allocation4 + $0xc0] sm:$0xff]
    %v7009 = vld [vmem:[#allocation4 + $0xc8] sm:$0xff]
    %v7010 = vld [vmem:[#allocation4 + $0xd0] sm:$0xff]
    %v7011 = vld [vmem:[#allocation4 + $0xd8] sm:$0xff]
    %v7012 = vld [vmem:[#allocation4 + $0xe0] sm:$0xff]
    %v7013 = vld [vmem:[#allocation4 + $0xe8] sm:$0xff]
    %v7014 = vld [vmem:[#allocation4 + $0xf0] sm:$0xff]
    %v7015 = vld [vmem:[#allocation4 + $0xf8] sm:$0xff]
    %v7016 = vld [vmem:[#allocation4 + $0x100] sm:$0xff]
    %v7017 = vld [vmem:[#allocation4 + $0x108] sm:$0xff]
    %v7018 = vld [vmem:[#allocation4 + $0x110] sm:$0xff]
    %v7019 = vld [vmem:[#allocation4 + $0x118] sm:$0xff]
    %v7020 = vld [vmem:[#allocation4 + $0x120] sm:$0xff]
    %v7021 = vld [vmem:[#allocation4 + $0x128] sm:$0xff]
    %v7022 = vld [vmem:[#allocation4 + $0x130] sm:$0xff]
    %v7023 = vld [vmem:[#allocation4 + $0x138] sm:$0xff]
    %v7024 = vld [vmem:[#allocation4 + $0x140] sm:$0xff]
    %v7025 = vld [vmem:[#allocation4 + $0x148] sm:$0xff]
    %v7026 = vld [vmem:[#allocation4 + $0x150] sm:$0xff]
    %v7027 = vld [vmem:[#allocation4 + $0x158] sm:$0xff]
    %v7028 = vld [vmem:[#allocation4 + $0x160] sm:$0xff]
    %v7029 = vld [vmem:[#allocation4 + $0x168] sm:$0xff]
    %v7030 = vld [vmem:[#allocation4 + $0x170] sm:$0xff]
    %v7031 = vld [vmem:[#allocation4 + $0x178] sm:$0xff]
    %v7032 = vld [vmem:[#allocation4 + $0x180] sm:$0xff]
    %v7033 = vld [vmem:[#allocation4 + $0x188] sm:$0xff]
    %v7034 = vld [vmem:[#allocation4 + $0x190] sm:$0xff]
    %v7035 = vld [vmem:[#allocation4 + $0x198] sm:$0xff]
    %v7036 = vld [vmem:[#allocation4 + $0x1a0] sm:$0xff]
    %v7037 = vld [vmem:[#allocation4 + $0x1a8] sm:$0xff]
    %v7038 = vld [vmem:[#allocation4 + $0x1b0] sm:$0xff]
    %v7039 = vld [vmem:[#allocation4 + $0x1b8] sm:$0xff]
    %v7040 = vld [vmem:[#allocation4 + $0x1c0] sm:$0xff]
    %v7041 = vld [vmem:[#allocation4 + $0x1c8] sm:$0xff]
    %v7042 = vld [vmem:[#allocation4 + $0x1d0] sm:$0xff]
    %v7043 = vld [vmem:[#allocation4 + $0x1d8] sm:$0xff]
    %v7044 = vld [vmem:[#allocation4 + $0x1e0] sm:$0xff]
    %v7045 = vld [vmem:[#allocation4 + $0x1e8] sm:$0xff]
    %v7046 = vld [vmem:[#allocation4 + $0x1f0] sm:$0xff]
    %v7047 = vld [vmem:[#allocation4 + $0x1f8] sm:$0xff]
    %v7048 = vld [vmem:[#allocation4 + $0x200] sm:$0xff]
    %v7049 = vld [vmem:[#allocation4 + $0x208] sm:$0xff]
    %v7050 = vld [vmem:[#allocation4 + $0x210] sm:$0xff]
    %v7051 = vld [vmem:[#allocation4 + $0x218] sm:$0xff]
    %v7052 = vld [vmem:[#allocation4 + $0x220] sm:$0xff]
    %v7053 = vld [vmem:[#allocation4 + $0x228] sm:$0xff]
    %v7054 = vld [vmem:[#allocation4 + $0x230] sm:$0xff]
    %v7055 = vld [vmem:[#allocation4 + $0x238] sm:$0xff]
    %v7056 = vld [vmem:[#allocation4 + $0x240] sm:$0xff]
    %v7057 = vld [vmem:[#allocation4 + $0x248] sm:$0xff]
    %v7058 = vld [vmem:[#allocation4 + $0x250] sm:$0xff]
    %v7059 = vld [vmem:[#allocation4 + $0x258] sm:$0xff]
    %v7060 = vld [vmem:[#allocation4 + $0x260] sm:$0xff]
    %v7061 = vld [vmem:[#allocation4 + $0x268] sm:$0xff]
    %v7062 = vld [vmem:[#allocation4 + $0x270] sm:$0xff]
    %v7063 = vld [vmem:[#allocation4 + $0x278] sm:$0xff]
    %v7064 = vld [vmem:[#allocation4 + $0x280] sm:$0xff]
    %v7065 = vld [vmem:[#allocation4 + $0x288] sm:$0xff]
    %v7066 = vld [vmem:[#allocation4 + $0x290] sm:$0xff]
    %v7067 = vld [vmem:[#allocation4 + $0x298] sm:$0xff]
    %v7068 = vld [vmem:[#allocation4 + $0x2a0] sm:$0xff]
    %v7069 = vld [vmem:[#allocation4 + $0x2a8] sm:$0xff]
    %v7070 = vld [vmem:[#allocation4 + $0x2b0] sm:$0xff]
    %v7071 = vld [vmem:[#allocation4 + $0x2b8] sm:$0xff]
    %v7072 = vld [vmem:[#allocation4 + $0x2c0] sm:$0xff]
    %v7073 = vld [vmem:[#allocation4 + $0x2c8] sm:$0xff]
    %v7074 = vld [vmem:[#allocation4 + $0x2d0] sm:$0xff]
    %v7075 = vld [vmem:[#allocation4 + $0x2d8] sm:$0xff]
    %v7076 = vld [vmem:[#allocation4 + $0x2e0] sm:$0xff]
    %v7077 = vld [vmem:[#allocation4 + $0x2e8] sm:$0xff]
    %v7078 = vld [vmem:[#allocation4 + $0x2f0] sm:$0xff]
    %v7079 = vld [vmem:[#allocation4 + $0x2f8] sm:$0xff]
    %7080 = vmatprep.subr.bf16.mxu0 %v6985
    %7081 = vmatpush1.bf16.msra.mxu0 %v6984
    %7082 = vmatprep.subr.bf16.mxu0 %v6987
    %7083 = vmatpush1.bf16.msra.mxu0 %v6986
    %7084 = vmatprep.subr.bf16.mxu0 %v6989
    %7085 = vmatpush1.bf16.msra.mxu0 %v6988
    %7086 = vmatprep.subr.bf16.mxu0 %v6991
    %7087 = vmatpush1.bf16.msra.mxu0 %v6990
    %7088 = vmatprep.subr.bf16.mxu0 %v6993
    %7089 = vmatpush1.bf16.msra.mxu0 %v6992
    %7090 = vmatprep.subr.bf16.mxu0 %v6995
    %7091 = vmatpush1.bf16.msra.mxu0 %v6994
    %7092 = vmatprep.subr.bf16.mxu0 %v6997
    %7093 = vmatpush1.bf16.msra.mxu0 %v6996
    %7094 = vmatprep.subr.bf16.mxu0 %v6999
    %7095 = vmatpush1.bf16.msra.mxu0 %v6998
    %7096 = vmatprep.subr.bf16.mxu0 %v7001
    %7097 = vmatpush1.bf16.msra.mxu0 %v7000
    %7098 = vmatprep.subr.bf16.mxu0 %v7003
    %7099 = vmatpush1.bf16.msra.mxu0 %v7002
    %7100 = vmatprep.subr.bf16.mxu0 %v7005
    %7101 = vmatpush1.bf16.msra.mxu0 %v7004
    %7102 = vmatprep.subr.bf16.mxu0 %v7007
    %7103 = vmatpush1.bf16.msra.mxu0 %v7006
    %7104 = vmatprep.subr.bf16.mxu0 %v7009
    %7105 = vmatpush1.bf16.msra.mxu0 %v7008
    %7106 = vmatprep.subr.bf16.mxu0 %v7011
    %7107 = vmatpush1.bf16.msra.mxu0 %v7010
    %7108 = vmatprep.subr.bf16.mxu0 %v7013
    %7109 = vmatpush1.bf16.msra.mxu0 %v7012
    %7110 = vmatprep.subr.bf16.mxu0 %v7015
    %7111 = vmatpush1.bf16.msra.mxu0 %v7014
    %7112 = vmatprep.mubr.bf16.mxu0 %v6955
    %7113 = vmatmul.mubr.bf16.gmra.mrb[0].mxu0 %v6954
    %v7114 = vpop.f32.mrb[0].mxu0
    %v7115 = vadd.f32 0.0, %v7114
    %v7116 = vpop.f32.mrb[0].mxu0
    %v7117 = vadd.f32 0.0, %v7116
    %v7118 = vpop.f32.mrb[0].mxu0
    %v7119 = vadd.f32 0.0, %v7118
    %v7120 = vpop.f32.mrb[0].mxu0
    %v7121 = vadd.f32 0.0, %v7120
    %7122 = vmatprep.mubr.bf16.mxu0 %v6958
    %7123 = vmatmul.mubr.bf16.gmra.mrb[0].mxu0 %v6957
    %v7124 = vpop.f32.mrb[0].mxu0
    %v7125 = vadd.f32 0.0, %v7124
    %v7126 = vpop.f32.mrb[0].mxu0
    %v7127 = vadd.f32 0.0, %v7126
    %v7128 = vpop.f32.mrb[0].mxu0
    %v7129 = vadd.f32 0.0, %v7128
    %v7130 = vpop.f32.mrb[0].mxu0
    %v7131 = vadd.f32 0.0, %v7130
    %7132 = vmatprep.mubr.bf16.mxu0 %v6961
    %7133 = vmatmul.mubr.bf16.gmra.mrb[0].mxu0 %v6960
    %v7134 = vpop.f32.mrb[0].mxu0
    %v7135 = vadd.f32 0.0, %v7134
    %v7136 = vpop.f32.mrb[0].mxu0
    %v7137 = vadd.f32 0.0, %v7136
    %v7138 = vpop.f32.mrb[0].mxu0
    %v7139 = vadd.f32 0.0, %v7138
    %v7140 = vpop.f32.mrb[0].mxu0
    %v7141 = vadd.f32 0.0, %v7140
    %7142 = vmatprep.mubr.bf16.mxu0 %v6964
    %7143 = vmatmul.mubr.bf16.gmra.mrb[0].mxu0 %v6963
    %v7144 = vpop.f32.mrb[0].mxu0
    %v7145 = vadd.f32 0.0, %v7144
    %v7146 = vpop.f32.mrb[0].mxu0
    %v7147 = vadd.f32 0.0, %v7146
    %v7148 = vpop.f32.mrb[0].mxu0
    %v7149 = vadd.f32 0.0, %v7148
    %v7150 = vpop.f32.mrb[0].mxu0
    %v7151 = vadd.f32 0.0, %v7150
    %7152 = vmatprep.mubr.bf16.mxu0 %v6970
    %7153 = vmatmul.mubr.bf16.gmra.mrb[0].mxu0 %v6969
    %v7154 = vpop.f32.mrb[0].mxu0
    %v7155 = vadd.f32 0.0, %v7154
    %v7156 = vpop.f32.mrb[0].mxu0
    %v7157 = vadd.f32 0.0, %v7156
    %v7158 = vpop.f32.mrb[0].mxu0
    %v7159 = vadd.f32 0.0, %v7158
    %v7160 = vpop.f32.mrb[0].mxu0
    %v7161 = vadd.f32 0.0, %v7160
    %7162 = vmatprep.mubr.bf16.mxu0 %v6973
    %7163 = vmatmul.mubr.bf16.gmra.mrb[0].mxu0 %v6972
    %v7164 = vpop.f32.mrb[0].mxu0
    %v7165 = vadd.f32 0.0, %v7164
    %v7166 = vpop.f32.mrb[0].mxu0
    %v7167 = vadd.f32 0.0, %v7166
    %v7168 = vpop.f32.mrb[0].mxu0
    %v7169 = vadd.f32 0.0, %v7168
    %v7170 = vpop.f32.mrb[0].mxu0
    %v7171 = vadd.f32 0.0, %v7170
    %7172 = vmatprep.mubr.bf16.mxu0 %v6976
    %7173 = vmatmul.mubr.bf16.gmra.mrb[0].mxu0 %v6975
    %v7174 = vpop.f32.mrb[0].mxu0
    %v7175 = vadd.f32 0.0, %v7174
    %v7176 = vpop.f32.mrb[0].mxu0
    %v7177 = vadd.f32 0.0, %v7176
    %v7178 = vpop.f32.mrb[0].mxu0
    %v7179 = vadd.f32 0.0, %v7178
    %v7180 = vpop.f32.mrb[0].mxu0
    %v7181 = vadd.f32 0.0, %v7180
    %7182 = vmatprep.mubr.bf16.mxu0 %v6979
    %7183 = vmatmul.mubr.bf16.gmra.mrb[0].mxu0 %v6978
    %v7184 = vpop.f32.mrb[0].mxu0
    %v7185 = vadd.f32 0.0, %v7184
    %v7186 = vpop.f32.mrb[0].mxu0
    %v7187 = vadd.f32 0.0, %v7186
    %v7188 = vpop.f32.mrb[0].mxu0
    %v7189 = vadd.f32 0.0, %v7188
    %v7190 = vpop.f32.mrb[0].mxu0
    %v7191 = vadd.f32 0.0, %v7190
    %7192 = vdwg.mxu0
    %7193 = vmatprep.subr.bf16.mxu0 %v7017
    %7194 = vmatpush1.bf16.msra.mxu0 %v7016
    %7195 = vmatprep.subr.bf16.mxu0 %v7019
    %7196 = vmatpush1.bf16.msra.mxu0 %v7018
    %7197 = vmatprep.subr.bf16.mxu0 %v7021
    %7198 = vmatpush1.bf16.msra.mxu0 %v7020
    %7199 = vmatprep.subr.bf16.mxu0 %v7023
    %7200 = vmatpush1.bf16.msra.mxu0 %v7022
    %7201 = vmatprep.subr.bf16.mxu0 %v7025
    %7202 = vmatpush1.bf16.msra.mxu0 %v7024
    %7203 = vmatprep.subr.bf16.mxu0 %v7027
    %7204 = vmatpush1.bf16.msra.mxu0 %v7026
    %7205 = vmatprep.subr.bf16.mxu0 %v7029
    %7206 = vmatpush1.bf16.msra.mxu0 %v7028
    %7207 = vmatprep.subr.bf16.mxu0 %v7031
    %7208 = vmatpush1.bf16.msra.mxu0 %v7030
    %7209 = vmatprep.subr.bf16.mxu0 %v7033
    %7210 = vmatpush1.bf16.msra.mxu0 %v7032
    %7211 = vmatprep.subr.bf16.mxu0 %v7035
    %7212 = vmatpush1.bf16.msra.mxu0 %v7034
    %7213 = vmatprep.subr.bf16.mxu0 %v7037
    %7214 = vmatpush1.bf16.msra.mxu0 %v7036
    %7215 = vmatprep.subr.bf16.mxu0 %v7039
    %7216 = vmatpush1.bf16.msra.mxu0 %v7038
    %7217 = vmatprep.subr.bf16.mxu0 %v7041
    %7218 = vmatpush1.bf16.msra.mxu0 %v7040
    %7219 = vmatprep.subr.bf16.mxu0 %v7043
    %7220 = vmatpush1.bf16.msra.mxu0 %v7042
    %7221 = vmatprep.subr.bf16.mxu0 %v7045
    %7222 = vmatpush1.bf16.msra.mxu0 %v7044
    %7223 = vmatprep.subr.bf16.mxu0 %v7047
    %7224 = vmatpush1.bf16.msra.mxu0 %v7046
    %7225 = vmatprep.mubr.bf16.mxu0 %v6957
    %7226 = vmatmul.mubr.bf16.gmra.mrb[0].mxu0 %v6956
    %v7227 = vpop.f32.mrb[0].mxu0
    %v7228 = vadd.f32 %v7115, %v7227
    %v7229 = vpop.f32.mrb[0].mxu0
    %v7230 = vadd.f32 %v7117, %v7229
    %v7231 = vpop.f32.mrb[0].mxu0
    %v7232 = vadd.f32 %v7119, %v7231
    %v7233 = vpop.f32.mrb[0].mxu0
    %v7234 = vadd.f32 %v7121, %v7233
    %7235 = vmatprep.mubr.bf16.mxu0 %v6960
    %7236 = vmatmul.mubr.bf16.gmra.mrb[0].mxu0 %v6959
    %v7237 = vpop.f32.mrb[0].mxu0
    %v7238 = vadd.f32 %v7125, %v7237
    %v7239 = vpop.f32.mrb[0].mxu0
    %v7240 = vadd.f32 %v7127, %v7239
    %v7241 = vpop.f32.mrb[0].mxu0
    %v7242 = vadd.f32 %v7129, %v7241
    %v7243 = vpop.f32.mrb[0].mxu0
    %v7244 = vadd.f32 %v7131, %v7243
    %7245 = vmatprep.mubr.bf16.mxu0 %v6963
    %7246 = vmatmul.mubr.bf16.gmra.mrb[0].mxu0 %v6962
    %v7247 = vpop.f32.mrb[0].mxu0
    %v7248 = vadd.f32 %v7135, %v7247
    %v7249 = vpop.f32.mrb[0].mxu0
    %v7250 = vadd.f32 %v7137, %v7249
    %v7251 = vpop.f32.mrb[0].mxu0
    %v7252 = vadd.f32 %v7139, %v7251
    %v7253 = vpop.f32.mrb[0].mxu0
    %v7254 = vadd.f32 %v7141, %v7253
    %7255 = vmatprep.mubr.bf16.mxu0 %v6966
    %7256 = vmatmul.mubr.bf16.gmra.mrb[0].mxu0 %v6965
    %v7257 = vpop.f32.mrb[0].mxu0
    %v7258 = vadd.f32 %v7145, %v7257
    %v7259 = vpop.f32.mrb[0].mxu0
    %v7260 = vadd.f32 %v7147, %v7259
    %v7261 = vpop.f32.mrb[0].mxu0
    %v7262 = vadd.f32 %v7149, %v7261
    %v7263 = vpop.f32.mrb[0].mxu0
    %v7264 = vadd.f32 %v7151, %v7263
    %7265 = vmatprep.mubr.bf16.mxu0 %v6972
    %7266 = vmatmul.mubr.bf16.gmra.mrb[0].mxu0 %v6971
    %v7267 = vpop.f32.mrb[0].mxu0
    %v7268 = vadd.f32 %v7155, %v7267
    %v7269 = vpop.f32.mrb[0].mxu0
    %v7270 = vadd.f32 %v7157, %v7269
    %v7271 = vpop.f32.mrb[0].mxu0
    %v7272 = vadd.f32 %v7159, %v7271
    %v7273 = vpop.f32.mrb[0].mxu0
    %v7274 = vadd.f32 %v7161, %v7273
    %7275 = vmatprep.mubr.bf16.mxu0 %v6975
    %7276 = vmatmul.mubr.bf16.gmra.mrb[0].mxu0 %v6974
    %v7277 = vpop.f32.mrb[0].mxu0
    %v7278 = vadd.f32 %v7165, %v7277
    %v7279 = vpop.f32.mrb[0].mxu0
    %v7280 = vadd.f32 %v7167, %v7279
    %v7281 = vpop.f32.mrb[0].mxu0
    %v7282 = vadd.f32 %v7169, %v7281
    %v7283 = vpop.f32.mrb[0].mxu0
    %v7284 = vadd.f32 %v7171, %v7283
    %7285 = vmatprep.mubr.bf16.mxu0 %v6978
    %7286 = vmatmul.mubr.bf16.gmra.mrb[0].mxu0 %v6977
    %v7287 = vpop.f32.mrb[0].mxu0
    %v7288 = vadd.f32 %v7175, %v7287
    %v7289 = vpop.f32.mrb[0].mxu0
    %v7290 = vadd.f32 %v7177, %v7289
    %v7291 = vpop.f32.mrb[0].mxu0
    %v7292 = vadd.f32 %v7179, %v7291
    %v7293 = vpop.f32.mrb[0].mxu0
    %v7294 = vadd.f32 %v7181, %v7293
    %7295 = vmatprep.mubr.bf16.mxu0 %v6981
    %7296 = vmatmul.mubr.bf16.gmra.mrb[0].mxu0 %v6980
    %v7297 = vpop.f32.mrb[0].mxu0
    %v7298 = vadd.f32 %v7185, %v7297
    %v7299 = vpop.f32.mrb[0].mxu0
    %v7300 = vadd.f32 %v7187, %v7299
    %v7301 = vpop.f32.mrb[0].mxu0
    %v7302 = vadd.f32 %v7189, %v7301
    %v7303 = vpop.f32.mrb[0].mxu0
    %v7304 = vadd.f32 %v7191, %v7303
    %7305 = vdwg.mxu0
    %7306 = vmatprep.subr.bf16.mxu0 %v7049
    %7307 = vmatpush1.bf16.msra.mxu0 %v7048
    %7308 = vmatprep.subr.bf16.mxu0 %v7051
    %7309 = vmatpush1.bf16.msra.mxu0 %v7050
    %7310 = vmatprep.subr.bf16.mxu0 %v7053
    %7311 = vmatpush1.bf16.msra.mxu0 %v7052
    %7312 = vmatprep.subr.bf16.mxu0 %v7055
    %7313 = vmatpush1.bf16.msra.mxu0 %v7054
    %7314 = vmatprep.subr.bf16.mxu0 %v7057
    %7315 = vmatpush1.bf16.msra.mxu0 %v7056
    %7316 = vmatprep.subr.bf16.mxu0 %v7059
    %7317 = vmatpush1.bf16.msra.mxu0 %v7058
    %7318 = vmatprep.subr.bf16.mxu0 %v7061
    %7319 = vmatpush1.bf16.msra.mxu0 %v7060
    %7320 = vmatprep.subr.bf16.mxu0 %v7063
    %7321 = vmatpush1.bf16.msra.mxu0 %v7062
    %7322 = vmatprep.subr.bf16.mxu0 %v7065
    %7323 = vmatpush1.bf16.msra.mxu0 %v7064
    %7324 = vmatprep.subr.bf16.mxu0 %v7067
    %7325 = vmatpush1.bf16.msra.mxu0 %v7066
    %7326 = vmatprep.subr.bf16.mxu0 %v7069
    %7327 = vmatpush1.bf16.msra.mxu0 %v7068
    %7328 = vmatprep.subr.bf16.mxu0 %v7071
    %7329 = vmatpush1.bf16.msra.mxu0 %v7070
    %7330 = vmatprep.subr.bf16.mxu0 %v7073
    %7331 = vmatpush1.bf16.msra.mxu0 %v7072
    %7332 = vmatprep.subr.bf16.mxu0 %v7075
    %7333 = vmatpush1.bf16.msra.mxu0 %v7074
    %7334 = vmatprep.subr.bf16.mxu0 %v7077
    %7335 = vmatpush1.bf16.msra.mxu0 %v7076
    %7336 = vmatprep.subr.bf16.mxu0 %v7079
    %7337 = vmatpush1.bf16.msra.mxu0 %v7078
    %7338 = vmatprep.mubr.bf16.mxu0 %v6959
    %7339 = vmatmul.mubr.bf16.gmra.mrb[0].mxu0 %v6958
    %v7340 = vpop.f32.mrb[0].mxu0
    %v7341 = vadd.f32 %v7228, %v7340
    %v7342 = vpop.f32.mrb[0].mxu0
    %v7343 = vadd.f32 %v7230, %v7342
    %v7344 = vpop.f32.mrb[0].mxu0
    %v7345 = vadd.f32 %v7232, %v7344
    %v7346 = vpop.f32.mrb[0].mxu0
    %v7347 = vadd.f32 %v7234, %v7346
    %7348 = vmatprep.mubr.bf16.mxu0 %v6962
    %7349 = vmatmul.mubr.bf16.gmra.mrb[0].mxu0 %v6961
    %v7350 = vpop.f32.mrb[0].mxu0
    %v7351 = vadd.f32 %v7238, %v7350
    %v7352 = vpop.f32.mrb[0].mxu0
    %v7353 = vadd.f32 %v7240, %v7352
    %v7354 = vpop.f32.mrb[0].mxu0
    %v7355 = vadd.f32 %v7242, %v7354
    %v7356 = vpop.f32.mrb[0].mxu0
    %v7357 = vadd.f32 %v7244, %v7356
    %7358 = vmatprep.mubr.bf16.mxu0 %v6965
    %7359 = vmatmul.mubr.bf16.gmra.mrb[0].mxu0 %v6964
    %v7360 = vpop.f32.mrb[0].mxu0
    %v7361 = vadd.f32 %v7248, %v7360
    %v7362 = vpop.f32.mrb[0].mxu0
    %v7363 = vadd.f32 %v7250, %v7362
    %v7364 = vpop.f32.mrb[0].mxu0
    %v7365 = vadd.f32 %v7252, %v7364
    %v7366 = vpop.f32.mrb[0].mxu0
    %v7367 = vadd.f32 %v7254, %v7366
    %7368 = vmatprep.mubr.bf16.mxu0 %v6968
    %7369 = vmatmul.mubr.bf16.gmra.mrb[0].mxu0 %v6967
    %v7370 = vpop.f32.mrb[0].mxu0
    %v7371 = vadd.f32 %v7258, %v7370
    %v7372 = vpop.f32.mrb[0].mxu0
    %v7373 = vadd.f32 %v7260, %v7372
    %v7374 = vpop.f32.mrb[0].mxu0
    %v7375 = vadd.f32 %v7262, %v7374
    %v7376 = vpop.f32.mrb[0].mxu0
    %v7377 = vadd.f32 %v7264, %v7376
    %7378 = vmatprep.mubr.bf16.mxu0 %v6974
    %7379 = vmatmul.mubr.bf16.gmra.mrb[0].mxu0 %v6973
    %v7380 = vpop.f32.mrb[0].mxu0
    %v7381 = vadd.f32 %v7268, %v7380
    %v7382 = vpop.f32.mrb[0].mxu0
    %v7383 = vadd.f32 %v7270, %v7382
    %v7384 = vpop.f32.mrb[0].mxu0
    %v7385 = vadd.f32 %v7272, %v7384
    %v7386 = vpop.f32.mrb[0].mxu0
    %v7387 = vadd.f32 %v7274, %v7386
    %7388 = vmatprep.mubr.bf16.mxu0 %v6977
    %7389 = vmatmul.mubr.bf16.gmra.mrb[0].mxu0 %v6976
    %v7390 = vpop.f32.mrb[0].mxu0
    %v7391 = vadd.f32 %v7278, %v7390
    %v7392 = vpop.f32.mrb[0].mxu0
    %v7393 = vadd.f32 %v7280, %v7392
    %v7394 = vpop.f32.mrb[0].mxu0
    %v7395 = vadd.f32 %v7282, %v7394
    %v7396 = vpop.f32.mrb[0].mxu0
    %v7397 = vadd.f32 %v7284, %v7396
    %7398 = vmatprep.mubr.bf16.mxu0 %v6980
    %7399 = vmatmul.mubr.bf16.gmra.mrb[0].mxu0 %v6979
    %v7400 = vpop.f32.mrb[0].mxu0
    %v7401 = vadd.f32 %v7288, %v7400
    %v7402 = vpop.f32.mrb[0].mxu0
    %v7403 = vadd.f32 %v7290, %v7402
    %v7404 = vpop.f32.mrb[0].mxu0
    %v7405 = vadd.f32 %v7292, %v7404
    %v7406 = vpop.f32.mrb[0].mxu0
    %v7407 = vadd.f32 %v7294, %v7406
    %7408 = vmatprep.mubr.bf16.mxu0 %v6983
    %7409 = vmatmul.mubr.bf16.gmra.mrb[0].mxu0 %v6982
    %v7410 = vpop.f32.mrb[0].mxu0
    %v7411 = vadd.f32 %v7298, %v7410
    %v7412 = vpop.f32.mrb[0].mxu0
    %v7413 = vadd.f32 %v7300, %v7412
    %v7414 = vpop.f32.mrb[0].mxu0
    %v7415 = vadd.f32 %v7302, %v7414
    %v7416 = vpop.f32.mrb[0].mxu0
    %v7417 = vadd.f32 %v7304, %v7416
    %7418 = vdwg.mxu0
    %v7419 = vld [vmem:[%s5] ss:$4 sm:$0x3]
    %v7421 = vlaneseq
    %v7422 = vshrl.u32 %v7421, 7
    %v7423 = vsub.s32 0, %v7422
    %v7424 = vrot.slane %v7419, %v7423
    %v7425 = vlaneseq
    %v7426 = vshrl.u32 %v7425, 7
    %v7427 = vsub.s32 1, %v7426
    %v7428 = vrot.slane %v7419, %v7427
    %v7431 = vadd.f32 %v7341, %v7424
    %v7432 = vadd.f32 %v7343, %v7428
    %v7433 = vadd.f32 %v7345, %v7424
    %v7434 = vadd.f32 %v7347, %v7428
    %v7435 = vadd.f32 %v7351, %v7424
    %v7436 = vadd.f32 %v7353, %v7428
    %v7437 = vadd.f32 %v7355, %v7424
    %v7438 = vadd.f32 %v7357, %v7428
    %v7439 = vadd.f32 %v7361, %v7424
    %v7440 = vadd.f32 %v7363, %v7428
    %v7441 = vadd.f32 %v7365, %v7424
    %v7442 = vadd.f32 %v7367, %v7428
    %v7443 = vadd.f32 %v7371, %v7424
    %v7444 = vadd.f32 %v7373, %v7428
    %v7445 = vadd.f32 %v7375, %v7424
    %v7446 = vadd.f32 %v7377, %v7428
    %v7447 = vadd.f32 %v7381, %v7424
    %v7448 = vadd.f32 %v7383, %v7428
    %v7449 = vadd.f32 %v7385, %v7424
    %v7450 = vadd.f32 %v7387, %v7428
    %v7451 = vadd.f32 %v7391, %v7424
    %v7452 = vadd.f32 %v7393, %v7428
    %v7453 = vadd.f32 %v7395, %v7424
    %v7454 = vadd.f32 %v7397, %v7428
    %v7455 = vadd.f32 %v7401, %v7424
    %v7456 = vadd.f32 %v7403, %v7428
    %v7457 = vadd.f32 %v7405, %v7424
    %v7458 = vadd.f32 %v7407, %v7428
    %v7459 = vadd.f32 %v7411, %v7424
    %v7460 = vadd.f32 %v7413, %v7428
    %v7461 = vadd.f32 %v7415, %v7424
    %v7462 = vadd.f32 %v7417, %v7428
    %s7463 = scalar_lea.vmem %s5, 1
    %v7464 = vld [vmem:[%s7463] ss:$4 sm:$0x3]
    %s7465 = scalar_lea.vmem %s5, 2
    %v7466 = vld [vmem:[%s7465] ss:$4 sm:$0x3]
    %v7467 = vmul.f32 %v7431, %v1303
    %v7468 = vmul.f32 %v7432, %v1303
    %v7469 = vmul.f32 %v7433, %v1304
    %v7470 = vmul.f32 %v7434, %v1304
    %v7471 = vmul.f32 %v7435, %v1303
    %v7472 = vmul.f32 %v7436, %v1303
    %v7473 = vmul.f32 %v7437, %v1304
    %v7474 = vmul.f32 %v7438, %v1304
    %v7475 = vmul.f32 %v7439, %v1303
    %v7476 = vmul.f32 %v7440, %v1303
    %v7477 = vmul.f32 %v7441, %v1304
    %v7478 = vmul.f32 %v7442, %v1304
    %v7479 = vmul.f32 %v7443, %v1303
    %v7480 = vmul.f32 %v7444, %v1303
    %v7481 = vmul.f32 %v7445, %v1304
    %v7482 = vmul.f32 %v7446, %v1304
    %v7483 = vmul.f32 %v7447, %v1303
    %v7484 = vmul.f32 %v7448, %v1303
    %v7485 = vmul.f32 %v7449, %v1304
    %v7486 = vmul.f32 %v7450, %v1304
    %v7487 = vmul.f32 %v7451, %v1303
    %v7488 = vmul.f32 %v7452, %v1303
    %v7489 = vmul.f32 %v7453, %v1304
    %v7490 = vmul.f32 %v7454, %v1304
    %v7491 = vmul.f32 %v7455, %v1303
    %v7492 = vmul.f32 %v7456, %v1303
    %v7493 = vmul.f32 %v7457, %v1304
    %v7494 = vmul.f32 %v7458, %v1304
    %v7495 = vmul.f32 %v7459, %v1303
    %v7496 = vmul.f32 %v7460, %v1303
    %v7497 = vmul.f32 %v7461, %v1304
    %v7498 = vmul.f32 %v7462, %v1304
    %v7499 = vadd.f32 %v7467, %v7483
    %v7500 = vadd.f32 %v7468, %v7484
    %v7501 = vadd.f32 %v7469, %v7485
    %v7502 = vadd.f32 %v7470, %v7486
    %v7503 = vadd.f32 %v7471, %v7487
    %v7504 = vadd.f32 %v7472, %v7488
    %v7505 = vadd.f32 %v7473, %v7489
    %v7506 = vadd.f32 %v7474, %v7490
    %v7507 = vadd.f32 %v7475, %v7491
    %v7508 = vadd.f32 %v7476, %v7492
    %v7509 = vadd.f32 %v7477, %v7493
    %v7510 = vadd.f32 %v7478, %v7494
    %v7511 = vadd.f32 %v7479, %v7495
    %v7512 = vadd.f32 %v7480, %v7496
    %v7513 = vadd.f32 %v7481, %v7497
    %v7514 = vadd.f32 %v7482, %v7498
    %v7515 = vadd.f32 %v7499, %v7503
    %v7516 = vadd.f32 %v7515, %v7507
    %v7517 = vadd.f32 %v7516, %v7511
    %v7518 = vadd.f32 %v7500, %v7504
    %v7519 = vadd.f32 %v7518, %v7508
    %v7520 = vadd.f32 %v7519, %v7512
    %v7521 = vadd.f32 %v7501, %v7505
    %v7522 = vadd.f32 %v7521, %v7509
    %v7523 = vadd.f32 %v7522, %v7513
    %v7524 = vadd.f32 %v7502, %v7506
    %v7525 = vadd.f32 %v7524, %v7510
    %v7526 = vadd.f32 %v7525, %v7514
    %v7527 = vadd.f32 %v7517, %v7523
    %v7528 = vrot.slane %v7527, 4
    %v7529 = vadd.f32 %v7527, %v7528
    %v7530 = vrot.slane %v7529, 2
    %v7531 = vadd.f32 %v7529, %v7530
    %v7532 = vrot.slane %v7531, 1
    %v7533 = vadd.f32 %v7531, %v7532
    %v7534 = vadd.f32 %v7520, %v7526
    %v7535 = vrot.slane %v7534, 4
    %v7536 = vadd.f32 %v7534, %v7535
    %v7537 = vrot.slane %v7536, 2
    %v7538 = vadd.f32 %v7536, %v7537
    %v7539 = vrot.slane %v7538, 1
    %v7540 = vadd.f32 %v7538, %v7539
    %v7541 = vmul.f32 %v7467, %v7467
    %v7542 = vmul.f32 %v7468, %v7468
    %v7543 = vmul.f32 %v7469, %v7469
    %v7544 = vmul.f32 %v7470, %v7470
    %v7545 = vmul.f32 %v7471, %v7471
    %v7546 = vmul.f32 %v7472, %v7472
    %v7547 = vmul.f32 %v7473, %v7473
    %v7548 = vmul.f32 %v7474, %v7474
    %v7549 = vmul.f32 %v7475, %v7475
    %v7550 = vmul.f32 %v7476, %v7476
    %v7551 = vmul.f32 %v7477, %v7477
    %v7552 = vmul.f32 %v7478, %v7478
    %v7553 = vmul.f32 %v7479, %v7479
    %v7554 = vmul.f32 %v7480, %v7480
    %v7555 = vmul.f32 %v7481, %v7481
    %v7556 = vmul.f32 %v7482, %v7482
    %v7557 = vmul.f32 %v7483, %v7483
    %v7558 = vmul.f32 %v7484, %v7484
    %v7559 = vmul.f32 %v7485, %v7485
    %v7560 = vmul.f32 %v7486, %v7486
    %v7561 = vmul.f32 %v7487, %v7487
    %v7562 = vmul.f32 %v7488, %v7488
    %v7563 = vmul.f32 %v7489, %v7489
    %v7564 = vmul.f32 %v7490, %v7490
    %v7565 = vmul.f32 %v7491, %v7491
    %v7566 = vmul.f32 %v7492, %v7492
    %v7567 = vmul.f32 %v7493, %v7493
    %v7568 = vmul.f32 %v7494, %v7494
    %v7569 = vmul.f32 %v7495, %v7495
    %v7570 = vmul.f32 %v7496, %v7496
    %v7571 = vmul.f32 %v7497, %v7497
    %v7572 = vmul.f32 %v7498, %v7498
    %v7573 = vadd.f32 %v7541, %v7557
    %v7574 = vadd.f32 %v7542, %v7558
    %v7575 = vadd.f32 %v7543, %v7559
    %v7576 = vadd.f32 %v7544, %v7560
    %v7577 = vadd.f32 %v7545, %v7561
    %v7578 = vadd.f32 %v7546, %v7562
    %v7579 = vadd.f32 %v7547, %v7563
    %v7580 = vadd.f32 %v7548, %v7564
    %v7581 = vadd.f32 %v7549, %v7565
    %v7582 = vadd.f32 %v7550, %v7566
    %v7583 = vadd.f32 %v7551, %v7567
    %v7584 = vadd.f32 %v7552, %v7568
    %v7585 = vadd.f32 %v7553, %v7569
    %v7586 = vadd.f32 %v7554, %v7570
    %v7587 = vadd.f32 %v7555, %v7571
    %v7588 = vadd.f32 %v7556, %v7572
    %v7589 = vadd.f32 %v7573, %v7577
    %v7590 = vadd.f32 %v7589, %v7581
    %v7591 = vadd.f32 %v7590, %v7585
    %v7592 = vadd.f32 %v7574, %v7578
    %v7593 = vadd.f32 %v7592, %v7582
    %v7594 = vadd.f32 %v7593, %v7586
    %v7595 = vadd.f32 %v7575, %v7579
    %v7596 = vadd.f32 %v7595, %v7583
    %v7597 = vadd.f32 %v7596, %v7587
    %v7598 = vadd.f32 %v7576, %v7580
    %v7599 = vadd.f32 %v7598, %v7584
    %v7600 = vadd.f32 %v7599, %v7588
    %v7601 = vadd.f32 %v7591, %v7597
    %v7602 = vrot.slane %v7601, 4
    %v7603 = vadd.f32 %v7601, %v7602
    %v7604 = vrot.slane %v7603, 2
    %v7605 = vadd.f32 %v7603, %v7604
    %v7606 = vrot.slane %v7605, 1
    %v7607 = vadd.f32 %v7605, %v7606
    %v7608 = vadd.f32 %v7594, %v7600
    %v7609 = vrot.slane %v7608, 4
    %v7610 = vadd.f32 %v7608, %v7609
    %v7611 = vrot.slane %v7610, 2
    %v7612 = vadd.f32 %v7610, %v7611
    %v7613 = vrot.slane %v7612, 1
    %v7614 = vadd.f32 %v7612, %v7613
    %v7615 = vrcp.pop 120.0
    %v7616 = vmul.f32 %v7533, %v7615
    %v7617 = vmul.f32 %v7540, %v7615
    %v7618 = vmul.f32 %v7607, %v7615
    %v7619 = vmul.f32 %v7614, %v7615
    %v7620 = vmul.f32 %v7616, %v7616
    %v7621 = vmul.f32 %v7617, %v7617
    %v7622 = vsub.f32 %v7618, %v7620
    %v7623 = vsub.f32 %v7619, %v7621
    %v7624 = vmax.f32 %v7622, 0.0
    %v7625 = vmax.f32 %v7623, 0.0
    %v7626 = vadd.f32 %v7624, 1e-05
    %v7627 = vadd.f32 %v7625, 1e-05
    %v7628 = vrsqrt.pop %v7626
    %v7629 = vrsqrt.pop %v7627
    %v7631 = vlaneseq
    %v7632 = vshrl.u32 %v7631, 7
    %v7633 = vsub.s32 0, %v7632
    %v7634 = vrot.slane %v7464, %v7633
    %v7635 = vlaneseq
    %v7636 = vshrl.u32 %v7635, 7
    %v7637 = vsub.s32 1, %v7636
    %v7638 = vrot.slane %v7464, %v7637
    %v7641 = vmul.f32 %v7628, %v7634
    %v7642 = vmul.f32 %v7629, %v7638
    %v7643 = vmul.f32 %v7616, %v7641
    %v7644 = vmul.f32 %v7617, %v7642
    %v7647 = vcombine.low %v7643, %v7644
    %v7649 = vunpack.c.l.s4 1966171168
    %v7650 = vunpack.c.0.s8 %v7649
    %v7651 = vlaneseq
    %v7652 = vshrl.u32 %v7651, 7
    %v7653 = vsub.s32 %v7650, %v7652
    %v7654 = vrot.slane %v7647, %v7653
    %v7656 = vunpack.c.l.s4 1966171168
    %v7657 = vunpack.c.0.s8 %v7656
    %v7658 = vlaneseq
    %v7659 = vshrl.u32 %v7658, 7
    %v7660 = vsub.s32 %v7657, %v7659
    %v7661 = vrot.slane %v7654, %v7660
    %v7663 = vsub.f32 %v7466, %v7661
    %v7664 = vlaneseq
    %v7665 = vshrl.u32 %v7664, 7
    %v7666 = vsub.s32 0, %v7665
    %v7667 = vrot.slane %v7641, %v7666
    %v7668 = vlaneseq
    %v7669 = vshrl.u32 %v7668, 7
    %v7670 = vsub.s32 0, %v7669
    %v7671 = vrot.slane %v7642, %v7670
    %v7672 = vmul.f32 %v7431, %v7667
    %v7673 = vmul.f32 %v7432, %v7671
    %v7674 = vmul.f32 %v7433, %v7667
    %v7675 = vmul.f32 %v7434, %v7671
    %v7676 = vmul.f32 %v7435, %v7667
    %v7677 = vmul.f32 %v7436, %v7671
    %v7678 = vmul.f32 %v7437, %v7667
    %v7679 = vmul.f32 %v7438, %v7671
    %v7680 = vmul.f32 %v7439, %v7667
    %v7681 = vmul.f32 %v7440, %v7671
    %v7682 = vmul.f32 %v7441, %v7667
    %v7683 = vmul.f32 %v7442, %v7671
    %v7684 = vmul.f32 %v7443, %v7667
    %v7685 = vmul.f32 %v7444, %v7671
    %v7686 = vmul.f32 %v7445, %v7667
    %v7687 = vmul.f32 %v7446, %v7671
    %v7688 = vmul.f32 %v7447, %v7667
    %v7689 = vmul.f32 %v7448, %v7671
    %v7690 = vmul.f32 %v7449, %v7667
    %v7691 = vmul.f32 %v7450, %v7671
    %v7692 = vmul.f32 %v7451, %v7667
    %v7693 = vmul.f32 %v7452, %v7671
    %v7694 = vmul.f32 %v7453, %v7667
    %v7695 = vmul.f32 %v7454, %v7671
    %v7696 = vmul.f32 %v7455, %v7667
    %v7697 = vmul.f32 %v7456, %v7671
    %v7698 = vmul.f32 %v7457, %v7667
    %v7699 = vmul.f32 %v7458, %v7671
    %v7700 = vmul.f32 %v7459, %v7667
    %v7701 = vmul.f32 %v7460, %v7671
    %v7702 = vmul.f32 %v7461, %v7667
    %v7703 = vmul.f32 %v7462, %v7671
    %v7705 = vlaneseq
    %v7706 = vshrl.u32 %v7705, 7
    %v7707 = vsub.s32 0, %v7706
    %v7708 = vrot.slane %v7663, %v7707
    %v7709 = vlaneseq
    %v7710 = vshrl.u32 %v7709, 7
    %v7711 = vsub.s32 1, %v7710
    %v7712 = vrot.slane %v7663, %v7711
    %v7715 = vadd.f32 %v7672, %v7708
    %v7716 = vadd.f32 %v7673, %v7712
    %v7717 = vadd.f32 %v7674, %v7708
    %v7718 = vadd.f32 %v7675, %v7712
    %v7719 = vadd.f32 %v7676, %v7708
    %v7720 = vadd.f32 %v7677, %v7712
    %v7721 = vadd.f32 %v7678, %v7708
    %v7722 = vadd.f32 %v7679, %v7712
    %v7723 = vadd.f32 %v7680, %v7708
    %v7724 = vadd.f32 %v7681, %v7712
    %v7725 = vadd.f32 %v7682, %v7708
    %v7726 = vadd.f32 %v7683, %v7712
    %v7727 = vadd.f32 %v7684, %v7708
    %v7728 = vadd.f32 %v7685, %v7712
    %v7729 = vadd.f32 %v7686, %v7708
    %v7730 = vadd.f32 %v7687, %v7712
    %v7731 = vadd.f32 %v7688, %v7708
    %v7732 = vadd.f32 %v7689, %v7712
    %v7733 = vadd.f32 %v7690, %v7708
    %v7734 = vadd.f32 %v7691, %v7712
    %v7735 = vadd.f32 %v7692, %v7708
    %v7736 = vadd.f32 %v7693, %v7712
    %v7737 = vadd.f32 %v7694, %v7708
    %v7738 = vadd.f32 %v7695, %v7712
    %v7739 = vadd.f32 %v7696, %v7708
    %v7740 = vadd.f32 %v7697, %v7712
    %v7741 = vadd.f32 %v7698, %v7708
    %v7742 = vadd.f32 %v7699, %v7712
    %v7743 = vadd.f32 %v7700, %v7708
    %v7744 = vadd.f32 %v7701, %v7712
    %v7745 = vadd.f32 %v7702, %v7708
    %v7746 = vadd.f32 %v7703, %v7712
    %v7747 = vmax.f32 %v7715, 0.0
    %v7748 = vmax.f32 %v7716, 0.0
    %v7749 = vmax.f32 %v7717, 0.0
    %v7750 = vmax.f32 %v7718, 0.0
    %v7751 = vmax.f32 %v7719, 0.0
    %v7752 = vmax.f32 %v7720, 0.0
    %v7753 = vmax.f32 %v7721, 0.0
    %v7754 = vmax.f32 %v7722, 0.0
    %v7755 = vmax.f32 %v7723, 0.0
    %v7756 = vmax.f32 %v7724, 0.0
    %v7757 = vmax.f32 %v7725, 0.0
    %v7758 = vmax.f32 %v7726, 0.0
    %v7759 = vmax.f32 %v7727, 0.0
    %v7760 = vmax.f32 %v7728, 0.0
    %v7761 = vmax.f32 %v7729, 0.0
    %v7762 = vmax.f32 %v7730, 0.0
    %v7763 = vmax.f32 %v7731, 0.0
    %v7764 = vmax.f32 %v7732, 0.0
    %v7765 = vmax.f32 %v7733, 0.0
    %v7766 = vmax.f32 %v7734, 0.0
    %v7767 = vmax.f32 %v7735, 0.0
    %v7768 = vmax.f32 %v7736, 0.0
    %v7769 = vmax.f32 %v7737, 0.0
    %v7770 = vmax.f32 %v7738, 0.0
    %v7771 = vmax.f32 %v7739, 0.0
    %v7772 = vmax.f32 %v7740, 0.0
    %v7773 = vmax.f32 %v7741, 0.0
    %v7774 = vmax.f32 %v7742, 0.0
    %v7775 = vmax.f32 %v7743, 0.0
    %v7776 = vmax.f32 %v7744, 0.0
    %v7777 = vmax.f32 %v7745, 0.0
    %v7778 = vmax.f32 %v7746, 0.0
    %v7779 = vmul.f32 %v7747, %v1303
    %v7780 = vmul.f32 %v7748, %v1303
    %v7781 = vmul.f32 %v7749, %v1304
    %v7782 = vmul.f32 %v7750, %v1304
    %v7783 = vmul.f32 %v7751, %v1303
    %v7784 = vmul.f32 %v7752, %v1303
    %v7785 = vmul.f32 %v7753, %v1304
    %v7786 = vmul.f32 %v7754, %v1304
    %v7787 = vmul.f32 %v7755, %v1303
    %v7788 = vmul.f32 %v7756, %v1303
    %v7789 = vmul.f32 %v7757, %v1304
    %v7790 = vmul.f32 %v7758, %v1304
    %v7791 = vmul.f32 %v7759, %v1303
    %v7792 = vmul.f32 %v7760, %v1303
    %v7793 = vmul.f32 %v7761, %v1304
    %v7794 = vmul.f32 %v7762, %v1304
    %v7795 = vmul.f32 %v7763, %v1303
    %v7796 = vmul.f32 %v7764, %v1303
    %v7797 = vmul.f32 %v7765, %v1304
    %v7798 = vmul.f32 %v7766, %v1304
    %v7799 = vmul.f32 %v7767, %v1303
    %v7800 = vmul.f32 %v7768, %v1303
    %v7801 = vmul.f32 %v7769, %v1304
    %v7802 = vmul.f32 %v7770, %v1304
    %v7803 = vmul.f32 %v7771, %v1303
    %v7804 = vmul.f32 %v7772, %v1303
    %v7805 = vmul.f32 %v7773, %v1304
    %v7806 = vmul.f32 %v7774, %v1304
    %v7807 = vmul.f32 %v7775, %v1303
    %v7808 = vmul.f32 %v7776, %v1303
    %v7809 = vmul.f32 %v7777, %v1304
    %v7810 = vmul.f32 %v7778, %v1304
    %s7811 = smul.u32 4, 6
    %s7812 = smul.u32 %s7811, 8
    %s7813 = smul.u32 %s7812, 2
    %s7814 = sshll.u32 %s7813, 4
    %7815 = dma.done %s843, %s7814
    %v7816 = vld [vmem:[#allocation5] sm:$0xff]
    %v7817 = vld [vmem:[#allocation5 + $0x8] sm:$0xff]
    %v7818 = vld [vmem:[#allocation5 + $0x10] sm:$0xff]
    %v7819 = vld [vmem:[#allocation5 + $0x18] sm:$0xff]
    %v7820 = vld [vmem:[#allocation5 + $0x20] sm:$0xff]
    %v7821 = vld [vmem:[#allocation5 + $0x28] sm:$0xff]
    %v7822 = vld [vmem:[#allocation5 + $0x30] sm:$0xff]
    %v7823 = vld [vmem:[#allocation5 + $0x38] sm:$0xff]
    %v7824 = vunpack.c.l.bf16 %v7816
    %v7825 = vunpack.c.l.bf16 %v7817
    %v7826 = vunpack.c.h.bf16 %v7816
    %v7827 = vunpack.c.h.bf16 %v7817
    %v7828 = vunpack.c.l.bf16 %v7818
    %v7829 = vunpack.c.l.bf16 %v7819
    %v7830 = vunpack.c.h.bf16 %v7818
    %v7831 = vunpack.c.h.bf16 %v7819
    %v7832 = vunpack.c.l.bf16 %v7820
    %v7833 = vunpack.c.l.bf16 %v7821
    %v7834 = vunpack.c.h.bf16 %v7820
    %v7835 = vunpack.c.h.bf16 %v7821
    %v7836 = vunpack.c.l.bf16 %v7822
    %v7837 = vunpack.c.l.bf16 %v7823
    %v7838 = vunpack.c.h.bf16 %v7822
    %v7839 = vunpack.c.h.bf16 %v7823
    %v7840 = vmul.f32 %v7779, %v7824
    %v7841 = vmul.f32 %v7780, %v7825
    %v7842 = vmul.f32 %v7781, %v7826
    %v7843 = vmul.f32 %v7782, %v7827
    %v7844 = vmul.f32 %v7783, %v7828
    %v7845 = vmul.f32 %v7784, %v7829
    %v7846 = vmul.f32 %v7785, %v7830
    %v7847 = vmul.f32 %v7786, %v7831
    %v7848 = vmul.f32 %v7787, %v7832
    %v7849 = vmul.f32 %v7788, %v7833
    %v7850 = vmul.f32 %v7789, %v7834
    %v7851 = vmul.f32 %v7790, %v7835
    %v7852 = vmul.f32 %v7791, %v7836
    %v7853 = vmul.f32 %v7792, %v7837
    %v7854 = vmul.f32 %v7793, %v7838
    %v7855 = vmul.f32 %v7794, %v7839
    %v7856 = vmul.f32 %v7795, %v7824
    %v7857 = vmul.f32 %v7796, %v7825
    %v7858 = vmul.f32 %v7797, %v7826
    %v7859 = vmul.f32 %v7798, %v7827
    %v7860 = vmul.f32 %v7799, %v7828
    %v7861 = vmul.f32 %v7800, %v7829
    %v7862 = vmul.f32 %v7801, %v7830
    %v7863 = vmul.f32 %v7802, %v7831
    %v7864 = vmul.f32 %v7803, %v7832
    %v7865 = vmul.f32 %v7804, %v7833
    %v7866 = vmul.f32 %v7805, %v7834
    %v7867 = vmul.f32 %v7806, %v7835
    %v7868 = vmul.f32 %v7807, %v7836
    %v7869 = vmul.f32 %v7808, %v7837
    %v7870 = vmul.f32 %v7809, %v7838
    %v7871 = vmul.f32 %v7810, %v7839
    %v7872 = vadd.f32 %v7840, %v7842
    %v7873 = vadd.f32 %v7872, %v7844
    %v7874 = vadd.f32 %v7873, %v7846
    %v7875 = vadd.f32 %v7874, %v7848
    %v7876 = vadd.f32 %v7875, %v7850
    %v7877 = vadd.f32 %v7876, %v7852
    %v7878 = vadd.f32 %v7877, %v7854
    %v7879 = vrot.slane %v7878, 4
    %v7880 = vadd.f32 %v7878, %v7879
    %v7881 = vrot.slane %v7880, 2
    %v7882 = vadd.f32 %v7880, %v7881
    %v7883 = vrot.slane %v7882, 1
    %v7884 = vadd.f32 %v7882, %v7883
    %v7885 = vadd.f32 %v7841, %v7843
    %v7886 = vadd.f32 %v7885, %v7845
    %v7887 = vadd.f32 %v7886, %v7847
    %v7888 = vadd.f32 %v7887, %v7849
    %v7889 = vadd.f32 %v7888, %v7851
    %v7890 = vadd.f32 %v7889, %v7853
    %v7891 = vadd.f32 %v7890, %v7855
    %v7892 = vrot.slane %v7891, 4
    %v7893 = vadd.f32 %v7891, %v7892
    %v7894 = vrot.slane %v7893, 2
    %v7895 = vadd.f32 %v7893, %v7894
    %v7896 = vrot.slane %v7895, 1
    %v7897 = vadd.f32 %v7895, %v7896
    %v7898 = vadd.f32 %v7856, %v7858
    %v7899 = vadd.f32 %v7898, %v7860
    %v7900 = vadd.f32 %v7899, %v7862
    %v7901 = vadd.f32 %v7900, %v7864
    %v7902 = vadd.f32 %v7901, %v7866
    %v7903 = vadd.f32 %v7902, %v7868
    %v7904 = vadd.f32 %v7903, %v7870
    %v7905 = vrot.slane %v7904, 4
    %v7906 = vadd.f32 %v7904, %v7905
    %v7907 = vrot.slane %v7906, 2
    %v7908 = vadd.f32 %v7906, %v7907
    %v7909 = vrot.slane %v7908, 1
    %v7910 = vadd.f32 %v7908, %v7909
    %v7911 = vadd.f32 %v7857, %v7859
    %v7912 = vadd.f32 %v7911, %v7861
    %v7913 = vadd.f32 %v7912, %v7863
    %v7914 = vadd.f32 %v7913, %v7865
    %v7915 = vadd.f32 %v7914, %v7867
    %v7916 = vadd.f32 %v7915, %v7869
    %v7917 = vadd.f32 %v7916, %v7871
    %v7918 = vrot.slane %v7917, 4
    %v7919 = vadd.f32 %v7917, %v7918
    %v7920 = vrot.slane %v7919, 2
    %v7921 = vadd.f32 %v7919, %v7920
    %v7922 = vrot.slane %v7921, 1
    %v7923 = vadd.f32 %v7921, %v7922
    %v7924 = vadd.f32 %v7884, %v7897
    %7925 = vadd.xlane.f32.xlu0 %v7924
    %v7926 = vpop.xlane.xlu0 %7925
    %v7927 = vadd.f32 %v7910, %v7923
    %7928 = vadd.xlane.f32.xlu0 %v7927
    %v7929 = vpop.xlane.xlu0 %7928
    %s7930 = scalar_lea.vmem [#allocation5], 64
    %v7931 = vld [vmem:[%s7930] sm:$0xff]
    %v7932 = vld [vmem:[%s7930 + $0x8] sm:$0xff]
    %v7933 = vld [vmem:[%s7930 + $0x10] sm:$0xff]
    %v7934 = vld [vmem:[%s7930 + $0x18] sm:$0xff]
    %v7935 = vld [vmem:[%s7930 + $0x20] sm:$0xff]
    %v7936 = vld [vmem:[%s7930 + $0x28] sm:$0xff]
    %v7937 = vld [vmem:[%s7930 + $0x30] sm:$0xff]
    %v7938 = vld [vmem:[%s7930 + $0x38] sm:$0xff]
    %v7939 = vunpack.c.l.bf16 %v7931
    %v7940 = vunpack.c.l.bf16 %v7932
    %v7941 = vunpack.c.h.bf16 %v7931
    %v7942 = vunpack.c.h.bf16 %v7932
    %v7943 = vunpack.c.l.bf16 %v7933
    %v7944 = vunpack.c.l.bf16 %v7934
    %v7945 = vunpack.c.h.bf16 %v7933
    %v7946 = vunpack.c.h.bf16 %v7934
    %v7947 = vunpack.c.l.bf16 %v7935
    %v7948 = vunpack.c.l.bf16 %v7936
    %v7949 = vunpack.c.h.bf16 %v7935
    %v7950 = vunpack.c.h.bf16 %v7936
    %v7951 = vunpack.c.l.bf16 %v7937
    %v7952 = vunpack.c.l.bf16 %v7938
    %v7953 = vunpack.c.h.bf16 %v7937
    %v7954 = vunpack.c.h.bf16 %v7938
    %v7955 = vmul.f32 %v7779, %v7939
    %v7956 = vmul.f32 %v7780, %v7940
    %v7957 = vmul.f32 %v7781, %v7941
    %v7958 = vmul.f32 %v7782, %v7942
    %v7959 = vmul.f32 %v7783, %v7943
    %v7960 = vmul.f32 %v7784, %v7944
    %v7961 = vmul.f32 %v7785, %v7945
    %v7962 = vmul.f32 %v7786, %v7946
    %v7963 = vmul.f32 %v7787, %v7947
    %v7964 = vmul.f32 %v7788, %v7948
    %v7965 = vmul.f32 %v7789, %v7949
    %v7966 = vmul.f32 %v7790, %v7950
    %v7967 = vmul.f32 %v7791, %v7951
    %v7968 = vmul.f32 %v7792, %v7952
    %v7969 = vmul.f32 %v7793, %v7953
    %v7970 = vmul.f32 %v7794, %v7954
    %v7971 = vmul.f32 %v7795, %v7939
    %v7972 = vmul.f32 %v7796, %v7940
    %v7973 = vmul.f32 %v7797, %v7941
    %v7974 = vmul.f32 %v7798, %v7942
    %v7975 = vmul.f32 %v7799, %v7943
    %v7976 = vmul.f32 %v7800, %v7944
    %v7977 = vmul.f32 %v7801, %v7945
    %v7978 = vmul.f32 %v7802, %v7946
    %v7979 = vmul.f32 %v7803, %v7947
    %v7980 = vmul.f32 %v7804, %v7948
    %v7981 = vmul.f32 %v7805, %v7949
    %v7982 = vmul.f32 %v7806, %v7950
    %v7983 = vmul.f32 %v7807, %v7951
    %v7984 = vmul.f32 %v7808, %v7952
    %v7985 = vmul.f32 %v7809, %v7953
    %v7986 = vmul.f32 %v7810, %v7954
    %v7987 = vadd.f32 %v7955, %v7957
    %v7988 = vadd.f32 %v7987, %v7959
    %v7989 = vadd.f32 %v7988, %v7961
    %v7990 = vadd.f32 %v7989, %v7963
    %v7991 = vadd.f32 %v7990, %v7965
    %v7992 = vadd.f32 %v7991, %v7967
    %v7993 = vadd.f32 %v7992, %v7969
    %v7994 = vrot.slane %v7993, 4
    %v7995 = vadd.f32 %v7993, %v7994
    %v7996 = vrot.slane %v7995, 2
    %v7997 = vadd.f32 %v7995, %v7996
    %v7998 = vrot.slane %v7997, 1
    %v7999 = vadd.f32 %v7997, %v7998
    %v8000 = vadd.f32 %v7956, %v7958
    %v8001 = vadd.f32 %v8000, %v7960
    %v8002 = vadd.f32 %v8001, %v7962
    %v8003 = vadd.f32 %v8002, %v7964
    %v8004 = vadd.f32 %v8003, %v7966
    %v8005 = vadd.f32 %v8004, %v7968
    %v8006 = vadd.f32 %v8005, %v7970
    %v8007 = vrot.slane %v8006, 4
    %v8008 = vadd.f32 %v8006, %v8007
    %v8009 = vrot.slane %v8008, 2
    %v8010 = vadd.f32 %v8008, %v8009
    %v8011 = vrot.slane %v8010, 1
    %v8012 = vadd.f32 %v8010, %v8011
    %v8013 = vadd.f32 %v7971, %v7973
    %v8014 = vadd.f32 %v8013, %v7975
    %v8015 = vadd.f32 %v8014, %v7977
    %v8016 = vadd.f32 %v8015, %v7979
    %v8017 = vadd.f32 %v8016, %v7981
    %v8018 = vadd.f32 %v8017, %v7983
    %v8019 = vadd.f32 %v8018, %v7985
    %v8020 = vrot.slane %v8019, 4
    %v8021 = vadd.f32 %v8019, %v8020
    %v8022 = vrot.slane %v8021, 2
    %v8023 = vadd.f32 %v8021, %v8022
    %v8024 = vrot.slane %v8023, 1
    %v8025 = vadd.f32 %v8023, %v8024
    %v8026 = vadd.f32 %v7972, %v7974
    %v8027 = vadd.f32 %v8026, %v7976
    %v8028 = vadd.f32 %v8027, %v7978
    %v8029 = vadd.f32 %v8028, %v7980
    %v8030 = vadd.f32 %v8029, %v7982
    %v8031 = vadd.f32 %v8030, %v7984
    %v8032 = vadd.f32 %v8031, %v7986
    %v8033 = vrot.slane %v8032, 4
    %v8034 = vadd.f32 %v8032, %v8033
    %v8035 = vrot.slane %v8034, 2
    %v8036 = vadd.f32 %v8034, %v8035
    %v8037 = vrot.slane %v8036, 1
    %v8038 = vadd.f32 %v8036, %v8037
    %v8039 = vadd.f32 %v7999, %v8012
    %8040 = vadd.xlane.f32.xlu0 %v8039
    %v8041 = vpop.xlane.xlu0 %8040
    %v8042 = vadd.f32 %v8025, %v8038
    %8043 = vadd.xlane.f32.xlu0 %v8042
    %v8044 = vpop.xlane.xlu0 %8043
    %s8045 = scalar_lea.vmem [#allocation5], 128
    %v8046 = vld [vmem:[%s8045] sm:$0xff]
    %v8047 = vld [vmem:[%s8045 + $0x8] sm:$0xff]
    %v8048 = vld [vmem:[%s8045 + $0x10] sm:$0xff]
    %v8049 = vld [vmem:[%s8045 + $0x18] sm:$0xff]
    %v8050 = vld [vmem:[%s8045 + $0x20] sm:$0xff]
    %v8051 = vld [vmem:[%s8045 + $0x28] sm:$0xff]
    %v8052 = vld [vmem:[%s8045 + $0x30] sm:$0xff]
    %v8053 = vld [vmem:[%s8045 + $0x38] sm:$0xff]
    %v8054 = vunpack.c.l.bf16 %v8046
    %v8055 = vunpack.c.l.bf16 %v8047
    %v8056 = vunpack.c.h.bf16 %v8046
    %v8057 = vunpack.c.h.bf16 %v8047
    %v8058 = vunpack.c.l.bf16 %v8048
    %v8059 = vunpack.c.l.bf16 %v8049
    %v8060 = vunpack.c.h.bf16 %v8048
    %v8061 = vunpack.c.h.bf16 %v8049
    %v8062 = vunpack.c.l.bf16 %v8050
    %v8063 = vunpack.c.l.bf16 %v8051
    %v8064 = vunpack.c.h.bf16 %v8050
    %v8065 = vunpack.c.h.bf16 %v8051
    %v8066 = vunpack.c.l.bf16 %v8052
    %v8067 = vunpack.c.l.bf16 %v8053
    %v8068 = vunpack.c.h.bf16 %v8052
    %v8069 = vunpack.c.h.bf16 %v8053
    %v8070 = vmul.f32 %v7779, %v8054
    %v8071 = vmul.f32 %v7780, %v8055
    %v8072 = vmul.f32 %v7781, %v8056
    %v8073 = vmul.f32 %v7782, %v8057
    %v8074 = vmul.f32 %v7783, %v8058
    %v8075 = vmul.f32 %v7784, %v8059
    %v8076 = vmul.f32 %v7785, %v8060
    %v8077 = vmul.f32 %v7786, %v8061
    %v8078 = vmul.f32 %v7787, %v8062
    %v8079 = vmul.f32 %v7788, %v8063
    %v8080 = vmul.f32 %v7789, %v8064
    %v8081 = vmul.f32 %v7790, %v8065
    %v8082 = vmul.f32 %v7791, %v8066
    %v8083 = vmul.f32 %v7792, %v8067
    %v8084 = vmul.f32 %v7793, %v8068
    %v8085 = vmul.f32 %v7794, %v8069
    %v8086 = vmul.f32 %v7795, %v8054
    %v8087 = vmul.f32 %v7796, %v8055
    %v8088 = vmul.f32 %v7797, %v8056
    %v8089 = vmul.f32 %v7798, %v8057
    %v8090 = vmul.f32 %v7799, %v8058
    %v8091 = vmul.f32 %v7800, %v8059
    %v8092 = vmul.f32 %v7801, %v8060
    %v8093 = vmul.f32 %v7802, %v8061
    %v8094 = vmul.f32 %v7803, %v8062
    %v8095 = vmul.f32 %v7804, %v8063
    %v8096 = vmul.f32 %v7805, %v8064
    %v8097 = vmul.f32 %v7806, %v8065
    %v8098 = vmul.f32 %v7807, %v8066
    %v8099 = vmul.f32 %v7808, %v8067
    %v8100 = vmul.f32 %v7809, %v8068
    %v8101 = vmul.f32 %v7810, %v8069
    %v8102 = vadd.f32 %v8070, %v8072
    %v8103 = vadd.f32 %v8102, %v8074
    %v8104 = vadd.f32 %v8103, %v8076
    %v8105 = vadd.f32 %v8104, %v8078
    %v8106 = vadd.f32 %v8105, %v8080
    %v8107 = vadd.f32 %v8106, %v8082
    %v8108 = vadd.f32 %v8107, %v8084
    %v8109 = vrot.slane %v8108, 4
    %v8110 = vadd.f32 %v8108, %v8109
    %v8111 = vrot.slane %v8110, 2
    %v8112 = vadd.f32 %v8110, %v8111
    %v8113 = vrot.slane %v8112, 1
    %v8114 = vadd.f32 %v8112, %v8113
    %v8115 = vadd.f32 %v8071, %v8073
    %v8116 = vadd.f32 %v8115, %v8075
    %v8117 = vadd.f32 %v8116, %v8077
    %v8118 = vadd.f32 %v8117, %v8079
    %v8119 = vadd.f32 %v8118, %v8081
    %v8120 = vadd.f32 %v8119, %v8083
    %v8121 = vadd.f32 %v8120, %v8085
    %v8122 = vrot.slane %v8121, 4
    %v8123 = vadd.f32 %v8121, %v8122
    %v8124 = vrot.slane %v8123, 2
    %v8125 = vadd.f32 %v8123, %v8124
    %v8126 = vrot.slane %v8125, 1
    %v8127 = vadd.f32 %v8125, %v8126
    %v8128 = vadd.f32 %v8086, %v8088
    %v8129 = vadd.f32 %v8128, %v8090
    %v8130 = vadd.f32 %v8129, %v8092
    %v8131 = vadd.f32 %v8130, %v8094
    %v8132 = vadd.f32 %v8131, %v8096
    %v8133 = vadd.f32 %v8132, %v8098
    %v8134 = vadd.f32 %v8133, %v8100
    %v8135 = vrot.slane %v8134, 4
    %v8136 = vadd.f32 %v8134, %v8135
    %v8137 = vrot.slane %v8136, 2
    %v8138 = vadd.f32 %v8136, %v8137
    %v8139 = vrot.slane %v8138, 1
    %v8140 = vadd.f32 %v8138, %v8139
    %v8141 = vadd.f32 %v8087, %v8089
    %v8142 = vadd.f32 %v8141, %v8091
    %v8143 = vadd.f32 %v8142, %v8093
    %v8144 = vadd.f32 %v8143, %v8095
    %v8145 = vadd.f32 %v8144, %v8097
    %v8146 = vadd.f32 %v8145, %v8099
    %v8147 = vadd.f32 %v8146, %v8101
    %v8148 = vrot.slane %v8147, 4
    %v8149 = vadd.f32 %v8147, %v8148
    %v8150 = vrot.slane %v8149, 2
    %v8151 = vadd.f32 %v8149, %v8150
    %v8152 = vrot.slane %v8151, 1
    %v8153 = vadd.f32 %v8151, %v8152
    %v8154 = vadd.f32 %v8114, %v8127
    %8155 = vadd.xlane.f32.xlu0 %v8154
    %v8156 = vpop.xlane.xlu0 %8155
    %v8157 = vadd.f32 %v8140, %v8153
    %8158 = vadd.xlane.f32.xlu0 %v8157
    %v8159 = vpop.xlane.xlu0 %8158
    %s8160 = scalar_lea.vmem [#allocation5], 192
    %v8161 = vld [vmem:[%s8160] sm:$0xff]
    %v8162 = vld [vmem:[%s8160 + $0x8] sm:$0xff]
    %v8163 = vld [vmem:[%s8160 + $0x10] sm:$0xff]
    %v8164 = vld [vmem:[%s8160 + $0x18] sm:$0xff]
    %v8165 = vld [vmem:[%s8160 + $0x20] sm:$0xff]
    %v8166 = vld [vmem:[%s8160 + $0x28] sm:$0xff]
    %v8167 = vld [vmem:[%s8160 + $0x30] sm:$0xff]
    %v8168 = vld [vmem:[%s8160 + $0x38] sm:$0xff]
    %v8169 = vunpack.c.l.bf16 %v8161
    %v8170 = vunpack.c.l.bf16 %v8162
    %v8171 = vunpack.c.h.bf16 %v8161
    %v8172 = vunpack.c.h.bf16 %v8162
    %v8173 = vunpack.c.l.bf16 %v8163
    %v8174 = vunpack.c.l.bf16 %v8164
    %v8175 = vunpack.c.h.bf16 %v8163
    %v8176 = vunpack.c.h.bf16 %v8164
    %v8177 = vunpack.c.l.bf16 %v8165
    %v8178 = vunpack.c.l.bf16 %v8166
    %v8179 = vunpack.c.h.bf16 %v8165
    %v8180 = vunpack.c.h.bf16 %v8166
    %v8181 = vunpack.c.l.bf16 %v8167
    %v8182 = vunpack.c.l.bf16 %v8168
    %v8183 = vunpack.c.h.bf16 %v8167
    %v8184 = vunpack.c.h.bf16 %v8168
    %v8185 = vmul.f32 %v7779, %v8169
    %v8186 = vmul.f32 %v7780, %v8170
    %v8187 = vmul.f32 %v7781, %v8171
    %v8188 = vmul.f32 %v7782, %v8172
    %v8189 = vmul.f32 %v7783, %v8173
    %v8190 = vmul.f32 %v7784, %v8174
    %v8191 = vmul.f32 %v7785, %v8175
    %v8192 = vmul.f32 %v7786, %v8176
    %v8193 = vmul.f32 %v7787, %v8177
    %v8194 = vmul.f32 %v7788, %v8178
    %v8195 = vmul.f32 %v7789, %v8179
    %v8196 = vmul.f32 %v7790, %v8180
    %v8197 = vmul.f32 %v7791, %v8181
    %v8198 = vmul.f32 %v7792, %v8182
    %v8199 = vmul.f32 %v7793, %v8183
    %v8200 = vmul.f32 %v7794, %v8184
    %v8201 = vmul.f32 %v7795, %v8169
    %v8202 = vmul.f32 %v7796, %v8170
    %v8203 = vmul.f32 %v7797, %v8171
    %v8204 = vmul.f32 %v7798, %v8172
    %v8205 = vmul.f32 %v7799, %v8173
    %v8206 = vmul.f32 %v7800, %v8174
    %v8207 = vmul.f32 %v7801, %v8175
    %v8208 = vmul.f32 %v7802, %v8176
    %v8209 = vmul.f32 %v7803, %v8177
    %v8210 = vmul.f32 %v7804, %v8178
    %v8211 = vmul.f32 %v7805, %v8179
    %v8212 = vmul.f32 %v7806, %v8180
    %v8213 = vmul.f32 %v7807, %v8181
    %v8214 = vmul.f32 %v7808, %v8182
    %v8215 = vmul.f32 %v7809, %v8183
    %v8216 = vmul.f32 %v7810, %v8184
    %v8217 = vadd.f32 %v8185, %v8187
    %v8218 = vadd.f32 %v8217, %v8189
    %v8219 = vadd.f32 %v8218, %v8191
    %v8220 = vadd.f32 %v8219, %v8193
    %v8221 = vadd.f32 %v8220, %v8195
    %v8222 = vadd.f32 %v8221, %v8197
    %v8223 = vadd.f32 %v8222, %v8199
    %v8224 = vrot.slane %v8223, 4
    %v8225 = vadd.f32 %v8223, %v8224
    %v8226 = vrot.slane %v8225, 2
    %v8227 = vadd.f32 %v8225, %v8226
    %v8228 = vrot.slane %v8227, 1
    %v8229 = vadd.f32 %v8227, %v8228
    %v8230 = vadd.f32 %v8186, %v8188
    %v8231 = vadd.f32 %v8230, %v8190
    %v8232 = vadd.f32 %v8231, %v8192
    %v8233 = vadd.f32 %v8232, %v8194
    %v8234 = vadd.f32 %v8233, %v8196
    %v8235 = vadd.f32 %v8234, %v8198
    %v8236 = vadd.f32 %v8235, %v8200
    %v8237 = vrot.slane %v8236, 4
    %v8238 = vadd.f32 %v8236, %v8237
    %v8239 = vrot.slane %v8238, 2
    %v8240 = vadd.f32 %v8238, %v8239
    %v8241 = vrot.slane %v8240, 1
    %v8242 = vadd.f32 %v8240, %v8241
    %v8243 = vadd.f32 %v8201, %v8203
    %v8244 = vadd.f32 %v8243, %v8205
    %v8245 = vadd.f32 %v8244, %v8207
    %v8246 = vadd.f32 %v8245, %v8209
    %v8247 = vadd.f32 %v8246, %v8211
    %v8248 = vadd.f32 %v8247, %v8213
    %v8249 = vadd.f32 %v8248, %v8215
    %v8250 = vrot.slane %v8249, 4
    %v8251 = vadd.f32 %v8249, %v8250
    %v8252 = vrot.slane %v8251, 2
    %v8253 = vadd.f32 %v8251, %v8252
    %v8254 = vrot.slane %v8253, 1
    %v8255 = vadd.f32 %v8253, %v8254
    %v8256 = vadd.f32 %v8202, %v8204
    %v8257 = vadd.f32 %v8256, %v8206
    %v8258 = vadd.f32 %v8257, %v8208
    %v8259 = vadd.f32 %v8258, %v8210
    %v8260 = vadd.f32 %v8259, %v8212
    %v8261 = vadd.f32 %v8260, %v8214
    %v8262 = vadd.f32 %v8261, %v8216
    %v8263 = vrot.slane %v8262, 4
    %v8264 = vadd.f32 %v8262, %v8263
    %v8265 = vrot.slane %v8264, 2
    %v8266 = vadd.f32 %v8264, %v8265
    %v8267 = vrot.slane %v8266, 1
    %v8268 = vadd.f32 %v8266, %v8267
    %v8269 = vadd.f32 %v8229, %v8242
    %8270 = vadd.xlane.f32.xlu0 %v8269
    %v8271 = vpop.xlane.xlu0 %8270
    %v8272 = vadd.f32 %v8255, %v8268
    %8273 = vadd.xlane.f32.xlu0 %v8272
    %v8274 = vpop.xlane.xlu0 %8273
    %s8275 = scalar_lea.vmem [#allocation5], 256
    %v8276 = vld [vmem:[%s8275] sm:$0xff]
    %v8277 = vld [vmem:[%s8275 + $0x8] sm:$0xff]
    %v8278 = vld [vmem:[%s8275 + $0x10] sm:$0xff]
    %v8279 = vld [vmem:[%s8275 + $0x18] sm:$0xff]
    %v8280 = vld [vmem:[%s8275 + $0x20] sm:$0xff]
    %v8281 = vld [vmem:[%s8275 + $0x28] sm:$0xff]
    %v8282 = vld [vmem:[%s8275 + $0x30] sm:$0xff]
    %v8283 = vld [vmem:[%s8275 + $0x38] sm:$0xff]
    %v8284 = vunpack.c.l.bf16 %v8276
    %v8285 = vunpack.c.l.bf16 %v8277
    %v8286 = vunpack.c.h.bf16 %v8276
    %v8287 = vunpack.c.h.bf16 %v8277
    %v8288 = vunpack.c.l.bf16 %v8278
    %v8289 = vunpack.c.l.bf16 %v8279
    %v8290 = vunpack.c.h.bf16 %v8278
    %v8291 = vunpack.c.h.bf16 %v8279
    %v8292 = vunpack.c.l.bf16 %v8280
    %v8293 = vunpack.c.l.bf16 %v8281
    %v8294 = vunpack.c.h.bf16 %v8280
    %v8295 = vunpack.c.h.bf16 %v8281
    %v8296 = vunpack.c.l.bf16 %v8282
    %v8297 = vunpack.c.l.bf16 %v8283
    %v8298 = vunpack.c.h.bf16 %v8282
    %v8299 = vunpack.c.h.bf16 %v8283
    %v8300 = vmul.f32 %v7779, %v8284
    %v8301 = vmul.f32 %v7780, %v8285
    %v8302 = vmul.f32 %v7781, %v8286
    %v8303 = vmul.f32 %v7782, %v8287
    %v8304 = vmul.f32 %v7783, %v8288
    %v8305 = vmul.f32 %v7784, %v8289
    %v8306 = vmul.f32 %v7785, %v8290
    %v8307 = vmul.f32 %v7786, %v8291
    %v8308 = vmul.f32 %v7787, %v8292
    %v8309 = vmul.f32 %v7788, %v8293
    %v8310 = vmul.f32 %v7789, %v8294
    %v8311 = vmul.f32 %v7790, %v8295
    %v8312 = vmul.f32 %v7791, %v8296
    %v8313 = vmul.f32 %v7792, %v8297
    %v8314 = vmul.f32 %v7793, %v8298
    %v8315 = vmul.f32 %v7794, %v8299
    %v8316 = vmul.f32 %v7795, %v8284
    %v8317 = vmul.f32 %v7796, %v8285
    %v8318 = vmul.f32 %v7797, %v8286
    %v8319 = vmul.f32 %v7798, %v8287
    %v8320 = vmul.f32 %v7799, %v8288
    %v8321 = vmul.f32 %v7800, %v8289
    %v8322 = vmul.f32 %v7801, %v8290
    %v8323 = vmul.f32 %v7802, %v8291
    %v8324 = vmul.f32 %v7803, %v8292
    %v8325 = vmul.f32 %v7804, %v8293
    %v8326 = vmul.f32 %v7805, %v8294
    %v8327 = vmul.f32 %v7806, %v8295
    %v8328 = vmul.f32 %v7807, %v8296
    %v8329 = vmul.f32 %v7808, %v8297
    %v8330 = vmul.f32 %v7809, %v8298
    %v8331 = vmul.f32 %v7810, %v8299
    %v8332 = vadd.f32 %v8300, %v8302
    %v8333 = vadd.f32 %v8332, %v8304
    %v8334 = vadd.f32 %v8333, %v8306
    %v8335 = vadd.f32 %v8334, %v8308
    %v8336 = vadd.f32 %v8335, %v8310
    %v8337 = vadd.f32 %v8336, %v8312
    %v8338 = vadd.f32 %v8337, %v8314
    %v8339 = vrot.slane %v8338, 4
    %v8340 = vadd.f32 %v8338, %v8339
    %v8341 = vrot.slane %v8340, 2
    %v8342 = vadd.f32 %v8340, %v8341
    %v8343 = vrot.slane %v8342, 1
    %v8344 = vadd.f32 %v8342, %v8343
    %v8345 = vadd.f32 %v8301, %v8303
    %v8346 = vadd.f32 %v8345, %v8305
    %v8347 = vadd.f32 %v8346, %v8307
    %v8348 = vadd.f32 %v8347, %v8309
    %v8349 = vadd.f32 %v8348, %v8311
    %v8350 = vadd.f32 %v8349, %v8313
    %v8351 = vadd.f32 %v8350, %v8315
    %v8352 = vrot.slane %v8351, 4
    %v8353 = vadd.f32 %v8351, %v8352
    %v8354 = vrot.slane %v8353, 2
    %v8355 = vadd.f32 %v8353, %v8354
    %v8356 = vrot.slane %v8355, 1
    %v8357 = vadd.f32 %v8355, %v8356
    %v8358 = vadd.f32 %v8316, %v8318
    %v8359 = vadd.f32 %v8358, %v8320
    %v8360 = vadd.f32 %v8359, %v8322
    %v8361 = vadd.f32 %v8360, %v8324
    %v8362 = vadd.f32 %v8361, %v8326
    %v8363 = vadd.f32 %v8362, %v8328
    %v8364 = vadd.f32 %v8363, %v8330
    %v8365 = vrot.slane %v8364, 4
    %v8366 = vadd.f32 %v8364, %v8365
    %v8367 = vrot.slane %v8366, 2
    %v8368 = vadd.f32 %v8366, %v8367
    %v8369 = vrot.slane %v8368, 1
    %v8370 = vadd.f32 %v8368, %v8369
    %v8371 = vadd.f32 %v8317, %v8319
    %v8372 = vadd.f32 %v8371, %v8321
    %v8373 = vadd.f32 %v8372, %v8323
    %v8374 = vadd.f32 %v8373, %v8325
    %v8375 = vadd.f32 %v8374, %v8327
    %v8376 = vadd.f32 %v8375, %v8329
    %v8377 = vadd.f32 %v8376, %v8331
    %v8378 = vrot.slane %v8377, 4
    %v8379 = vadd.f32 %v8377, %v8378
    %v8380 = vrot.slane %v8379, 2
    %v8381 = vadd.f32 %v8379, %v8380
    %v8382 = vrot.slane %v8381, 1
    %v8383 = vadd.f32 %v8381, %v8382
    %v8384 = vadd.f32 %v8344, %v8357
    %8385 = vadd.xlane.f32.xlu0 %v8384
    %v8386 = vpop.xlane.xlu0 %8385
    %v8387 = vadd.f32 %v8370, %v8383
    %8388 = vadd.xlane.f32.xlu0 %v8387
    %v8389 = vpop.xlane.xlu0 %8388
    %s8390 = scalar_lea.vmem [#allocation5], 320
    %v8391 = vld [vmem:[%s8390] sm:$0xff]
    %v8392 = vld [vmem:[%s8390 + $0x8] sm:$0xff]
    %v8393 = vld [vmem:[%s8390 + $0x10] sm:$0xff]
    %v8394 = vld [vmem:[%s8390 + $0x18] sm:$0xff]
    %v8395 = vld [vmem:[%s8390 + $0x20] sm:$0xff]
    %v8396 = vld [vmem:[%s8390 + $0x28] sm:$0xff]
    %v8397 = vld [vmem:[%s8390 + $0x30] sm:$0xff]
    %v8398 = vld [vmem:[%s8390 + $0x38] sm:$0xff]
    %v8399 = vunpack.c.l.bf16 %v8391
    %v8400 = vunpack.c.l.bf16 %v8392
    %v8401 = vunpack.c.h.bf16 %v8391
    %v8402 = vunpack.c.h.bf16 %v8392
    %v8403 = vunpack.c.l.bf16 %v8393
    %v8404 = vunpack.c.l.bf16 %v8394
    %v8405 = vunpack.c.h.bf16 %v8393
    %v8406 = vunpack.c.h.bf16 %v8394
    %v8407 = vunpack.c.l.bf16 %v8395
    %v8408 = vunpack.c.l.bf16 %v8396
    %v8409 = vunpack.c.h.bf16 %v8395
    %v8410 = vunpack.c.h.bf16 %v8396
    %v8411 = vunpack.c.l.bf16 %v8397
    %v8412 = vunpack.c.l.bf16 %v8398
    %v8413 = vunpack.c.h.bf16 %v8397
    %v8414 = vunpack.c.h.bf16 %v8398
    %v8415 = vmul.f32 %v7779, %v8399
    %v8416 = vmul.f32 %v7780, %v8400
    %v8417 = vmul.f32 %v7781, %v8401
    %v8418 = vmul.f32 %v7782, %v8402
    %v8419 = vmul.f32 %v7783, %v8403
    %v8420 = vmul.f32 %v7784, %v8404
    %v8421 = vmul.f32 %v7785, %v8405
    %v8422 = vmul.f32 %v7786, %v8406
    %v8423 = vmul.f32 %v7787, %v8407
    %v8424 = vmul.f32 %v7788, %v8408
    %v8425 = vmul.f32 %v7789, %v8409
    %v8426 = vmul.f32 %v7790, %v8410
    %v8427 = vmul.f32 %v7791, %v8411
    %v8428 = vmul.f32 %v7792, %v8412
    %v8429 = vmul.f32 %v7793, %v8413
    %v8430 = vmul.f32 %v7794, %v8414
    %v8431 = vmul.f32 %v7795, %v8399
    %v8432 = vmul.f32 %v7796, %v8400
    %v8433 = vmul.f32 %v7797, %v8401
    %v8434 = vmul.f32 %v7798, %v8402
    %v8435 = vmul.f32 %v7799, %v8403
    %v8436 = vmul.f32 %v7800, %v8404
    %v8437 = vmul.f32 %v7801, %v8405
    %v8438 = vmul.f32 %v7802, %v8406
    %v8439 = vmul.f32 %v7803, %v8407
    %v8440 = vmul.f32 %v7804, %v8408
    %v8441 = vmul.f32 %v7805, %v8409
    %v8442 = vmul.f32 %v7806, %v8410
    %v8443 = vmul.f32 %v7807, %v8411
    %v8444 = vmul.f32 %v7808, %v8412
    %v8445 = vmul.f32 %v7809, %v8413
    %v8446 = vmul.f32 %v7810, %v8414
    %v8447 = vadd.f32 %v8415, %v8417
    %v8448 = vadd.f32 %v8447, %v8419
    %v8449 = vadd.f32 %v8448, %v8421
    %v8450 = vadd.f32 %v8449, %v8423
    %v8451 = vadd.f32 %v8450, %v8425
    %v8452 = vadd.f32 %v8451, %v8427
    %v8453 = vadd.f32 %v8452, %v8429
    %v8454 = vrot.slane %v8453, 4
    %v8455 = vadd.f32 %v8453, %v8454
    %v8456 = vrot.slane %v8455, 2
    %v8457 = vadd.f32 %v8455, %v8456
    %v8458 = vrot.slane %v8457, 1
    %v8459 = vadd.f32 %v8457, %v8458
    %v8460 = vadd.f32 %v8416, %v8418
    %v8461 = vadd.f32 %v8460, %v8420
    %v8462 = vadd.f32 %v8461, %v8422
    %v8463 = vadd.f32 %v8462, %v8424
    %v8464 = vadd.f32 %v8463, %v8426
    %v8465 = vadd.f32 %v8464, %v8428
    %v8466 = vadd.f32 %v8465, %v8430
    %v8467 = vrot.slane %v8466, 4
    %v8468 = vadd.f32 %v8466, %v8467
    %v8469 = vrot.slane %v8468, 2
    %v8470 = vadd.f32 %v8468, %v8469
    %v8471 = vrot.slane %v8470, 1
    %v8472 = vadd.f32 %v8470, %v8471
    %v8473 = vadd.f32 %v8431, %v8433
    %v8474 = vadd.f32 %v8473, %v8435
    %v8475 = vadd.f32 %v8474, %v8437
    %v8476 = vadd.f32 %v8475, %v8439
    %v8477 = vadd.f32 %v8476, %v8441
    %v8478 = vadd.f32 %v8477, %v8443
    %v8479 = vadd.f32 %v8478, %v8445
    %v8480 = vrot.slane %v8479, 4
    %v8481 = vadd.f32 %v8479, %v8480
    %v8482 = vrot.slane %v8481, 2
    %v8483 = vadd.f32 %v8481, %v8482
    %v8484 = vrot.slane %v8483, 1
    %v8485 = vadd.f32 %v8483, %v8484
    %v8486 = vadd.f32 %v8432, %v8434
    %v8487 = vadd.f32 %v8486, %v8436
    %v8488 = vadd.f32 %v8487, %v8438
    %v8489 = vadd.f32 %v8488, %v8440
    %v8490 = vadd.f32 %v8489, %v8442
    %v8491 = vadd.f32 %v8490, %v8444
    %v8492 = vadd.f32 %v8491, %v8446
    %v8493 = vrot.slane %v8492, 4
    %v8494 = vadd.f32 %v8492, %v8493
    %v8495 = vrot.slane %v8494, 2
    %v8496 = vadd.f32 %v8494, %v8495
    %v8497 = vrot.slane %v8496, 1
    %v8498 = vadd.f32 %v8496, %v8497
    %v8499 = vadd.f32 %v8459, %v8472
    %8500 = vadd.xlane.f32.xlu0 %v8499
    %v8501 = vpop.xlane.xlu0 %8500
    %v8502 = vadd.f32 %v8485, %v8498
    %8503 = vadd.xlane.f32.xlu0 %v8502
    %v8504 = vpop.xlane.xlu0 %8503
    %vm8505 = vcmask 7168
    %v8506 = vsel %vm8505, %v7926, %v8041
    %v8507 = vsel %vm8505, %v7929, %v8044
    %vm8508 = vcmask 15360
    %v8509 = vsel %vm8508, %v8506, %v8156
    %v8510 = vsel %vm8508, %v8507, %v8159
    %vm8511 = vcmask 23552
    %v8512 = vsel %vm8511, %v8509, %v8271
    %v8513 = vsel %vm8511, %v8510, %v8274
    %vm8514 = vcmask 31744
    %v8515 = vsel %vm8514, %v8512, %v8386
    %v8516 = vsel %vm8514, %v8513, %v8389
    %vm8517 = vcmask 39936
    %v8518 = vsel %vm8517, %v8515, %v8501
    %v8519 = vsel %vm8517, %v8516, %v8504
    %v8520 = vld [vmem:[%s5 + $0x3] sm:$0x1]
    %v8521 = vadd.f32 %v8518, %v8520
    %v8522 = vadd.f32 %v8519, %v8520
    %vm8523 = vcmask 40960
    %v8524 = vsel %vm8523, %v8521, 0.0
    %v8525 = vsel %vm8523, %v8522, 0.0
    %v8526 = vadd.f32 %v8524, %v8525
    %v8527 = vadd.f32 %v8526, 0.0
    %v8528 = vsel %vm8523, %v8527, 0.0
    %8529 = vadd.xlane.f32.xlu0 %v8528
    %v8530 = vpop.xlane.xlu0 %8529
    %v8531 = vrcp.pop 12.0
    %v8532 = vmul.f32 %v8530, %v8531
    %v8533 = vsub.f32 %v8521, %v8532
    %v8534 = vsub.f32 %v8522, %v8532
    %v8535 = vmul.f32 %v8533, %v8533
    %v8536 = vmul.f32 %v8534, %v8534
    %v8537 = vsel %vm8523, %v8535, 0.0
    %v8538 = vsel %vm8523, %v8536, 0.0
    %v8539 = vadd.f32 %v8537, %v8538
    %v8540 = vadd.f32 %v8539, 0.0
    %v8541 = vsel %vm8523, %v8540, 0.0
    %8542 = vadd.xlane.f32.xlu0 %v8541
    %v8543 = vpop.xlane.xlu0 %8542
    %v8544 = vmul.f32 %v8543, %v8531
    %v8545 = vadd.f32 %v8544, 1e-05
    %v8546 = vrsqrt.pop %v8545
    %v8547 = vmul.f32 %v8533, %v8546
    %v8548 = vmul.f32 %v8534, %v8546
    %v8549 = vmul.f32 %v8547, %v8547
    %v8550 = vmul.f32 %v8548, %v8548
    %v8551 = vsel %vm8523, %v8549, 0.0
    %8552 = vadd.xlane.f32.xlu0 %v8551
    %v8553 = vpop.xlane.xlu0 %8552
    %v8554 = vsel %vm8523, %v8550, 0.0
    %8555 = vadd.xlane.f32.xlu0 %v8554
    %v8556 = vpop.xlane.xlu0 %8555
    %v8557 = vrsqrt.pop %v8553
    %v8558 = vmul.f32 %v8553, %v8557
    %vm8559 = vcmp.eq.f32.partialorder %v8553, inf
    %v8560 = vsel %vm8559, %v8553, %v8558
    %vm8561 = vcmp.eq.f32.partialorder %v8553, 0.0
    %v8562 = vand.u32 %v8553, 2147483648
    %v8563 = vsel %vm8561, %v8562, %v8560
    %v8564 = vrsqrt.pop %v8556
    %v8565 = vmul.f32 %v8556, %v8564
    %vm8566 = vcmp.eq.f32.partialorder %v8556, inf
    %v8567 = vsel %vm8566, %v8556, %v8565
    %vm8568 = vcmp.eq.f32.partialorder %v8556, 0.0
    %v8569 = vand.u32 %v8556, 2147483648
    %v8570 = vsel %vm8568, %v8569, %v8567
    %v8571 = vmax.f32 %v8563, 1e-12
    %v8572 = vmax.f32 %v8570, 1e-12
    %v8573 = vrcp.pop %v8571
    %v8574 = vmul.f32 %v8547, %v8573
    %v8575 = vrcp.pop %v8572
    %v8576 = vmul.f32 %v8548, %v8575
    %8577 = vst.msk [vmem:[#allocation7] sm:$0x1] %vm8523, %v8574
    %8578 = vst.msk [vmem:[#allocation7 + $0x1] sm:$0x1] %vm8523, %v8576
    // Predicated region
    $region100: #{net_sc_forward.1} parent=1 // pred_check
      _
    $region101: #{net_sc_forward.1} parent=1 // pred_check_branch
      %8580 = sbr.rel (0) target = $region103
    $region102: #{net_sc_forward.1} parent=1 // pred_region
      %s8582 = ssub.s32 32, 32
      %8583 = vsyncadd [#allocation8], %s8582
      %s8584 = sshll.u32 [#allocation7], 4
      %s8585 = int_to_ptr.vmem [resolvable:$true] %s8584
      %8590 = dma.vmem_to_hbm [thread:$0]  %s8585, 32, %s8, [#allocation8], 16, 16, 1
    $region103: #{net_sc_forward.1} parent=1 // pred_fallthru
      _
    // Predicated region
    $region104: #{net_sc_forward.1} parent=1 // pred_check
      _
    $region105: #{net_sc_forward.1} parent=1 // pred_check_branch
      %8592 = sbr.rel (0) target = $region107
    $region106: #{net_sc_forward.1} parent=1 // pred_region
      %8593 = dma.done [#allocation8], 32
    $region107: #{net_sc_forward.1} parent=1 // pred_fallthru
      _
    %8594 = vsyncpa [#allocation8], 1
  %8595 = vsyncmov [#allocation6]
  %s8596 = vpop.sfrf %8595
  %p8597 = scmp.eq.s32.totalorder %s8596, 0
  %p8598 = pneg %p8597
  %8600 = shalt.err (%p8598)
  %s8601 = scalar_lea.sflag [#allocation6], 1
  %8602 = vsyncmov %s8601
  %s8603 = vpop.sfrf %8602
  %p8604 = scmp.eq.s32.totalorder %s8603, 0
  %p8605 = pneg %p8604
  %8607 = shalt.err (%p8605)

</llo_original>
